<compile_context>
chip_gen: v7x
topology: tpu7x:2x2x1
jax: 0.10.0
libtpu: 0.0.40
codegen_flags: <defaults>
</compile_context>

<pallas_src>
import functools

import jax
import jax.numpy as jnp
from jax.experimental import pallas as pl
from jax.experimental.pallas import tpu as pltpu


# ----------------------------------------------------------------------------- #
# Per-generation sizing
# ----------------------------------------------------------------------------- #
def _vmem_capacity_bytes():
    try:
        return int(pltpu.get_tpu_info().vmem_capacity_bytes)
    except Exception:
        return 64 * 1024 * 1024  # conservative (v7x-sized) fallback


_VMEM_PHYS = _vmem_capacity_bytes()
_SMALL_VMEM = _VMEM_PHYS <= 96 * 1024 * 1024            # v7x (64 MiB) vs v5e/v6e (128 MiB)
_VMEM_LIMIT = min(_VMEM_PHYS // 2, 64 * 1024 * 1024)    # 32 MiB on v7x, 64 MiB on v5e/v6e
_EDGE_TILE_CAP = 128 if _SMALL_VMEM else 256            # edge-conv point tile
_ROW_TILE_CAP = 256 if _SMALL_VMEM else 512             # kNN query tile / head point tile


def _pick_tile(n, cap):
    """Largest tile <= cap that divides n and is a multiple of 8 (or n itself)."""
    if n <= cap:
        return n
    t = (cap // 8) * 8
    while t >= 8:
        if n % t == 0:
            return t
        t -= 8
    # TODO(synk): ragged N with no multiple-of-8 divisor falls back to one big block.
    return n


# ----------------------------------------------------------------------------- #
# Pallas kernels
# ----------------------------------------------------------------------------- #
def knn_kernel(xq_ref, xt_ref, sqa_ref, idx_ref, *, k):
    # xq_ref:  (1, TM, C) bf16  query rows of this tile
    # xt_ref:  (1, C, N)  bf16  all points, pre-transposed (resident across query tiles)
    # sqa_ref: (1, 1, N)  f32   precomputed ||x_j||^2 for all points (lane-dense)
    # idx_ref: (1, TM, K) int32 indices of the K nearest neighbours (self included)
    xq = xq_ref[0]                                                   # (TM, C)
    xt = xt_ref[0]                                                   # (C, N)
    tm = xq.shape[0]
    g = jnp.dot(xq, xt, preferred_element_type=jnp.float32)         # (TM, N) on the MXU
    # Ranking score: -||xi - xj||^2 + ||xi||^2 = 2*xi.xj - ||xj||^2   (the per-row
    # constant ||xi||^2 is dropped; it does not change the top-k ordering).
    d = 2.0 * g - sqa_ref[0]                                         # (TM, N) f32
    n = d.shape[1]

    col = jax.lax.broadcasted_iota(jnp.int32, d.shape, 1).astype(jnp.float32)
    out_cols = jax.lax.broadcasted_iota(jnp.int32, (tm, k), 1)
    acc = jnp.zeros((tm, k), jnp.float32)
    work = d
    for j in range(k):                       # static, small K: unrolled top-k selection
        m = jnp.max(work, axis=-1, keepdims=True)                    # (TM, 1)
        hit = work == m
        # smallest column index among ties (matches lax.top_k tie-breaking)
        sel = jnp.min(jnp.where(hit, col, float(n)), axis=-1, keepdims=True)  # (TM, 1)
        acc = jnp.where(out_cols == j, sel, acc)                     # write column j
        work = jnp.where(col == sel, -jnp.inf, work)                 # mask the winner
    idx_ref[0] = acc.astype(jnp.int32)                               # (TM, K)


def edge_conv_kernel(xall_ref, xc_ref, idx_ref, wd_ref, wcd_ref,
                     scale_ref, shift_ref, out_ref, *, k):
    # xall_ref: (1, N, Cin)  bf16  all points of this batch (resident across N tiles)
    # xc_ref:   (1, TN, Cin) bf16  centre points of this tile
    # idx_ref:  (1, TN, K)   int32 neighbour indices into [0, N)
    # wd_ref:   (Cin, Cout)  bf16  W_d         (neighbour - centre part)
    # wcd_ref:  (Cin, Cout)  bf16  W_c - W_d   (centre part, pre-combined)
    # scale/shift: (1, Cout) f32   fused eval-mode BN (scale > 0)
    # out_ref:  (1, TN, Cout) bf16
    x_all = xall_ref[0]                                              # (N, Cin)
    x_c = xc_ref[0]                                                  # (TN, Cin)
    idx = idx_ref[0]                                                 # (TN, K)
    tn = x_c.shape[0]
    n = x_all.shape[0]

    # Column-index iota shared by every neighbour slice (hoisted out of the K loop).
    cols = jax.lax.broadcasted_iota(jnp.int32, (tn, n), 1)           # (TN, N)

    # Gather + project + max over K, one neighbour at a time: live intermediates are
    # bounded by one (TN, N) one-hot plus a (TN, Cout) accumulator (never (TN, K, N)).
    m = None
    for kk in range(k):
        onehot = (cols == idx[:, kk:kk + 1]).astype(jnp.bfloat16)    # (TN, N)
        nb = jnp.dot(onehot, x_all, preferred_element_type=jnp.float32)   # exact gather
        a = jnp.dot(nb.astype(jnp.bfloat16), wd_ref[...],
                    preferred_element_type=jnp.float32)              # (TN, Cout)
        m = a if m is None else jnp.maximum(m, a)

    c = jnp.dot(x_c, wcd_ref[...], preferred_element_type=jnp.float32)    # (TN, Cout)

    # BN + LeakyReLU applied AFTER the K-max (valid because the fused BN scale is > 0).
    y = (m + c) * scale_ref[...] + shift_ref[...]
    y = jnp.maximum(y, 0.2 * y)                                      # LeakyReLU(0.2)
    # TODO(synk): 64-channel outputs (<128 lanes) use masked stores; lane-packing two
    # points per row would need matching layout changes in downstream kernels.
    out_ref[0] = y.astype(out_ref.dtype)


def conv5_head_kernel(x1_ref, x2_ref, x3_ref, x4_ref,
                      w5a_ref, w5b_ref, w5c_ref, w5d_ref, s5_ref, h5_ref,
                      w1a_ref, w1b_ref, s6_ref, b6_ref,
                      w2_ref, b2_ref, s7_ref, b7_ref, w3_ref, b3_ref,
                      out_ref, m_sc, s_sc, *, n_points):
    # Streams N in tiles, keeps running max/sum of conv5 activations in VMEM scratch,
    # and runs the whole MLP head in the finalize step (no HBM round trips).
    n = pl.program_id(1)

    @pl.when(n == 0)
    def _init():
        m_sc[...] = jnp.full(m_sc.shape, -jnp.inf, m_sc.dtype)
        s_sc[...] = jnp.zeros(s_sc.shape, s_sc.dtype)

    # conv5 on this tile: (TN, 512) @ (512, emb) done as 4 partial matmuls (no concat).
    y = (jnp.dot(x1_ref[0], w5a_ref[...], preferred_element_type=jnp.float32)
         + jnp.dot(x2_ref[0], w5b_ref[...], preferred_element_type=jnp.float32)
         + jnp.dot(x3_ref[0], w5c_ref[...], preferred_element_type=jnp.float32)
         + jnp.dot(x4_ref[0], w5d_ref[...], preferred_element_type=jnp.float32))
    y = y * s5_ref[...] + h5_ref[...]
    y = jnp.maximum(y, 0.2 * y)                                      # (TN, emb)

    m_sc[...] = jnp.maximum(m_sc[...], jnp.max(y, axis=0, keepdims=True))
    s_sc[...] = s_sc[...] + jnp.sum(y, axis=0, keepdims=True)

    @pl.when(n == pl.num_programs(1) - 1)
    def _finalize():
        gmax = m_sc[...]                                             # adaptive_max_pool1d
        gmean = s_sc[...] * (1.0 / n_points)                         # adaptive_avg_pool1d
        # linear1 (bias=False) on concat([gmax, gmean]) as two partial matmuls.
        h = (jnp.dot(gmax.astype(jnp.bfloat16), w1a_ref[...],
                     preferred_element_type=jnp.float32)
             + jnp.dot(gmean.astype(jnp.bfloat16), w1b_ref[...],
                       preferred_element_type=jnp.float32))
        h = h * s6_ref[...] + b6_ref[...]                            # bn6
        h = jnp.maximum(h, 0.2 * h)
        # TODO(synk): dp1/dp2 dropout are identity in eval mode; not applied.
        h = jnp.dot(h.astype(jnp.bfloat16), w2_ref[...],
                    preferred_element_type=jnp.float32) + b2_ref[...]
        h = h * s7_ref[...] + b7_ref[...]                            # bn7
        h = jnp.maximum(h, 0.2 * h)
        o = jnp.dot(h.astype(jnp.bfloat16), w3_ref[...],
                    preferred_element_type=jnp.float32) + b3_ref[...]
        out_ref[0] = o.astype(out_ref.dtype)


# ----------------------------------------------------------------------------- #
# Pallas wrappers
# ----------------------------------------------------------------------------- #
def knn_indices(x, k):
    # x: (B, N, C) bf16 -> (B, N, k) int32 nearest-neighbour indices (self included).
    B, N, C = x.shape
    tm = _pick_tile(N, _ROW_TILE_CAP)
    xt = jnp.transpose(x, (0, 2, 1))                                       # (B, C, N)
    sqa = jnp.sum(jnp.square(x.astype(jnp.float32)), axis=-1)[:, None, :]  # (B, 1, N)
    return pl.pallas_call(
        functools.partial(knn_kernel, k=k),
        grid=(B, N // tm),
        in_specs=[
            pl.BlockSpec((1, tm, C), lambda b, i: (b, i, 0)),      # query rows
            pl.BlockSpec((1, C, N), lambda b, i: (b, 0, 0)),       # all points (resident)
            pl.BlockSpec((1, 1, N), lambda b, i: (b, 0, 0)),       # ||x_j||^2 (resident)
        ],
        out_specs=pl.BlockSpec((1, tm, k), lambda b, i: (b, i, 0)),
        out_shape=jax.ShapeDtypeStruct((B, N, k), jnp.int32),
        compiler_params=pltpu.CompilerParams(
            dimension_semantics=("parallel", "parallel"),
            vmem_limit_bytes=_VMEM_LIMIT),
    )(x, xt, sqa)


def edge_conv(x, idx, wd, wcd, scale, shift):
    # x: (B, N, Cin) bf16, idx: (B, N, K) int32 -> (B, N, Cout) bf16
    B, N, Cin = x.shape
    K = idx.shape[2]
    Cout = wd.shape[1]
    tn = _pick_tile(N, _EDGE_TILE_CAP)
    return pl.pallas_call(
        functools.partial(edge_conv_kernel, k=K),
        grid=(B, N // tn),
        in_specs=[
            pl.BlockSpec((1, N, Cin), lambda b, j: (b, 0, 0)),     # all points (resident)
            pl.BlockSpec((1, tn, Cin), lambda b, j: (b, j, 0)),    # centre tile
            pl.BlockSpec((1, tn, K), lambda b, j: (b, j, 0)),      # neighbour ids
            pl.BlockSpec((Cin, Cout), lambda b, j: (0, 0)),
            pl.BlockSpec((Cin, Cout), lambda b, j: (0, 0)),
            pl.BlockSpec((1, Cout), lambda b, j: (0, 0)),
            pl.BlockSpec((1, Cout), lambda b, j: (0, 0)),
        ],
        out_specs=pl.BlockSpec((1, tn, Cout), lambda b, j: (b, j, 0)),
        out_shape=jax.ShapeDtypeStruct((B, N, Cout), jnp.bfloat16),
        compiler_params=pltpu.CompilerParams(
            dimension_semantics=("parallel", "parallel"),
            vmem_limit_bytes=_VMEM_LIMIT),
    )(x, x, idx, wd, wcd, scale, shift)


def conv5_head(x1, x2, x3, x4, p):
    # x1..x4: (B, N, 64/64/128/256) bf16 -> logits (B, out_channels) f32
    B, N, _ = x1.shape
    emb = p["w5a"].shape[1]
    out_dim = p["w3"].shape[1]
    tn = _pick_tile(N, _ROW_TILE_CAP)

    def xi_spec(c):
        return pl.BlockSpec((1, tn, c), lambda b, n_: (b, n_, 0))

    def w_spec(r, c):
        return pl.BlockSpec((r, c), lambda b, n_: (0, 0))

    def v_spec(c):
        return pl.BlockSpec((1, c), lambda b, n_: (0, 0))

    out = pl.pallas_call(
        functools.partial(conv5_head_kernel, n_points=N),
        grid=(B, N // tn),
        in_specs=[
            xi_spec(64), xi_spec(64), xi_spec(128), xi_spec(256),
            w_spec(64, emb), w_spec(64, emb), w_spec(128, emb), w_spec(256, emb),
            v_spec(emb), v_spec(emb),
            w_spec(emb, 512), w_spec(emb, 512),
            v_spec(512), v_spec(512),
            w_spec(512, 256), v_spec(256),
            v_spec(256), v_spec(256),
            w_spec(256, out_dim), v_spec(out_dim),
        ],
        out_specs=pl.BlockSpec((1, 1, out_dim), lambda b, n_: (b, 0, 0)),
        out_shape=jax.ShapeDtypeStruct((B, 1, out_dim), jnp.float32),
        scratch_shapes=[pltpu.VMEM((1, emb), jnp.float32),   # running max
                        pltpu.VMEM((1, emb), jnp.float32)],  # running sum
        compiler_params=pltpu.CompilerParams(
            dimension_semantics=("parallel", "arbitrary"),
            vmem_limit_bytes=_VMEM_LIMIT),
    )(x1, x2, x3, x4, p["w5a"], p["w5b"], p["w5c"], p["w5d"], p["s5"], p["h5"],
      p["w1a"], p["w1b"], p["s6"], p["b6"], p["w2"], p["b2"], p["s7"], p["b7"],
      p["w3"], p["b3"])
    return out[:, 0, :]


# ----------------------------------------------------------------------------- #
# DGCNN forward (thin JAX glue around the Pallas kernels)
# ----------------------------------------------------------------------------- #
def dgcnn_forward(x, params, k):
    # x: (B, 3, N) PyTorch layout -> channels-last, pad 3 -> 8 channels (zeros; the
    # extra zero channels change neither pairwise distances nor the padded matmuls).
    x_t = jnp.transpose(x, (0, 2, 1)).astype(jnp.float32)
    x0 = jnp.pad(x_t, ((0, 0), (0, 0), (0, 5))).astype(jnp.bfloat16)       # (B, N, 8)

    def edge_layer(feat, wd, wcd, s, h):
        # TODO(synk): dim9=True path (knn on channels 6:) not implemented (dim9=False here).
        # TODO(synk): first-layer kNN uses bf16 coords; f32 would match PyTorch ties exactly.
        idx = knn_indices(feat, k)                                   # (B, N, k) int32
        return edge_conv(feat, idx, wd, wcd, s, h)

    x1 = edge_layer(x0, params["wd1"], params["wcd1"], params["s1"], params["h1"])  # 64
    x2 = edge_layer(x1, params["wd2"], params["wcd2"], params["s2"], params["h2"])  # 64
    x3 = edge_layer(x2, params["wd3"], params["wcd3"], params["s3"], params["h3"])  # 128
    x4 = edge_layer(x3, params["wd4"], params["wcd4"], params["s4"], params["h4"])  # 256

    return conv5_head(x1, x2, x3, x4, params)                                       # (B, out)


# ----------------------------------------------------------------------------- #
# Deterministic parameter construction
# ----------------------------------------------------------------------------- #
def fuse_bn(key, c, eps=1e-5):
    k1, k2, k3, k4 = jax.random.split(key, 4)
    # gamma > 0 so the fused BN scale is strictly positive, which makes BN + LeakyReLU
    # commute with the max over K (required by edge_conv_kernel's K-max hoist).
    gamma = 1.0 + 0.1 * jax.random.uniform(k1, (c,), jnp.float32)
    beta = 0.1 * jax.random.normal(k2, (c,), jnp.float32)
    mean = 0.1 * jax.random.normal(k3, (c,), jnp.float32)
    var = 1.0 + 0.1 * jax.random.uniform(k4, (c,), jnp.float32)
    scale = gamma / jnp.sqrt(var + eps)
    shift = beta - mean * scale
    assert float(scale.min()) > 0.0
    return scale.reshape(1, c), shift.reshape(1, c)


def split_edge_w(key, cin, cout, pad_to=None):
    # PyTorch edge-conv weight is (2*cin, cout) acting on concat(nb - c, c).
    w = 0.1 * jax.random.normal(key, (2 * cin, cout), jnp.float32)
    wd = w[:cin]                 # neighbour - centre part
    wcd = w[cin:] - wd           # centre part, pre-combined: W_c - W_d
    if pad_to is not None and pad_to > cin:
        pad = ((0, pad_to - cin), (0, 0))
        wd = jnp.pad(wd, pad)
        wcd = jnp.pad(wcd, pad)
    return wd.astype(jnp.bfloat16), wcd.astype(jnp.bfloat16)


def make_params(key, emb_dims, output_channels):
    ks = jax.random.split(key, 24)
    lin = lambda kk, i, o: 0.1 * jax.random.normal(kk, (i, o), jnp.float32)
    p = {}
    p["wd1"], p["wcd1"] = split_edge_w(ks[0], 3, 64, pad_to=8)
    p["s1"], p["h1"] = fuse_bn(ks[1], 64)
    p["wd2"], p["wcd2"] = split_edge_w(ks[2], 64, 64)
    p["s2"], p["h2"] = fuse_bn(ks[3], 64)
    p["wd3"], p["wcd3"] = split_edge_w(ks[4], 64, 128)
    p["s3"], p["h3"] = fuse_bn(ks[5], 128)
    p["wd4"], p["wcd4"] = split_edge_w(ks[6], 128, 256)
    p["s4"], p["h4"] = fuse_bn(ks[7], 256)
    # conv5: (512, emb) split along the x1|x2|x3|x4 concat boundaries (64/64/128/256).
    w5 = lin(ks[8], 512, emb_dims)
    p["w5a"] = w5[:64].astype(jnp.bfloat16)
    p["w5b"] = w5[64:128].astype(jnp.bfloat16)
    p["w5c"] = w5[128:256].astype(jnp.bfloat16)
    p["w5d"] = w5[256:].astype(jnp.bfloat16)
    p["s5"], p["h5"] = fuse_bn(ks[9], emb_dims)
    # MLP head: weights in bf16 (f32 accumulation), scales/biases in f32.
    w1 = lin(ks[10], emb_dims * 2, 512)                     # linear1 (bias=False)
    p["w1a"] = w1[:emb_dims].astype(jnp.bfloat16)
    p["w1b"] = w1[emb_dims:].astype(jnp.bfloat16)
    p["s6"], p["b6"] = fuse_bn(ks[11], 512)                 # bn6
    p["w2"] = lin(ks[12], 512, 256).astype(jnp.bfloat16)    # linear2
    p["b2"] = 0.1 * jax.random.normal(ks[13], (1, 256), jnp.float32)
    p["s7"], p["b7"] = fuse_bn(ks[14], 256)                 # bn7
    p["w3"] = lin(ks[15], 256, output_channels).astype(jnp.bfloat16)   # linear3
    p["b3"] = 0.1 * jax.random.normal(ks[16], (1, output_channels), jnp.float32)
    return p


# ----------------------------------------------------------------------------- #
if __name__ == "__main__":
    settings = {"k": 4, "dim9": False, "emb_dims": 64, "dropout": 0.5}
    output_channels = 8
    B, C, N = 2, 3, 16

    key = jax.random.PRNGKey(0)
    k_x, k_p = jax.random.split(key)
    x = jax.random.normal(k_x, (B, C, N), jnp.float32)      # PyTorch layout (B, 3, N)
    params = make_params(k_p, settings["emb_dims"], output_channels)

    fwd = jax.jit(functools.partial(dgcnn_forward, k=settings["k"]))
    out = fwd(x, params)
    jax.block_until_ready(out)
    assert out.shape == (B, output_channels)
    assert bool(jnp.all(jnp.isfinite(out)))
    print("KERNEL_OK")
</pallas_src>

<mosaic_0001>
module attributes {stable_mosaic.version = 11 : i64} {
  func.func @knn_kernel(%arg0: i32, %arg1: i32, %arg2: memref<1x16x8xbf16, #tpu.memory_space<vmem>>, %arg3: memref<1x8x16xbf16, #tpu.memory_space<vmem>>, %arg4: memref<1x1x16xf32, #tpu.memory_space<vmem>>, %arg5: memref<1x16x4xi32, #tpu.memory_space<vmem>>) attributes {dimension_semantics = [#tpu.dimension_semantics<parallel>, #tpu.dimension_semantics<parallel>], iteration_bounds = array<i64: 2, 1>, scalar_prefetch = 0 : i64, scratch_operands = 0 : i64, tpu.core_type = #tpu.core_type<tc>, window_params = [{transform_indices = @transform_0, window_bounds = array<i64: 1, 16, 8>}, {transform_indices = @transform_1, window_bounds = array<i64: 1, 8, 16>}, {transform_indices = @transform_2, window_bounds = array<i64: 1, 1, 16>}, {transform_indices = @transform_3, window_bounds = array<i64: 1, 16, 4>}]} {
    %c0 = arith.constant 0 : index
    %c0_0 = arith.constant 0 : index
    %c0_1 = arith.constant 0 : index
    %0 = vector.load %arg2[%c0, %c0_0, %c0_1] : memref<1x16x8xbf16, #tpu.memory_space<vmem>>, vector<1x16x8xbf16>
    %1 = vector.shape_cast %0 : vector<1x16x8xbf16> to vector<16x8xbf16>
    %c0_2 = arith.constant 0 : index
    %c0_3 = arith.constant 0 : index
    %c0_4 = arith.constant 0 : index
    %2 = vector.load %arg3[%c0_2, %c0_3, %c0_4] : memref<1x8x16xbf16, #tpu.memory_space<vmem>>, vector<1x8x16xbf16>
    %3 = vector.shape_cast %2 : vector<1x8x16xbf16> to vector<8x16xbf16>
    %cst = arith.constant dense<0.000000e+00> : vector<16x16xf32>
    %4 = tpu.matmul %1, %3, %cst {dimension_numbers = #tpu.dot_dimension_numbers<[1], [0], [0], [1], [0, 0, 1, 1], [], []>} : vector<16x8xbf16>, vector<8x16xbf16>, vector<16x16xf32> -> vector<16x16xf32>
    %cst_5 = arith.constant 2.000000e+00 : f32
    %5 = vector.broadcast %cst_5 : f32 to vector<16x16xf32>
    %6 = arith.mulf %5, %4 : vector<16x16xf32>
    %c0_6 = arith.constant 0 : index
    %c0_7 = arith.constant 0 : index
    %c0_8 = arith.constant 0 : index
    %7 = vector.load %arg4[%c0_6, %c0_7, %c0_8] : memref<1x1x16xf32, #tpu.memory_space<vmem>>, vector<1x1x16xf32>
    %8 = vector.shape_cast %7 : vector<1x1x16xf32> to vector<1x16xf32>
    %9 = vector.broadcast %8 : vector<1x16xf32> to vector<16x16xf32>
    %10 = arith.subf %6, %9 : vector<16x16xf32>
    %11 = tpu.iota {dimensions = array<i32: 1>} : vector<16x16xi32>
    %12 = arith.sitofp %11 : vector<16x16xi32> to vector<16x16xf32>
    %13 = tpu.iota {dimensions = array<i32: 1>} : vector<16x4xi32>
    %cst_9 = arith.constant 0.000000e+00 : f32
    %14 = vector.broadcast %cst_9 : f32 to vector<16x4xf32>
    %cst_10 = arith.constant dense<0xFF800000> : vector<16xf32>
    %15 = vector.multi_reduction <maximumf>, %10, %cst_10 [1] : vector<16x16xf32> to vector<16xf32>
    %16 = vector.shape_cast %15 : vector<16xf32> to vector<16x1xf32>
    %17 = vector.broadcast %16 : vector<16x1xf32> to vector<16x16xf32>
    %18 = arith.cmpf oeq, %10, %17 : vector<16x16xf32>
    %cst_11 = arith.constant 1.600000e+01 : f32
    %19 = vector.broadcast %cst_11 : f32 to vector<16x16xf32>
    %20 = arith.select %18, %12, %19 : vector<16x16xi1>, vector<16x16xf32>
    %cst_12 = arith.constant dense<0x7F800000> : vector<16xf32>
    %21 = vector.multi_reduction <minimumf>, %20, %cst_12 [1] : vector<16x16xf32> to vector<16xf32>
    %22 = vector.shape_cast %21 : vector<16xf32> to vector<16x1xf32>
    %c0_i32 = arith.constant 0 : i32
    %23 = vector.broadcast %c0_i32 : i32 to vector<16x4xi32>
    %24 = arith.cmpi eq, %13, %23 : vector<16x4xi32>
    %25 = vector.shape_cast %22 : vector<16x1xf32> to vector<16x1xf32>
    %26 = vector.broadcast %25 : vector<16x1xf32> to vector<16x4xf32>
    %27 = arith.select %24, %26, %14 : vector<16x4xi1>, vector<16x4xf32>
    %28 = vector.broadcast %22 : vector<16x1xf32> to vector<16x16xf32>
    %29 = arith.cmpf oeq, %12, %28 : vector<16x16xf32>
    %cst_13 = arith.constant 0xFF800000 : f32
    %30 = vector.broadcast %cst_13 : f32 to vector<16x16xf32>
    %31 = arith.select %29, %30, %10 : vector<16x16xi1>, vector<16x16xf32>
    %cst_14 = arith.constant dense<0xFF800000> : vector<16xf32>
    %32 = vector.multi_reduction <maximumf>, %31, %cst_14 [1] : vector<16x16xf32> to vector<16xf32>
    %33 = vector.shape_cast %32 : vector<16xf32> to vector<16x1xf32>
    %34 = vector.broadcast %33 : vector<16x1xf32> to vector<16x16xf32>
    %35 = arith.cmpf oeq, %31, %34 : vector<16x16xf32>
    %cst_15 = arith.constant 1.600000e+01 : f32
    %36 = vector.broadcast %cst_15 : f32 to vector<16x16xf32>
    %37 = arith.select %35, %12, %36 : vector<16x16xi1>, vector<16x16xf32>
    %cst_16 = arith.constant dense<0x7F800000> : vector<16xf32>
    %38 = vector.multi_reduction <minimumf>, %37, %cst_16 [1] : vector<16x16xf32> to vector<16xf32>
    %39 = vector.shape_cast %38 : vector<16xf32> to vector<16x1xf32>
    %c1_i32 = arith.constant 1 : i32
    %40 = vector.broadcast %c1_i32 : i32 to vector<16x4xi32>
    %41 = arith.cmpi eq, %13, %40 : vector<16x4xi32>
    %42 = vector.shape_cast %39 : vector<16x1xf32> to vector<16x1xf32>
    %43 = vector.broadcast %42 : vector<16x1xf32> to vector<16x4xf32>
    %44 = arith.select %41, %43, %27 : vector<16x4xi1>, vector<16x4xf32>
    %45 = vector.broadcast %39 : vector<16x1xf32> to vector<16x16xf32>
    %46 = arith.cmpf oeq, %12, %45 : vector<16x16xf32>
    %cst_17 = arith.constant 0xFF800000 : f32
    %47 = vector.broadcast %cst_17 : f32 to vector<16x16xf32>
    %48 = arith.select %46, %47, %31 : vector<16x16xi1>, vector<16x16xf32>
    %cst_18 = arith.constant dense<0xFF800000> : vector<16xf32>
    %49 = vector.multi_reduction <maximumf>, %48, %cst_18 [1] : vector<16x16xf32> to vector<16xf32>
    %50 = vector.shape_cast %49 : vector<16xf32> to vector<16x1xf32>
    %51 = vector.broadcast %50 : vector<16x1xf32> to vector<16x16xf32>
    %52 = arith.cmpf oeq, %48, %51 : vector<16x16xf32>
    %cst_19 = arith.constant 1.600000e+01 : f32
    %53 = vector.broadcast %cst_19 : f32 to vector<16x16xf32>
    %54 = arith.select %52, %12, %53 : vector<16x16xi1>, vector<16x16xf32>
    %cst_20 = arith.constant dense<0x7F800000> : vector<16xf32>
    %55 = vector.multi_reduction <minimumf>, %54, %cst_20 [1] : vector<16x16xf32> to vector<16xf32>
    %56 = vector.shape_cast %55 : vector<16xf32> to vector<16x1xf32>
    %c2_i32 = arith.constant 2 : i32
    %57 = vector.broadcast %c2_i32 : i32 to vector<16x4xi32>
    %58 = arith.cmpi eq, %13, %57 : vector<16x4xi32>
    %59 = vector.shape_cast %56 : vector<16x1xf32> to vector<16x1xf32>
    %60 = vector.broadcast %59 : vector<16x1xf32> to vector<16x4xf32>
    %61 = arith.select %58, %60, %44 : vector<16x4xi1>, vector<16x4xf32>
    %62 = vector.broadcast %56 : vector<16x1xf32> to vector<16x16xf32>
    %63 = arith.cmpf oeq, %12, %62 : vector<16x16xf32>
    %cst_21 = arith.constant 0xFF800000 : f32
    %64 = vector.broadcast %cst_21 : f32 to vector<16x16xf32>
    %65 = arith.select %63, %64, %48 : vector<16x16xi1>, vector<16x16xf32>
    %cst_22 = arith.constant dense<0xFF800000> : vector<16xf32>
    %66 = vector.multi_reduction <maximumf>, %65, %cst_22 [1] : vector<16x16xf32> to vector<16xf32>
    %67 = vector.shape_cast %66 : vector<16xf32> to vector<16x1xf32>
    %68 = vector.broadcast %67 : vector<16x1xf32> to vector<16x16xf32>
    %69 = arith.cmpf oeq, %65, %68 : vector<16x16xf32>
    %cst_23 = arith.constant 1.600000e+01 : f32
    %70 = vector.broadcast %cst_23 : f32 to vector<16x16xf32>
    %71 = arith.select %69, %12, %70 : vector<16x16xi1>, vector<16x16xf32>
    %cst_24 = arith.constant dense<0x7F800000> : vector<16xf32>
    %72 = vector.multi_reduction <minimumf>, %71, %cst_24 [1] : vector<16x16xf32> to vector<16xf32>
    %73 = vector.shape_cast %72 : vector<16xf32> to vector<16x1xf32>
    %c3_i32 = arith.constant 3 : i32
    %74 = vector.broadcast %c3_i32 : i32 to vector<16x4xi32>
    %75 = arith.cmpi eq, %13, %74 : vector<16x4xi32>
    %76 = vector.shape_cast %73 : vector<16x1xf32> to vector<16x1xf32>
    %77 = vector.broadcast %76 : vector<16x1xf32> to vector<16x4xf32>
    %78 = arith.select %75, %77, %61 : vector<16x4xi1>, vector<16x4xf32>
    %79 = arith.fptosi %78 : vector<16x4xf32> to vector<16x4xi32>
    %c0_25 = arith.constant 0 : index
    %c0_26 = arith.constant 0 : index
    %c0_27 = arith.constant 0 : index
    %80 = vector.load %arg5[%c0_25, %c0_26, %c0_27] : memref<1x16x4xi32, #tpu.memory_space<vmem>>, vector<1x16x4xi32>
    %81 = vector.shape_cast %80 : vector<1x16x4xi32> to vector<16x4xi32>
    %82 = vector.shape_cast %79 : vector<16x4xi32> to vector<1x16x4xi32>
    tpu.vector_store %arg5[%c0_25, %c0_26, %c0_27], %82 {strides = array<i32>} : memref<1x16x4xi32, #tpu.memory_space<vmem>>, vector<1x16x4xi32>,
    return
  }
  func.func @transform_0(%arg0: i32, %arg1: i32) -> (i32, i32, i32) {
    %c0_i32 = arith.constant 0 : i32
    %c0_i32_0 = arith.constant 0 : i32
    return %arg0, %arg1, %c0_i32 : i32, i32, i32
  }
  func.func @transform_1(%arg0: i32, %arg1: i32) -> (i32, i32, i32) {
    %c0_i32 = arith.constant 0 : i32
    %c0_i32_0 = arith.constant 0 : i32
    %c0_i32_1 = arith.constant 0 : i32
    return %arg0, %c0_i32, %c0_i32_0 : i32, i32, i32
  }
  func.func @transform_2(%arg0: i32, %arg1: i32) -> (i32, i32, i32) {
    %c0_i32 = arith.constant 0 : i32
    %c0_i32_0 = arith.constant 0 : i32
    %c0_i32_1 = arith.constant 0 : i32
    return %arg0, %c0_i32, %c0_i32_0 : i32, i32, i32
  }
  func.func @transform_3(%arg0: i32, %arg1: i32) -> (i32, i32, i32) {
    %c0_i32 = arith.constant 0 : i32
    %c0_i32_0 = arith.constant 0 : i32
    return %arg0, %arg1, %c0_i32 : i32, i32, i32
  }
}

module attributes {stable_mosaic.version = 11 : i64} {
  func.func @edge_conv_kernel(%arg0: i32, %arg1: i32, %arg2: memref<1x16x8xbf16, #tpu.memory_space<vmem>>, %arg3: memref<1x16x8xbf16, #tpu.memory_space<vmem>>, %arg4: memref<1x16x4xi32, #tpu.memory_space<vmem>>, %arg5: memref<8x64xbf16, #tpu.memory_space<vmem>>, %arg6: memref<8x64xbf16, #tpu.memory_space<vmem>>, %arg7: memref<1x64xf32, #tpu.memory_space<vmem>>, %arg8: memref<1x64xf32, #tpu.memory_space<vmem>>, %arg9: memref<1x16x64xbf16, #tpu.memory_space<vmem>>) attributes {dimension_semantics = [#tpu.dimension_semantics<parallel>, #tpu.dimension_semantics<parallel>], iteration_bounds = array<i64: 2, 1>, scalar_prefetch = 0 : i64, scratch_operands = 0 : i64, tpu.core_type = #tpu.core_type<tc>, window_params = [{transform_indices = @transform_0, window_bounds = array<i64: 1, 16, 8>}, {transform_indices = @transform_1, window_bounds = array<i64: 1, 16, 8>}, {transform_indices = @transform_2, window_bounds = array<i64: 1, 16, 4>}, {pipeline_mode = #tpu.pipeline_mode<synchronous>, transform_indices = @transform_3, window_bounds = array<i64: 8, 64>}, {pipeline_mode = #tpu.pipeline_mode<synchronous>, transform_indices = @transform_4, window_bounds = array<i64: 8, 64>}, {pipeline_mode = #tpu.pipeline_mode<synchronous>, transform_indices = @transform_5, window_bounds = array<i64: 1, 64>}, {pipeline_mode = #tpu.pipeline_mode<synchronous>, transform_indices = @transform_6, window_bounds = array<i64: 1, 64>}, {transform_indices = @transform_7, window_bounds = array<i64: 1, 16, 64>}]} {
    %c0 = arith.constant 0 : index
    %c0_0 = arith.constant 0 : index
    %c0_1 = arith.constant 0 : index
    %0 = vector.load %arg2[%c0, %c0_0, %c0_1] : memref<1x16x8xbf16, #tpu.memory_space<vmem>>, vector<1x16x8xbf16>
    %1 = vector.shape_cast %0 : vector<1x16x8xbf16> to vector<16x8xbf16>
    %c0_2 = arith.constant 0 : index
    %c0_3 = arith.constant 0 : index
    %c0_4 = arith.constant 0 : index
    %2 = vector.load %arg3[%c0_2, %c0_3, %c0_4] : memref<1x16x8xbf16, #tpu.memory_space<vmem>>, vector<1x16x8xbf16>
    %3 = vector.shape_cast %2 : vector<1x16x8xbf16> to vector<16x8xbf16>
    %c0_5 = arith.constant 0 : index
    %c0_6 = arith.constant 0 : index
    %c0_7 = arith.constant 0 : index
    %4 = vector.load %arg4[%c0_5, %c0_6, %c0_7] : memref<1x16x4xi32, #tpu.memory_space<vmem>>, vector<1x16x4xi32>
    %5 = vector.shape_cast %4 : vector<1x16x4xi32> to vector<16x4xi32>
    %6 = tpu.iota {dimensions = array<i32: 1>} : vector<16x16xi32>
    %7 = vector.extract_strided_slice %5 {offsets = [0, 0], sizes = [16, 1], strides = [1, 1]} : vector<16x4xi32> to vector<16x1xi32>
    %8 = vector.broadcast %7 : vector<16x1xi32> to vector<16x16xi32>
    %9 = arith.cmpi eq, %6, %8 : vector<16x16xi32>
    %10 = arith.extui %9 : vector<16x16xi1> to vector<16x16xi32>
    %11 = arith.sitofp %10 : vector<16x16xi32> to vector<16x16xf32>
    %12 = arith.truncf %11 : vector<16x16xf32> to vector<16x16xbf16>
    %cst = arith.constant dense<0.000000e+00> : vector<16x8xf32>
    %13 = tpu.matmul %12, %1, %cst {dimension_numbers = #tpu.dot_dimension_numbers<[1], [0], [0], [1], [0, 0, 1, 1], [], []>} : vector<16x16xbf16>, vector<16x8xbf16>, vector<16x8xf32> -> vector<16x8xf32>
    %14 = arith.truncf %13 : vector<16x8xf32> to vector<16x8xbf16>
    %c0_8 = arith.constant 0 : index
    %c0_9 = arith.constant 0 : index
    %15 = vector.load %arg5[%c0_8, %c0_9] : memref<8x64xbf16, #tpu.memory_space<vmem>>, vector<8x64xbf16>
    %cst_10 = arith.constant dense<0.000000e+00> : vector<16x64xf32>
    %16 = tpu.matmul %14, %15, %cst_10 {dimension_numbers = #tpu.dot_dimension_numbers<[1], [0], [0], [1], [0, 0, 1, 1], [], []>} : vector<16x8xbf16>, vector<8x64xbf16>, vector<16x64xf32> -> vector<16x64xf32>
    %17 = vector.extract_strided_slice %5 {offsets = [0, 1], sizes = [16, 1], strides = [1, 1]} : vector<16x4xi32> to vector<16x1xi32>
    %18 = vector.broadcast %17 : vector<16x1xi32> to vector<16x16xi32>
    %19 = arith.cmpi eq, %6, %18 : vector<16x16xi32>
    %20 = arith.extui %19 : vector<16x16xi1> to vector<16x16xi32>
    %21 = arith.sitofp %20 : vector<16x16xi32> to vector<16x16xf32>
    %22 = arith.truncf %21 : vector<16x16xf32> to vector<16x16xbf16>
    %cst_11 = arith.constant dense<0.000000e+00> : vector<16x8xf32>
    %23 = tpu.matmul %22, %1, %cst_11 {dimension_numbers = #tpu.dot_dimension_numbers<[1], [0], [0], [1], [0, 0, 1, 1], [], []>} : vector<16x16xbf16>, vector<16x8xbf16>, vector<16x8xf32> -> vector<16x8xf32>
    %24 = arith.truncf %23 : vector<16x8xf32> to vector<16x8xbf16>
    %c0_12 = arith.constant 0 : index
    %c0_13 = arith.constant 0 : index
    %25 = vector.load %arg5[%c0_12, %c0_13] : memref<8x64xbf16, #tpu.memory_space<vmem>>, vector<8x64xbf16>
    %cst_14 = arith.constant dense<0.000000e+00> : vector<16x64xf32>
    %26 = tpu.matmul %24, %25, %cst_14 {dimension_numbers = #tpu.dot_dimension_numbers<[1], [0], [0], [1], [0, 0, 1, 1], [], []>} : vector<16x8xbf16>, vector<8x64xbf16>, vector<16x64xf32> -> vector<16x64xf32>
    %27 = arith.maximumf %16, %26 : vector<16x64xf32>
    %28 = vector.extract_strided_slice %5 {offsets = [0, 2], sizes = [16, 1], strides = [1, 1]} : vector<16x4xi32> to vector<16x1xi32>
    %29 = vector.broadcast %28 : vector<16x1xi32> to vector<16x16xi32>
    %30 = arith.cmpi eq, %6, %29 : vector<16x16xi32>
    %31 = arith.extui %30 : vector<16x16xi1> to vector<16x16xi32>
    %32 = arith.sitofp %31 : vector<16x16xi32> to vector<16x16xf32>
    %33 = arith.truncf %32 : vector<16x16xf32> to vector<16x16xbf16>
    %cst_15 = arith.constant dense<0.000000e+00> : vector<16x8xf32>
    %34 = tpu.matmul %33, %1, %cst_15 {dimension_numbers = #tpu.dot_dimension_numbers<[1], [0], [0], [1], [0, 0, 1, 1], [], []>} : vector<16x16xbf16>, vector<16x8xbf16>, vector<16x8xf32> -> vector<16x8xf32>
    %35 = arith.truncf %34 : vector<16x8xf32> to vector<16x8xbf16>
    %c0_16 = arith.constant 0 : index
    %c0_17 = arith.constant 0 : index
    %36 = vector.load %arg5[%c0_16, %c0_17] : memref<8x64xbf16, #tpu.memory_space<vmem>>, vector<8x64xbf16>
    %cst_18 = arith.constant dense<0.000000e+00> : vector<16x64xf32>
    %37 = tpu.matmul %35, %36, %cst_18 {dimension_numbers = #tpu.dot_dimension_numbers<[1], [0], [0], [1], [0, 0, 1, 1], [], []>} : vector<16x8xbf16>, vector<8x64xbf16>, vector<16x64xf32> -> vector<16x64xf32>
    %38 = arith.maximumf %27, %37 : vector<16x64xf32>
    %39 = vector.extract_strided_slice %5 {offsets = [0, 3], sizes = [16, 1], strides = [1, 1]} : vector<16x4xi32> to vector<16x1xi32>
    %40 = vector.broadcast %39 : vector<16x1xi32> to vector<16x16xi32>
    %41 = arith.cmpi eq, %6, %40 : vector<16x16xi32>
    %42 = arith.extui %41 : vector<16x16xi1> to vector<16x16xi32>
    %43 = arith.sitofp %42 : vector<16x16xi32> to vector<16x16xf32>
    %44 = arith.truncf %43 : vector<16x16xf32> to vector<16x16xbf16>
    %cst_19 = arith.constant dense<0.000000e+00> : vector<16x8xf32>
    %45 = tpu.matmul %44, %1, %cst_19 {dimension_numbers = #tpu.dot_dimension_numbers<[1], [0], [0], [1], [0, 0, 1, 1], [], []>} : vector<16x16xbf16>, vector<16x8xbf16>, vector<16x8xf32> -> vector<16x8xf32>
    %46 = arith.truncf %45 : vector<16x8xf32> to vector<16x8xbf16>
    %c0_20 = arith.constant 0 : index
    %c0_21 = arith.constant 0 : index
    %47 = vector.load %arg5[%c0_20, %c0_21] : memref<8x64xbf16, #tpu.memory_space<vmem>>, vector<8x64xbf16>
    %cst_22 = arith.constant dense<0.000000e+00> : vector<16x64xf32>
    %48 = tpu.matmul %46, %47, %cst_22 {dimension_numbers = #tpu.dot_dimension_numbers<[1], [0], [0], [1], [0, 0, 1, 1], [], []>} : vector<16x8xbf16>, vector<8x64xbf16>, vector<16x64xf32> -> vector<16x64xf32>
    %49 = arith.maximumf %38, %48 : vector<16x64xf32>
    %c0_23 = arith.constant 0 : index
    %c0_24 = arith.constant 0 : index
    %50 = vector.load %arg6[%c0_23, %c0_24] : memref<8x64xbf16, #tpu.memory_space<vmem>>, vector<8x64xbf16>
    %cst_25 = arith.constant dense<0.000000e+00> : vector<16x64xf32>
    %51 = tpu.matmul %3, %50, %cst_25 {dimension_numbers = #tpu.dot_dimension_numbers<[1], [0], [0], [1], [0, 0, 1, 1], [], []>} : vector<16x8xbf16>, vector<8x64xbf16>, vector<16x64xf32> -> vector<16x64xf32>
    %52 = arith.addf %49, %51 : vector<16x64xf32>
    %c0_26 = arith.constant 0 : index
    %c0_27 = arith.constant 0 : index
    %53 = vector.load %arg7[%c0_26, %c0_27] : memref<1x64xf32, #tpu.memory_space<vmem>>, vector<1x64xf32>
    %54 = vector.broadcast %53 : vector<1x64xf32> to vector<16x64xf32>
    %55 = arith.mulf %52, %54 : vector<16x64xf32>
    %c0_28 = arith.constant 0 : index
    %c0_29 = arith.constant 0 : index
    %56 = vector.load %arg8[%c0_28, %c0_29] : memref<1x64xf32, #tpu.memory_space<vmem>>, vector<1x64xf32>
    %57 = vector.broadcast %56 : vector<1x64xf32> to vector<16x64xf32>
    %58 = arith.addf %55, %57 : vector<16x64xf32>
    %cst_30 = arith.constant 2.000000e-01 : f32
    %59 = vector.broadcast %cst_30 : f32 to vector<16x64xf32>
    %60 = arith.mulf %59, %58 : vector<16x64xf32>
    %61 = arith.maximumf %58, %60 : vector<16x64xf32>
    %62 = arith.truncf %61 : vector<16x64xf32> to vector<16x64xbf16>
    %c0_31 = arith.constant 0 : index
    %c0_32 = arith.constant 0 : index
    %c0_33 = arith.constant 0 : index
    %63 = vector.load %arg9[%c0_31, %c0_32, %c0_33] : memref<1x16x64xbf16, #tpu.memory_space<vmem>>, vector<1x16x64xbf16>
    %64 = vector.shape_cast %63 : vector<1x16x64xbf16> to vector<16x64xbf16>
    %65 = vector.shape_cast %62 : vector<16x64xbf16> to vector<1x16x64xbf16>
    tpu.vector_store %arg9[%c0_31, %c0_32, %c0_33], %65 {strides = array<i32>} : memref<1x16x64xbf16, #tpu.memory_space<vmem>>, vector<1x16x64xbf16>,
    return
  }
  func.func @transform_0(%arg0: i32, %arg1: i32) -> (i32, i32, i32) {
    %c0_i32 = arith.constant 0 : i32
    %c0_i32_0 = arith.constant 0 : i32
    %c0_i32_1 = arith.constant 0 : i32
    return %arg0, %c0_i32, %c0_i32_0 : i32, i32, i32
  }
  func.func @transform_1(%arg0: i32, %arg1: i32) -> (i32, i32, i32) {
    %c0_i32 = arith.constant 0 : i32
    %c0_i32_0 = arith.constant 0 : i32
    return %arg0, %arg1, %c0_i32 : i32, i32, i32
  }
  func.func @transform_2(%arg0: i32, %arg1: i32) -> (i32, i32, i32) {
    %c0_i32 = arith.constant 0 : i32
    %c0_i32_0 = arith.constant 0 : i32
    return %arg0, %arg1, %c0_i32 : i32, i32, i32
  }
  func.func @transform_3(%arg0: i32, %arg1: i32) -> (i32, i32) {
    %c0_i32 = arith.constant 0 : i32
    %c0_i32_0 = arith.constant 0 : i32
    %c0_i32_1 = arith.constant 0 : i32
    return %c0_i32, %c0_i32_0 : i32, i32
  }
  func.func @transform_4(%arg0: i32, %arg1: i32) -> (i32, i32) {
    %c0_i32 = arith.constant 0 : i32
    %c0_i32_0 = arith.constant 0 : i32
    %c0_i32_1 = arith.constant 0 : i32
    return %c0_i32, %c0_i32_0 : i32, i32
  }
  func.func @transform_5(%arg0: i32, %arg1: i32) -> (i32, i32) {
    %c0_i32 = arith.constant 0 : i32
    %c0_i32_0 = arith.constant 0 : i32
    %c0_i32_1 = arith.constant 0 : i32
    return %c0_i32, %c0_i32_0 : i32, i32
  }
  func.func @transform_6(%arg0: i32, %arg1: i32) -> (i32, i32) {
    %c0_i32 = arith.constant 0 : i32
    %c0_i32_0 = arith.constant 0 : i32
    %c0_i32_1 = arith.constant 0 : i32
    return %c0_i32, %c0_i32_0 : i32, i32
  }
  func.func @transform_7(%arg0: i32, %arg1: i32) -> (i32, i32, i32) {
    %c0_i32 = arith.constant 0 : i32
    %c0_i32_0 = arith.constant 0 : i32
    return %arg0, %arg1, %c0_i32 : i32, i32, i32
  }
}

module attributes {stable_mosaic.version = 11 : i64} {
  func.func @knn_kernel(%arg0: i32, %arg1: i32, %arg2: memref<1x16x64xbf16, #tpu.memory_space<vmem>>, %arg3: memref<1x64x16xbf16, #tpu.memory_space<vmem>>, %arg4: memref<1x1x16xf32, #tpu.memory_space<vmem>>, %arg5: memref<1x16x4xi32, #tpu.memory_space<vmem>>) attributes {dimension_semantics = [#tpu.dimension_semantics<parallel>, #tpu.dimension_semantics<parallel>], iteration_bounds = array<i64: 2, 1>, scalar_prefetch = 0 : i64, scratch_operands = 0 : i64, tpu.core_type = #tpu.core_type<tc>, window_params = [{transform_indices = @transform_0, window_bounds = array<i64: 1, 16, 64>}, {transform_indices = @transform_1, window_bounds = array<i64: 1, 64, 16>}, {transform_indices = @transform_2, window_bounds = array<i64: 1, 1, 16>}, {transform_indices = @transform_3, window_bounds = array<i64: 1, 16, 4>}]} {
    %c0 = arith.constant 0 : index
    %c0_0 = arith.constant 0 : index
    %c0_1 = arith.constant 0 : index
    %0 = vector.load %arg2[%c0, %c0_0, %c0_1] : memref<1x16x64xbf16, #tpu.memory_space<vmem>>, vector<1x16x64xbf16>
    %1 = vector.shape_cast %0 : vector<1x16x64xbf16> to vector<16x64xbf16>
    %c0_2 = arith.constant 0 : index
    %c0_3 = arith.constant 0 : index
    %c0_4 = arith.constant 0 : index
    %2 = vector.load %arg3[%c0_2, %c0_3, %c0_4] : memref<1x64x16xbf16, #tpu.memory_space<vmem>>, vector<1x64x16xbf16>
    %3 = vector.shape_cast %2 : vector<1x64x16xbf16> to vector<64x16xbf16>
    %cst = arith.constant dense<0.000000e+00> : vector<16x16xf32>
    %4 = tpu.matmul %1, %3, %cst {dimension_numbers = #tpu.dot_dimension_numbers<[1], [0], [0], [1], [0, 0, 1, 1], [], []>} : vector<16x64xbf16>, vector<64x16xbf16>, vector<16x16xf32> -> vector<16x16xf32>
    %cst_5 = arith.constant 2.000000e+00 : f32
    %5 = vector.broadcast %cst_5 : f32 to vector<16x16xf32>
    %6 = arith.mulf %5, %4 : vector<16x16xf32>
    %c0_6 = arith.constant 0 : index
    %c0_7 = arith.constant 0 : index
    %c0_8 = arith.constant 0 : index
    %7 = vector.load %arg4[%c0_6, %c0_7, %c0_8] : memref<1x1x16xf32, #tpu.memory_space<vmem>>, vector<1x1x16xf32>
    %8 = vector.shape_cast %7 : vector<1x1x16xf32> to vector<1x16xf32>
    %9 = vector.broadcast %8 : vector<1x16xf32> to vector<16x16xf32>
    %10 = arith.subf %6, %9 : vector<16x16xf32>
    %11 = tpu.iota {dimensions = array<i32: 1>} : vector<16x16xi32>
    %12 = arith.sitofp %11 : vector<16x16xi32> to vector<16x16xf32>
    %13 = tpu.iota {dimensions = array<i32: 1>} : vector<16x4xi32>
    %cst_9 = arith.constant 0.000000e+00 : f32
    %14 = vector.broadcast %cst_9 : f32 to vector<16x4xf32>
    %cst_10 = arith.constant dense<0xFF800000> : vector<16xf32>
    %15 = vector.multi_reduction <maximumf>, %10, %cst_10 [1] : vector<16x16xf32> to vector<16xf32>
    %16 = vector.shape_cast %15 : vector<16xf32> to vector<16x1xf32>
    %17 = vector.broadcast %16 : vector<16x1xf32> to vector<16x16xf32>
    %18 = arith.cmpf oeq, %10, %17 : vector<16x16xf32>
    %cst_11 = arith.constant 1.600000e+01 : f32
    %19 = vector.broadcast %cst_11 : f32 to vector<16x16xf32>
    %20 = arith.select %18, %12, %19 : vector<16x16xi1>, vector<16x16xf32>
    %cst_12 = arith.constant dense<0x7F800000> : vector<16xf32>
    %21 = vector.multi_reduction <minimumf>, %20, %cst_12 [1] : vector<16x16xf32> to vector<16xf32>
    %22 = vector.shape_cast %21 : vector<16xf32> to vector<16x1xf32>
    %c0_i32 = arith.constant 0 : i32
    %23 = vector.broadcast %c0_i32 : i32 to vector<16x4xi32>
    %24 = arith.cmpi eq, %13, %23 : vector<16x4xi32>
    %25 = vector.shape_cast %22 : vector<16x1xf32> to vector<16x1xf32>
    %26 = vector.broadcast %25 : vector<16x1xf32> to vector<16x4xf32>
    %27 = arith.select %24, %26, %14 : vector<16x4xi1>, vector<16x4xf32>
    %28 = vector.broadcast %22 : vector<16x1xf32> to vector<16x16xf32>
    %29 = arith.cmpf oeq, %12, %28 : vector<16x16xf32>
    %cst_13 = arith.constant 0xFF800000 : f32
    %30 = vector.broadcast %cst_13 : f32 to vector<16x16xf32>
    %31 = arith.select %29, %30, %10 : vector<16x16xi1>, vector<16x16xf32>
    %cst_14 = arith.constant dense<0xFF800000> : vector<16xf32>
    %32 = vector.multi_reduction <maximumf>, %31, %cst_14 [1] : vector<16x16xf32> to vector<16xf32>
    %33 = vector.shape_cast %32 : vector<16xf32> to vector<16x1xf32>
    %34 = vector.broadcast %33 : vector<16x1xf32> to vector<16x16xf32>
    %35 = arith.cmpf oeq, %31, %34 : vector<16x16xf32>
    %cst_15 = arith.constant 1.600000e+01 : f32
    %36 = vector.broadcast %cst_15 : f32 to vector<16x16xf32>
    %37 = arith.select %35, %12, %36 : vector<16x16xi1>, vector<16x16xf32>
    %cst_16 = arith.constant dense<0x7F800000> : vector<16xf32>
    %38 = vector.multi_reduction <minimumf>, %37, %cst_16 [1] : vector<16x16xf32> to vector<16xf32>
    %39 = vector.shape_cast %38 : vector<16xf32> to vector<16x1xf32>
    %c1_i32 = arith.constant 1 : i32
    %40 = vector.broadcast %c1_i32 : i32 to vector<16x4xi32>
    %41 = arith.cmpi eq, %13, %40 : vector<16x4xi32>
    %42 = vector.shape_cast %39 : vector<16x1xf32> to vector<16x1xf32>
    %43 = vector.broadcast %42 : vector<16x1xf32> to vector<16x4xf32>
    %44 = arith.select %41, %43, %27 : vector<16x4xi1>, vector<16x4xf32>
    %45 = vector.broadcast %39 : vector<16x1xf32> to vector<16x16xf32>
    %46 = arith.cmpf oeq, %12, %45 : vector<16x16xf32>
    %cst_17 = arith.constant 0xFF800000 : f32
    %47 = vector.broadcast %cst_17 : f32 to vector<16x16xf32>
    %48 = arith.select %46, %47, %31 : vector<16x16xi1>, vector<16x16xf32>
    %cst_18 = arith.constant dense<0xFF800000> : vector<16xf32>
    %49 = vector.multi_reduction <maximumf>, %48, %cst_18 [1] : vector<16x16xf32> to vector<16xf32>
    %50 = vector.shape_cast %49 : vector<16xf32> to vector<16x1xf32>
    %51 = vector.broadcast %50 : vector<16x1xf32> to vector<16x16xf32>
    %52 = arith.cmpf oeq, %48, %51 : vector<16x16xf32>
    %cst_19 = arith.constant 1.600000e+01 : f32
    %53 = vector.broadcast %cst_19 : f32 to vector<16x16xf32>
    %54 = arith.select %52, %12, %53 : vector<16x16xi1>, vector<16x16xf32>
    %cst_20 = arith.constant dense<0x7F800000> : vector<16xf32>
    %55 = vector.multi_reduction <minimumf>, %54, %cst_20 [1] : vector<16x16xf32> to vector<16xf32>
    %56 = vector.shape_cast %55 : vector<16xf32> to vector<16x1xf32>
    %c2_i32 = arith.constant 2 : i32
    %57 = vector.broadcast %c2_i32 : i32 to vector<16x4xi32>
    %58 = arith.cmpi eq, %13, %57 : vector<16x4xi32>
    %59 = vector.shape_cast %56 : vector<16x1xf32> to vector<16x1xf32>
    %60 = vector.broadcast %59 : vector<16x1xf32> to vector<16x4xf32>
    %61 = arith.select %58, %60, %44 : vector<16x4xi1>, vector<16x4xf32>
    %62 = vector.broadcast %56 : vector<16x1xf32> to vector<16x16xf32>
    %63 = arith.cmpf oeq, %12, %62 : vector<16x16xf32>
    %cst_21 = arith.constant 0xFF800000 : f32
    %64 = vector.broadcast %cst_21 : f32 to vector<16x16xf32>
    %65 = arith.select %63, %64, %48 : vector<16x16xi1>, vector<16x16xf32>
    %cst_22 = arith.constant dense<0xFF800000> : vector<16xf32>
    %66 = vector.multi_reduction <maximumf>, %65, %cst_22 [1] : vector<16x16xf32> to vector<16xf32>
    %67 = vector.shape_cast %66 : vector<16xf32> to vector<16x1xf32>
    %68 = vector.broadcast %67 : vector<16x1xf32> to vector<16x16xf32>
    %69 = arith.cmpf oeq, %65, %68 : vector<16x16xf32>
    %cst_23 = arith.constant 1.600000e+01 : f32
    %70 = vector.broadcast %cst_23 : f32 to vector<16x16xf32>
    %71 = arith.select %69, %12, %70 : vector<16x16xi1>, vector<16x16xf32>
    %cst_24 = arith.constant dense<0x7F800000> : vector<16xf32>
    %72 = vector.multi_reduction <minimumf>, %71, %cst_24 [1] : vector<16x16xf32> to vector<16xf32>
    %73 = vector.shape_cast %72 : vector<16xf32> to vector<16x1xf32>
    %c3_i32 = arith.constant 3 : i32
    %74 = vector.broadcast %c3_i32 : i32 to vector<16x4xi32>
    %75 = arith.cmpi eq, %13, %74 : vector<16x4xi32>
    %76 = vector.shape_cast %73 : vector<16x1xf32> to vector<16x1xf32>
    %77 = vector.broadcast %76 : vector<16x1xf32> to vector<16x4xf32>
    %78 = arith.select %75, %77, %61 : vector<16x4xi1>, vector<16x4xf32>
    %79 = arith.fptosi %78 : vector<16x4xf32> to vector<16x4xi32>
    %c0_25 = arith.constant 0 : index
    %c0_26 = arith.constant 0 : index
    %c0_27 = arith.constant 0 : index
    %80 = vector.load %arg5[%c0_25, %c0_26, %c0_27] : memref<1x16x4xi32, #tpu.memory_space<vmem>>, vector<1x16x4xi32>
    %81 = vector.shape_cast %80 : vector<1x16x4xi32> to vector<16x4xi32>
    %82 = vector.shape_cast %79 : vector<16x4xi32> to vector<1x16x4xi32>
    tpu.vector_store %arg5[%c0_25, %c0_26, %c0_27], %82 {strides = array<i32>} : memref<1x16x4xi32, #tpu.memory_space<vmem>>, vector<1x16x4xi32>,
    return
  }
  func.func @transform_0(%arg0: i32, %arg1: i32) -> (i32, i32, i32) {
    %c0_i32 = arith.constant 0 : i32
    %c0_i32_0 = arith.constant 0 : i32
    return %arg0, %arg1, %c0_i32 : i32, i32, i32
  }
  func.func @transform_1(%arg0: i32, %arg1: i32) -> (i32, i32, i32) {
    %c0_i32 = arith.constant 0 : i32
    %c0_i32_0 = arith.constant 0 : i32
    %c0_i32_1 = arith.constant 0 : i32
    return %arg0, %c0_i32, %c0_i32_0 : i32, i32, i32
  }
  func.func @transform_2(%arg0: i32, %arg1: i32) -> (i32, i32, i32) {
    %c0_i32 = arith.constant 0 : i32
    %c0_i32_0 = arith.constant 0 : i32
    %c0_i32_1 = arith.constant 0 : i32
    return %arg0, %c0_i32, %c0_i32_0 : i32, i32, i32
  }
  func.func @transform_3(%arg0: i32, %arg1: i32) -> (i32, i32, i32) {
    %c0_i32 = arith.constant 0 : i32
    %c0_i32_0 = arith.constant 0 : i32
    return %arg0, %arg1, %c0_i32 : i32, i32, i32
  }
}

module attributes {stable_mosaic.version = 11 : i64} {
  func.func @edge_conv_kernel(%arg0: i32, %arg1: i32, %arg2: memref<1x16x64xbf16, #tpu.memory_space<vmem>>, %arg3: memref<1x16x64xbf16, #tpu.memory_space<vmem>>, %arg4: memref<1x16x4xi32, #tpu.memory_space<vmem>>, %arg5: memref<64x64xbf16, #tpu.memory_space<vmem>>, %arg6: memref<64x64xbf16, #tpu.memory_space<vmem>>, %arg7: memref<1x64xf32, #tpu.memory_space<vmem>>, %arg8: memref<1x64xf32, #tpu.memory_space<vmem>>, %arg9: memref<1x16x64xbf16, #tpu.memory_space<vmem>>) attributes {dimension_semantics = [#tpu.dimension_semantics<parallel>, #tpu.dimension_semantics<parallel>], iteration_bounds = array<i64: 2, 1>, scalar_prefetch = 0 : i64, scratch_operands = 0 : i64, tpu.core_type = #tpu.core_type<tc>, window_params = [{transform_indices = @transform_0, window_bounds = array<i64: 1, 16, 64>}, {transform_indices = @transform_1, window_bounds = array<i64: 1, 16, 64>}, {transform_indices = @transform_2, window_bounds = array<i64: 1, 16, 4>}, {pipeline_mode = #tpu.pipeline_mode<synchronous>, transform_indices = @transform_3, window_bounds = array<i64: 64, 64>}, {pipeline_mode = #tpu.pipeline_mode<synchronous>, transform_indices = @transform_4, window_bounds = array<i64: 64, 64>}, {pipeline_mode = #tpu.pipeline_mode<synchronous>, transform_indices = @transform_5, window_bounds = array<i64: 1, 64>}, {pipeline_mode = #tpu.pipeline_mode<synchronous>, transform_indices = @transform_6, window_bounds = array<i64: 1, 64>}, {transform_indices = @transform_7, window_bounds = array<i64: 1, 16, 64>}]} {
    %c0 = arith.constant 0 : index
    %c0_0 = arith.constant 0 : index
    %c0_1 = arith.constant 0 : index
    %0 = vector.load %arg2[%c0, %c0_0, %c0_1] : memref<1x16x64xbf16, #tpu.memory_space<vmem>>, vector<1x16x64xbf16>
    %1 = vector.shape_cast %0 : vector<1x16x64xbf16> to vector<16x64xbf16>
    %c0_2 = arith.constant 0 : index
    %c0_3 = arith.constant 0 : index
    %c0_4 = arith.constant 0 : index
    %2 = vector.load %arg3[%c0_2, %c0_3, %c0_4] : memref<1x16x64xbf16, #tpu.memory_space<vmem>>, vector<1x16x64xbf16>
    %3 = vector.shape_cast %2 : vector<1x16x64xbf16> to vector<16x64xbf16>
    %c0_5 = arith.constant 0 : index
    %c0_6 = arith.constant 0 : index
    %c0_7 = arith.constant 0 : index
    %4 = vector.load %arg4[%c0_5, %c0_6, %c0_7] : memref<1x16x4xi32, #tpu.memory_space<vmem>>, vector<1x16x4xi32>
    %5 = vector.shape_cast %4 : vector<1x16x4xi32> to vector<16x4xi32>
    %6 = tpu.iota {dimensions = array<i32: 1>} : vector<16x16xi32>
    %7 = vector.extract_strided_slice %5 {offsets = [0, 0], sizes = [16, 1], strides = [1, 1]} : vector<16x4xi32> to vector<16x1xi32>
    %8 = vector.broadcast %7 : vector<16x1xi32> to vector<16x16xi32>
    %9 = arith.cmpi eq, %6, %8 : vector<16x16xi32>
    %10 = arith.extui %9 : vector<16x16xi1> to vector<16x16xi32>
    %11 = arith.sitofp %10 : vector<16x16xi32> to vector<16x16xf32>
    %12 = arith.truncf %11 : vector<16x16xf32> to vector<16x16xbf16>
    %cst = arith.constant dense<0.000000e+00> : vector<16x64xf32>
    %13 = tpu.matmul %12, %1, %cst {dimension_numbers = #tpu.dot_dimension_numbers<[1], [0], [0], [1], [0, 0, 1, 1], [], []>} : vector<16x16xbf16>, vector<16x64xbf16>, vector<16x64xf32> -> vector<16x64xf32>
    %14 = arith.truncf %13 : vector<16x64xf32> to vector<16x64xbf16>
    %c0_8 = arith.constant 0 : index
    %c0_9 = arith.constant 0 : index
    %15 = vector.load %arg5[%c0_8, %c0_9] : memref<64x64xbf16, #tpu.memory_space<vmem>>, vector<64x64xbf16>
    %cst_10 = arith.constant dense<0.000000e+00> : vector<16x64xf32>
    %16 = tpu.matmul %14, %15, %cst_10 {dimension_numbers = #tpu.dot_dimension_numbers<[1], [0], [0], [1], [0, 0, 1, 1], [], []>} : vector<16x64xbf16>, vector<64x64xbf16>, vector<16x64xf32> -> vector<16x64xf32>
    %17 = vector.extract_strided_slice %5 {offsets = [0, 1], sizes = [16, 1], strides = [1, 1]} : vector<16x4xi32> to vector<16x1xi32>
    %18 = vector.broadcast %17 : vector<16x1xi32> to vector<16x16xi32>
    %19 = arith.cmpi eq, %6, %18 : vector<16x16xi32>
    %20 = arith.extui %19 : vector<16x16xi1> to vector<16x16xi32>
    %21 = arith.sitofp %20 : vector<16x16xi32> to vector<16x16xf32>
    %22 = arith.truncf %21 : vector<16x16xf32> to vector<16x16xbf16>
    %cst_11 = arith.constant dense<0.000000e+00> : vector<16x64xf32>
    %23 = tpu.matmul %22, %1, %cst_11 {dimension_numbers = #tpu.dot_dimension_numbers<[1], [0], [0], [1], [0, 0, 1, 1], [], []>} : vector<16x16xbf16>, vector<16x64xbf16>, vector<16x64xf32> -> vector<16x64xf32>
    %24 = arith.truncf %23 : vector<16x64xf32> to vector<16x64xbf16>
    %c0_12 = arith.constant 0 : index
    %c0_13 = arith.constant 0 : index
    %25 = vector.load %arg5[%c0_12, %c0_13] : memref<64x64xbf16, #tpu.memory_space<vmem>>, vector<64x64xbf16>
    %cst_14 = arith.constant dense<0.000000e+00> : vector<16x64xf32>
    %26 = tpu.matmul %24, %25, %cst_14 {dimension_numbers = #tpu.dot_dimension_numbers<[1], [0], [0], [1], [0, 0, 1, 1], [], []>} : vector<16x64xbf16>, vector<64x64xbf16>, vector<16x64xf32> -> vector<16x64xf32>
    %27 = arith.maximumf %16, %26 : vector<16x64xf32>
    %28 = vector.extract_strided_slice %5 {offsets = [0, 2], sizes = [16, 1], strides = [1, 1]} : vector<16x4xi32> to vector<16x1xi32>
    %29 = vector.broadcast %28 : vector<16x1xi32> to vector<16x16xi32>
    %30 = arith.cmpi eq, %6, %29 : vector<16x16xi32>
    %31 = arith.extui %30 : vector<16x16xi1> to vector<16x16xi32>
    %32 = arith.sitofp %31 : vector<16x16xi32> to vector<16x16xf32>
    %33 = arith.truncf %32 : vector<16x16xf32> to vector<16x16xbf16>
    %cst_15 = arith.constant dense<0.000000e+00> : vector<16x64xf32>
    %34 = tpu.matmul %33, %1, %cst_15 {dimension_numbers = #tpu.dot_dimension_numbers<[1], [0], [0], [1], [0, 0, 1, 1], [], []>} : vector<16x16xbf16>, vector<16x64xbf16>, vector<16x64xf32> -> vector<16x64xf32>
    %35 = arith.truncf %34 : vector<16x64xf32> to vector<16x64xbf16>
    %c0_16 = arith.constant 0 : index
    %c0_17 = arith.constant 0 : index
    %36 = vector.load %arg5[%c0_16, %c0_17] : memref<64x64xbf16, #tpu.memory_space<vmem>>, vector<64x64xbf16>
    %cst_18 = arith.constant dense<0.000000e+00> : vector<16x64xf32>
    %37 = tpu.matmul %35, %36, %cst_18 {dimension_numbers = #tpu.dot_dimension_numbers<[1], [0], [0], [1], [0, 0, 1, 1], [], []>} : vector<16x64xbf16>, vector<64x64xbf16>, vector<16x64xf32> -> vector<16x64xf32>
    %38 = arith.maximumf %27, %37 : vector<16x64xf32>
    %39 = vector.extract_strided_slice %5 {offsets = [0, 3], sizes = [16, 1], strides = [1, 1]} : vector<16x4xi32> to vector<16x1xi32>
    %40 = vector.broadcast %39 : vector<16x1xi32> to vector<16x16xi32>
    %41 = arith.cmpi eq, %6, %40 : vector<16x16xi32>
    %42 = arith.extui %41 : vector<16x16xi1> to vector<16x16xi32>
    %43 = arith.sitofp %42 : vector<16x16xi32> to vector<16x16xf32>
    %44 = arith.truncf %43 : vector<16x16xf32> to vector<16x16xbf16>
    %cst_19 = arith.constant dense<0.000000e+00> : vector<16x64xf32>
    %45 = tpu.matmul %44, %1, %cst_19 {dimension_numbers = #tpu.dot_dimension_numbers<[1], [0], [0], [1], [0, 0, 1, 1], [], []>} : vector<16x16xbf16>, vector<16x64xbf16>, vector<16x64xf32> -> vector<16x64xf32>
    %46 = arith.truncf %45 : vector<16x64xf32> to vector<16x64xbf16>
    %c0_20 = arith.constant 0 : index
    %c0_21 = arith.constant 0 : index
    %47 = vector.load %arg5[%c0_20, %c0_21] : memref<64x64xbf16, #tpu.memory_space<vmem>>, vector<64x64xbf16>
    %cst_22 = arith.constant dense<0.000000e+00> : vector<16x64xf32>
    %48 = tpu.matmul %46, %47, %cst_22 {dimension_numbers = #tpu.dot_dimension_numbers<[1], [0], [0], [1], [0, 0, 1, 1], [], []>} : vector<16x64xbf16>, vector<64x64xbf16>, vector<16x64xf32> -> vector<16x64xf32>
    %49 = arith.maximumf %38, %48 : vector<16x64xf32>
    %c0_23 = arith.constant 0 : index
    %c0_24 = arith.constant 0 : index
    %50 = vector.load %arg6[%c0_23, %c0_24] : memref<64x64xbf16, #tpu.memory_space<vmem>>, vector<64x64xbf16>
    %cst_25 = arith.constant dense<0.000000e+00> : vector<16x64xf32>
    %51 = tpu.matmul %3, %50, %cst_25 {dimension_numbers = #tpu.dot_dimension_numbers<[1], [0], [0], [1], [0, 0, 1, 1], [], []>} : vector<16x64xbf16>, vector<64x64xbf16>, vector<16x64xf32> -> vector<16x64xf32>
    %52 = arith.addf %49, %51 : vector<16x64xf32>
    %c0_26 = arith.constant 0 : index
    %c0_27 = arith.constant 0 : index
    %53 = vector.load %arg7[%c0_26, %c0_27] : memref<1x64xf32, #tpu.memory_space<vmem>>, vector<1x64xf32>
    %54 = vector.broadcast %53 : vector<1x64xf32> to vector<16x64xf32>
    %55 = arith.mulf %52, %54 : vector<16x64xf32>
    %c0_28 = arith.constant 0 : index
    %c0_29 = arith.constant 0 : index
    %56 = vector.load %arg8[%c0_28, %c0_29] : memref<1x64xf32, #tpu.memory_space<vmem>>, vector<1x64xf32>
    %57 = vector.broadcast %56 : vector<1x64xf32> to vector<16x64xf32>
    %58 = arith.addf %55, %57 : vector<16x64xf32>
    %cst_30 = arith.constant 2.000000e-01 : f32
    %59 = vector.broadcast %cst_30 : f32 to vector<16x64xf32>
    %60 = arith.mulf %59, %58 : vector<16x64xf32>
    %61 = arith.maximumf %58, %60 : vector<16x64xf32>
    %62 = arith.truncf %61 : vector<16x64xf32> to vector<16x64xbf16>
    %c0_31 = arith.constant 0 : index
    %c0_32 = arith.constant 0 : index
    %c0_33 = arith.constant 0 : index
    %63 = vector.load %arg9[%c0_31, %c0_32, %c0_33] : memref<1x16x64xbf16, #tpu.memory_space<vmem>>, vector<1x16x64xbf16>
    %64 = vector.shape_cast %63 : vector<1x16x64xbf16> to vector<16x64xbf16>
    %65 = vector.shape_cast %62 : vector<16x64xbf16> to vector<1x16x64xbf16>
    tpu.vector_store %arg9[%c0_31, %c0_32, %c0_33], %65 {strides = array<i32>} : memref<1x16x64xbf16, #tpu.memory_space<vmem>>, vector<1x16x64xbf16>,
    return
  }
  func.func @transform_0(%arg0: i32, %arg1: i32) -> (i32, i32, i32) {
    %c0_i32 = arith.constant 0 : i32
    %c0_i32_0 = arith.constant 0 : i32
    %c0_i32_1 = arith.constant 0 : i32
    return %arg0, %c0_i32, %c0_i32_0 : i32, i32, i32
  }
  func.func @transform_1(%arg0: i32, %arg1: i32) -> (i32, i32, i32) {
    %c0_i32 = arith.constant 0 : i32
    %c0_i32_0 = arith.constant 0 : i32
    return %arg0, %arg1, %c0_i32 : i32, i32, i32
  }
  func.func @transform_2(%arg0: i32, %arg1: i32) -> (i32, i32, i32) {
    %c0_i32 = arith.constant 0 : i32
    %c0_i32_0 = arith.constant 0 : i32
    return %arg0, %arg1, %c0_i32 : i32, i32, i32
  }
  func.func @transform_3(%arg0: i32, %arg1: i32) -> (i32, i32) {
    %c0_i32 = arith.constant 0 : i32
    %c0_i32_0 = arith.constant 0 : i32
    %c0_i32_1 = arith.constant 0 : i32
    return %c0_i32, %c0_i32_0 : i32, i32
  }
  func.func @transform_4(%arg0: i32, %arg1: i32) -> (i32, i32) {
    %c0_i32 = arith.constant 0 : i32
    %c0_i32_0 = arith.constant 0 : i32
    %c0_i32_1 = arith.constant 0 : i32
    return %c0_i32, %c0_i32_0 : i32, i32
  }
  func.func @transform_5(%arg0: i32, %arg1: i32) -> (i32, i32) {
    %c0_i32 = arith.constant 0 : i32
    %c0_i32_0 = arith.constant 0 : i32
    %c0_i32_1 = arith.constant 0 : i32
    return %c0_i32, %c0_i32_0 : i32, i32
  }
  func.func @transform_6(%arg0: i32, %arg1: i32) -> (i32, i32) {
    %c0_i32 = arith.constant 0 : i32
    %c0_i32_0 = arith.constant 0 : i32
    %c0_i32_1 = arith.constant 0 : i32
    return %c0_i32, %c0_i32_0 : i32, i32
  }
  func.func @transform_7(%arg0: i32, %arg1: i32) -> (i32, i32, i32) {
    %c0_i32 = arith.constant 0 : i32
    %c0_i32_0 = arith.constant 0 : i32
    return %arg0, %arg1, %c0_i32 : i32, i32, i32
  }
}

module attributes {stable_mosaic.version = 11 : i64} {
  func.func @edge_conv_kernel(%arg0: i32, %arg1: i32, %arg2: memref<1x16x64xbf16, #tpu.memory_space<vmem>>, %arg3: memref<1x16x64xbf16, #tpu.memory_space<vmem>>, %arg4: memref<1x16x4xi32, #tpu.memory_space<vmem>>, %arg5: memref<64x128xbf16, #tpu.memory_space<vmem>>, %arg6: memref<64x128xbf16, #tpu.memory_space<vmem>>, %arg7: memref<1x128xf32, #tpu.memory_space<vmem>>, %arg8: memref<1x128xf32, #tpu.memory_space<vmem>>, %arg9: memref<1x16x128xbf16, #tpu.memory_space<vmem>>) attributes {dimension_semantics = [#tpu.dimension_semantics<parallel>, #tpu.dimension_semantics<parallel>], iteration_bounds = array<i64: 2, 1>, scalar_prefetch = 0 : i64, scratch_operands = 0 : i64, tpu.core_type = #tpu.core_type<tc>, window_params = [{transform_indices = @transform_0, window_bounds = array<i64: 1, 16, 64>}, {transform_indices = @transform_1, window_bounds = array<i64: 1, 16, 64>}, {transform_indices = @transform_2, window_bounds = array<i64: 1, 16, 4>}, {pipeline_mode = #tpu.pipeline_mode<synchronous>, transform_indices = @transform_3, window_bounds = array<i64: 64, 128>}, {pipeline_mode = #tpu.pipeline_mode<synchronous>, transform_indices = @transform_4, window_bounds = array<i64: 64, 128>}, {pipeline_mode = #tpu.pipeline_mode<synchronous>, transform_indices = @transform_5, window_bounds = array<i64: 1, 128>}, {pipeline_mode = #tpu.pipeline_mode<synchronous>, transform_indices = @transform_6, window_bounds = array<i64: 1, 128>}, {transform_indices = @transform_7, window_bounds = array<i64: 1, 16, 128>}]} {
    %c0 = arith.constant 0 : index
    %c0_0 = arith.constant 0 : index
    %c0_1 = arith.constant 0 : index
    %0 = vector.load %arg2[%c0, %c0_0, %c0_1] : memref<1x16x64xbf16, #tpu.memory_space<vmem>>, vector<1x16x64xbf16>
    %1 = vector.shape_cast %0 : vector<1x16x64xbf16> to vector<16x64xbf16>
    %c0_2 = arith.constant 0 : index
    %c0_3 = arith.constant 0 : index
    %c0_4 = arith.constant 0 : index
    %2 = vector.load %arg3[%c0_2, %c0_3, %c0_4] : memref<1x16x64xbf16, #tpu.memory_space<vmem>>, vector<1x16x64xbf16>
    %3 = vector.shape_cast %2 : vector<1x16x64xbf16> to vector<16x64xbf16>
    %c0_5 = arith.constant 0 : index
    %c0_6 = arith.constant 0 : index
    %c0_7 = arith.constant 0 : index
    %4 = vector.load %arg4[%c0_5, %c0_6, %c0_7] : memref<1x16x4xi32, #tpu.memory_space<vmem>>, vector<1x16x4xi32>
    %5 = vector.shape_cast %4 : vector<1x16x4xi32> to vector<16x4xi32>
    %6 = tpu.iota {dimensions = array<i32: 1>} : vector<16x16xi32>
    %7 = vector.extract_strided_slice %5 {offsets = [0, 0], sizes = [16, 1], strides = [1, 1]} : vector<16x4xi32> to vector<16x1xi32>
    %8 = vector.broadcast %7 : vector<16x1xi32> to vector<16x16xi32>
    %9 = arith.cmpi eq, %6, %8 : vector<16x16xi32>
    %10 = arith.extui %9 : vector<16x16xi1> to vector<16x16xi32>
    %11 = arith.sitofp %10 : vector<16x16xi32> to vector<16x16xf32>
    %12 = arith.truncf %11 : vector<16x16xf32> to vector<16x16xbf16>
    %cst = arith.constant dense<0.000000e+00> : vector<16x64xf32>
    %13 = tpu.matmul %12, %1, %cst {dimension_numbers = #tpu.dot_dimension_numbers<[1], [0], [0], [1], [0, 0, 1, 1], [], []>} : vector<16x16xbf16>, vector<16x64xbf16>, vector<16x64xf32> -> vector<16x64xf32>
    %14 = arith.truncf %13 : vector<16x64xf32> to vector<16x64xbf16>
    %c0_8 = arith.constant 0 : index
    %c0_9 = arith.constant 0 : index
    %15 = vector.load %arg5[%c0_8, %c0_9] : memref<64x128xbf16, #tpu.memory_space<vmem>>, vector<64x128xbf16>
    %cst_10 = arith.constant dense<0.000000e+00> : vector<16x128xf32>
    %16 = tpu.matmul %14, %15, %cst_10 {dimension_numbers = #tpu.dot_dimension_numbers<[1], [0], [0], [1], [0, 0, 1, 1], [], []>} : vector<16x64xbf16>, vector<64x128xbf16>, vector<16x128xf32> -> vector<16x128xf32>
    %17 = vector.extract_strided_slice %5 {offsets = [0, 1], sizes = [16, 1], strides = [1, 1]} : vector<16x4xi32> to vector<16x1xi32>
    %18 = vector.broadcast %17 : vector<16x1xi32> to vector<16x16xi32>
    %19 = arith.cmpi eq, %6, %18 : vector<16x16xi32>
    %20 = arith.extui %19 : vector<16x16xi1> to vector<16x16xi32>
    %21 = arith.sitofp %20 : vector<16x16xi32> to vector<16x16xf32>
    %22 = arith.truncf %21 : vector<16x16xf32> to vector<16x16xbf16>
    %cst_11 = arith.constant dense<0.000000e+00> : vector<16x64xf32>
    %23 = tpu.matmul %22, %1, %cst_11 {dimension_numbers = #tpu.dot_dimension_numbers<[1], [0], [0], [1], [0, 0, 1, 1], [], []>} : vector<16x16xbf16>, vector<16x64xbf16>, vector<16x64xf32> -> vector<16x64xf32>
    %24 = arith.truncf %23 : vector<16x64xf32> to vector<16x64xbf16>
    %c0_12 = arith.constant 0 : index
    %c0_13 = arith.constant 0 : index
    %25 = vector.load %arg5[%c0_12, %c0_13] : memref<64x128xbf16, #tpu.memory_space<vmem>>, vector<64x128xbf16>
    %cst_14 = arith.constant dense<0.000000e+00> : vector<16x128xf32>
    %26 = tpu.matmul %24, %25, %cst_14 {dimension_numbers = #tpu.dot_dimension_numbers<[1], [0], [0], [1], [0, 0, 1, 1], [], []>} : vector<16x64xbf16>, vector<64x128xbf16>, vector<16x128xf32> -> vector<16x128xf32>
    %27 = arith.maximumf %16, %26 : vector<16x128xf32>
    %28 = vector.extract_strided_slice %5 {offsets = [0, 2], sizes = [16, 1], strides = [1, 1]} : vector<16x4xi32> to vector<16x1xi32>
    %29 = vector.broadcast %28 : vector<16x1xi32> to vector<16x16xi32>
    %30 = arith.cmpi eq, %6, %29 : vector<16x16xi32>
    %31 = arith.extui %30 : vector<16x16xi1> to vector<16x16xi32>
    %32 = arith.sitofp %31 : vector<16x16xi32> to vector<16x16xf32>
    %33 = arith.truncf %32 : vector<16x16xf32> to vector<16x16xbf16>
    %cst_15 = arith.constant dense<0.000000e+00> : vector<16x64xf32>
    %34 = tpu.matmul %33, %1, %cst_15 {dimension_numbers = #tpu.dot_dimension_numbers<[1], [0], [0], [1], [0, 0, 1, 1], [], []>} : vector<16x16xbf16>, vector<16x64xbf16>, vector<16x64xf32> -> vector<16x64xf32>
    %35 = arith.truncf %34 : vector<16x64xf32> to vector<16x64xbf16>
    %c0_16 = arith.constant 0 : index
    %c0_17 = arith.constant 0 : index
    %36 = vector.load %arg5[%c0_16, %c0_17] : memref<64x128xbf16, #tpu.memory_space<vmem>>, vector<64x128xbf16>
    %cst_18 = arith.constant dense<0.000000e+00> : vector<16x128xf32>
    %37 = tpu.matmul %35, %36, %cst_18 {dimension_numbers = #tpu.dot_dimension_numbers<[1], [0], [0], [1], [0, 0, 1, 1], [], []>} : vector<16x64xbf16>, vector<64x128xbf16>, vector<16x128xf32> -> vector<16x128xf32>
    %38 = arith.maximumf %27, %37 : vector<16x128xf32>
    %39 = vector.extract_strided_slice %5 {offsets = [0, 3], sizes = [16, 1], strides = [1, 1]} : vector<16x4xi32> to vector<16x1xi32>
    %40 = vector.broadcast %39 : vector<16x1xi32> to vector<16x16xi32>
    %41 = arith.cmpi eq, %6, %40 : vector<16x16xi32>
    %42 = arith.extui %41 : vector<16x16xi1> to vector<16x16xi32>
    %43 = arith.sitofp %42 : vector<16x16xi32> to vector<16x16xf32>
    %44 = arith.truncf %43 : vector<16x16xf32> to vector<16x16xbf16>
    %cst_19 = arith.constant dense<0.000000e+00> : vector<16x64xf32>
    %45 = tpu.matmul %44, %1, %cst_19 {dimension_numbers = #tpu.dot_dimension_numbers<[1], [0], [0], [1], [0, 0, 1, 1], [], []>} : vector<16x16xbf16>, vector<16x64xbf16>, vector<16x64xf32> -> vector<16x64xf32>
    %46 = arith.truncf %45 : vector<16x64xf32> to vector<16x64xbf16>
    %c0_20 = arith.constant 0 : index
    %c0_21 = arith.constant 0 : index
    %47 = vector.load %arg5[%c0_20, %c0_21] : memref<64x128xbf16, #tpu.memory_space<vmem>>, vector<64x128xbf16>
    %cst_22 = arith.constant dense<0.000000e+00> : vector<16x128xf32>
    %48 = tpu.matmul %46, %47, %cst_22 {dimension_numbers = #tpu.dot_dimension_numbers<[1], [0], [0], [1], [0, 0, 1, 1], [], []>} : vector<16x64xbf16>, vector<64x128xbf16>, vector<16x128xf32> -> vector<16x128xf32>
    %49 = arith.maximumf %38, %48 : vector<16x128xf32>
    %c0_23 = arith.constant 0 : index
    %c0_24 = arith.constant 0 : index
    %50 = vector.load %arg6[%c0_23, %c0_24] : memref<64x128xbf16, #tpu.memory_space<vmem>>, vector<64x128xbf16>
    %cst_25 = arith.constant dense<0.000000e+00> : vector<16x128xf32>
    %51 = tpu.matmul %3, %50, %cst_25 {dimension_numbers = #tpu.dot_dimension_numbers<[1], [0], [0], [1], [0, 0, 1, 1], [], []>} : vector<16x64xbf16>, vector<64x128xbf16>, vector<16x128xf32> -> vector<16x128xf32>
    %52 = arith.addf %49, %51 : vector<16x128xf32>
    %c0_26 = arith.constant 0 : index
    %c0_27 = arith.constant 0 : index
    %53 = vector.load %arg7[%c0_26, %c0_27] : memref<1x128xf32, #tpu.memory_space<vmem>>, vector<1x128xf32>
    %54 = vector.broadcast %53 : vector<1x128xf32> to vector<16x128xf32>
    %55 = arith.mulf %52, %54 : vector<16x128xf32>
    %c0_28 = arith.constant 0 : index
    %c0_29 = arith.constant 0 : index
    %56 = vector.load %arg8[%c0_28, %c0_29] : memref<1x128xf32, #tpu.memory_space<vmem>>, vector<1x128xf32>
    %57 = vector.broadcast %56 : vector<1x128xf32> to vector<16x128xf32>
    %58 = arith.addf %55, %57 : vector<16x128xf32>
    %cst_30 = arith.constant 2.000000e-01 : f32
    %59 = vector.broadcast %cst_30 : f32 to vector<16x128xf32>
    %60 = arith.mulf %59, %58 : vector<16x128xf32>
    %61 = arith.maximumf %58, %60 : vector<16x128xf32>
    %62 = arith.truncf %61 : vector<16x128xf32> to vector<16x128xbf16>
    %c0_31 = arith.constant 0 : index
    %c0_32 = arith.constant 0 : index
    %c0_33 = arith.constant 0 : index
    %63 = vector.load %arg9[%c0_31, %c0_32, %c0_33] : memref<1x16x128xbf16, #tpu.memory_space<vmem>>, vector<1x16x128xbf16>
    %64 = vector.shape_cast %63 : vector<1x16x128xbf16> to vector<16x128xbf16>
    %65 = vector.shape_cast %62 : vector<16x128xbf16> to vector<1x16x128xbf16>
    tpu.vector_store %arg9[%c0_31, %c0_32, %c0_33], %65 {strides = array<i32>} : memref<1x16x128xbf16, #tpu.memory_space<vmem>>, vector<1x16x128xbf16>,
    return
  }
  func.func @transform_0(%arg0: i32, %arg1: i32) -> (i32, i32, i32) {
    %c0_i32 = arith.constant 0 : i32
    %c0_i32_0 = arith.constant 0 : i32
    %c0_i32_1 = arith.constant 0 : i32
    return %arg0, %c0_i32, %c0_i32_0 : i32, i32, i32
  }
  func.func @transform_1(%arg0: i32, %arg1: i32) -> (i32, i32, i32) {
    %c0_i32 = arith.constant 0 : i32
    %c0_i32_0 = arith.constant 0 : i32
    return %arg0, %arg1, %c0_i32 : i32, i32, i32
  }
  func.func @transform_2(%arg0: i32, %arg1: i32) -> (i32, i32, i32) {
    %c0_i32 = arith.constant 0 : i32
    %c0_i32_0 = arith.constant 0 : i32
    return %arg0, %arg1, %c0_i32 : i32, i32, i32
  }
  func.func @transform_3(%arg0: i32, %arg1: i32) -> (i32, i32) {
    %c0_i32 = arith.constant 0 : i32
    %c0_i32_0 = arith.constant 0 : i32
    %c0_i32_1 = arith.constant 0 : i32
    return %c0_i32, %c0_i32_0 : i32, i32
  }
  func.func @transform_4(%arg0: i32, %arg1: i32) -> (i32, i32) {
    %c0_i32 = arith.constant 0 : i32
    %c0_i32_0 = arith.constant 0 : i32
    %c0_i32_1 = arith.constant 0 : i32
    return %c0_i32, %c0_i32_0 : i32, i32
  }
  func.func @transform_5(%arg0: i32, %arg1: i32) -> (i32, i32) {
    %c0_i32 = arith.constant 0 : i32
    %c0_i32_0 = arith.constant 0 : i32
    %c0_i32_1 = arith.constant 0 : i32
    return %c0_i32, %c0_i32_0 : i32, i32
  }
  func.func @transform_6(%arg0: i32, %arg1: i32) -> (i32, i32) {
    %c0_i32 = arith.constant 0 : i32
    %c0_i32_0 = arith.constant 0 : i32
    %c0_i32_1 = arith.constant 0 : i32
    return %c0_i32, %c0_i32_0 : i32, i32
  }
  func.func @transform_7(%arg0: i32, %arg1: i32) -> (i32, i32, i32) {
    %c0_i32 = arith.constant 0 : i32
    %c0_i32_0 = arith.constant 0 : i32
    return %arg0, %arg1, %c0_i32 : i32, i32, i32
  }
}

module attributes {stable_mosaic.version = 11 : i64} {
  func.func @knn_kernel(%arg0: i32, %arg1: i32, %arg2: memref<1x16x128xbf16, #tpu.memory_space<vmem>>, %arg3: memref<1x128x16xbf16, #tpu.memory_space<vmem>>, %arg4: memref<1x1x16xf32, #tpu.memory_space<vmem>>, %arg5: memref<1x16x4xi32, #tpu.memory_space<vmem>>) attributes {dimension_semantics = [#tpu.dimension_semantics<parallel>, #tpu.dimension_semantics<parallel>], iteration_bounds = array<i64: 2, 1>, scalar_prefetch = 0 : i64, scratch_operands = 0 : i64, tpu.core_type = #tpu.core_type<tc>, window_params = [{transform_indices = @transform_0, window_bounds = array<i64: 1, 16, 128>}, {transform_indices = @transform_1, window_bounds = array<i64: 1, 128, 16>}, {transform_indices = @transform_2, window_bounds = array<i64: 1, 1, 16>}, {transform_indices = @transform_3, window_bounds = array<i64: 1, 16, 4>}]} {
    %c0 = arith.constant 0 : index
    %c0_0 = arith.constant 0 : index
    %c0_1 = arith.constant 0 : index
    %0 = vector.load %arg2[%c0, %c0_0, %c0_1] : memref<1x16x128xbf16, #tpu.memory_space<vmem>>, vector<1x16x128xbf16>
    %1 = vector.shape_cast %0 : vector<1x16x128xbf16> to vector<16x128xbf16>
    %c0_2 = arith.constant 0 : index
    %c0_3 = arith.constant 0 : index
    %c0_4 = arith.constant 0 : index
    %2 = vector.load %arg3[%c0_2, %c0_3, %c0_4] : memref<1x128x16xbf16, #tpu.memory_space<vmem>>, vector<1x128x16xbf16>
    %3 = vector.shape_cast %2 : vector<1x128x16xbf16> to vector<128x16xbf16>
    %cst = arith.constant dense<0.000000e+00> : vector<16x16xf32>
    %4 = tpu.matmul %1, %3, %cst {dimension_numbers = #tpu.dot_dimension_numbers<[1], [0], [0], [1], [0, 0, 1, 1], [], []>} : vector<16x128xbf16>, vector<128x16xbf16>, vector<16x16xf32> -> vector<16x16xf32>
    %cst_5 = arith.constant 2.000000e+00 : f32
    %5 = vector.broadcast %cst_5 : f32 to vector<16x16xf32>
    %6 = arith.mulf %5, %4 : vector<16x16xf32>
    %c0_6 = arith.constant 0 : index
    %c0_7 = arith.constant 0 : index
    %c0_8 = arith.constant 0 : index
    %7 = vector.load %arg4[%c0_6, %c0_7, %c0_8] : memref<1x1x16xf32, #tpu.memory_space<vmem>>, vector<1x1x16xf32>
    %8 = vector.shape_cast %7 : vector<1x1x16xf32> to vector<1x16xf32>
    %9 = vector.broadcast %8 : vector<1x16xf32> to vector<16x16xf32>
    %10 = arith.subf %6, %9 : vector<16x16xf32>
    %11 = tpu.iota {dimensions = array<i32: 1>} : vector<16x16xi32>
    %12 = arith.sitofp %11 : vector<16x16xi32> to vector<16x16xf32>
    %13 = tpu.iota {dimensions = array<i32: 1>} : vector<16x4xi32>
    %cst_9 = arith.constant 0.000000e+00 : f32
    %14 = vector.broadcast %cst_9 : f32 to vector<16x4xf32>
    %cst_10 = arith.constant dense<0xFF800000> : vector<16xf32>
    %15 = vector.multi_reduction <maximumf>, %10, %cst_10 [1] : vector<16x16xf32> to vector<16xf32>
    %16 = vector.shape_cast %15 : vector<16xf32> to vector<16x1xf32>
    %17 = vector.broadcast %16 : vector<16x1xf32> to vector<16x16xf32>
    %18 = arith.cmpf oeq, %10, %17 : vector<16x16xf32>
    %cst_11 = arith.constant 1.600000e+01 : f32
    %19 = vector.broadcast %cst_11 : f32 to vector<16x16xf32>
    %20 = arith.select %18, %12, %19 : vector<16x16xi1>, vector<16x16xf32>
    %cst_12 = arith.constant dense<0x7F800000> : vector<16xf32>
    %21 = vector.multi_reduction <minimumf>, %20, %cst_12 [1] : vector<16x16xf32> to vector<16xf32>
    %22 = vector.shape_cast %21 : vector<16xf32> to vector<16x1xf32>
    %c0_i32 = arith.constant 0 : i32
    %23 = vector.broadcast %c0_i32 : i32 to vector<16x4xi32>
    %24 = arith.cmpi eq, %13, %23 : vector<16x4xi32>
    %25 = vector.shape_cast %22 : vector<16x1xf32> to vector<16x1xf32>
    %26 = vector.broadcast %25 : vector<16x1xf32> to vector<16x4xf32>
    %27 = arith.select %24, %26, %14 : vector<16x4xi1>, vector<16x4xf32>
    %28 = vector.broadcast %22 : vector<16x1xf32> to vector<16x16xf32>
    %29 = arith.cmpf oeq, %12, %28 : vector<16x16xf32>
    %cst_13 = arith.constant 0xFF800000 : f32
    %30 = vector.broadcast %cst_13 : f32 to vector<16x16xf32>
    %31 = arith.select %29, %30, %10 : vector<16x16xi1>, vector<16x16xf32>
    %cst_14 = arith.constant dense<0xFF800000> : vector<16xf32>
    %32 = vector.multi_reduction <maximumf>, %31, %cst_14 [1] : vector<16x16xf32> to vector<16xf32>
    %33 = vector.shape_cast %32 : vector<16xf32> to vector<16x1xf32>
    %34 = vector.broadcast %33 : vector<16x1xf32> to vector<16x16xf32>
    %35 = arith.cmpf oeq, %31, %34 : vector<16x16xf32>
    %cst_15 = arith.constant 1.600000e+01 : f32
    %36 = vector.broadcast %cst_15 : f32 to vector<16x16xf32>
    %37 = arith.select %35, %12, %36 : vector<16x16xi1>, vector<16x16xf32>
    %cst_16 = arith.constant dense<0x7F800000> : vector<16xf32>
    %38 = vector.multi_reduction <minimumf>, %37, %cst_16 [1] : vector<16x16xf32> to vector<16xf32>
    %39 = vector.shape_cast %38 : vector<16xf32> to vector<16x1xf32>
    %c1_i32 = arith.constant 1 : i32
    %40 = vector.broadcast %c1_i32 : i32 to vector<16x4xi32>
    %41 = arith.cmpi eq, %13, %40 : vector<16x4xi32>
    %42 = vector.shape_cast %39 : vector<16x1xf32> to vector<16x1xf32>
    %43 = vector.broadcast %42 : vector<16x1xf32> to vector<16x4xf32>
    %44 = arith.select %41, %43, %27 : vector<16x4xi1>, vector<16x4xf32>
    %45 = vector.broadcast %39 : vector<16x1xf32> to vector<16x16xf32>
    %46 = arith.cmpf oeq, %12, %45 : vector<16x16xf32>
    %cst_17 = arith.constant 0xFF800000 : f32
    %47 = vector.broadcast %cst_17 : f32 to vector<16x16xf32>
    %48 = arith.select %46, %47, %31 : vector<16x16xi1>, vector<16x16xf32>
    %cst_18 = arith.constant dense<0xFF800000> : vector<16xf32>
    %49 = vector.multi_reduction <maximumf>, %48, %cst_18 [1] : vector<16x16xf32> to vector<16xf32>
    %50 = vector.shape_cast %49 : vector<16xf32> to vector<16x1xf32>
    %51 = vector.broadcast %50 : vector<16x1xf32> to vector<16x16xf32>
    %52 = arith.cmpf oeq, %48, %51 : vector<16x16xf32>
    %cst_19 = arith.constant 1.600000e+01 : f32
    %53 = vector.broadcast %cst_19 : f32 to vector<16x16xf32>
    %54 = arith.select %52, %12, %53 : vector<16x16xi1>, vector<16x16xf32>
    %cst_20 = arith.constant dense<0x7F800000> : vector<16xf32>
    %55 = vector.multi_reduction <minimumf>, %54, %cst_20 [1] : vector<16x16xf32> to vector<16xf32>
    %56 = vector.shape_cast %55 : vector<16xf32> to vector<16x1xf32>
    %c2_i32 = arith.constant 2 : i32
    %57 = vector.broadcast %c2_i32 : i32 to vector<16x4xi32>
    %58 = arith.cmpi eq, %13, %57 : vector<16x4xi32>
    %59 = vector.shape_cast %56 : vector<16x1xf32> to vector<16x1xf32>
    %60 = vector.broadcast %59 : vector<16x1xf32> to vector<16x4xf32>
    %61 = arith.select %58, %60, %44 : vector<16x4xi1>, vector<16x4xf32>
    %62 = vector.broadcast %56 : vector<16x1xf32> to vector<16x16xf32>
    %63 = arith.cmpf oeq, %12, %62 : vector<16x16xf32>
    %cst_21 = arith.constant 0xFF800000 : f32
    %64 = vector.broadcast %cst_21 : f32 to vector<16x16xf32>
    %65 = arith.select %63, %64, %48 : vector<16x16xi1>, vector<16x16xf32>
    %cst_22 = arith.constant dense<0xFF800000> : vector<16xf32>
    %66 = vector.multi_reduction <maximumf>, %65, %cst_22 [1] : vector<16x16xf32> to vector<16xf32>
    %67 = vector.shape_cast %66 : vector<16xf32> to vector<16x1xf32>
    %68 = vector.broadcast %67 : vector<16x1xf32> to vector<16x16xf32>
    %69 = arith.cmpf oeq, %65, %68 : vector<16x16xf32>
    %cst_23 = arith.constant 1.600000e+01 : f32
    %70 = vector.broadcast %cst_23 : f32 to vector<16x16xf32>
    %71 = arith.select %69, %12, %70 : vector<16x16xi1>, vector<16x16xf32>
    %cst_24 = arith.constant dense<0x7F800000> : vector<16xf32>
    %72 = vector.multi_reduction <minimumf>, %71, %cst_24 [1] : vector<16x16xf32> to vector<16xf32>
    %73 = vector.shape_cast %72 : vector<16xf32> to vector<16x1xf32>
    %c3_i32 = arith.constant 3 : i32
    %74 = vector.broadcast %c3_i32 : i32 to vector<16x4xi32>
    %75 = arith.cmpi eq, %13, %74 : vector<16x4xi32>
    %76 = vector.shape_cast %73 : vector<16x1xf32> to vector<16x1xf32>
    %77 = vector.broadcast %76 : vector<16x1xf32> to vector<16x4xf32>
    %78 = arith.select %75, %77, %61 : vector<16x4xi1>, vector<16x4xf32>
    %79 = arith.fptosi %78 : vector<16x4xf32> to vector<16x4xi32>
    %c0_25 = arith.constant 0 : index
    %c0_26 = arith.constant 0 : index
    %c0_27 = arith.constant 0 : index
    %80 = vector.load %arg5[%c0_25, %c0_26, %c0_27] : memref<1x16x4xi32, #tpu.memory_space<vmem>>, vector<1x16x4xi32>
    %81 = vector.shape_cast %80 : vector<1x16x4xi32> to vector<16x4xi32>
    %82 = vector.shape_cast %79 : vector<16x4xi32> to vector<1x16x4xi32>
    tpu.vector_store %arg5[%c0_25, %c0_26, %c0_27], %82 {strides = array<i32>} : memref<1x16x4xi32, #tpu.memory_space<vmem>>, vector<1x16x4xi32>,
    return
  }
  func.func @transform_0(%arg0: i32, %arg1: i32) -> (i32, i32, i32) {
    %c0_i32 = arith.constant 0 : i32
    %c0_i32_0 = arith.constant 0 : i32
    return %arg0, %arg1, %c0_i32 : i32, i32, i32
  }
  func.func @transform_1(%arg0: i32, %arg1: i32) -> (i32, i32, i32) {
    %c0_i32 = arith.constant 0 : i32
    %c0_i32_0 = arith.constant 0 : i32
    %c0_i32_1 = arith.constant 0 : i32
    return %arg0, %c0_i32, %c0_i32_0 : i32, i32, i32
  }
  func.func @transform_2(%arg0: i32, %arg1: i32) -> (i32, i32, i32) {
    %c0_i32 = arith.constant 0 : i32
    %c0_i32_0 = arith.constant 0 : i32
    %c0_i32_1 = arith.constant 0 : i32
    return %arg0, %c0_i32, %c0_i32_0 : i32, i32, i32
  }
  func.func @transform_3(%arg0: i32, %arg1: i32) -> (i32, i32, i32) {
    %c0_i32 = arith.constant 0 : i32
    %c0_i32_0 = arith.constant 0 : i32
    return %arg0, %arg1, %c0_i32 : i32, i32, i32
  }
}

module attributes {stable_mosaic.version = 11 : i64} {
  func.func @edge_conv_kernel(%arg0: i32, %arg1: i32, %arg2: memref<1x16x128xbf16, #tpu.memory_space<vmem>>, %arg3: memref<1x16x128xbf16, #tpu.memory_space<vmem>>, %arg4: memref<1x16x4xi32, #tpu.memory_space<vmem>>, %arg5: memref<128x256xbf16, #tpu.memory_space<vmem>>, %arg6: memref<128x256xbf16, #tpu.memory_space<vmem>>, %arg7: memref<1x256xf32, #tpu.memory_space<vmem>>, %arg8: memref<1x256xf32, #tpu.memory_space<vmem>>, %arg9: memref<1x16x256xbf16, #tpu.memory_space<vmem>>) attributes {dimension_semantics = [#tpu.dimension_semantics<parallel>, #tpu.dimension_semantics<parallel>], iteration_bounds = array<i64: 2, 1>, scalar_prefetch = 0 : i64, scratch_operands = 0 : i64, tpu.core_type = #tpu.core_type<tc>, window_params = [{transform_indices = @transform_0, window_bounds = array<i64: 1, 16, 128>}, {transform_indices = @transform_1, window_bounds = array<i64: 1, 16, 128>}, {transform_indices = @transform_2, window_bounds = array<i64: 1, 16, 4>}, {pipeline_mode = #tpu.pipeline_mode<synchronous>, transform_indices = @transform_3, window_bounds = array<i64: 128, 256>}, {pipeline_mode = #tpu.pipeline_mode<synchronous>, transform_indices = @transform_4, window_bounds = array<i64: 128, 256>}, {pipeline_mode = #tpu.pipeline_mode<synchronous>, transform_indices = @transform_5, window_bounds = array<i64: 1, 256>}, {pipeline_mode = #tpu.pipeline_mode<synchronous>, transform_indices = @transform_6, window_bounds = array<i64: 1, 256>}, {transform_indices = @transform_7, window_bounds = array<i64: 1, 16, 256>}]} {
    %c0 = arith.constant 0 : index
    %c0_0 = arith.constant 0 : index
    %c0_1 = arith.constant 0 : index
    %0 = vector.load %arg2[%c0, %c0_0, %c0_1] : memref<1x16x128xbf16, #tpu.memory_space<vmem>>, vector<1x16x128xbf16>
    %1 = vector.shape_cast %0 : vector<1x16x128xbf16> to vector<16x128xbf16>
    %c0_2 = arith.constant 0 : index
    %c0_3 = arith.constant 0 : index
    %c0_4 = arith.constant 0 : index
    %2 = vector.load %arg3[%c0_2, %c0_3, %c0_4] : memref<1x16x128xbf16, #tpu.memory_space<vmem>>, vector<1x16x128xbf16>
    %3 = vector.shape_cast %2 : vector<1x16x128xbf16> to vector<16x128xbf16>
    %c0_5 = arith.constant 0 : index
    %c0_6 = arith.constant 0 : index
    %c0_7 = arith.constant 0 : index
    %4 = vector.load %arg4[%c0_5, %c0_6, %c0_7] : memref<1x16x4xi32, #tpu.memory_space<vmem>>, vector<1x16x4xi32>
    %5 = vector.shape_cast %4 : vector<1x16x4xi32> to vector<16x4xi32>
    %6 = tpu.iota {dimensions = array<i32: 1>} : vector<16x16xi32>
    %7 = vector.extract_strided_slice %5 {offsets = [0, 0], sizes = [16, 1], strides = [1, 1]} : vector<16x4xi32> to vector<16x1xi32>
    %8 = vector.broadcast %7 : vector<16x1xi32> to vector<16x16xi32>
    %9 = arith.cmpi eq, %6, %8 : vector<16x16xi32>
    %10 = arith.extui %9 : vector<16x16xi1> to vector<16x16xi32>
    %11 = arith.sitofp %10 : vector<16x16xi32> to vector<16x16xf32>
    %12 = arith.truncf %11 : vector<16x16xf32> to vector<16x16xbf16>
    %cst = arith.constant dense<0.000000e+00> : vector<16x128xf32>
    %13 = tpu.matmul %12, %1, %cst {dimension_numbers = #tpu.dot_dimension_numbers<[1], [0], [0], [1], [0, 0, 1, 1], [], []>} : vector<16x16xbf16>, vector<16x128xbf16>, vector<16x128xf32> -> vector<16x128xf32>
    %14 = arith.truncf %13 : vector<16x128xf32> to vector<16x128xbf16>
    %c0_8 = arith.constant 0 : index
    %c0_9 = arith.constant 0 : index
    %15 = vector.load %arg5[%c0_8, %c0_9] : memref<128x256xbf16, #tpu.memory_space<vmem>>, vector<128x256xbf16>
    %cst_10 = arith.constant dense<0.000000e+00> : vector<16x256xf32>
    %16 = tpu.matmul %14, %15, %cst_10 {dimension_numbers = #tpu.dot_dimension_numbers<[1], [0], [0], [1], [0, 0, 1, 1], [], []>} : vector<16x128xbf16>, vector<128x256xbf16>, vector<16x256xf32> -> vector<16x256xf32>
    %17 = vector.extract_strided_slice %5 {offsets = [0, 1], sizes = [16, 1], strides = [1, 1]} : vector<16x4xi32> to vector<16x1xi32>
    %18 = vector.broadcast %17 : vector<16x1xi32> to vector<16x16xi32>
    %19 = arith.cmpi eq, %6, %18 : vector<16x16xi32>
    %20 = arith.extui %19 : vector<16x16xi1> to vector<16x16xi32>
    %21 = arith.sitofp %20 : vector<16x16xi32> to vector<16x16xf32>
    %22 = arith.truncf %21 : vector<16x16xf32> to vector<16x16xbf16>
    %cst_11 = arith.constant dense<0.000000e+00> : vector<16x128xf32>
    %23 = tpu.matmul %22, %1, %cst_11 {dimension_numbers = #tpu.dot_dimension_numbers<[1], [0], [0], [1], [0, 0, 1, 1], [], []>} : vector<16x16xbf16>, vector<16x128xbf16>, vector<16x128xf32> -> vector<16x128xf32>
    %24 = arith.truncf %23 : vector<16x128xf32> to vector<16x128xbf16>
    %c0_12 = arith.constant 0 : index
    %c0_13 = arith.constant 0 : index
    %25 = vector.load %arg5[%c0_12, %c0_13] : memref<128x256xbf16, #tpu.memory_space<vmem>>, vector<128x256xbf16>
    %cst_14 = arith.constant dense<0.000000e+00> : vector<16x256xf32>
    %26 = tpu.matmul %24, %25, %cst_14 {dimension_numbers = #tpu.dot_dimension_numbers<[1], [0], [0], [1], [0, 0, 1, 1], [], []>} : vector<16x128xbf16>, vector<128x256xbf16>, vector<16x256xf32> -> vector<16x256xf32>
    %27 = arith.maximumf %16, %26 : vector<16x256xf32>
    %28 = vector.extract_strided_slice %5 {offsets = [0, 2], sizes = [16, 1], strides = [1, 1]} : vector<16x4xi32> to vector<16x1xi32>
    %29 = vector.broadcast %28 : vector<16x1xi32> to vector<16x16xi32>
    %30 = arith.cmpi eq, %6, %29 : vector<16x16xi32>
    %31 = arith.extui %30 : vector<16x16xi1> to vector<16x16xi32>
    %32 = arith.sitofp %31 : vector<16x16xi32> to vector<16x16xf32>
    %33 = arith.truncf %32 : vector<16x16xf32> to vector<16x16xbf16>
    %cst_15 = arith.constant dense<0.000000e+00> : vector<16x128xf32>
    %34 = tpu.matmul %33, %1, %cst_15 {dimension_numbers = #tpu.dot_dimension_numbers<[1], [0], [0], [1], [0, 0, 1, 1], [], []>} : vector<16x16xbf16>, vector<16x128xbf16>, vector<16x128xf32> -> vector<16x128xf32>
    %35 = arith.truncf %34 : vector<16x128xf32> to vector<16x128xbf16>
    %c0_16 = arith.constant 0 : index
    %c0_17 = arith.constant 0 : index
    %36 = vector.load %arg5[%c0_16, %c0_17] : memref<128x256xbf16, #tpu.memory_space<vmem>>, vector<128x256xbf16>
    %cst_18 = arith.constant dense<0.000000e+00> : vector<16x256xf32>
    %37 = tpu.matmul %35, %36, %cst_18 {dimension_numbers = #tpu.dot_dimension_numbers<[1], [0], [0], [1], [0, 0, 1, 1], [], []>} : vector<16x128xbf16>, vector<128x256xbf16>, vector<16x256xf32> -> vector<16x256xf32>
    %38 = arith.maximumf %27, %37 : vector<16x256xf32>
    %39 = vector.extract_strided_slice %5 {offsets = [0, 3], sizes = [16, 1], strides = [1, 1]} : vector<16x4xi32> to vector<16x1xi32>
    %40 = vector.broadcast %39 : vector<16x1xi32> to vector<16x16xi32>
    %41 = arith.cmpi eq, %6, %40 : vector<16x16xi32>
    %42 = arith.extui %41 : vector<16x16xi1> to vector<16x16xi32>
    %43 = arith.sitofp %42 : vector<16x16xi32> to vector<16x16xf32>
    %44 = arith.truncf %43 : vector<16x16xf32> to vector<16x16xbf16>
    %cst_19 = arith.constant dense<0.000000e+00> : vector<16x128xf32>
    %45 = tpu.matmul %44, %1, %cst_19 {dimension_numbers = #tpu.dot_dimension_numbers<[1], [0], [0], [1], [0, 0, 1, 1], [], []>} : vector<16x16xbf16>, vector<16x128xbf16>, vector<16x128xf32> -> vector<16x128xf32>
    %46 = arith.truncf %45 : vector<16x128xf32> to vector<16x128xbf16>
    %c0_20 = arith.constant 0 : index
    %c0_21 = arith.constant 0 : index
    %47 = vector.load %arg5[%c0_20, %c0_21] : memref<128x256xbf16, #tpu.memory_space<vmem>>, vector<128x256xbf16>
    %cst_22 = arith.constant dense<0.000000e+00> : vector<16x256xf32>
    %48 = tpu.matmul %46, %47, %cst_22 {dimension_numbers = #tpu.dot_dimension_numbers<[1], [0], [0], [1], [0, 0, 1, 1], [], []>} : vector<16x128xbf16>, vector<128x256xbf16>, vector<16x256xf32> -> vector<16x256xf32>
    %49 = arith.maximumf %38, %48 : vector<16x256xf32>
    %c0_23 = arith.constant 0 : index
    %c0_24 = arith.constant 0 : index
    %50 = vector.load %arg6[%c0_23, %c0_24] : memref<128x256xbf16, #tpu.memory_space<vmem>>, vector<128x256xbf16>
    %cst_25 = arith.constant dense<0.000000e+00> : vector<16x256xf32>
    %51 = tpu.matmul %3, %50, %cst_25 {dimension_numbers = #tpu.dot_dimension_numbers<[1], [0], [0], [1], [0, 0, 1, 1], [], []>} : vector<16x128xbf16>, vector<128x256xbf16>, vector<16x256xf32> -> vector<16x256xf32>
    %52 = arith.addf %49, %51 : vector<16x256xf32>
    %c0_26 = arith.constant 0 : index
    %c0_27 = arith.constant 0 : index
    %53 = vector.load %arg7[%c0_26, %c0_27] : memref<1x256xf32, #tpu.memory_space<vmem>>, vector<1x256xf32>
    %54 = vector.broadcast %53 : vector<1x256xf32> to vector<16x256xf32>
    %55 = arith.mulf %52, %54 : vector<16x256xf32>
    %c0_28 = arith.constant 0 : index
    %c0_29 = arith.constant 0 : index
    %56 = vector.load %arg8[%c0_28, %c0_29] : memref<1x256xf32, #tpu.memory_space<vmem>>, vector<1x256xf32>
    %57 = vector.broadcast %56 : vector<1x256xf32> to vector<16x256xf32>
    %58 = arith.addf %55, %57 : vector<16x256xf32>
    %cst_30 = arith.constant 2.000000e-01 : f32
    %59 = vector.broadcast %cst_30 : f32 to vector<16x256xf32>
    %60 = arith.mulf %59, %58 : vector<16x256xf32>
    %61 = arith.maximumf %58, %60 : vector<16x256xf32>
    %62 = arith.truncf %61 : vector<16x256xf32> to vector<16x256xbf16>
    %c0_31 = arith.constant 0 : index
    %c0_32 = arith.constant 0 : index
    %c0_33 = arith.constant 0 : index
    %63 = vector.load %arg9[%c0_31, %c0_32, %c0_33] : memref<1x16x256xbf16, #tpu.memory_space<vmem>>, vector<1x16x256xbf16>
    %64 = vector.shape_cast %63 : vector<1x16x256xbf16> to vector<16x256xbf16>
    %65 = vector.shape_cast %62 : vector<16x256xbf16> to vector<1x16x256xbf16>
    tpu.vector_store %arg9[%c0_31, %c0_32, %c0_33], %65 {strides = array<i32>} : memref<1x16x256xbf16, #tpu.memory_space<vmem>>, vector<1x16x256xbf16>,
    return
  }
  func.func @transform_0(%arg0: i32, %arg1: i32) -> (i32, i32, i32) {
    %c0_i32 = arith.constant 0 : i32
    %c0_i32_0 = arith.constant 0 : i32
    %c0_i32_1 = arith.constant 0 : i32
    return %arg0, %c0_i32, %c0_i32_0 : i32, i32, i32
  }
  func.func @transform_1(%arg0: i32, %arg1: i32) -> (i32, i32, i32) {
    %c0_i32 = arith.constant 0 : i32
    %c0_i32_0 = arith.constant 0 : i32
    return %arg0, %arg1, %c0_i32 : i32, i32, i32
  }
  func.func @transform_2(%arg0: i32, %arg1: i32) -> (i32, i32, i32) {
    %c0_i32 = arith.constant 0 : i32
    %c0_i32_0 = arith.constant 0 : i32
    return %arg0, %arg1, %c0_i32 : i32, i32, i32
  }
  func.func @transform_3(%arg0: i32, %arg1: i32) -> (i32, i32) {
    %c0_i32 = arith.constant 0 : i32
    %c0_i32_0 = arith.constant 0 : i32
    %c0_i32_1 = arith.constant 0 : i32
    return %c0_i32, %c0_i32_0 : i32, i32
  }
  func.func @transform_4(%arg0: i32, %arg1: i32) -> (i32, i32) {
    %c0_i32 = arith.constant 0 : i32
    %c0_i32_0 = arith.constant 0 : i32
    %c0_i32_1 = arith.constant 0 : i32
    return %c0_i32, %c0_i32_0 : i32, i32
  }
  func.func @transform_5(%arg0: i32, %arg1: i32) -> (i32, i32) {
    %c0_i32 = arith.constant 0 : i32
    %c0_i32_0 = arith.constant 0 : i32
    %c0_i32_1 = arith.constant 0 : i32
    return %c0_i32, %c0_i32_0 : i32, i32
  }
  func.func @transform_6(%arg0: i32, %arg1: i32) -> (i32, i32) {
    %c0_i32 = arith.constant 0 : i32
    %c0_i32_0 = arith.constant 0 : i32
    %c0_i32_1 = arith.constant 0 : i32
    return %c0_i32, %c0_i32_0 : i32, i32
  }
  func.func @transform_7(%arg0: i32, %arg1: i32) -> (i32, i32, i32) {
    %c0_i32 = arith.constant 0 : i32
    %c0_i32_0 = arith.constant 0 : i32
    return %arg0, %arg1, %c0_i32 : i32, i32, i32
  }
}

module attributes {stable_mosaic.version = 11 : i64} {
  func.func @conv5_head_kernel(%arg0: i32, %arg1: i32, %arg2: memref<1x16x64xbf16, #tpu.memory_space<vmem>>, %arg3: memref<1x16x64xbf16, #tpu.memory_space<vmem>>, %arg4: memref<1x16x128xbf16, #tpu.memory_space<vmem>>, %arg5: memref<1x16x256xbf16, #tpu.memory_space<vmem>>, %arg6: memref<64x64xbf16, #tpu.memory_space<vmem>>, %arg7: memref<64x64xbf16, #tpu.memory_space<vmem>>, %arg8: memref<128x64xbf16, #tpu.memory_space<vmem>>, %arg9: memref<256x64xbf16, #tpu.memory_space<vmem>>, %arg10: memref<1x64xf32, #tpu.memory_space<vmem>>, %arg11: memref<1x64xf32, #tpu.memory_space<vmem>>, %arg12: memref<64x512xbf16, #tpu.memory_space<vmem>>, %arg13: memref<64x512xbf16, #tpu.memory_space<vmem>>, %arg14: memref<1x512xf32, #tpu.memory_space<vmem>>, %arg15: memref<1x512xf32, #tpu.memory_space<vmem>>, %arg16: memref<512x256xbf16, #tpu.memory_space<vmem>>, %arg17: memref<1x256xf32, #tpu.memory_space<vmem>>, %arg18: memref<1x256xf32, #tpu.memory_space<vmem>>, %arg19: memref<1x256xf32, #tpu.memory_space<vmem>>, %arg20: memref<256x8xbf16, #tpu.memory_space<vmem>>, %arg21: memref<1x8xf32, #tpu.memory_space<vmem>>, %arg22: memref<1x1x8xf32, #tpu.memory_space<vmem>>, %arg23: memref<1x64xf32, #tpu.memory_space<vmem>>, %arg24: memref<1x64xf32, #tpu.memory_space<vmem>>) attributes {dimension_semantics = [#tpu.dimension_semantics<parallel>, #tpu.dimension_semantics<arbitrary>], iteration_bounds = array<i64: 2, 1>, scalar_prefetch = 0 : i64, scratch_operands = 2 : i64, tpu.core_type = #tpu.core_type<tc>, window_params = [{transform_indices = @transform_0, window_bounds = array<i64: 1, 16, 64>}, {transform_indices = @transform_1, window_bounds = array<i64: 1, 16, 64>}, {transform_indices = @transform_2, window_bounds = array<i64: 1, 16, 128>}, {transform_indices = @transform_3, window_bounds = array<i64: 1, 16, 256>}, {pipeline_mode = #tpu.pipeline_mode<synchronous>, transform_indices = @transform_4, window_bounds = array<i64: 64, 64>}, {pipeline_mode = #tpu.pipeline_mode<synchronous>, transform_indices = @transform_5, window_bounds = array<i64: 64, 64>}, {pipeline_mode = #tpu.pipeline_mode<synchronous>, transform_indices = @transform_6, window_bounds = array<i64: 128, 64>}, {pipeline_mode = #tpu.pipeline_mode<synchronous>, transform_indices = @transform_7, window_bounds = array<i64: 256, 64>}, {pipeline_mode = #tpu.pipeline_mode<synchronous>, transform_indices = @transform_8, window_bounds = array<i64: 1, 64>}, {pipeline_mode = #tpu.pipeline_mode<synchronous>, transform_indices = @transform_9, window_bounds = array<i64: 1, 64>}, {pipeline_mode = #tpu.pipeline_mode<synchronous>, transform_indices = @transform_10, window_bounds = array<i64: 64, 512>}, {pipeline_mode = #tpu.pipeline_mode<synchronous>, transform_indices = @transform_11, window_bounds = array<i64: 64, 512>}, {pipeline_mode = #tpu.pipeline_mode<synchronous>, transform_indices = @transform_12, window_bounds = array<i64: 1, 512>}, {pipeline_mode = #tpu.pipeline_mode<synchronous>, transform_indices = @transform_13, window_bounds = array<i64: 1, 512>}, {pipeline_mode = #tpu.pipeline_mode<synchronous>, transform_indices = @transform_14, window_bounds = array<i64: 512, 256>}, {pipeline_mode = #tpu.pipeline_mode<synchronous>, transform_indices = @transform_15, window_bounds = array<i64: 1, 256>}, {pipeline_mode = #tpu.pipeline_mode<synchronous>, transform_indices = @transform_16, window_bounds = array<i64: 1, 256>}, {pipeline_mode = #tpu.pipeline_mode<synchronous>, transform_indices = @transform_17, window_bounds = array<i64: 1, 256>}, {pipeline_mode = #tpu.pipeline_mode<synchronous>, transform_indices = @transform_18, window_bounds = array<i64: 256, 8>}, {pipeline_mode = #tpu.pipeline_mode<synchronous>, transform_indices = @transform_19, window_bounds = array<i64: 1, 8>}, {transform_indices = @transform_20, window_bounds = array<i64: 1, 1, 8>}]} {
    %c0_i32 = arith.constant 0 : i32
    %0 = arith.cmpi eq, %arg1, %c0_i32 : i32
    %1 = arith.extui %0 : i1 to i32
    %c0_i32_0 = arith.constant 0 : i32
    %2 = arith.cmpi ne, %1, %c0_i32_0 : i32
    scf.if %2 {
      %cst_40 = arith.constant 0xFF800000 : f32
      %44 = vector.broadcast %cst_40 : f32 to vector<1x64xf32>
      %c0_41 = arith.constant 0 : index
      %c0_42 = arith.constant 0 : index
      %45 = vector.load %arg23[%c0_41, %c0_42] : memref<1x64xf32, #tpu.memory_space<vmem>>, vector<1x64xf32>
      tpu.vector_store %arg23[%c0_41, %c0_42], %44 {strides = array<i32>} : memref<1x64xf32, #tpu.memory_space<vmem>>, vector<1x64xf32>,
      %cst_43 = arith.constant 0.000000e+00 : f32
      %46 = vector.broadcast %cst_43 : f32 to vector<1x64xf32>
      %c0_44 = arith.constant 0 : index
      %c0_45 = arith.constant 0 : index
      %47 = vector.load %arg24[%c0_44, %c0_45] : memref<1x64xf32, #tpu.memory_space<vmem>>, vector<1x64xf32>
      tpu.vector_store %arg24[%c0_44, %c0_45], %46 {strides = array<i32>} : memref<1x64xf32, #tpu.memory_space<vmem>>, vector<1x64xf32>,
    } else {
    }
    %c0 = arith.constant 0 : index
    %c0_1 = arith.constant 0 : index
    %c0_2 = arith.constant 0 : index
    %3 = vector.load %arg2[%c0, %c0_1, %c0_2] : memref<1x16x64xbf16, #tpu.memory_space<vmem>>, vector<1x16x64xbf16>
    %4 = vector.shape_cast %3 : vector<1x16x64xbf16> to vector<16x64xbf16>
    %c0_3 = arith.constant 0 : index
    %c0_4 = arith.constant 0 : index
    %5 = vector.load %arg6[%c0_3, %c0_4] : memref<64x64xbf16, #tpu.memory_space<vmem>>, vector<64x64xbf16>
    %cst = arith.constant dense<0.000000e+00> : vector<16x64xf32>
    %6 = tpu.matmul %4, %5, %cst {dimension_numbers = #tpu.dot_dimension_numbers<[1], [0], [0], [1], [0, 0, 1, 1], [], []>} : vector<16x64xbf16>, vector<64x64xbf16>, vector<16x64xf32> -> vector<16x64xf32>
    %c0_5 = arith.constant 0 : index
    %c0_6 = arith.constant 0 : index
    %c0_7 = arith.constant 0 : index
    %7 = vector.load %arg3[%c0_5, %c0_6, %c0_7] : memref<1x16x64xbf16, #tpu.memory_space<vmem>>, vector<1x16x64xbf16>
    %8 = vector.shape_cast %7 : vector<1x16x64xbf16> to vector<16x64xbf16>
    %c0_8 = arith.constant 0 : index
    %c0_9 = arith.constant 0 : index
    %9 = vector.load %arg7[%c0_8, %c0_9] : memref<64x64xbf16, #tpu.memory_space<vmem>>, vector<64x64xbf16>
    %cst_10 = arith.constant dense<0.000000e+00> : vector<16x64xf32>
    %10 = tpu.matmul %8, %9, %cst_10 {dimension_numbers = #tpu.dot_dimension_numbers<[1], [0], [0], [1], [0, 0, 1, 1], [], []>} : vector<16x64xbf16>, vector<64x64xbf16>, vector<16x64xf32> -> vector<16x64xf32>
    %11 = arith.addf %6, %10 : vector<16x64xf32>
    %c0_11 = arith.constant 0 : index
    %c0_12 = arith.constant 0 : index
    %c0_13 = arith.constant 0 : index
    %12 = vector.load %arg4[%c0_11, %c0_12, %c0_13] : memref<1x16x128xbf16, #tpu.memory_space<vmem>>, vector<1x16x128xbf16>
    %13 = vector.shape_cast %12 : vector<1x16x128xbf16> to vector<16x128xbf16>
    %c0_14 = arith.constant 0 : index
    %c0_15 = arith.constant 0 : index
    %14 = vector.load %arg8[%c0_14, %c0_15] : memref<128x64xbf16, #tpu.memory_space<vmem>>, vector<128x64xbf16>
    %cst_16 = arith.constant dense<0.000000e+00> : vector<16x64xf32>
    %15 = tpu.matmul %13, %14, %cst_16 {dimension_numbers = #tpu.dot_dimension_numbers<[1], [0], [0], [1], [0, 0, 1, 1], [], []>} : vector<16x128xbf16>, vector<128x64xbf16>, vector<16x64xf32> -> vector<16x64xf32>
    %16 = arith.addf %11, %15 : vector<16x64xf32>
    %c0_17 = arith.constant 0 : index
    %c0_18 = arith.constant 0 : index
    %c0_19 = arith.constant 0 : index
    %17 = vector.load %arg5[%c0_17, %c0_18, %c0_19] : memref<1x16x256xbf16, #tpu.memory_space<vmem>>, vector<1x16x256xbf16>
    %18 = vector.shape_cast %17 : vector<1x16x256xbf16> to vector<16x256xbf16>
    %c0_20 = arith.constant 0 : index
    %c0_21 = arith.constant 0 : index
    %19 = vector.load %arg9[%c0_20, %c0_21] : memref<256x64xbf16, #tpu.memory_space<vmem>>, vector<256x64xbf16>
    %cst_22 = arith.constant dense<0.000000e+00> : vector<16x64xf32>
    %20 = tpu.matmul %18, %19, %cst_22 {dimension_numbers = #tpu.dot_dimension_numbers<[1], [0], [0], [1], [0, 0, 1, 1], [], []>} : vector<16x256xbf16>, vector<256x64xbf16>, vector<16x64xf32> -> vector<16x64xf32>
    %21 = arith.addf %16, %20 : vector<16x64xf32>
    %c0_23 = arith.constant 0 : index
    %c0_24 = arith.constant 0 : index
    %22 = vector.load %arg10[%c0_23, %c0_24] : memref<1x64xf32, #tpu.memory_space<vmem>>, vector<1x64xf32>
    %23 = vector.broadcast %22 : vector<1x64xf32> to vector<16x64xf32>
    %24 = arith.mulf %21, %23 : vector<16x64xf32>
    %c0_25 = arith.constant 0 : index
    %c0_26 = arith.constant 0 : index
    %25 = vector.load %arg11[%c0_25, %c0_26] : memref<1x64xf32, #tpu.memory_space<vmem>>, vector<1x64xf32>
    %26 = vector.broadcast %25 : vector<1x64xf32> to vector<16x64xf32>
    %27 = arith.addf %24, %26 : vector<16x64xf32>
    %cst_27 = arith.constant 2.000000e-01 : f32
    %28 = vector.broadcast %cst_27 : f32 to vector<16x64xf32>
    %29 = arith.mulf %28, %27 : vector<16x64xf32>
    %30 = arith.maximumf %27, %29 : vector<16x64xf32>
    %c0_28 = arith.constant 0 : index
    %c0_29 = arith.constant 0 : index
    %31 = vector.load %arg23[%c0_28, %c0_29] : memref<1x64xf32, #tpu.memory_space<vmem>>, vector<1x64xf32>
    %cst_30 = arith.constant dense<0xFF800000> : vector<64xf32>
    %32 = vector.multi_reduction <maximumf>, %30, %cst_30 [0] : vector<16x64xf32> to vector<64xf32>
    %33 = vector.shape_cast %32 : vector<64xf32> to vector<1x64xf32>
    %34 = arith.maximumf %31, %33 : vector<1x64xf32>
    %c0_31 = arith.constant 0 : index
    %c0_32 = arith.constant 0 : index
    %35 = vector.load %arg23[%c0_31, %c0_32] : memref<1x64xf32, #tpu.memory_space<vmem>>, vector<1x64xf32>
    tpu.vector_store %arg23[%c0_31, %c0_32], %34 {strides = array<i32>} : memref<1x64xf32, #tpu.memory_space<vmem>>, vector<1x64xf32>,
    %c0_33 = arith.constant 0 : index
    %c0_34 = arith.constant 0 : index
    %36 = vector.load %arg24[%c0_33, %c0_34] : memref<1x64xf32, #tpu.memory_space<vmem>>, vector<1x64xf32>
    %cst_35 = arith.constant dense<0.000000e+00> : vector<64xf32>
    %37 = vector.multi_reduction <add>, %30, %cst_35 [0] : vector<16x64xf32> to vector<64xf32>
    %38 = vector.shape_cast %37 : vector<64xf32> to vector<1x64xf32>
    %39 = arith.addf %36, %38 : vector<1x64xf32>
    %c0_36 = arith.constant 0 : index
    %c0_37 = arith.constant 0 : index
    %40 = vector.load %arg24[%c0_36, %c0_37] : memref<1x64xf32, #tpu.memory_space<vmem>>, vector<1x64xf32>
    tpu.vector_store %arg24[%c0_36, %c0_37], %39 {strides = array<i32>} : memref<1x64xf32, #tpu.memory_space<vmem>>, vector<1x64xf32>,
    %c0_i32_38 = arith.constant 0 : i32
    %41 = arith.cmpi eq, %arg1, %c0_i32_38 : i32
    %42 = arith.extui %41 : i1 to i32
    %c0_i32_39 = arith.constant 0 : i32
    %43 = arith.cmpi ne, %42, %c0_i32_39 : i32
    scf.if %43 {
      %c0_40 = arith.constant 0 : index
      %c0_41 = arith.constant 0 : index
      %44 = vector.load %arg23[%c0_40, %c0_41] : memref<1x64xf32, #tpu.memory_space<vmem>>, vector<1x64xf32>
      %c0_42 = arith.constant 0 : index
      %c0_43 = arith.constant 0 : index
      %45 = vector.load %arg24[%c0_42, %c0_43] : memref<1x64xf32, #tpu.memory_space<vmem>>, vector<1x64xf32>
      %cst_44 = arith.constant 6.250000e-02 : f32
      %46 = vector.broadcast %cst_44 : f32 to vector<1x64xf32>
      %47 = arith.mulf %45, %46 : vector<1x64xf32>
      %48 = arith.truncf %44 : vector<1x64xf32> to vector<1x64xbf16>
      %c0_45 = arith.constant 0 : index
      %c0_46 = arith.constant 0 : index
      %49 = vector.load %arg12[%c0_45, %c0_46] : memref<64x512xbf16, #tpu.memory_space<vmem>>, vector<64x512xbf16>
      %cst_47 = arith.constant dense<0.000000e+00> : vector<1x512xf32>
      %50 = tpu.matmul %48, %49, %cst_47 {dimension_numbers = #tpu.dot_dimension_numbers<[1], [0], [0], [1], [0, 0, 1, 1], [], []>} : vector<1x64xbf16>, vector<64x512xbf16>, vector<1x512xf32> -> vector<1x512xf32>
      %51 = arith.truncf %47 : vector<1x64xf32> to vector<1x64xbf16>
      %c0_48 = arith.constant 0 : index
      %c0_49 = arith.constant 0 : index
      %52 = vector.load %arg13[%c0_48, %c0_49] : memref<64x512xbf16, #tpu.memory_space<vmem>>, vector<64x512xbf16>
      %cst_50 = arith.constant dense<0.000000e+00> : vector<1x512xf32>
      %53 = tpu.matmul %51, %52, %cst_50 {dimension_numbers = #tpu.dot_dimension_numbers<[1], [0], [0], [1], [0, 0, 1, 1], [], []>} : vector<1x64xbf16>, vector<64x512xbf16>, vector<1x512xf32> -> vector<1x512xf32>
      %54 = arith.addf %50, %53 : vector<1x512xf32>
      %c0_51 = arith.constant 0 : index
      %c0_52 = arith.constant 0 : index
      %55 = vector.load %arg14[%c0_51, %c0_52] : memref<1x512xf32, #tpu.memory_space<vmem>>, vector<1x512xf32>
      %56 = arith.mulf %54, %55 : vector<1x512xf32>
      %c0_53 = arith.constant 0 : index
      %c0_54 = arith.constant 0 : index
      %57 = vector.load %arg15[%c0_53, %c0_54] : memref<1x512xf32, #tpu.memory_space<vmem>>, vector<1x512xf32>
      %58 = arith.addf %56, %57 : vector<1x512xf32>
      %cst_55 = arith.constant 2.000000e-01 : f32
      %59 = vector.broadcast %cst_55 : f32 to vector<1x512xf32>
      %60 = arith.mulf %59, %58 : vector<1x512xf32>
      %61 = arith.maximumf %58, %60 : vector<1x512xf32>
      %62 = arith.truncf %61 : vector<1x512xf32> to vector<1x512xbf16>
      %c0_56 = arith.constant 0 : index
      %c0_57 = arith.constant 0 : index
      %63 = vector.load %arg16[%c0_56, %c0_57] : memref<512x256xbf16, #tpu.memory_space<vmem>>, vector<512x256xbf16>
      %cst_58 = arith.constant dense<0.000000e+00> : vector<1x256xf32>
      %64 = tpu.matmul %62, %63, %cst_58 {dimension_numbers = #tpu.dot_dimension_numbers<[1], [0], [0], [1], [0, 0, 1, 1], [], []>} : vector<1x512xbf16>, vector<512x256xbf16>, vector<1x256xf32> -> vector<1x256xf32>
      %c0_59 = arith.constant 0 : index
      %c0_60 = arith.constant 0 : index
      %65 = vector.load %arg17[%c0_59, %c0_60] : memref<1x256xf32, #tpu.memory_space<vmem>>, vector<1x256xf32>
      %66 = arith.addf %64, %65 : vector<1x256xf32>
      %c0_61 = arith.constant 0 : index
      %c0_62 = arith.constant 0 : index
      %67 = vector.load %arg18[%c0_61, %c0_62] : memref<1x256xf32, #tpu.memory_space<vmem>>, vector<1x256xf32>
      %68 = arith.mulf %66, %67 : vector<1x256xf32>
      %c0_63 = arith.constant 0 : index
      %c0_64 = arith.constant 0 : index
      %69 = vector.load %arg19[%c0_63, %c0_64] : memref<1x256xf32, #tpu.memory_space<vmem>>, vector<1x256xf32>
      %70 = arith.addf %68, %69 : vector<1x256xf32>
      %cst_65 = arith.constant 2.000000e-01 : f32
      %71 = vector.broadcast %cst_65 : f32 to vector<1x256xf32>
      %72 = arith.mulf %71, %70 : vector<1x256xf32>
      %73 = arith.maximumf %70, %72 : vector<1x256xf32>
      %74 = arith.truncf %73 : vector<1x256xf32> to vector<1x256xbf16>
      %c0_66 = arith.constant 0 : index
      %c0_67 = arith.constant 0 : index
      %75 = vector.load %arg20[%c0_66, %c0_67] : memref<256x8xbf16, #tpu.memory_space<vmem>>, vector<256x8xbf16>
      %cst_68 = arith.constant dense<0.000000e+00> : vector<1x8xf32>
      %76 = tpu.matmul %74, %75, %cst_68 {dimension_numbers = #tpu.dot_dimension_numbers<[1], [0], [0], [1], [0, 0, 1, 1], [], []>} : vector<1x256xbf16>, vector<256x8xbf16>, vector<1x8xf32> -> vector<1x8xf32>
      %c0_69 = arith.constant 0 : index
      %c0_70 = arith.constant 0 : index
      %77 = vector.load %arg21[%c0_69, %c0_70] : memref<1x8xf32, #tpu.memory_space<vmem>>, vector<1x8xf32>
      %78 = arith.addf %76, %77 : vector<1x8xf32>
      %c0_71 = arith.constant 0 : index
      %c0_72 = arith.constant 0 : index
      %c0_73 = arith.constant 0 : index
      %79 = vector.load %arg22[%c0_71, %c0_72, %c0_73] : memref<1x1x8xf32, #tpu.memory_space<vmem>>, vector<1x1x8xf32>
      %80 = vector.shape_cast %79 : vector<1x1x8xf32> to vector<1x8xf32>
      %81 = vector.shape_cast %78 : vector<1x8xf32> to vector<1x1x8xf32>
      tpu.vector_store %arg22[%c0_71, %c0_72, %c0_73], %81 {strides = array<i32>} : memref<1x1x8xf32, #tpu.memory_space<vmem>>, vector<1x1x8xf32>,
    } else {
    }
    return
  }
  func.func @transform_0(%arg0: i32, %arg1: i32) -> (i32, i32, i32) {
    %c0_i32 = arith.constant 0 : i32
    %c0_i32_0 = arith.constant 0 : i32
    return %arg0, %arg1, %c0_i32 : i32, i32, i32
  }
  func.func @transform_1(%arg0: i32, %arg1: i32) -> (i32, i32, i32) {
    %c0_i32 = arith.constant 0 : i32
    %c0_i32_0 = arith.constant 0 : i32
    return %arg0, %arg1, %c0_i32 : i32, i32, i32
  }
  func.func @transform_2(%arg0: i32, %arg1: i32) -> (i32, i32, i32) {
    %c0_i32 = arith.constant 0 : i32
    %c0_i32_0 = arith.constant 0 : i32
    return %arg0, %arg1, %c0_i32 : i32, i32, i32
  }
  func.func @transform_3(%arg0: i32, %arg1: i32) -> (i32, i32, i32) {
    %c0_i32 = arith.constant 0 : i32
    %c0_i32_0 = arith.constant 0 : i32
    return %arg0, %arg1, %c0_i32 : i32, i32, i32
  }
  func.func @transform_4(%arg0: i32, %arg1: i32) -> (i32, i32) {
    %c0_i32 = arith.constant 0 : i32
    %c0_i32_0 = arith.constant 0 : i32
    %c0_i32_1 = arith.constant 0 : i32
    return %c0_i32, %c0_i32_0 : i32, i32
  }
  func.func @transform_5(%arg0: i32, %arg1: i32) -> (i32, i32) {
    %c0_i32 = arith.constant 0 : i32
    %c0_i32_0 = arith.constant 0 : i32
    %c0_i32_1 = arith.constant 0 : i32
    return %c0_i32, %c0_i32_0 : i32, i32
  }
  func.func @transform_6(%arg0: i32, %arg1: i32) -> (i32, i32) {
    %c0_i32 = arith.constant 0 : i32
    %c0_i32_0 = arith.constant 0 : i32
    %c0_i32_1 = arith.constant 0 : i32
    return %c0_i32, %c0_i32_0 : i32, i32
  }
  func.func @transform_7(%arg0: i32, %arg1: i32) -> (i32, i32) {
    %c0_i32 = arith.constant 0 : i32
    %c0_i32_0 = arith.constant 0 : i32
    %c0_i32_1 = arith.constant 0 : i32
    return %c0_i32, %c0_i32_0 : i32, i32
  }
  func.func @transform_8(%arg0: i32, %arg1: i32) -> (i32, i32) {
    %c0_i32 = arith.constant 0 : i32
    %c0_i32_0 = arith.constant 0 : i32
    %c0_i32_1 = arith.constant 0 : i32
    return %c0_i32, %c0_i32_0 : i32, i32
  }
  func.func @transform_9(%arg0: i32, %arg1: i32) -> (i32, i32) {
    %c0_i32 = arith.constant 0 : i32
    %c0_i32_0 = arith.constant 0 : i32
    %c0_i32_1 = arith.constant 0 : i32
    return %c0_i32, %c0_i32_0 : i32, i32
  }
  func.func @transform_10(%arg0: i32, %arg1: i32) -> (i32, i32) {
    %c0_i32 = arith.constant 0 : i32
    %c0_i32_0 = arith.constant 0 : i32
    %c0_i32_1 = arith.constant 0 : i32
    return %c0_i32, %c0_i32_0 : i32, i32
  }
  func.func @transform_11(%arg0: i32, %arg1: i32) -> (i32, i32) {
    %c0_i32 = arith.constant 0 : i32
    %c0_i32_0 = arith.constant 0 : i32
    %c0_i32_1 = arith.constant 0 : i32
    return %c0_i32, %c0_i32_0 : i32, i32
  }
  func.func @transform_12(%arg0: i32, %arg1: i32) -> (i32, i32) {
    %c0_i32 = arith.constant 0 : i32
    %c0_i32_0 = arith.constant 0 : i32
    %c0_i32_1 = arith.constant 0 : i32
    return %c0_i32, %c0_i32_0 : i32, i32
  }
  func.func @transform_13(%arg0: i32, %arg1: i32) -> (i32, i32) {
    %c0_i32 = arith.constant 0 : i32
    %c0_i32_0 = arith.constant 0 : i32
    %c0_i32_1 = arith.constant 0 : i32
    return %c0_i32, %c0_i32_0 : i32, i32
  }
  func.func @transform_14(%arg0: i32, %arg1: i32) -> (i32, i32) {
    %c0_i32 = arith.constant 0 : i32
    %c0_i32_0 = arith.constant 0 : i32
    %c0_i32_1 = arith.constant 0 : i32
    return %c0_i32, %c0_i32_0 : i32, i32
  }
  func.func @transform_15(%arg0: i32, %arg1: i32) -> (i32, i32) {
    %c0_i32 = arith.constant 0 : i32
    %c0_i32_0 = arith.constant 0 : i32
    %c0_i32_1 = arith.constant 0 : i32
    return %c0_i32, %c0_i32_0 : i32, i32
  }
  func.func @transform_16(%arg0: i32, %arg1: i32) -> (i32, i32) {
    %c0_i32 = arith.constant 0 : i32
    %c0_i32_0 = arith.constant 0 : i32
    %c0_i32_1 = arith.constant 0 : i32
    return %c0_i32, %c0_i32_0 : i32, i32
  }
  func.func @transform_17(%arg0: i32, %arg1: i32) -> (i32, i32) {
    %c0_i32 = arith.constant 0 : i32
    %c0_i32_0 = arith.constant 0 : i32
    %c0_i32_1 = arith.constant 0 : i32
    return %c0_i32, %c0_i32_0 : i32, i32
  }
  func.func @transform_18(%arg0: i32, %arg1: i32) -> (i32, i32) {
    %c0_i32 = arith.constant 0 : i32
    %c0_i32_0 = arith.constant 0 : i32
    %c0_i32_1 = arith.constant 0 : i32
    return %c0_i32, %c0_i32_0 : i32, i32
  }
  func.func @transform_19(%arg0: i32, %arg1: i32) -> (i32, i32) {
    %c0_i32 = arith.constant 0 : i32
    %c0_i32_0 = arith.constant 0 : i32
    %c0_i32_1 = arith.constant 0 : i32
    return %c0_i32, %c0_i32_0 : i32, i32
  }
  func.func @transform_20(%arg0: i32, %arg1: i32) -> (i32, i32, i32) {
    %c0_i32 = arith.constant 0 : i32
    %c0_i32_0 = arith.constant 0 : i32
    %c0_i32_1 = arith.constant 0 : i32
    return %arg0, %c0_i32, %c0_i32_0 : i32, i32, i32
  }
}

</mosaic_0001>

<llo_original>
// kernel: dgcnn_forward.9
$region0: #{dgcnn_forward.9}
  #allocation0 [shape = 'u32[]', space=smem, size = 0x4, offset = 0x4, fixed_abs, tag = 'smem constant byte address 0x4 - core index']
  #allocation1 [shape = 'u32[144,128]{1,0:T(1,128)}', space=vmem, size = 0x12000, scoped, tag = 'internal scratch']
  %s0 = inlined_call_operand.vmem [shape: bf16[2,16,8], index: 0, kind: input, shape index: {}]
  %s1 = inlined_call_operand.vmem [shape: bf16[2,8,16], index: 1, kind: input, shape index: {}]
  %s2 = inlined_call_operand.vmem [shape: f32[2,1,16], index: 2, kind: input, shape index: {}]
  %s3 = inlined_call_operand.vmem [shape: s32[2,16,4], index: 3, kind: output, shape index: {}]
  %s4 = sld [smem:[#allocation0]]
  $region45: #{dgcnn_forward.9} parent=0
    _
  %s6 = ssub.s32 1, %s4
  %s7 = scalar_select 0, %s6, %s4
  loop: start=0, step=1, limit=4
  $region2: #{dgcnn_forward.9} parent=0 // loop_pre_header
    _
  $region3: #{dgcnn_forward.9} parent=0 // loop_header
    %s9 = sphi 0, %s13
    %p10 = scmp.ge.s32.totalorder %s9, 4
    %s16 = sphi 0, %s28
    %s17 = sphi 0, %s24
    %s18 = sphi 0, %s16
    %s19 = sphi 0, %s17
    %s20 = sphi 0, %s18
    %s21 = sphi 0, %s19
    %s33 = sphi 0, %s35
    %s36 = sphi 0, %s33
    %s37 = sphi 0, %s36
    %s53 = sphi 0, %s37
    %s59 = sphi 0, %s61
    %s62 = sphi 0, %s59
    %s63 = sphi 0, %s62
    %s79 = sphi 0, %s63
    %s85 = sphi 0, %s87
    %s88 = sphi 0, %s85
    %s89 = sphi 0, %s88
    %s105 = sphi 0, %s89
    %s113 = sphi 0, %s115
    %s116 = sphi 0, %s113
    %s117 = sphi 0, %s116
    %s133 = sphi 0, %s117
  $region4: #{dgcnn_forward.9} parent=0 // loop_header_branch
    %12 = sbr.rel (%p10) target = $region8
  $region5: #{dgcnn_forward.9} parent=0 // loop_body
    %s14 = ssub.s32 %s9, 1
    %s15 = ssub.s32 %s9, 2
    %s22 = sadd.s32 1, %s17
    %p23 = scmp.ge.s32.totalorder %s22, 1
    %s24 = scalar_select %p23, 0, %s22
    %s25 = sadd.s32 1, %s16
    %s26 = scalar_select %p23, %s25, %s16
    %p27 = scmp.ge.s32.totalorder %s26, 2
    %s28 = scalar_select %p27, 0, %s26
    %s29 = ssub.s32 %s16, %s28
    %s30 = ssub.s32 %s17, %s24
    %s31 = sor.u32 %s29, %s30
    %p32 = scmp.eq.s32.totalorder %s31, 0
    %s34 = sadd.s32 %s33, 1
    %s35 = scalar_select %p32, %s33, %s34
    %p38 = pneg %p32
    %p39 = scmp.eq.s32.totalorder %s9, 1
    %p40 = por %p38, %p39
    %p41 = scmp.ne.s32.totalorder %s33, %s36
    %p42 = scmp.eq.s32.totalorder %s9, 0
    %p43 = por %p41, %p42
    %p44 = scmp.ne.s32.totalorder %s33, %s36
    %p45 = scmp.eq.s32.totalorder %s14, 1
    %p46 = por %p44, %p45
    %p47 = scmp.ne.s32.totalorder %s36, %s37
    %p48 = scmp.eq.s32.totalorder %s14, 0
    %p49 = por %p47, %p48
    %p50 = scmp.ne.s32.totalorder %s36, %s37
    %p51 = scmp.eq.s32.totalorder %s15, 1
    %p52 = por %p50, %p51
    %p54 = scmp.ne.s32.totalorder %s37, %s53
    %p55 = scmp.eq.s32.totalorder %s15, 0
    %p56 = por %p54, %p55
    %s57 = ssub.s32 %s16, %s28
    %p58 = scmp.eq.s32.totalorder %s57, 0
    %s60 = sadd.s32 %s59, 1
    %s61 = scalar_select %p58, %s59, %s60
    %p64 = pneg %p58
    %p65 = scmp.eq.s32.totalorder %s9, 1
    %p66 = por %p64, %p65
    %p67 = scmp.ne.s32.totalorder %s59, %s62
    %p68 = scmp.eq.s32.totalorder %s9, 0
    %p69 = por %p67, %p68
    %p70 = scmp.ne.s32.totalorder %s59, %s62
    %p71 = scmp.eq.s32.totalorder %s14, 1
    %p72 = por %p70, %p71
    %p73 = scmp.ne.s32.totalorder %s62, %s63
    %p74 = scmp.eq.s32.totalorder %s14, 0
    %p75 = por %p73, %p74
    %p76 = scmp.ne.s32.totalorder %s62, %s63
    %p77 = scmp.eq.s32.totalorder %s15, 1
    %p78 = por %p76, %p77
    %p80 = scmp.ne.s32.totalorder %s63, %s79
    %p81 = scmp.eq.s32.totalorder %s15, 0
    %p82 = por %p80, %p81
    %s83 = ssub.s32 %s16, %s28
    %p84 = scmp.eq.s32.totalorder %s83, 0
    %s86 = sadd.s32 %s85, 1
    %s87 = scalar_select %p84, %s85, %s86
    %p90 = pneg %p84
    %p91 = scmp.eq.s32.totalorder %s9, 1
    %p92 = por %p90, %p91
    %p93 = scmp.ne.s32.totalorder %s85, %s88
    %p94 = scmp.eq.s32.totalorder %s9, 0
    %p95 = por %p93, %p94
    %p96 = scmp.ne.s32.totalorder %s85, %s88
    %p97 = scmp.eq.s32.totalorder %s14, 1
    %p98 = por %p96, %p97
    %p99 = scmp.ne.s32.totalorder %s88, %s89
    %p100 = scmp.eq.s32.totalorder %s14, 0
    %p101 = por %p99, %p100
    %p102 = scmp.ne.s32.totalorder %s88, %s89
    %p103 = scmp.eq.s32.totalorder %s15, 1
    %p104 = por %p102, %p103
    %p106 = scmp.ne.s32.totalorder %s89, %s105
    %p107 = scmp.eq.s32.totalorder %s15, 0
    %p108 = por %p106, %p107
    %s109 = ssub.s32 %s16, %s28
    %s110 = ssub.s32 %s17, %s24
    %s111 = sor.u32 %s109, %s110
    %p112 = scmp.eq.s32.totalorder %s111, 0
    %s114 = sadd.s32 %s113, 1
    %s115 = scalar_select %p112, %s113, %s114
    %p118 = pneg %p112
    %p119 = scmp.eq.s32.totalorder %s9, 1
    %p120 = por %p118, %p119
    %p121 = scmp.ne.s32.totalorder %s113, %s116
    %p122 = scmp.eq.s32.totalorder %s9, 0
    %p123 = por %p121, %p122
    %p124 = scmp.ne.s32.totalorder %s113, %s116
    %p125 = scmp.eq.s32.totalorder %s14, 1
    %p126 = por %p124, %p125
    %p127 = scmp.ne.s32.totalorder %s116, %s117
    %p128 = scmp.eq.s32.totalorder %s14, 0
    %p129 = por %p127, %p128
    %p130 = scmp.ne.s32.totalorder %s116, %s117
    %p131 = scmp.eq.s32.totalorder %s15, 1
    %p132 = por %p130, %p131
    %p134 = scmp.ne.s32.totalorder %s117, %s133
    %p135 = scmp.eq.s32.totalorder %s15, 0
    %p136 = por %p134, %p135
    %p137 = scmp.le.s32.totalorder 1, %s9
    %p138 = scmp.lt.s32.totalorder %s9, 3
    %p139 = pnand %p137, %p138
    %p140 = pneg %p139
    // Predicated region
    $region9: #{dgcnn_forward.9} parent=5 // pred_check
      _
    $region10: #{dgcnn_forward.9} parent=5 // pred_check_branch
      %142 = sbr.rel (%p139) target = $region12
    $region11: #{dgcnn_forward.9} parent=5 // pred_region
      %s143 = ssub.s32 %s9, 1
    $region12: #{dgcnn_forward.9} parent=5 // pred_fallthru
      _
    %p144 = scmp.lt.s32.totalorder %s9, 2
    // Predicated region
    $region13: #{dgcnn_forward.9} parent=5 // pred_check
      %p145 = pneg %p144
    $region14: #{dgcnn_forward.9} parent=5 // pred_check_branch
      %147 = sbr.rel (%p145) target = $region16
    $region15: #{dgcnn_forward.9} parent=5 // pred_region
      // Predicated region
      $region17: #{dgcnn_forward.9} parent=15 // pred_check
        %p148 = pneg %p43
      $region18: #{dgcnn_forward.9} parent=15 // pred_check_branch
        %150 = sbr.rel (%p148) target = $region20
      $region19: #{dgcnn_forward.9} parent=15 // pred_region
        %s151 = smul.u32 2, %s17
        %p152 = scmp.lt.s32.totalorder %s16, 1
        %s153 = scalar_select %p152, %s16, 1
        %p154 = scmp.lt.s32.totalorder %s151, 1
        %s155 = scalar_select %p154, %s151, 1
        %s156 = smul.addr %s153, 2
        %s157 = sadd.s32 %s155, %s156
        %s158 = smul.addr %s157, 4
        %s159 = scalar_lea.vmem %s0, %s158
        %s160 = smul.u32 2, %s17
      $region20: #{dgcnn_forward.9} parent=15 // pred_fallthru
        _
      // Predicated region
      $region21: #{dgcnn_forward.9} parent=15 // pred_check
        %p161 = pneg %p69
      $region22: #{dgcnn_forward.9} parent=15 // pred_check_branch
        %163 = sbr.rel (%p161) target = $region24
      $region23: #{dgcnn_forward.9} parent=15 // pred_region
        %p164 = scmp.lt.s32.totalorder %s16, 1
        %s165 = scalar_select %p164, %s16, 1
        %s166 = smul.addr %s165, 4
        %s167 = scalar_lea.vmem %s1, %s166
      $region24: #{dgcnn_forward.9} parent=15 // pred_fallthru
        _
      // Predicated region
      $region25: #{dgcnn_forward.9} parent=15 // pred_check
        %p168 = pneg %p95
      $region26: #{dgcnn_forward.9} parent=15 // pred_check_branch
        %170 = sbr.rel (%p168) target = $region28
      $region27: #{dgcnn_forward.9} parent=15 // pred_region
        %p171 = scmp.lt.s32.totalorder %s16, 1
        %s172 = scalar_select %p171, %s16, 1
        %s173 = scalar_lea.vmem %s2, %s172
      $region28: #{dgcnn_forward.9} parent=15 // pred_fallthru
        _
    $region16: #{dgcnn_forward.9} parent=5 // pred_fallthru
      _
    %p174 = scmp.le.s32.totalorder 1, %s9
    %p175 = scmp.lt.s32.totalorder %s9, 3
    %p176 = pnand %p174, %p175
    %p177 = pneg %p176
    // Predicated region
    $region29: #{dgcnn_forward.9} parent=5 // pred_check
      _
    $region30: #{dgcnn_forward.9} parent=5 // pred_check_branch
      %179 = sbr.rel (%p176) target = $region32
    $region31: #{dgcnn_forward.9} parent=5 // pred_region
      %s180 = ssub.s32 %s9, 1
      %s181 = smul.u32 2, %s19
      %p182 = scmp.lt.s32.totalorder %s18, 1
      %s183 = scalar_select %p182, %s18, 1
      %p184 = scmp.lt.s32.totalorder %s181, 1
      %s185 = scalar_select %p184, %s181, 1
      %s186 = smul.addr %s183, 2
      %s187 = sadd.s32 %s185, %s186
      %s188 = smul.addr %s187, 4
      %s189 = scalar_lea.vmem %s0, %s188
      %p190 = pneg %p49
      %p191 = pneg %p46
      %p192 = scmp.lt.s32.totalorder %s18, 1
      %s193 = scalar_select %p192, %s18, 1
      %s194 = smul.addr %s193, 4
      %s195 = scalar_lea.vmem %s1, %s194
      %p196 = pneg %p75
      %p197 = pneg %p72
      %p198 = scmp.lt.s32.totalorder %s18, 1
      %s199 = scalar_select %p198, %s18, 1
      %s200 = scalar_lea.vmem %s2, %s199
      %p201 = pneg %p101
      %p202 = pneg %p98
      %p203 = pneg %p129
      %p204 = pneg %p126
      %s205 = smul.u32 2, %s19
      %p206 = scmp.lt.s32.totalorder %s18, 1
      %s207 = scalar_select %p206, %s18, 1
      %p208 = scmp.lt.s32.totalorder %s205, 1
      %s209 = scalar_select %p208, %s205, 1
      %s210 = smul.addr %s207, 2
      %s211 = sadd.s32 %s209, %s210
      %s212 = smul.addr %s211, 8
      %s213 = scalar_lea.vmem %s3, %s212
      %s214 = smul.u32 2, %s19
      %p215 = scmp.lt.s32.totalorder %s18, 1
      %s216 = scalar_select %p215, %s18, 1
      %p217 = scmp.lt.s32.totalorder %s214, 1
      %s218 = scalar_select %p217, %s214, 1
      %s219 = smul.addr %s216, 2
      %s220 = sadd.s32 %s218, %s219
      %s221 = smul.addr %s220, 4
      %s222 = scalar_lea.vmem %s0, %s221
      %s223 = smul.u32 2, %s19
      %p224 = scmp.lt.s32.totalorder %s18, 1
      %s225 = scalar_select %p224, %s18, 1
      %s226 = smul.addr %s225, 4
      %s227 = scalar_lea.vmem %s1, %s226
      %p228 = scmp.lt.s32.totalorder %s18, 1
      %s229 = scalar_select %p228, %s18, 1
      %s230 = scalar_lea.vmem %s2, %s229
      %s231 = smul.u32 2, %s19
      %p232 = scmp.lt.s32.totalorder %s18, 1
      %s233 = scalar_select %p232, %s18, 1
      %p234 = scmp.lt.s32.totalorder %s231, 1
      %s235 = scalar_select %p234, %s231, 1
      %s236 = smul.addr %s233, 2
      %s237 = sadd.s32 %s235, %s236
      %s238 = smul.addr %s237, 8
      %s239 = scalar_lea.vmem %s3, %s238
      %s240 = smul.u32 2, %s19
      %v242 = vld [vmem:[%s222] sm:$0xf]
      %v243 = vld [vmem:[%s222 + $0x4] sm:$0xf]
      %v244 = vld [vmem:[%s227] sm:$0xf]
      %v247 = vunpack.c.l.b16 %v242
      %v248 = vunpack.c.l.b16 %v243
      %v249 = vpack.c.b16 %v248, %v247
      %vm250 = vcmask 64512
      %v252 = vsel %vm250, %v249, 0
      %vm254 = vcmask 1043456
      %v256 = vsel %vm254, %v244, 0
      %258 = vmatprep.subr.bf16.mxu0 0
      %259 = vmatpush1.bf16.msra.mxu0 %v256
      %260 = vmatprep.subr.bf16.mxu0 0
      %261 = vmatpush1.bf16.msra.mxu0 0
      %262 = vmatprep.subr.bf16.mxu0 0
      %263 = vmatpush1.bf16.msra.mxu0 0
      %264 = vmatprep.subr.bf16.mxu0 0
      %265 = vmatpush1.bf16.msra.mxu0 0
      %266 = vmatprep.subr.bf16.mxu0 0
      %267 = vmatpush1.bf16.msra.mxu0 0
      %268 = vmatprep.subr.bf16.mxu0 0
      %269 = vmatpush1.bf16.msra.mxu0 0
      %270 = vmatprep.subr.bf16.mxu0 0
      %271 = vmatpush1.bf16.msra.mxu0 0
      %272 = vmatprep.subr.bf16.mxu0 0
      %273 = vmatpush1.bf16.msra.mxu0 0
      %274 = vmatprep.subr.bf16.mxu0 0
      %275 = vmatpush1.bf16.msra.mxu0 0
      %276 = vmatprep.subr.bf16.mxu0 0
      %277 = vmatpush1.bf16.msra.mxu0 0
      %278 = vmatprep.subr.bf16.mxu0 0
      %279 = vmatpush1.bf16.msra.mxu0 0
      %280 = vmatprep.subr.bf16.mxu0 0
      %281 = vmatpush1.bf16.msra.mxu0 0
      %282 = vmatprep.subr.bf16.mxu0 0
      %283 = vmatpush1.bf16.msra.mxu0 0
      %284 = vmatprep.subr.bf16.mxu0 0
      %285 = vmatpush1.bf16.msra.mxu0 0
      %286 = vmatprep.subr.bf16.mxu0 0
      %287 = vmatpush1.bf16.msra.mxu0 0
      %288 = vmatprep.subr.bf16.mxu0 0
      %289 = vmatpush1.bf16.msra.mxu0 0
      %290 = vmatprep.mubr.bf16.mxu0 0
      %291 = vmatmul.mubr.bf16.gmra.mrb[0].mxu0 %v252
      %v292 = vpop.f32.mrb[0].mxu0
      %v293 = vadd.f32 0.0, %v292
      %v294 = vpop.f32.mrb[0].mxu0
      %v295 = vpop.f32.mrb[0].mxu0
      %v296 = vadd.f32 0.0, %v295
      %v297 = vpop.f32.mrb[0].mxu0
      %298 = vdwg.mxu0
      %v299 = vmul.f32 %v293, 2.0
      %v300 = vmul.f32 %v296, 2.0
      %v301 = vld [vmem:[%s230] sm:$0x1]
      %v303 = vlaneseq
      %v304 = vshrl.u32 %v303, 7
      %v305 = vsub.s32 0, %v304
      %v306 = vrot.slane %v301, %v305
      %v308 = vsub.f32 %v299, %v306
      %v309 = vsub.f32 %v300, %v306
      %v310 = vlaneseq
      %v311 = vand.u32 %v310, 127
      %v312 = vcvt.s32.f32 %v311
      %vm313 = vcmask 130048
      %v314 = vsel %vm313, %v308, -inf
      %315 = vmax.xlane.f32.xlu0 %v314
      %v316 = vpop.xlane.xlu0 %315
      %v317 = vsel %vm313, %v309, -inf
      %318 = vmax.xlane.f32.xlu0 %v317
      %v319 = vpop.xlane.xlu0 %318
      %vm320 = vcmp.eq.f32.partialorder %v308, %v316
      %vm321 = vcmp.eq.f32.partialorder %v309, %v319
      %v322 = vsel %vm320, %v312, 16.0
      %v323 = vsel %vm321, %v312, 16.0
      %v324 = vsel %vm313, %v322, inf
      %325 = vmin.xlane.f32.xlu0 %v324
      %v326 = vpop.xlane.xlu0 %325
      %v327 = vsel %vm313, %v323, inf
      %328 = vmin.xlane.f32.xlu0 %v327
      %v329 = vpop.xlane.xlu0 %328
      %vm330 = vcmp.eq.s32.totalorder %v311, 0
      %v331 = vsel %vm330, %v326, 0.0
      %v332 = vsel %vm330, %v329, 0.0
      %vm333 = vcmp.eq.f32.partialorder %v312, %v326
      %vm334 = vcmp.eq.f32.partialorder %v312, %v329
      %v335 = vsel %vm333, -inf, %v308
      %v336 = vsel %vm334, -inf, %v309
      %v337 = vsel %vm313, %v335, -inf
      %338 = vmax.xlane.f32.xlu0 %v337
      %v339 = vpop.xlane.xlu0 %338
      %v340 = vsel %vm313, %v336, -inf
      %341 = vmax.xlane.f32.xlu0 %v340
      %v342 = vpop.xlane.xlu0 %341
      %vm343 = vcmp.eq.f32.partialorder %v335, %v339
      %vm344 = vcmp.eq.f32.partialorder %v336, %v342
      %v345 = vsel %vm343, %v312, 16.0
      %v346 = vsel %vm344, %v312, 16.0
      %v347 = vsel %vm313, %v345, inf
      %348 = vmin.xlane.f32.xlu0 %v347
      %v349 = vpop.xlane.xlu0 %348
      %v350 = vsel %vm313, %v346, inf
      %351 = vmin.xlane.f32.xlu0 %v350
      %v352 = vpop.xlane.xlu0 %351
      %vm353 = vcmp.eq.s32.totalorder %v311, 1
      %v354 = vsel %vm353, %v349, %v331
      %v355 = vsel %vm353, %v352, %v332
      %vm356 = vcmp.eq.f32.partialorder %v312, %v349
      %vm357 = vcmp.eq.f32.partialorder %v312, %v352
      %v358 = vsel %vm356, -inf, %v335
      %v359 = vsel %vm357, -inf, %v336
      %v360 = vsel %vm313, %v358, -inf
      %361 = vmax.xlane.f32.xlu0 %v360
      %v362 = vpop.xlane.xlu0 %361
      %v363 = vsel %vm313, %v359, -inf
      %364 = vmax.xlane.f32.xlu0 %v363
      %v365 = vpop.xlane.xlu0 %364
      %vm366 = vcmp.eq.f32.partialorder %v358, %v362
      %vm367 = vcmp.eq.f32.partialorder %v359, %v365
      %v368 = vsel %vm366, %v312, 16.0
      %v369 = vsel %vm367, %v312, 16.0
      %v370 = vsel %vm313, %v368, inf
      %371 = vmin.xlane.f32.xlu0 %v370
      %v372 = vpop.xlane.xlu0 %371
      %v373 = vsel %vm313, %v369, inf
      %374 = vmin.xlane.f32.xlu0 %v373
      %v375 = vpop.xlane.xlu0 %374
      %vm376 = vcmp.eq.s32.totalorder %v311, 2
      %v377 = vsel %vm376, %v372, %v354
      %v378 = vsel %vm376, %v375, %v355
      %vm379 = vcmp.eq.f32.partialorder %v312, %v372
      %vm380 = vcmp.eq.f32.partialorder %v312, %v375
      %v381 = vsel %vm379, -inf, %v358
      %v382 = vsel %vm380, -inf, %v359
      %v383 = vsel %vm313, %v381, -inf
      %384 = vmax.xlane.f32.xlu0 %v383
      %v385 = vpop.xlane.xlu0 %384
      %v386 = vsel %vm313, %v382, -inf
      %387 = vmax.xlane.f32.xlu0 %v386
      %v388 = vpop.xlane.xlu0 %387
      %vm389 = vcmp.eq.f32.partialorder %v381, %v385
      %vm390 = vcmp.eq.f32.partialorder %v382, %v388
      %v391 = vsel %vm389, %v312, 16.0
      %v392 = vsel %vm390, %v312, 16.0
      %v393 = vsel %vm313, %v391, inf
      %394 = vmin.xlane.f32.xlu0 %v393
      %v395 = vpop.xlane.xlu0 %394
      %v396 = vsel %vm313, %v392, inf
      %397 = vmin.xlane.f32.xlu0 %v396
      %v398 = vpop.xlane.xlu0 %397
      %vm399 = vcmp.eq.s32.totalorder %v311, 3
      %v400 = vsel %vm399, %v395, %v377
      %v401 = vsel %vm399, %v398, %v378
      %v402 = vcvt.f32.s32.to.zero.pseudo %v400
      %v403 = vcvt.f32.s32.to.zero.pseudo %v401
      %vm404 = vcmask 31744
      %405 = vst.msk [vmem:[%s239] sm:$0xff] %vm404, %v402
      %406 = vst.msk [vmem:[%s239 + $0x8] sm:$0xff] %vm404, %v403
      %s407 = smul.u32 2, %s19
      %p408 = scmp.lt.s32.totalorder %s18, 1
      %s409 = scalar_select %p408, %s18, 1
      %p410 = scmp.lt.s32.totalorder %s407, 1
      %s411 = scalar_select %p410, %s407, 1
      %s412 = smul.addr %s409, 2
      %s413 = sadd.s32 %s411, %s412
      %s414 = smul.addr %s413, 8
      %s415 = scalar_lea.vmem %s3, %s414
      // Predicated region
      $region33: #{dgcnn_forward.9} parent=31 // pred_check
        %p416 = pneg %p126
      $region34: #{dgcnn_forward.9} parent=31 // pred_check_branch
        %418 = sbr.rel (%p416) target = $region36
      $region35: #{dgcnn_forward.9} parent=31 // pred_region
        %s419 = smul.u32 2, %s19
      $region36: #{dgcnn_forward.9} parent=31 // pred_fallthru
        _
    $region32: #{dgcnn_forward.9} parent=5 // pred_fallthru
      _
    %p420 = scmp.le.s32.totalorder 2, %s9
    // Predicated region
    $region37: #{dgcnn_forward.9} parent=5 // pred_check
      %p421 = pneg %p420
    $region38: #{dgcnn_forward.9} parent=5 // pred_check_branch
      %423 = sbr.rel (%p421) target = $region40
    $region39: #{dgcnn_forward.9} parent=5 // pred_region
      %s424 = ssub.s32 %s9, 2
      // Predicated region
      $region41: #{dgcnn_forward.9} parent=39 // pred_check
        %p425 = pneg %p132
      $region42: #{dgcnn_forward.9} parent=39 // pred_check_branch
        %427 = sbr.rel (%p425) target = $region44
      $region43: #{dgcnn_forward.9} parent=39 // pred_region
        %s428 = smul.u32 2, %s21
        %p429 = scmp.lt.s32.totalorder %s20, 1
        %s430 = scalar_select %p429, %s20, 1
        %p431 = scmp.lt.s32.totalorder %s428, 1
        %s432 = scalar_select %p431, %s428, 1
        %s433 = smul.addr %s430, 2
        %s434 = sadd.s32 %s432, %s433
        %s435 = smul.addr %s434, 8
        %s436 = scalar_lea.vmem %s3, %s435
      $region44: #{dgcnn_forward.9} parent=39 // pred_fallthru
        _
    $region40: #{dgcnn_forward.9} parent=5 // pred_fallthru
      _
  $region6: #{dgcnn_forward.9} parent=0 // loop_footer
    %s13 = sadd.s32 1, %s9
  $region7: #{dgcnn_forward.9} parent=0 // loop_footer_branch
    %8 = sbr.rel target = $region3
  $region8: #{dgcnn_forward.9} parent=0 // loop_exit
    _

// kernel: dgcnn_forward.11
$region0: #{dgcnn_forward.11}
  #allocation0 [shape = 'u32[]', space=smem, size = 0x4, offset = 0x4, fixed_abs, tag = 'smem constant byte address 0x4 - core index']
  #allocation1 [shape = 'u32[144,128]{1,0:T(1,128)}', space=vmem, size = 0x12000, scoped, tag = 'internal scratch']
  %s0 = inlined_call_operand.vmem [shape: bf16[2,16,64], index: 0, kind: input, shape index: {}]
  %s1 = inlined_call_operand.vmem [shape: bf16[2,64,16], index: 1, kind: input, shape index: {}]
  %s2 = inlined_call_operand.vmem [shape: f32[2,1,16], index: 2, kind: input, shape index: {}]
  %s3 = inlined_call_operand.vmem [shape: s32[2,16,4], index: 3, kind: output, shape index: {}]
  %s4 = sld [smem:[#allocation0]]
  $region45: #{dgcnn_forward.11} parent=0
    _
  %s6 = ssub.s32 1, %s4
  %s7 = scalar_select 0, %s6, %s4
  loop: start=0, step=1, limit=4
  $region2: #{dgcnn_forward.11} parent=0 // loop_pre_header
    _
  $region3: #{dgcnn_forward.11} parent=0 // loop_header
    %s9 = sphi 0, %s13
    %p10 = scmp.ge.s32.totalorder %s9, 4
    %s16 = sphi 0, %s28
    %s17 = sphi 0, %s24
    %s18 = sphi 0, %s16
    %s19 = sphi 0, %s17
    %s20 = sphi 0, %s18
    %s21 = sphi 0, %s19
    %s33 = sphi 0, %s35
    %s36 = sphi 0, %s33
    %s37 = sphi 0, %s36
    %s53 = sphi 0, %s37
    %s59 = sphi 0, %s61
    %s62 = sphi 0, %s59
    %s63 = sphi 0, %s62
    %s79 = sphi 0, %s63
    %s85 = sphi 0, %s87
    %s88 = sphi 0, %s85
    %s89 = sphi 0, %s88
    %s105 = sphi 0, %s89
    %s113 = sphi 0, %s115
    %s116 = sphi 0, %s113
    %s117 = sphi 0, %s116
    %s133 = sphi 0, %s117
  $region4: #{dgcnn_forward.11} parent=0 // loop_header_branch
    %12 = sbr.rel (%p10) target = $region8
  $region5: #{dgcnn_forward.11} parent=0 // loop_body
    %s14 = ssub.s32 %s9, 1
    %s15 = ssub.s32 %s9, 2
    %s22 = sadd.s32 1, %s17
    %p23 = scmp.ge.s32.totalorder %s22, 1
    %s24 = scalar_select %p23, 0, %s22
    %s25 = sadd.s32 1, %s16
    %s26 = scalar_select %p23, %s25, %s16
    %p27 = scmp.ge.s32.totalorder %s26, 2
    %s28 = scalar_select %p27, 0, %s26
    %s29 = ssub.s32 %s16, %s28
    %s30 = ssub.s32 %s17, %s24
    %s31 = sor.u32 %s29, %s30
    %p32 = scmp.eq.s32.totalorder %s31, 0
    %s34 = sadd.s32 %s33, 1
    %s35 = scalar_select %p32, %s33, %s34
    %p38 = pneg %p32
    %p39 = scmp.eq.s32.totalorder %s9, 1
    %p40 = por %p38, %p39
    %p41 = scmp.ne.s32.totalorder %s33, %s36
    %p42 = scmp.eq.s32.totalorder %s9, 0
    %p43 = por %p41, %p42
    %p44 = scmp.ne.s32.totalorder %s33, %s36
    %p45 = scmp.eq.s32.totalorder %s14, 1
    %p46 = por %p44, %p45
    %p47 = scmp.ne.s32.totalorder %s36, %s37
    %p48 = scmp.eq.s32.totalorder %s14, 0
    %p49 = por %p47, %p48
    %p50 = scmp.ne.s32.totalorder %s36, %s37
    %p51 = scmp.eq.s32.totalorder %s15, 1
    %p52 = por %p50, %p51
    %p54 = scmp.ne.s32.totalorder %s37, %s53
    %p55 = scmp.eq.s32.totalorder %s15, 0
    %p56 = por %p54, %p55
    %s57 = ssub.s32 %s16, %s28
    %p58 = scmp.eq.s32.totalorder %s57, 0
    %s60 = sadd.s32 %s59, 1
    %s61 = scalar_select %p58, %s59, %s60
    %p64 = pneg %p58
    %p65 = scmp.eq.s32.totalorder %s9, 1
    %p66 = por %p64, %p65
    %p67 = scmp.ne.s32.totalorder %s59, %s62
    %p68 = scmp.eq.s32.totalorder %s9, 0
    %p69 = por %p67, %p68
    %p70 = scmp.ne.s32.totalorder %s59, %s62
    %p71 = scmp.eq.s32.totalorder %s14, 1
    %p72 = por %p70, %p71
    %p73 = scmp.ne.s32.totalorder %s62, %s63
    %p74 = scmp.eq.s32.totalorder %s14, 0
    %p75 = por %p73, %p74
    %p76 = scmp.ne.s32.totalorder %s62, %s63
    %p77 = scmp.eq.s32.totalorder %s15, 1
    %p78 = por %p76, %p77
    %p80 = scmp.ne.s32.totalorder %s63, %s79
    %p81 = scmp.eq.s32.totalorder %s15, 0
    %p82 = por %p80, %p81
    %s83 = ssub.s32 %s16, %s28
    %p84 = scmp.eq.s32.totalorder %s83, 0
    %s86 = sadd.s32 %s85, 1
    %s87 = scalar_select %p84, %s85, %s86
    %p90 = pneg %p84
    %p91 = scmp.eq.s32.totalorder %s9, 1
    %p92 = por %p90, %p91
    %p93 = scmp.ne.s32.totalorder %s85, %s88
    %p94 = scmp.eq.s32.totalorder %s9, 0
    %p95 = por %p93, %p94
    %p96 = scmp.ne.s32.totalorder %s85, %s88
    %p97 = scmp.eq.s32.totalorder %s14, 1
    %p98 = por %p96, %p97
    %p99 = scmp.ne.s32.totalorder %s88, %s89
    %p100 = scmp.eq.s32.totalorder %s14, 0
    %p101 = por %p99, %p100
    %p102 = scmp.ne.s32.totalorder %s88, %s89
    %p103 = scmp.eq.s32.totalorder %s15, 1
    %p104 = por %p102, %p103
    %p106 = scmp.ne.s32.totalorder %s89, %s105
    %p107 = scmp.eq.s32.totalorder %s15, 0
    %p108 = por %p106, %p107
    %s109 = ssub.s32 %s16, %s28
    %s110 = ssub.s32 %s17, %s24
    %s111 = sor.u32 %s109, %s110
    %p112 = scmp.eq.s32.totalorder %s111, 0
    %s114 = sadd.s32 %s113, 1
    %s115 = scalar_select %p112, %s113, %s114
    %p118 = pneg %p112
    %p119 = scmp.eq.s32.totalorder %s9, 1
    %p120 = por %p118, %p119
    %p121 = scmp.ne.s32.totalorder %s113, %s116
    %p122 = scmp.eq.s32.totalorder %s9, 0
    %p123 = por %p121, %p122
    %p124 = scmp.ne.s32.totalorder %s113, %s116
    %p125 = scmp.eq.s32.totalorder %s14, 1
    %p126 = por %p124, %p125
    %p127 = scmp.ne.s32.totalorder %s116, %s117
    %p128 = scmp.eq.s32.totalorder %s14, 0
    %p129 = por %p127, %p128
    %p130 = scmp.ne.s32.totalorder %s116, %s117
    %p131 = scmp.eq.s32.totalorder %s15, 1
    %p132 = por %p130, %p131
    %p134 = scmp.ne.s32.totalorder %s117, %s133
    %p135 = scmp.eq.s32.totalorder %s15, 0
    %p136 = por %p134, %p135
    %p137 = scmp.le.s32.totalorder 1, %s9
    %p138 = scmp.lt.s32.totalorder %s9, 3
    %p139 = pnand %p137, %p138
    %p140 = pneg %p139
    // Predicated region
    $region9: #{dgcnn_forward.11} parent=5 // pred_check
      _
    $region10: #{dgcnn_forward.11} parent=5 // pred_check_branch
      %142 = sbr.rel (%p139) target = $region12
    $region11: #{dgcnn_forward.11} parent=5 // pred_region
      %s143 = ssub.s32 %s9, 1
    $region12: #{dgcnn_forward.11} parent=5 // pred_fallthru
      _
    %p144 = scmp.lt.s32.totalorder %s9, 2
    // Predicated region
    $region13: #{dgcnn_forward.11} parent=5 // pred_check
      %p145 = pneg %p144
    $region14: #{dgcnn_forward.11} parent=5 // pred_check_branch
      %147 = sbr.rel (%p145) target = $region16
    $region15: #{dgcnn_forward.11} parent=5 // pred_region
      // Predicated region
      $region17: #{dgcnn_forward.11} parent=15 // pred_check
        %p148 = pneg %p43
      $region18: #{dgcnn_forward.11} parent=15 // pred_check_branch
        %150 = sbr.rel (%p148) target = $region20
      $region19: #{dgcnn_forward.11} parent=15 // pred_region
        %s151 = smul.u32 2, %s17
        %p152 = scmp.lt.s32.totalorder %s16, 1
        %s153 = scalar_select %p152, %s16, 1
        %p154 = scmp.lt.s32.totalorder %s151, 1
        %s155 = scalar_select %p154, %s151, 1
        %s156 = smul.addr %s153, 2
        %s157 = sadd.s32 %s155, %s156
        %s158 = smul.addr %s157, 4
        %s159 = scalar_lea.vmem %s0, %s158
        %s160 = smul.u32 2, %s17
      $region20: #{dgcnn_forward.11} parent=15 // pred_fallthru
        _
      // Predicated region
      $region21: #{dgcnn_forward.11} parent=15 // pred_check
        %p161 = pneg %p69
      $region22: #{dgcnn_forward.11} parent=15 // pred_check_branch
        %163 = sbr.rel (%p161) target = $region24
      $region23: #{dgcnn_forward.11} parent=15 // pred_region
        %p164 = scmp.lt.s32.totalorder %s16, 1
        %s165 = scalar_select %p164, %s16, 1
        %s166 = smul.addr %s165, 8
        %s167 = smul.addr %s166, 4
        %s168 = scalar_lea.vmem %s1, %s167
      $region24: #{dgcnn_forward.11} parent=15 // pred_fallthru
        _
      // Predicated region
      $region25: #{dgcnn_forward.11} parent=15 // pred_check
        %p169 = pneg %p95
      $region26: #{dgcnn_forward.11} parent=15 // pred_check_branch
        %171 = sbr.rel (%p169) target = $region28
      $region27: #{dgcnn_forward.11} parent=15 // pred_region
        %p172 = scmp.lt.s32.totalorder %s16, 1
        %s173 = scalar_select %p172, %s16, 1
        %s174 = scalar_lea.vmem %s2, %s173
      $region28: #{dgcnn_forward.11} parent=15 // pred_fallthru
        _
    $region16: #{dgcnn_forward.11} parent=5 // pred_fallthru
      _
    %p175 = scmp.le.s32.totalorder 1, %s9
    %p176 = scmp.lt.s32.totalorder %s9, 3
    %p177 = pnand %p175, %p176
    %p178 = pneg %p177
    // Predicated region
    $region29: #{dgcnn_forward.11} parent=5 // pred_check
      _
    $region30: #{dgcnn_forward.11} parent=5 // pred_check_branch
      %180 = sbr.rel (%p177) target = $region32
    $region31: #{dgcnn_forward.11} parent=5 // pred_region
      %s181 = ssub.s32 %s9, 1
      %s182 = smul.u32 2, %s19
      %p183 = scmp.lt.s32.totalorder %s18, 1
      %s184 = scalar_select %p183, %s18, 1
      %p185 = scmp.lt.s32.totalorder %s182, 1
      %s186 = scalar_select %p185, %s182, 1
      %s187 = smul.addr %s184, 2
      %s188 = sadd.s32 %s186, %s187
      %s189 = smul.addr %s188, 4
      %s190 = scalar_lea.vmem %s0, %s189
      %p191 = pneg %p49
      %p192 = pneg %p46
      %p193 = scmp.lt.s32.totalorder %s18, 1
      %s194 = scalar_select %p193, %s18, 1
      %s195 = smul.addr %s194, 8
      %s196 = smul.addr %s195, 4
      %s197 = scalar_lea.vmem %s1, %s196
      %p198 = pneg %p75
      %p199 = pneg %p72
      %p200 = scmp.lt.s32.totalorder %s18, 1
      %s201 = scalar_select %p200, %s18, 1
      %s202 = scalar_lea.vmem %s2, %s201
      %p203 = pneg %p101
      %p204 = pneg %p98
      %p205 = pneg %p129
      %p206 = pneg %p126
      %s207 = smul.u32 2, %s19
      %p208 = scmp.lt.s32.totalorder %s18, 1
      %s209 = scalar_select %p208, %s18, 1
      %p210 = scmp.lt.s32.totalorder %s207, 1
      %s211 = scalar_select %p210, %s207, 1
      %s212 = smul.addr %s209, 2
      %s213 = sadd.s32 %s211, %s212
      %s214 = smul.addr %s213, 8
      %s215 = scalar_lea.vmem %s3, %s214
      %s216 = smul.u32 2, %s19
      %p217 = scmp.lt.s32.totalorder %s18, 1
      %s218 = scalar_select %p217, %s18, 1
      %p219 = scmp.lt.s32.totalorder %s216, 1
      %s220 = scalar_select %p219, %s216, 1
      %s221 = smul.addr %s218, 2
      %s222 = sadd.s32 %s220, %s221
      %s223 = smul.addr %s222, 4
      %s224 = scalar_lea.vmem %s0, %s223
      %s225 = smul.u32 2, %s19
      %p226 = scmp.lt.s32.totalorder %s18, 1
      %s227 = scalar_select %p226, %s18, 1
      %s228 = smul.addr %s227, 8
      %s229 = smul.addr %s228, 4
      %s230 = scalar_lea.vmem %s1, %s229
      %p231 = scmp.lt.s32.totalorder %s18, 1
      %s232 = scalar_select %p231, %s18, 1
      %s233 = scalar_lea.vmem %s2, %s232
      %s234 = smul.u32 2, %s19
      %p235 = scmp.lt.s32.totalorder %s18, 1
      %s236 = scalar_select %p235, %s18, 1
      %p237 = scmp.lt.s32.totalorder %s234, 1
      %s238 = scalar_select %p237, %s234, 1
      %s239 = smul.addr %s236, 2
      %s240 = sadd.s32 %s238, %s239
      %s241 = smul.addr %s240, 8
      %s242 = scalar_lea.vmem %s3, %s241
      %s243 = smul.u32 2, %s19
      %v245 = vld [vmem:[%s224] sm:$0xf]
      %v246 = vld [vmem:[%s224 + $0x4] sm:$0xf]
      %v247 = vld [vmem:[%s230] sm:$0xf]
      %v248 = vld [vmem:[%s230 + $0x4] sm:$0xf]
      %v249 = vld [vmem:[%s230 + $0x8] sm:$0xf]
      %v250 = vld [vmem:[%s230 + $0xc] sm:$0xf]
      %v251 = vld [vmem:[%s230 + $0x10] sm:$0xf]
      %v252 = vld [vmem:[%s230 + $0x14] sm:$0xf]
      %v253 = vld [vmem:[%s230 + $0x18] sm:$0xf]
      %v254 = vld [vmem:[%s230 + $0x1c] sm:$0xf]
      %v257 = vunpack.c.l.b16 %v245
      %v258 = vunpack.c.l.b16 %v246
      %v259 = vpack.c.b16 %v258, %v257
      %v268 = vunpack.c.l.b16 %v247
      %v269 = vunpack.c.l.b16 %v248
      %v270 = vunpack.c.l.b16 %v249
      %v271 = vunpack.c.l.b16 %v250
      %v272 = vunpack.c.l.b16 %v251
      %v273 = vunpack.c.l.b16 %v252
      %v274 = vunpack.c.l.b16 %v253
      %v275 = vunpack.c.l.b16 %v254
      %v276 = vpack.c.b16 %v269, %v268
      %v277 = vpack.c.b16 %v271, %v270
      %v278 = vpack.c.b16 %v273, %v272
      %v279 = vpack.c.b16 %v275, %v274
      %vm284 = vcmask 523264
      %v286 = vsel %vm284, %v259, 0
      %288 = vmatprep.subr.bf16.mxu0 0
      %289 = vmatpush1.bf16.msra.mxu0 %v276
      %290 = vmatprep.subr.bf16.mxu0 0
      %291 = vmatpush1.bf16.msra.mxu0 %v277
      %292 = vmatprep.subr.bf16.mxu0 0
      %293 = vmatpush1.bf16.msra.mxu0 %v278
      %294 = vmatprep.subr.bf16.mxu0 0
      %295 = vmatpush1.bf16.msra.mxu0 %v279
      %296 = vmatprep.subr.bf16.mxu0 0
      %297 = vmatpush1.bf16.msra.mxu0 0
      %298 = vmatprep.subr.bf16.mxu0 0
      %299 = vmatpush1.bf16.msra.mxu0 0
      %300 = vmatprep.subr.bf16.mxu0 0
      %301 = vmatpush1.bf16.msra.mxu0 0
      %302 = vmatprep.subr.bf16.mxu0 0
      %303 = vmatpush1.bf16.msra.mxu0 0
      %304 = vmatprep.subr.bf16.mxu0 0
      %305 = vmatpush1.bf16.msra.mxu0 0
      %306 = vmatprep.subr.bf16.mxu0 0
      %307 = vmatpush1.bf16.msra.mxu0 0
      %308 = vmatprep.subr.bf16.mxu0 0
      %309 = vmatpush1.bf16.msra.mxu0 0
      %310 = vmatprep.subr.bf16.mxu0 0
      %311 = vmatpush1.bf16.msra.mxu0 0
      %312 = vmatprep.subr.bf16.mxu0 0
      %313 = vmatpush1.bf16.msra.mxu0 0
      %314 = vmatprep.subr.bf16.mxu0 0
      %315 = vmatpush1.bf16.msra.mxu0 0
      %316 = vmatprep.subr.bf16.mxu0 0
      %317 = vmatpush1.bf16.msra.mxu0 0
      %318 = vmatprep.subr.bf16.mxu0 0
      %319 = vmatpush1.bf16.msra.mxu0 0
      %320 = vmatprep.mubr.bf16.mxu0 0
      %321 = vmatmul.mubr.bf16.gmra.mrb[0].mxu0 %v286
      %v322 = vpop.f32.mrb[0].mxu0
      %v323 = vadd.f32 0.0, %v322
      %v324 = vpop.f32.mrb[0].mxu0
      %v325 = vpop.f32.mrb[0].mxu0
      %v326 = vadd.f32 0.0, %v325
      %v327 = vpop.f32.mrb[0].mxu0
      %328 = vdwg.mxu0
      %v329 = vmul.f32 %v323, 2.0
      %v330 = vmul.f32 %v326, 2.0
      %v331 = vld [vmem:[%s233] sm:$0x1]
      %v333 = vlaneseq
      %v334 = vshrl.u32 %v333, 7
      %v335 = vsub.s32 0, %v334
      %v336 = vrot.slane %v331, %v335
      %v338 = vsub.f32 %v329, %v336
      %v339 = vsub.f32 %v330, %v336
      %v340 = vlaneseq
      %v341 = vand.u32 %v340, 127
      %v342 = vcvt.s32.f32 %v341
      %vm343 = vcmask 130048
      %v344 = vsel %vm343, %v338, -inf
      %345 = vmax.xlane.f32.xlu0 %v344
      %v346 = vpop.xlane.xlu0 %345
      %v347 = vsel %vm343, %v339, -inf
      %348 = vmax.xlane.f32.xlu0 %v347
      %v349 = vpop.xlane.xlu0 %348
      %vm350 = vcmp.eq.f32.partialorder %v338, %v346
      %vm351 = vcmp.eq.f32.partialorder %v339, %v349
      %v352 = vsel %vm350, %v342, 16.0
      %v353 = vsel %vm351, %v342, 16.0
      %v354 = vsel %vm343, %v352, inf
      %355 = vmin.xlane.f32.xlu0 %v354
      %v356 = vpop.xlane.xlu0 %355
      %v357 = vsel %vm343, %v353, inf
      %358 = vmin.xlane.f32.xlu0 %v357
      %v359 = vpop.xlane.xlu0 %358
      %vm360 = vcmp.eq.s32.totalorder %v341, 0
      %v361 = vsel %vm360, %v356, 0.0
      %v362 = vsel %vm360, %v359, 0.0
      %vm363 = vcmp.eq.f32.partialorder %v342, %v356
      %vm364 = vcmp.eq.f32.partialorder %v342, %v359
      %v365 = vsel %vm363, -inf, %v338
      %v366 = vsel %vm364, -inf, %v339
      %v367 = vsel %vm343, %v365, -inf
      %368 = vmax.xlane.f32.xlu0 %v367
      %v369 = vpop.xlane.xlu0 %368
      %v370 = vsel %vm343, %v366, -inf
      %371 = vmax.xlane.f32.xlu0 %v370
      %v372 = vpop.xlane.xlu0 %371
      %vm373 = vcmp.eq.f32.partialorder %v365, %v369
      %vm374 = vcmp.eq.f32.partialorder %v366, %v372
      %v375 = vsel %vm373, %v342, 16.0
      %v376 = vsel %vm374, %v342, 16.0
      %v377 = vsel %vm343, %v375, inf
      %378 = vmin.xlane.f32.xlu0 %v377
      %v379 = vpop.xlane.xlu0 %378
      %v380 = vsel %vm343, %v376, inf
      %381 = vmin.xlane.f32.xlu0 %v380
      %v382 = vpop.xlane.xlu0 %381
      %vm383 = vcmp.eq.s32.totalorder %v341, 1
      %v384 = vsel %vm383, %v379, %v361
      %v385 = vsel %vm383, %v382, %v362
      %vm386 = vcmp.eq.f32.partialorder %v342, %v379
      %vm387 = vcmp.eq.f32.partialorder %v342, %v382
      %v388 = vsel %vm386, -inf, %v365
      %v389 = vsel %vm387, -inf, %v366
      %v390 = vsel %vm343, %v388, -inf
      %391 = vmax.xlane.f32.xlu0 %v390
      %v392 = vpop.xlane.xlu0 %391
      %v393 = vsel %vm343, %v389, -inf
      %394 = vmax.xlane.f32.xlu0 %v393
      %v395 = vpop.xlane.xlu0 %394
      %vm396 = vcmp.eq.f32.partialorder %v388, %v392
      %vm397 = vcmp.eq.f32.partialorder %v389, %v395
      %v398 = vsel %vm396, %v342, 16.0
      %v399 = vsel %vm397, %v342, 16.0
      %v400 = vsel %vm343, %v398, inf
      %401 = vmin.xlane.f32.xlu0 %v400
      %v402 = vpop.xlane.xlu0 %401
      %v403 = vsel %vm343, %v399, inf
      %404 = vmin.xlane.f32.xlu0 %v403
      %v405 = vpop.xlane.xlu0 %404
      %vm406 = vcmp.eq.s32.totalorder %v341, 2
      %v407 = vsel %vm406, %v402, %v384
      %v408 = vsel %vm406, %v405, %v385
      %vm409 = vcmp.eq.f32.partialorder %v342, %v402
      %vm410 = vcmp.eq.f32.partialorder %v342, %v405
      %v411 = vsel %vm409, -inf, %v388
      %v412 = vsel %vm410, -inf, %v389
      %v413 = vsel %vm343, %v411, -inf
      %414 = vmax.xlane.f32.xlu0 %v413
      %v415 = vpop.xlane.xlu0 %414
      %v416 = vsel %vm343, %v412, -inf
      %417 = vmax.xlane.f32.xlu0 %v416
      %v418 = vpop.xlane.xlu0 %417
      %vm419 = vcmp.eq.f32.partialorder %v411, %v415
      %vm420 = vcmp.eq.f32.partialorder %v412, %v418
      %v421 = vsel %vm419, %v342, 16.0
      %v422 = vsel %vm420, %v342, 16.0
      %v423 = vsel %vm343, %v421, inf
      %424 = vmin.xlane.f32.xlu0 %v423
      %v425 = vpop.xlane.xlu0 %424
      %v426 = vsel %vm343, %v422, inf
      %427 = vmin.xlane.f32.xlu0 %v426
      %v428 = vpop.xlane.xlu0 %427
      %vm429 = vcmp.eq.s32.totalorder %v341, 3
      %v430 = vsel %vm429, %v425, %v407
      %v431 = vsel %vm429, %v428, %v408
      %v432 = vcvt.f32.s32.to.zero.pseudo %v430
      %v433 = vcvt.f32.s32.to.zero.pseudo %v431
      %vm434 = vcmask 31744
      %435 = vst.msk [vmem:[%s242] sm:$0xff] %vm434, %v432
      %436 = vst.msk [vmem:[%s242 + $0x8] sm:$0xff] %vm434, %v433
      %s437 = smul.u32 2, %s19
      %p438 = scmp.lt.s32.totalorder %s18, 1
      %s439 = scalar_select %p438, %s18, 1
      %p440 = scmp.lt.s32.totalorder %s437, 1
      %s441 = scalar_select %p440, %s437, 1
      %s442 = smul.addr %s439, 2
      %s443 = sadd.s32 %s441, %s442
      %s444 = smul.addr %s443, 8
      %s445 = scalar_lea.vmem %s3, %s444
      // Predicated region
      $region33: #{dgcnn_forward.11} parent=31 // pred_check
        %p446 = pneg %p126
      $region34: #{dgcnn_forward.11} parent=31 // pred_check_branch
        %448 = sbr.rel (%p446) target = $region36
      $region35: #{dgcnn_forward.11} parent=31 // pred_region
        %s449 = smul.u32 2, %s19
      $region36: #{dgcnn_forward.11} parent=31 // pred_fallthru
        _
    $region32: #{dgcnn_forward.11} parent=5 // pred_fallthru
      _
    %p450 = scmp.le.s32.totalorder 2, %s9
    // Predicated region
    $region37: #{dgcnn_forward.11} parent=5 // pred_check
      %p451 = pneg %p450
    $region38: #{dgcnn_forward.11} parent=5 // pred_check_branch
      %453 = sbr.rel (%p451) target = $region40
    $region39: #{dgcnn_forward.11} parent=5 // pred_region
      %s454 = ssub.s32 %s9, 2
      // Predicated region
      $region41: #{dgcnn_forward.11} parent=39 // pred_check
        %p455 = pneg %p132
      $region42: #{dgcnn_forward.11} parent=39 // pred_check_branch
        %457 = sbr.rel (%p455) target = $region44
      $region43: #{dgcnn_forward.11} parent=39 // pred_region
        %s458 = smul.u32 2, %s21
        %p459 = scmp.lt.s32.totalorder %s20, 1
        %s460 = scalar_select %p459, %s20, 1
        %p461 = scmp.lt.s32.totalorder %s458, 1
        %s462 = scalar_select %p461, %s458, 1
        %s463 = smul.addr %s460, 2
        %s464 = sadd.s32 %s462, %s463
        %s465 = smul.addr %s464, 8
        %s466 = scalar_lea.vmem %s3, %s465
      $region44: #{dgcnn_forward.11} parent=39 // pred_fallthru
        _
    $region40: #{dgcnn_forward.11} parent=5 // pred_fallthru
      _
  $region6: #{dgcnn_forward.11} parent=0 // loop_footer
    %s13 = sadd.s32 1, %s9
  $region7: #{dgcnn_forward.11} parent=0 // loop_footer_branch
    %8 = sbr.rel target = $region3
  $region8: #{dgcnn_forward.11} parent=0 // loop_exit
    _

// kernel: dgcnn_forward.10
$region0: #{dgcnn_forward.10}
  #allocation0 [shape = 'u32[]', space=smem, size = 0x4, offset = 0x4, fixed_abs, tag = 'smem constant byte address 0x4 - core index']
  #allocation1 [shape = 'u32[144,128]{1,0:T(1,128)}', space=vmem, size = 0x12000, scoped, tag = 'internal scratch']
  %s0 = inlined_call_operand.vmem [shape: bf16[2,16,8], index: 0, kind: input, shape index: {}, may-alias: {0,1}]
  %s1 = inlined_call_operand.vmem [shape: bf16[2,16,8], index: 1, kind: input, shape index: {}, may-alias: {0,1}]
  %s2 = inlined_call_operand.vmem [shape: s32[2,16,4], index: 2, kind: input, shape index: {}]
  %s3 = inlined_call_operand.vmem [shape: bf16[8,64], index: 3, kind: input, shape index: {}]
  %s4 = inlined_call_operand.vmem [shape: bf16[8,64], index: 4, kind: input, shape index: {}]
  %s5 = inlined_call_operand.vmem [shape: f32[1,64], index: 5, kind: input, shape index: {}]
  %s6 = inlined_call_operand.vmem [shape: f32[1,64], index: 6, kind: input, shape index: {}]
  %s7 = inlined_call_operand.vmem [shape: bf16[2,16,64], index: 7, kind: output, shape index: {}]
  %s8 = sld [smem:[#allocation0]]
  $region61: #{dgcnn_forward.10} parent=0
    _
  %s10 = ssub.s32 1, %s8
  %s11 = scalar_select 0, %s10, %s8
  loop: start=0, step=1, limit=4
  $region2: #{dgcnn_forward.10} parent=0 // loop_pre_header
    _
  $region3: #{dgcnn_forward.10} parent=0 // loop_header
    %s13 = sphi 0, %s17
    %p14 = scmp.ge.s32.totalorder %s13, 4
    %s20 = sphi 0, %s32
    %s21 = sphi 0, %s28
    %s22 = sphi 0, %s20
    %s23 = sphi 0, %s21
    %s24 = sphi 0, %s22
    %s25 = sphi 0, %s23
    %s35 = sphi 0, %s37
    %s38 = sphi 0, %s35
    %s39 = sphi 0, %s38
    %s55 = sphi 0, %s39
    %s63 = sphi 0, %s65
    %s66 = sphi 0, %s63
    %s67 = sphi 0, %s66
    %s83 = sphi 0, %s67
    %s91 = sphi 0, %s93
    %s94 = sphi 0, %s91
    %s95 = sphi 0, %s94
    %s111 = sphi 0, %s95
    %s115 = sphi 0, %s115
    %s117 = sphi 0, %s115
    %s118 = sphi 0, %s117
    %s132 = sphi 0, %s118
    %s136 = sphi 0, %s136
    %s138 = sphi 0, %s136
    %s139 = sphi 0, %s138
    %s153 = sphi 0, %s139
    %s157 = sphi 0, %s157
    %s159 = sphi 0, %s157
    %s160 = sphi 0, %s159
    %s174 = sphi 0, %s160
    %s178 = sphi 0, %s178
    %s180 = sphi 0, %s178
    %s181 = sphi 0, %s180
    %s195 = sphi 0, %s181
    %s203 = sphi 0, %s205
    %s206 = sphi 0, %s203
    %s207 = sphi 0, %s206
    %s223 = sphi 0, %s207
  $region4: #{dgcnn_forward.10} parent=0 // loop_header_branch
    %16 = sbr.rel (%p14) target = $region8
  $region5: #{dgcnn_forward.10} parent=0 // loop_body
    %s18 = ssub.s32 %s13, 1
    %s19 = ssub.s32 %s13, 2
    %s26 = sadd.s32 1, %s21
    %p27 = scmp.ge.s32.totalorder %s26, 1
    %s28 = scalar_select %p27, 0, %s26
    %s29 = sadd.s32 1, %s20
    %s30 = scalar_select %p27, %s29, %s20
    %p31 = scmp.ge.s32.totalorder %s30, 2
    %s32 = scalar_select %p31, 0, %s30
    %s33 = ssub.s32 %s20, %s32
    %p34 = scmp.eq.s32.totalorder %s33, 0
    %s36 = sadd.s32 %s35, 1
    %s37 = scalar_select %p34, %s35, %s36
    %p40 = pneg %p34
    %p41 = scmp.eq.s32.totalorder %s13, 1
    %p42 = por %p40, %p41
    %p43 = scmp.ne.s32.totalorder %s35, %s38
    %p44 = scmp.eq.s32.totalorder %s13, 0
    %p45 = por %p43, %p44
    %p46 = scmp.ne.s32.totalorder %s35, %s38
    %p47 = scmp.eq.s32.totalorder %s18, 1
    %p48 = por %p46, %p47
    %p49 = scmp.ne.s32.totalorder %s38, %s39
    %p50 = scmp.eq.s32.totalorder %s18, 0
    %p51 = por %p49, %p50
    %p52 = scmp.ne.s32.totalorder %s38, %s39
    %p53 = scmp.eq.s32.totalorder %s19, 1
    %p54 = por %p52, %p53
    %p56 = scmp.ne.s32.totalorder %s39, %s55
    %p57 = scmp.eq.s32.totalorder %s19, 0
    %p58 = por %p56, %p57
    %s59 = ssub.s32 %s20, %s32
    %s60 = ssub.s32 %s21, %s28
    %s61 = sor.u32 %s59, %s60
    %p62 = scmp.eq.s32.totalorder %s61, 0
    %s64 = sadd.s32 %s63, 1
    %s65 = scalar_select %p62, %s63, %s64
    %p68 = pneg %p62
    %p69 = scmp.eq.s32.totalorder %s13, 1
    %p70 = por %p68, %p69
    %p71 = scmp.ne.s32.totalorder %s63, %s66
    %p72 = scmp.eq.s32.totalorder %s13, 0
    %p73 = por %p71, %p72
    %p74 = scmp.ne.s32.totalorder %s63, %s66
    %p75 = scmp.eq.s32.totalorder %s18, 1
    %p76 = por %p74, %p75
    %p77 = scmp.ne.s32.totalorder %s66, %s67
    %p78 = scmp.eq.s32.totalorder %s18, 0
    %p79 = por %p77, %p78
    %p80 = scmp.ne.s32.totalorder %s66, %s67
    %p81 = scmp.eq.s32.totalorder %s19, 1
    %p82 = por %p80, %p81
    %p84 = scmp.ne.s32.totalorder %s67, %s83
    %p85 = scmp.eq.s32.totalorder %s19, 0
    %p86 = por %p84, %p85
    %s87 = ssub.s32 %s20, %s32
    %s88 = ssub.s32 %s21, %s28
    %s89 = sor.u32 %s87, %s88
    %p90 = scmp.eq.s32.totalorder %s89, 0
    %s92 = sadd.s32 %s91, 1
    %s93 = scalar_select %p90, %s91, %s92
    %p96 = pneg %p90
    %p97 = scmp.eq.s32.totalorder %s13, 1
    %p98 = por %p96, %p97
    %p99 = scmp.ne.s32.totalorder %s91, %s94
    %p100 = scmp.eq.s32.totalorder %s13, 0
    %p101 = por %p99, %p100
    %p102 = scmp.ne.s32.totalorder %s91, %s94
    %p103 = scmp.eq.s32.totalorder %s18, 1
    %p104 = por %p102, %p103
    %p105 = scmp.ne.s32.totalorder %s94, %s95
    %p106 = scmp.eq.s32.totalorder %s18, 0
    %p107 = por %p105, %p106
    %p108 = scmp.ne.s32.totalorder %s94, %s95
    %p109 = scmp.eq.s32.totalorder %s19, 1
    %p110 = por %p108, %p109
    %p112 = scmp.ne.s32.totalorder %s95, %s111
    %p113 = scmp.eq.s32.totalorder %s19, 0
    %p114 = por %p112, %p113
    %s116 = sadd.s32 %s115, 1
    %p119 = scmp.eq.s32.totalorder %s13, 1
    %p120 = scmp.ne.s32.totalorder %s115, %s117
    %p121 = scmp.eq.s32.totalorder %s13, 0
    %p122 = por %p120, %p121
    %p123 = scmp.ne.s32.totalorder %s115, %s117
    %p124 = scmp.eq.s32.totalorder %s18, 1
    %p125 = por %p123, %p124
    %p126 = scmp.ne.s32.totalorder %s117, %s118
    %p127 = scmp.eq.s32.totalorder %s18, 0
    %p128 = por %p126, %p127
    %p129 = scmp.ne.s32.totalorder %s117, %s118
    %p130 = scmp.eq.s32.totalorder %s19, 1
    %p131 = por %p129, %p130
    %p133 = scmp.ne.s32.totalorder %s118, %s132
    %p134 = scmp.eq.s32.totalorder %s19, 0
    %p135 = por %p133, %p134
    %s137 = sadd.s32 %s136, 1
    %p140 = scmp.eq.s32.totalorder %s13, 1
    %p141 = scmp.ne.s32.totalorder %s136, %s138
    %p142 = scmp.eq.s32.totalorder %s13, 0
    %p143 = por %p141, %p142
    %p144 = scmp.ne.s32.totalorder %s136, %s138
    %p145 = scmp.eq.s32.totalorder %s18, 1
    %p146 = por %p144, %p145
    %p147 = scmp.ne.s32.totalorder %s138, %s139
    %p148 = scmp.eq.s32.totalorder %s18, 0
    %p149 = por %p147, %p148
    %p150 = scmp.ne.s32.totalorder %s138, %s139
    %p151 = scmp.eq.s32.totalorder %s19, 1
    %p152 = por %p150, %p151
    %p154 = scmp.ne.s32.totalorder %s139, %s153
    %p155 = scmp.eq.s32.totalorder %s19, 0
    %p156 = por %p154, %p155
    %s158 = sadd.s32 %s157, 1
    %p161 = scmp.eq.s32.totalorder %s13, 1
    %p162 = scmp.ne.s32.totalorder %s157, %s159
    %p163 = scmp.eq.s32.totalorder %s13, 0
    %p164 = por %p162, %p163
    %p165 = scmp.ne.s32.totalorder %s157, %s159
    %p166 = scmp.eq.s32.totalorder %s18, 1
    %p167 = por %p165, %p166
    %p168 = scmp.ne.s32.totalorder %s159, %s160
    %p169 = scmp.eq.s32.totalorder %s18, 0
    %p170 = por %p168, %p169
    %p171 = scmp.ne.s32.totalorder %s159, %s160
    %p172 = scmp.eq.s32.totalorder %s19, 1
    %p173 = por %p171, %p172
    %p175 = scmp.ne.s32.totalorder %s160, %s174
    %p176 = scmp.eq.s32.totalorder %s19, 0
    %p177 = por %p175, %p176
    %s179 = sadd.s32 %s178, 1
    %p182 = scmp.eq.s32.totalorder %s13, 1
    %p183 = scmp.ne.s32.totalorder %s178, %s180
    %p184 = scmp.eq.s32.totalorder %s13, 0
    %p185 = por %p183, %p184
    %p186 = scmp.ne.s32.totalorder %s178, %s180
    %p187 = scmp.eq.s32.totalorder %s18, 1
    %p188 = por %p186, %p187
    %p189 = scmp.ne.s32.totalorder %s180, %s181
    %p190 = scmp.eq.s32.totalorder %s18, 0
    %p191 = por %p189, %p190
    %p192 = scmp.ne.s32.totalorder %s180, %s181
    %p193 = scmp.eq.s32.totalorder %s19, 1
    %p194 = por %p192, %p193
    %p196 = scmp.ne.s32.totalorder %s181, %s195
    %p197 = scmp.eq.s32.totalorder %s19, 0
    %p198 = por %p196, %p197
    %s199 = ssub.s32 %s20, %s32
    %s200 = ssub.s32 %s21, %s28
    %s201 = sor.u32 %s199, %s200
    %p202 = scmp.eq.s32.totalorder %s201, 0
    %s204 = sadd.s32 %s203, 1
    %s205 = scalar_select %p202, %s203, %s204
    %p208 = pneg %p202
    %p209 = scmp.eq.s32.totalorder %s13, 1
    %p210 = por %p208, %p209
    %p211 = scmp.ne.s32.totalorder %s203, %s206
    %p212 = scmp.eq.s32.totalorder %s13, 0
    %p213 = por %p211, %p212
    %p214 = scmp.ne.s32.totalorder %s203, %s206
    %p215 = scmp.eq.s32.totalorder %s18, 1
    %p216 = por %p214, %p215
    %p217 = scmp.ne.s32.totalorder %s206, %s207
    %p218 = scmp.eq.s32.totalorder %s18, 0
    %p219 = por %p217, %p218
    %p220 = scmp.ne.s32.totalorder %s206, %s207
    %p221 = scmp.eq.s32.totalorder %s19, 1
    %p222 = por %p220, %p221
    %p224 = scmp.ne.s32.totalorder %s207, %s223
    %p225 = scmp.eq.s32.totalorder %s19, 0
    %p226 = por %p224, %p225
    %p227 = scmp.le.s32.totalorder 1, %s13
    %p228 = scmp.lt.s32.totalorder %s13, 3
    %p229 = pnand %p227, %p228
    %p230 = pneg %p229
    // Predicated region
    $region9: #{dgcnn_forward.10} parent=5 // pred_check
      _
    $region10: #{dgcnn_forward.10} parent=5 // pred_check_branch
      %232 = sbr.rel (%p229) target = $region12
    $region11: #{dgcnn_forward.10} parent=5 // pred_region
      %s233 = ssub.s32 %s13, 1
      // Predicated region
      $region13: #{dgcnn_forward.10} parent=11 // pred_check
        %p234 = pneg %p128
      $region14: #{dgcnn_forward.10} parent=11 // pred_check_branch
        %236 = sbr.rel (%p234) target = $region16
      $region15: #{dgcnn_forward.10} parent=11 // pred_region
        _
      $region16: #{dgcnn_forward.10} parent=11 // pred_fallthru
        _
      // Predicated region
      $region17: #{dgcnn_forward.10} parent=11 // pred_check
        %p237 = pneg %p149
      $region18: #{dgcnn_forward.10} parent=11 // pred_check_branch
        %239 = sbr.rel (%p237) target = $region20
      $region19: #{dgcnn_forward.10} parent=11 // pred_region
        _
      $region20: #{dgcnn_forward.10} parent=11 // pred_fallthru
        _
      // Predicated region
      $region21: #{dgcnn_forward.10} parent=11 // pred_check
        %p240 = pneg %p170
      $region22: #{dgcnn_forward.10} parent=11 // pred_check_branch
        %242 = sbr.rel (%p240) target = $region24
      $region23: #{dgcnn_forward.10} parent=11 // pred_region
        _
      $region24: #{dgcnn_forward.10} parent=11 // pred_fallthru
        _
      // Predicated region
      $region25: #{dgcnn_forward.10} parent=11 // pred_check
        %p243 = pneg %p191
      $region26: #{dgcnn_forward.10} parent=11 // pred_check_branch
        %245 = sbr.rel (%p243) target = $region28
      $region27: #{dgcnn_forward.10} parent=11 // pred_region
        _
      $region28: #{dgcnn_forward.10} parent=11 // pred_fallthru
        _
    $region12: #{dgcnn_forward.10} parent=5 // pred_fallthru
      _
    %p246 = scmp.lt.s32.totalorder %s13, 2
    // Predicated region
    $region29: #{dgcnn_forward.10} parent=5 // pred_check
      %p247 = pneg %p246
    $region30: #{dgcnn_forward.10} parent=5 // pred_check_branch
      %249 = sbr.rel (%p247) target = $region32
    $region31: #{dgcnn_forward.10} parent=5 // pred_region
      // Predicated region
      $region33: #{dgcnn_forward.10} parent=31 // pred_check
        %p250 = pneg %p45
      $region34: #{dgcnn_forward.10} parent=31 // pred_check_branch
        %252 = sbr.rel (%p250) target = $region36
      $region35: #{dgcnn_forward.10} parent=31 // pred_region
        %p253 = scmp.lt.s32.totalorder %s20, 1
        %s254 = scalar_select %p253, %s20, 1
        %s255 = smul.addr %s254, 2
        %s256 = smul.addr %s255, 4
        %s257 = scalar_lea.vmem %s0, %s256
      $region36: #{dgcnn_forward.10} parent=31 // pred_fallthru
        _
      // Predicated region
      $region37: #{dgcnn_forward.10} parent=31 // pred_check
        %p258 = pneg %p73
      $region38: #{dgcnn_forward.10} parent=31 // pred_check_branch
        %260 = sbr.rel (%p258) target = $region40
      $region39: #{dgcnn_forward.10} parent=31 // pred_region
        %s261 = smul.u32 2, %s21
        %p262 = scmp.lt.s32.totalorder %s20, 1
        %s263 = scalar_select %p262, %s20, 1
        %p264 = scmp.lt.s32.totalorder %s261, 1
        %s265 = scalar_select %p264, %s261, 1
        %s266 = smul.addr %s263, 2
        %s267 = sadd.s32 %s265, %s266
        %s268 = smul.addr %s267, 4
        %s269 = scalar_lea.vmem %s1, %s268
        %s270 = smul.u32 2, %s21
      $region40: #{dgcnn_forward.10} parent=31 // pred_fallthru
        _
      // Predicated region
      $region41: #{dgcnn_forward.10} parent=31 // pred_check
        %p271 = pneg %p101
      $region42: #{dgcnn_forward.10} parent=31 // pred_check_branch
        %273 = sbr.rel (%p271) target = $region44
      $region43: #{dgcnn_forward.10} parent=31 // pred_region
        %s274 = smul.u32 2, %s21
        %p275 = scmp.lt.s32.totalorder %s20, 1
        %s276 = scalar_select %p275, %s20, 1
        %p277 = scmp.lt.s32.totalorder %s274, 1
        %s278 = scalar_select %p277, %s274, 1
        %s279 = smul.addr %s276, 2
        %s280 = sadd.s32 %s278, %s279
        %s281 = smul.addr %s280, 8
        %s282 = scalar_lea.vmem %s2, %s281
        %s283 = smul.u32 2, %s21
      $region44: #{dgcnn_forward.10} parent=31 // pred_fallthru
        _
    $region32: #{dgcnn_forward.10} parent=5 // pred_fallthru
      _
    %p284 = scmp.le.s32.totalorder 1, %s13
    %p285 = scmp.lt.s32.totalorder %s13, 3
    %p286 = pnand %p284, %p285
    %p287 = pneg %p286
    // Predicated region
    $region45: #{dgcnn_forward.10} parent=5 // pred_check
      _
    $region46: #{dgcnn_forward.10} parent=5 // pred_check_branch
      %289 = sbr.rel (%p286) target = $region48
    $region47: #{dgcnn_forward.10} parent=5 // pred_region
      %s290 = ssub.s32 %s13, 1
      %p291 = scmp.lt.s32.totalorder %s22, 1
      %s292 = scalar_select %p291, %s22, 1
      %s293 = smul.addr %s292, 2
      %s294 = smul.addr %s293, 4
      %s295 = scalar_lea.vmem %s0, %s294
      %p296 = pneg %p51
      %p297 = pneg %p48
      %s298 = smul.u32 2, %s23
      %p299 = scmp.lt.s32.totalorder %s22, 1
      %s300 = scalar_select %p299, %s22, 1
      %p301 = scmp.lt.s32.totalorder %s298, 1
      %s302 = scalar_select %p301, %s298, 1
      %s303 = smul.addr %s300, 2
      %s304 = sadd.s32 %s302, %s303
      %s305 = smul.addr %s304, 4
      %s306 = scalar_lea.vmem %s1, %s305
      %p307 = pneg %p79
      %p308 = pneg %p76
      %s309 = smul.u32 2, %s23
      %p310 = scmp.lt.s32.totalorder %s22, 1
      %s311 = scalar_select %p310, %s22, 1
      %p312 = scmp.lt.s32.totalorder %s309, 1
      %s313 = scalar_select %p312, %s309, 1
      %s314 = smul.addr %s311, 2
      %s315 = sadd.s32 %s313, %s314
      %s316 = smul.addr %s315, 8
      %s317 = scalar_lea.vmem %s2, %s316
      %p318 = pneg %p107
      %p319 = pneg %p104
      %p320 = pneg %p128
      %p321 = pneg %p125
      %p322 = pneg %p149
      %p323 = pneg %p146
      %p324 = pneg %p170
      %p325 = pneg %p167
      %p326 = pneg %p191
      %p327 = pneg %p188
      %p328 = pneg %p219
      %p329 = pneg %p216
      %s330 = smul.u32 2, %s23
      %p331 = scmp.lt.s32.totalorder %s22, 1
      %s332 = scalar_select %p331, %s22, 1
      %p333 = scmp.lt.s32.totalorder %s330, 1
      %s334 = scalar_select %p333, %s330, 1
      %s335 = smul.addr %s332, 2
      %s336 = sadd.s32 %s334, %s335
      %s337 = smul.addr %s336, 4
      %s338 = scalar_lea.vmem %s7, %s337
      %p339 = scmp.lt.s32.totalorder %s22, 1
      %s340 = scalar_select %p339, %s22, 1
      %s341 = smul.addr %s340, 2
      %s342 = smul.addr %s341, 4
      %s343 = scalar_lea.vmem %s0, %s342
      %s344 = smul.u32 2, %s23
      %p345 = scmp.lt.s32.totalorder %s22, 1
      %s346 = scalar_select %p345, %s22, 1
      %p347 = scmp.lt.s32.totalorder %s344, 1
      %s348 = scalar_select %p347, %s344, 1
      %s349 = smul.addr %s346, 2
      %s350 = sadd.s32 %s348, %s349
      %s351 = smul.addr %s350, 4
      %s352 = scalar_lea.vmem %s1, %s351
      %s353 = smul.u32 2, %s23
      %s354 = smul.u32 2, %s23
      %p355 = scmp.lt.s32.totalorder %s22, 1
      %s356 = scalar_select %p355, %s22, 1
      %p357 = scmp.lt.s32.totalorder %s354, 1
      %s358 = scalar_select %p357, %s354, 1
      %s359 = smul.addr %s356, 2
      %s360 = sadd.s32 %s358, %s359
      %s361 = smul.addr %s360, 8
      %s362 = scalar_lea.vmem %s2, %s361
      %s363 = smul.u32 2, %s23
      %s364 = smul.u32 2, %s23
      %p365 = scmp.lt.s32.totalorder %s22, 1
      %s366 = scalar_select %p365, %s22, 1
      %p367 = scmp.lt.s32.totalorder %s364, 1
      %s368 = scalar_select %p367, %s364, 1
      %s369 = smul.addr %s366, 2
      %s370 = sadd.s32 %s368, %s369
      %s371 = smul.addr %s370, 4
      %s372 = scalar_lea.vmem %s7, %s371
      %s373 = smul.u32 2, %s23
      %v375 = vld [vmem:[%s343] sm:$0xf]
      %v376 = vld [vmem:[%s343 + $0x4] sm:$0xf]
      %v377 = vld [vmem:[%s352] sm:$0xf]
      %v378 = vld [vmem:[%s352 + $0x4] sm:$0xf]
      %v379 = vld [vmem:[%s362] sm:$0xff]
      %v380 = vld [vmem:[%s362 + $0x8] sm:$0xff]
      %v381 = vlaneseq
      %v382 = vand.u32 %v381, 127
      %383 = vset.pattern.permute.xlu0 0
      %384 = vperm.xlu0 %383, %v379
      %v385 = vpop.permute.xlu0 %384
      %386 = vset.pattern.permute.xlu0 0
      %387 = vperm.xlu0 %386, %v380
      %v388 = vpop.permute.xlu0 %387
      %vm389 = vcmp.eq.s32.totalorder %v382, %v385
      %vm390 = vcmp.eq.s32.totalorder %v382, %v388
      %v391 = vsel %vm389, 1, 0
      %v392 = vsel %vm390, 1, 0
      %v393 = vcvt.s32.f32 %v391
      %v394 = vcvt.s32.f32 %v392
      %v395 = vpack.c.bf16 %v394, %v393
      %v398 = vunpack.c.l.b16 %v375
      %v399 = vunpack.c.l.b16 %v376
      %v400 = vpack.c.b16 %v399, %v398
      %vm402 = vcmask 130048
      %v404 = vsel %vm402, %v395, 0
      %406 = vmatprep.subr.bf16.mxu0 0
      %407 = vmatpush1.bf16.msra.mxu0 %v400
      %408 = vmatprep.subr.bf16.mxu0 0
      %409 = vmatpush1.bf16.msra.mxu0 0
      %410 = vmatprep.subr.bf16.mxu0 0
      %411 = vmatpush1.bf16.msra.mxu0 0
      %412 = vmatprep.subr.bf16.mxu0 0
      %413 = vmatpush1.bf16.msra.mxu0 0
      %414 = vmatprep.subr.bf16.mxu0 0
      %415 = vmatpush1.bf16.msra.mxu0 0
      %416 = vmatprep.subr.bf16.mxu0 0
      %417 = vmatpush1.bf16.msra.mxu0 0
      %418 = vmatprep.subr.bf16.mxu0 0
      %419 = vmatpush1.bf16.msra.mxu0 0
      %420 = vmatprep.subr.bf16.mxu0 0
      %421 = vmatpush1.bf16.msra.mxu0 0
      %422 = vmatprep.subr.bf16.mxu0 0
      %423 = vmatpush1.bf16.msra.mxu0 0
      %424 = vmatprep.subr.bf16.mxu0 0
      %425 = vmatpush1.bf16.msra.mxu0 0
      %426 = vmatprep.subr.bf16.mxu0 0
      %427 = vmatpush1.bf16.msra.mxu0 0
      %428 = vmatprep.subr.bf16.mxu0 0
      %429 = vmatpush1.bf16.msra.mxu0 0
      %430 = vmatprep.subr.bf16.mxu0 0
      %431 = vmatpush1.bf16.msra.mxu0 0
      %432 = vmatprep.subr.bf16.mxu0 0
      %433 = vmatpush1.bf16.msra.mxu0 0
      %434 = vmatprep.subr.bf16.mxu0 0
      %435 = vmatpush1.bf16.msra.mxu0 0
      %436 = vmatprep.subr.bf16.mxu0 0
      %437 = vmatpush1.bf16.msra.mxu0 0
      %438 = vmatprep.mubr.bf16.mxu0 0
      %439 = vmatmul.mubr.bf16.gmra.mrb[0].mxu0 %v404
      %v440 = vpop.f32.mrb[0].mxu0
      %v441 = vadd.f32 0.0, %v440
      %v442 = vpop.f32.mrb[0].mxu0
      %v443 = vpop.f32.mrb[0].mxu0
      %v444 = vadd.f32 0.0, %v443
      %v445 = vpop.f32.mrb[0].mxu0
      %446 = vdwg.mxu0
      %v447 = vpack.c.bf16 %v444, %v441
      %v448 = vld [vmem:[%s3] sm:$0xf]
      %vm449 = vcmask 64512
      %v451 = vsel %vm449, %v447, 0
      %vm453 = vcmask 1043456
      %v455 = vsel %vm453, %v448, 0
      %457 = vmatprep.subr.bf16.mxu0 0
      %458 = vmatpush1.bf16.msra.mxu0 %v455
      %459 = vmatprep.subr.bf16.mxu0 0
      %460 = vmatpush1.bf16.msra.mxu0 0
      %461 = vmatprep.subr.bf16.mxu0 0
      %462 = vmatpush1.bf16.msra.mxu0 0
      %463 = vmatprep.subr.bf16.mxu0 0
      %464 = vmatpush1.bf16.msra.mxu0 0
      %465 = vmatprep.subr.bf16.mxu0 0
      %466 = vmatpush1.bf16.msra.mxu0 0
      %467 = vmatprep.subr.bf16.mxu0 0
      %468 = vmatpush1.bf16.msra.mxu0 0
      %469 = vmatprep.subr.bf16.mxu0 0
      %470 = vmatpush1.bf16.msra.mxu0 0
      %471 = vmatprep.subr.bf16.mxu0 0
      %472 = vmatpush1.bf16.msra.mxu0 0
      %473 = vmatprep.subr.bf16.mxu0 0
      %474 = vmatpush1.bf16.msra.mxu0 0
      %475 = vmatprep.subr.bf16.mxu0 0
      %476 = vmatpush1.bf16.msra.mxu0 0
      %477 = vmatprep.subr.bf16.mxu0 0
      %478 = vmatpush1.bf16.msra.mxu0 0
      %479 = vmatprep.subr.bf16.mxu0 0
      %480 = vmatpush1.bf16.msra.mxu0 0
      %481 = vmatprep.subr.bf16.mxu0 0
      %482 = vmatpush1.bf16.msra.mxu0 0
      %483 = vmatprep.subr.bf16.mxu0 0
      %484 = vmatpush1.bf16.msra.mxu0 0
      %485 = vmatprep.subr.bf16.mxu0 0
      %486 = vmatpush1.bf16.msra.mxu0 0
      %487 = vmatprep.subr.bf16.mxu0 0
      %488 = vmatpush1.bf16.msra.mxu0 0
      %489 = vmatprep.mubr.bf16.mxu0 0
      %490 = vmatmul.mubr.bf16.gmra.mrb[0].mxu0 %v451
      %v491 = vpop.f32.mrb[0].mxu0
      %v492 = vadd.f32 0.0, %v491
      %v493 = vpop.f32.mrb[0].mxu0
      %v494 = vpop.f32.mrb[0].mxu0
      %v495 = vadd.f32 0.0, %v494
      %v496 = vpop.f32.mrb[0].mxu0
      %497 = vdwg.mxu0
      %498 = vset.pattern.permute.xlu0 1
      %499 = vperm.xlu0 %498, %v379
      %v500 = vpop.permute.xlu0 %499
      %501 = vset.pattern.permute.xlu0 1
      %502 = vperm.xlu0 %501, %v380
      %v503 = vpop.permute.xlu0 %502
      %vm504 = vcmp.eq.s32.totalorder %v382, %v500
      %vm505 = vcmp.eq.s32.totalorder %v382, %v503
      %v506 = vsel %vm504, 1, 0
      %v507 = vsel %vm505, 1, 0
      %v508 = vcvt.s32.f32 %v506
      %v509 = vcvt.s32.f32 %v507
      %v510 = vpack.c.bf16 %v509, %v508
      %v512 = vsel %vm402, %v510, 0
      %514 = vmatprep.subr.bf16.mxu0 0
      %515 = vmatpush1.bf16.msra.mxu0 %v400
      %516 = vmatprep.subr.bf16.mxu0 0
      %517 = vmatpush1.bf16.msra.mxu0 0
      %518 = vmatprep.subr.bf16.mxu0 0
      %519 = vmatpush1.bf16.msra.mxu0 0
      %520 = vmatprep.subr.bf16.mxu0 0
      %521 = vmatpush1.bf16.msra.mxu0 0
      %522 = vmatprep.subr.bf16.mxu0 0
      %523 = vmatpush1.bf16.msra.mxu0 0
      %524 = vmatprep.subr.bf16.mxu0 0
      %525 = vmatpush1.bf16.msra.mxu0 0
      %526 = vmatprep.subr.bf16.mxu0 0
      %527 = vmatpush1.bf16.msra.mxu0 0
      %528 = vmatprep.subr.bf16.mxu0 0
      %529 = vmatpush1.bf16.msra.mxu0 0
      %530 = vmatprep.subr.bf16.mxu0 0
      %531 = vmatpush1.bf16.msra.mxu0 0
      %532 = vmatprep.subr.bf16.mxu0 0
      %533 = vmatpush1.bf16.msra.mxu0 0
      %534 = vmatprep.subr.bf16.mxu0 0
      %535 = vmatpush1.bf16.msra.mxu0 0
      %536 = vmatprep.subr.bf16.mxu0 0
      %537 = vmatpush1.bf16.msra.mxu0 0
      %538 = vmatprep.subr.bf16.mxu0 0
      %539 = vmatpush1.bf16.msra.mxu0 0
      %540 = vmatprep.subr.bf16.mxu0 0
      %541 = vmatpush1.bf16.msra.mxu0 0
      %542 = vmatprep.subr.bf16.mxu0 0
      %543 = vmatpush1.bf16.msra.mxu0 0
      %544 = vmatprep.subr.bf16.mxu0 0
      %545 = vmatpush1.bf16.msra.mxu0 0
      %546 = vmatprep.mubr.bf16.mxu0 0
      %547 = vmatmul.mubr.bf16.gmra.mrb[0].mxu0 %v512
      %v548 = vpop.f32.mrb[0].mxu0
      %v549 = vadd.f32 0.0, %v548
      %v550 = vpop.f32.mrb[0].mxu0
      %v551 = vpop.f32.mrb[0].mxu0
      %v552 = vadd.f32 0.0, %v551
      %v553 = vpop.f32.mrb[0].mxu0
      %554 = vdwg.mxu0
      %v555 = vpack.c.bf16 %v552, %v549
      %v557 = vsel %vm449, %v555, 0
      %559 = vmatprep.subr.bf16.mxu0 0
      %560 = vmatpush1.bf16.msra.mxu0 %v455
      %561 = vmatprep.subr.bf16.mxu0 0
      %562 = vmatpush1.bf16.msra.mxu0 0
      %563 = vmatprep.subr.bf16.mxu0 0
      %564 = vmatpush1.bf16.msra.mxu0 0
      %565 = vmatprep.subr.bf16.mxu0 0
      %566 = vmatpush1.bf16.msra.mxu0 0
      %567 = vmatprep.subr.bf16.mxu0 0
      %568 = vmatpush1.bf16.msra.mxu0 0
      %569 = vmatprep.subr.bf16.mxu0 0
      %570 = vmatpush1.bf16.msra.mxu0 0
      %571 = vmatprep.subr.bf16.mxu0 0
      %572 = vmatpush1.bf16.msra.mxu0 0
      %573 = vmatprep.subr.bf16.mxu0 0
      %574 = vmatpush1.bf16.msra.mxu0 0
      %575 = vmatprep.subr.bf16.mxu0 0
      %576 = vmatpush1.bf16.msra.mxu0 0
      %577 = vmatprep.subr.bf16.mxu0 0
      %578 = vmatpush1.bf16.msra.mxu0 0
      %579 = vmatprep.subr.bf16.mxu0 0
      %580 = vmatpush1.bf16.msra.mxu0 0
      %581 = vmatprep.subr.bf16.mxu0 0
      %582 = vmatpush1.bf16.msra.mxu0 0
      %583 = vmatprep.subr.bf16.mxu0 0
      %584 = vmatpush1.bf16.msra.mxu0 0
      %585 = vmatprep.subr.bf16.mxu0 0
      %586 = vmatpush1.bf16.msra.mxu0 0
      %587 = vmatprep.subr.bf16.mxu0 0
      %588 = vmatpush1.bf16.msra.mxu0 0
      %589 = vmatprep.subr.bf16.mxu0 0
      %590 = vmatpush1.bf16.msra.mxu0 0
      %591 = vmatprep.mubr.bf16.mxu0 0
      %592 = vmatmul.mubr.bf16.gmra.mrb[0].mxu0 %v557
      %v593 = vpop.f32.mrb[0].mxu0
      %v594 = vadd.f32 0.0, %v593
      %v595 = vpop.f32.mrb[0].mxu0
      %v596 = vpop.f32.mrb[0].mxu0
      %v597 = vadd.f32 0.0, %v596
      %v598 = vpop.f32.mrb[0].mxu0
      %599 = vdwg.mxu0
      %v600 = vmax.f32 %v492, %v594
      %v601 = vmax.f32 %v495, %v597
      %602 = vset.pattern.permute.xlu0 2
      %603 = vperm.xlu0 %602, %v379
      %v604 = vpop.permute.xlu0 %603
      %605 = vset.pattern.permute.xlu0 2
      %606 = vperm.xlu0 %605, %v380
      %v607 = vpop.permute.xlu0 %606
      %vm608 = vcmp.eq.s32.totalorder %v382, %v604
      %vm609 = vcmp.eq.s32.totalorder %v382, %v607
      %v610 = vsel %vm608, 1, 0
      %v611 = vsel %vm609, 1, 0
      %v612 = vcvt.s32.f32 %v610
      %v613 = vcvt.s32.f32 %v611
      %v614 = vpack.c.bf16 %v613, %v612
      %v616 = vsel %vm402, %v614, 0
      %618 = vmatprep.subr.bf16.mxu0 0
      %619 = vmatpush1.bf16.msra.mxu0 %v400
      %620 = vmatprep.subr.bf16.mxu0 0
      %621 = vmatpush1.bf16.msra.mxu0 0
      %622 = vmatprep.subr.bf16.mxu0 0
      %623 = vmatpush1.bf16.msra.mxu0 0
      %624 = vmatprep.subr.bf16.mxu0 0
      %625 = vmatpush1.bf16.msra.mxu0 0
      %626 = vmatprep.subr.bf16.mxu0 0
      %627 = vmatpush1.bf16.msra.mxu0 0
      %628 = vmatprep.subr.bf16.mxu0 0
      %629 = vmatpush1.bf16.msra.mxu0 0
      %630 = vmatprep.subr.bf16.mxu0 0
      %631 = vmatpush1.bf16.msra.mxu0 0
      %632 = vmatprep.subr.bf16.mxu0 0
      %633 = vmatpush1.bf16.msra.mxu0 0
      %634 = vmatprep.subr.bf16.mxu0 0
      %635 = vmatpush1.bf16.msra.mxu0 0
      %636 = vmatprep.subr.bf16.mxu0 0
      %637 = vmatpush1.bf16.msra.mxu0 0
      %638 = vmatprep.subr.bf16.mxu0 0
      %639 = vmatpush1.bf16.msra.mxu0 0
      %640 = vmatprep.subr.bf16.mxu0 0
      %641 = vmatpush1.bf16.msra.mxu0 0
      %642 = vmatprep.subr.bf16.mxu0 0
      %643 = vmatpush1.bf16.msra.mxu0 0
      %644 = vmatprep.subr.bf16.mxu0 0
      %645 = vmatpush1.bf16.msra.mxu0 0
      %646 = vmatprep.subr.bf16.mxu0 0
      %647 = vmatpush1.bf16.msra.mxu0 0
      %648 = vmatprep.subr.bf16.mxu0 0
      %649 = vmatpush1.bf16.msra.mxu0 0
      %650 = vmatprep.mubr.bf16.mxu0 0
      %651 = vmatmul.mubr.bf16.gmra.mrb[0].mxu0 %v616
      %v652 = vpop.f32.mrb[0].mxu0
      %v653 = vadd.f32 0.0, %v652
      %v654 = vpop.f32.mrb[0].mxu0
      %v655 = vpop.f32.mrb[0].mxu0
      %v656 = vadd.f32 0.0, %v655
      %v657 = vpop.f32.mrb[0].mxu0
      %658 = vdwg.mxu0
      %v659 = vpack.c.bf16 %v656, %v653
      %v661 = vsel %vm449, %v659, 0
      %663 = vmatprep.subr.bf16.mxu0 0
      %664 = vmatpush1.bf16.msra.mxu0 %v455
      %665 = vmatprep.subr.bf16.mxu0 0
      %666 = vmatpush1.bf16.msra.mxu0 0
      %667 = vmatprep.subr.bf16.mxu0 0
      %668 = vmatpush1.bf16.msra.mxu0 0
      %669 = vmatprep.subr.bf16.mxu0 0
      %670 = vmatpush1.bf16.msra.mxu0 0
      %671 = vmatprep.subr.bf16.mxu0 0
      %672 = vmatpush1.bf16.msra.mxu0 0
      %673 = vmatprep.subr.bf16.mxu0 0
      %674 = vmatpush1.bf16.msra.mxu0 0
      %675 = vmatprep.subr.bf16.mxu0 0
      %676 = vmatpush1.bf16.msra.mxu0 0
      %677 = vmatprep.subr.bf16.mxu0 0
      %678 = vmatpush1.bf16.msra.mxu0 0
      %679 = vmatprep.subr.bf16.mxu0 0
      %680 = vmatpush1.bf16.msra.mxu0 0
      %681 = vmatprep.subr.bf16.mxu0 0
      %682 = vmatpush1.bf16.msra.mxu0 0
      %683 = vmatprep.subr.bf16.mxu0 0
      %684 = vmatpush1.bf16.msra.mxu0 0
      %685 = vmatprep.subr.bf16.mxu0 0
      %686 = vmatpush1.bf16.msra.mxu0 0
      %687 = vmatprep.subr.bf16.mxu0 0
      %688 = vmatpush1.bf16.msra.mxu0 0
      %689 = vmatprep.subr.bf16.mxu0 0
      %690 = vmatpush1.bf16.msra.mxu0 0
      %691 = vmatprep.subr.bf16.mxu0 0
      %692 = vmatpush1.bf16.msra.mxu0 0
      %693 = vmatprep.subr.bf16.mxu0 0
      %694 = vmatpush1.bf16.msra.mxu0 0
      %695 = vmatprep.mubr.bf16.mxu0 0
      %696 = vmatmul.mubr.bf16.gmra.mrb[0].mxu0 %v661
      %v697 = vpop.f32.mrb[0].mxu0
      %v698 = vadd.f32 0.0, %v697
      %v699 = vpop.f32.mrb[0].mxu0
      %v700 = vpop.f32.mrb[0].mxu0
      %v701 = vadd.f32 0.0, %v700
      %v702 = vpop.f32.mrb[0].mxu0
      %703 = vdwg.mxu0
      %v704 = vmax.f32 %v600, %v698
      %v705 = vmax.f32 %v601, %v701
      %706 = vset.pattern.permute.xlu0 3
      %707 = vperm.xlu0 %706, %v379
      %v708 = vpop.permute.xlu0 %707
      %709 = vset.pattern.permute.xlu0 3
      %710 = vperm.xlu0 %709, %v380
      %v711 = vpop.permute.xlu0 %710
      %vm712 = vcmp.eq.s32.totalorder %v382, %v708
      %vm713 = vcmp.eq.s32.totalorder %v382, %v711
      %v714 = vsel %vm712, 1, 0
      %v715 = vsel %vm713, 1, 0
      %v716 = vcvt.s32.f32 %v714
      %v717 = vcvt.s32.f32 %v715
      %v718 = vpack.c.bf16 %v717, %v716
      %v720 = vsel %vm402, %v718, 0
      %722 = vmatprep.subr.bf16.mxu0 0
      %723 = vmatpush1.bf16.msra.mxu0 %v400
      %724 = vmatprep.subr.bf16.mxu0 0
      %725 = vmatpush1.bf16.msra.mxu0 0
      %726 = vmatprep.subr.bf16.mxu0 0
      %727 = vmatpush1.bf16.msra.mxu0 0
      %728 = vmatprep.subr.bf16.mxu0 0
      %729 = vmatpush1.bf16.msra.mxu0 0
      %730 = vmatprep.subr.bf16.mxu0 0
      %731 = vmatpush1.bf16.msra.mxu0 0
      %732 = vmatprep.subr.bf16.mxu0 0
      %733 = vmatpush1.bf16.msra.mxu0 0
      %734 = vmatprep.subr.bf16.mxu0 0
      %735 = vmatpush1.bf16.msra.mxu0 0
      %736 = vmatprep.subr.bf16.mxu0 0
      %737 = vmatpush1.bf16.msra.mxu0 0
      %738 = vmatprep.subr.bf16.mxu0 0
      %739 = vmatpush1.bf16.msra.mxu0 0
      %740 = vmatprep.subr.bf16.mxu0 0
      %741 = vmatpush1.bf16.msra.mxu0 0
      %742 = vmatprep.subr.bf16.mxu0 0
      %743 = vmatpush1.bf16.msra.mxu0 0
      %744 = vmatprep.subr.bf16.mxu0 0
      %745 = vmatpush1.bf16.msra.mxu0 0
      %746 = vmatprep.subr.bf16.mxu0 0
      %747 = vmatpush1.bf16.msra.mxu0 0
      %748 = vmatprep.subr.bf16.mxu0 0
      %749 = vmatpush1.bf16.msra.mxu0 0
      %750 = vmatprep.subr.bf16.mxu0 0
      %751 = vmatpush1.bf16.msra.mxu0 0
      %752 = vmatprep.subr.bf16.mxu0 0
      %753 = vmatpush1.bf16.msra.mxu0 0
      %754 = vmatprep.mubr.bf16.mxu0 0
      %755 = vmatmul.mubr.bf16.gmra.mrb[0].mxu0 %v720
      %v756 = vpop.f32.mrb[0].mxu0
      %v757 = vadd.f32 0.0, %v756
      %v758 = vpop.f32.mrb[0].mxu0
      %v759 = vpop.f32.mrb[0].mxu0
      %v760 = vadd.f32 0.0, %v759
      %v761 = vpop.f32.mrb[0].mxu0
      %762 = vdwg.mxu0
      %v763 = vpack.c.bf16 %v760, %v757
      %v765 = vsel %vm449, %v763, 0
      %767 = vmatprep.subr.bf16.mxu0 0
      %768 = vmatpush1.bf16.msra.mxu0 %v455
      %769 = vmatprep.subr.bf16.mxu0 0
      %770 = vmatpush1.bf16.msra.mxu0 0
      %771 = vmatprep.subr.bf16.mxu0 0
      %772 = vmatpush1.bf16.msra.mxu0 0
      %773 = vmatprep.subr.bf16.mxu0 0
      %774 = vmatpush1.bf16.msra.mxu0 0
      %775 = vmatprep.subr.bf16.mxu0 0
      %776 = vmatpush1.bf16.msra.mxu0 0
      %777 = vmatprep.subr.bf16.mxu0 0
      %778 = vmatpush1.bf16.msra.mxu0 0
      %779 = vmatprep.subr.bf16.mxu0 0
      %780 = vmatpush1.bf16.msra.mxu0 0
      %781 = vmatprep.subr.bf16.mxu0 0
      %782 = vmatpush1.bf16.msra.mxu0 0
      %783 = vmatprep.subr.bf16.mxu0 0
      %784 = vmatpush1.bf16.msra.mxu0 0
      %785 = vmatprep.subr.bf16.mxu0 0
      %786 = vmatpush1.bf16.msra.mxu0 0
      %787 = vmatprep.subr.bf16.mxu0 0
      %788 = vmatpush1.bf16.msra.mxu0 0
      %789 = vmatprep.subr.bf16.mxu0 0
      %790 = vmatpush1.bf16.msra.mxu0 0
      %791 = vmatprep.subr.bf16.mxu0 0
      %792 = vmatpush1.bf16.msra.mxu0 0
      %793 = vmatprep.subr.bf16.mxu0 0
      %794 = vmatpush1.bf16.msra.mxu0 0
      %795 = vmatprep.subr.bf16.mxu0 0
      %796 = vmatpush1.bf16.msra.mxu0 0
      %797 = vmatprep.subr.bf16.mxu0 0
      %798 = vmatpush1.bf16.msra.mxu0 0
      %799 = vmatprep.mubr.bf16.mxu0 0
      %800 = vmatmul.mubr.bf16.gmra.mrb[0].mxu0 %v765
      %v801 = vpop.f32.mrb[0].mxu0
      %v802 = vadd.f32 0.0, %v801
      %v803 = vpop.f32.mrb[0].mxu0
      %v804 = vpop.f32.mrb[0].mxu0
      %v805 = vadd.f32 0.0, %v804
      %v806 = vpop.f32.mrb[0].mxu0
      %807 = vdwg.mxu0
      %v808 = vmax.f32 %v704, %v802
      %v809 = vmax.f32 %v705, %v805
      %v810 = vld [vmem:[%s4] sm:$0xf]
      %v813 = vunpack.c.l.b16 %v377
      %v814 = vunpack.c.l.b16 %v378
      %v815 = vpack.c.b16 %v814, %v813
      %v817 = vsel %vm449, %v815, 0
      %v820 = vsel %vm453, %v810, 0
      %822 = vmatprep.subr.bf16.mxu0 0
      %823 = vmatpush1.bf16.msra.mxu0 %v820
      %824 = vmatprep.subr.bf16.mxu0 0
      %825 = vmatpush1.bf16.msra.mxu0 0
      %826 = vmatprep.subr.bf16.mxu0 0
      %827 = vmatpush1.bf16.msra.mxu0 0
      %828 = vmatprep.subr.bf16.mxu0 0
      %829 = vmatpush1.bf16.msra.mxu0 0
      %830 = vmatprep.subr.bf16.mxu0 0
      %831 = vmatpush1.bf16.msra.mxu0 0
      %832 = vmatprep.subr.bf16.mxu0 0
      %833 = vmatpush1.bf16.msra.mxu0 0
      %834 = vmatprep.subr.bf16.mxu0 0
      %835 = vmatpush1.bf16.msra.mxu0 0
      %836 = vmatprep.subr.bf16.mxu0 0
      %837 = vmatpush1.bf16.msra.mxu0 0
      %838 = vmatprep.subr.bf16.mxu0 0
      %839 = vmatpush1.bf16.msra.mxu0 0
      %840 = vmatprep.subr.bf16.mxu0 0
      %841 = vmatpush1.bf16.msra.mxu0 0
      %842 = vmatprep.subr.bf16.mxu0 0
      %843 = vmatpush1.bf16.msra.mxu0 0
      %844 = vmatprep.subr.bf16.mxu0 0
      %845 = vmatpush1.bf16.msra.mxu0 0
      %846 = vmatprep.subr.bf16.mxu0 0
      %847 = vmatpush1.bf16.msra.mxu0 0
      %848 = vmatprep.subr.bf16.mxu0 0
      %849 = vmatpush1.bf16.msra.mxu0 0
      %850 = vmatprep.subr.bf16.mxu0 0
      %851 = vmatpush1.bf16.msra.mxu0 0
      %852 = vmatprep.subr.bf16.mxu0 0
      %853 = vmatpush1.bf16.msra.mxu0 0
      %854 = vmatprep.mubr.bf16.mxu0 0
      %855 = vmatmul.mubr.bf16.gmra.mrb[0].mxu0 %v817
      %v856 = vpop.f32.mrb[0].mxu0
      %v857 = vadd.f32 0.0, %v856
      %v858 = vpop.f32.mrb[0].mxu0
      %v859 = vpop.f32.mrb[0].mxu0
      %v860 = vadd.f32 0.0, %v859
      %v861 = vpop.f32.mrb[0].mxu0
      %862 = vdwg.mxu0
      %v863 = vadd.f32 %v808, %v857
      %v864 = vadd.f32 %v809, %v860
      %v865 = vld [vmem:[%s5] sm:$0x1]
      %v867 = vlaneseq
      %v868 = vshrl.u32 %v867, 7
      %v869 = vsub.s32 0, %v868
      %v870 = vrot.slane %v865, %v869
      %v872 = vmul.f32 %v863, %v870
      %v873 = vmul.f32 %v864, %v870
      %v874 = vld [vmem:[%s6] sm:$0x1]
      %v876 = vlaneseq
      %v877 = vshrl.u32 %v876, 7
      %v878 = vsub.s32 0, %v877
      %v879 = vrot.slane %v874, %v878
      %v881 = vadd.f32 %v872, %v879
      %v882 = vadd.f32 %v873, %v879
      %v883 = vmul.f32 %v881, 0.2
      %v884 = vmul.f32 %v882, 0.2
      %v885 = vmax.f32 %v881, %v883
      %v886 = vmax.f32 %v882, %v884
      %v887 = vpack.c.bf16 %v886, %v885
      %v889 = vunpack.c.l.b16 %v887
      %v890 = vunpack.c.h.b16 %v887
      %v891 = vpack.c.b16 %v889, %v889
      %v892 = vpack.c.b16 %v890, %v890
      %vm895 = vcmask 519168
      %896 = vst.msk [vmem:[%s372] sm:$0xf] %vm895, %v891
      %897 = vst.msk [vmem:[%s372 + $0x4] sm:$0xf] %vm895, %v892
      %s898 = smul.u32 2, %s23
      %p899 = scmp.lt.s32.totalorder %s22, 1
      %s900 = scalar_select %p899, %s22, 1
      %p901 = scmp.lt.s32.totalorder %s898, 1
      %s902 = scalar_select %p901, %s898, 1
      %s903 = smul.addr %s900, 2
      %s904 = sadd.s32 %s902, %s903
      %s905 = smul.addr %s904, 4
      %s906 = scalar_lea.vmem %s7, %s905
      // Predicated region
      $region49: #{dgcnn_forward.10} parent=47 // pred_check
        %p907 = pneg %p216
      $region50: #{dgcnn_forward.10} parent=47 // pred_check_branch
        %909 = sbr.rel (%p907) target = $region52
      $region51: #{dgcnn_forward.10} parent=47 // pred_region
        %s910 = smul.u32 2, %s23
      $region52: #{dgcnn_forward.10} parent=47 // pred_fallthru
        _
    $region48: #{dgcnn_forward.10} parent=5 // pred_fallthru
      _
    %p911 = scmp.le.s32.totalorder 2, %s13
    // Predicated region
    $region53: #{dgcnn_forward.10} parent=5 // pred_check
      %p912 = pneg %p911
    $region54: #{dgcnn_forward.10} parent=5 // pred_check_branch
      %914 = sbr.rel (%p912) target = $region56
    $region55: #{dgcnn_forward.10} parent=5 // pred_region
      %s915 = ssub.s32 %s13, 2
      // Predicated region
      $region57: #{dgcnn_forward.10} parent=55 // pred_check
        %p916 = pneg %p222
      $region58: #{dgcnn_forward.10} parent=55 // pred_check_branch
        %918 = sbr.rel (%p916) target = $region60
      $region59: #{dgcnn_forward.10} parent=55 // pred_region
        %s919 = smul.u32 2, %s25
        %p920 = scmp.lt.s32.totalorder %s24, 1
        %s921 = scalar_select %p920, %s24, 1
        %p922 = scmp.lt.s32.totalorder %s919, 1
        %s923 = scalar_select %p922, %s919, 1
        %s924 = smul.addr %s921, 2
        %s925 = sadd.s32 %s923, %s924
        %s926 = smul.addr %s925, 4
        %s927 = scalar_lea.vmem %s7, %s926
      $region60: #{dgcnn_forward.10} parent=55 // pred_fallthru
        _
    $region56: #{dgcnn_forward.10} parent=5 // pred_fallthru
      _
  $region6: #{dgcnn_forward.10} parent=0 // loop_footer
    %s17 = sadd.s32 1, %s13
  $region7: #{dgcnn_forward.10} parent=0 // loop_footer_branch
    %12 = sbr.rel target = $region3
  $region8: #{dgcnn_forward.10} parent=0 // loop_exit
    _

// kernel: dgcnn_forward.12
$region0: #{dgcnn_forward.12}
  #allocation0 [shape = 'u32[]', space=smem, size = 0x4, offset = 0x4, fixed_abs, tag = 'smem constant byte address 0x4 - core index']
  #allocation1 [shape = 'u32[144,128]{1,0:T(1,128)}', space=vmem, size = 0x12000, scoped, tag = 'internal scratch']
  %s0 = inlined_call_operand.vmem [shape: bf16[2,16,64], index: 0, kind: input, shape index: {}, may-alias: {0,1}]
  %s1 = inlined_call_operand.vmem [shape: bf16[2,16,64], index: 1, kind: input, shape index: {}, may-alias: {0,1}]
  %s2 = inlined_call_operand.vmem [shape: s32[2,16,4], index: 2, kind: input, shape index: {}]
  %s3 = inlined_call_operand.vmem [shape: bf16[64,64], index: 3, kind: input, shape index: {}]
  %s4 = inlined_call_operand.vmem [shape: bf16[64,64], index: 4, kind: input, shape index: {}]
  %s5 = inlined_call_operand.vmem [shape: f32[1,64], index: 5, kind: input, shape index: {}]
  %s6 = inlined_call_operand.vmem [shape: f32[1,64], index: 6, kind: input, shape index: {}]
  %s7 = inlined_call_operand.vmem [shape: bf16[2,16,64], index: 7, kind: output, shape index: {}]
  %s8 = sld [smem:[#allocation0]]
  $region61: #{dgcnn_forward.12} parent=0
    _
  %s10 = ssub.s32 1, %s8
  %s11 = scalar_select 0, %s10, %s8
  loop: start=0, step=1, limit=4
  $region2: #{dgcnn_forward.12} parent=0 // loop_pre_header
    _
  $region3: #{dgcnn_forward.12} parent=0 // loop_header
    %s13 = sphi 0, %s17
    %p14 = scmp.ge.s32.totalorder %s13, 4
    %s20 = sphi 0, %s32
    %s21 = sphi 0, %s28
    %s22 = sphi 0, %s20
    %s23 = sphi 0, %s21
    %s24 = sphi 0, %s22
    %s25 = sphi 0, %s23
    %s35 = sphi 0, %s37
    %s38 = sphi 0, %s35
    %s39 = sphi 0, %s38
    %s55 = sphi 0, %s39
    %s63 = sphi 0, %s65
    %s66 = sphi 0, %s63
    %s67 = sphi 0, %s66
    %s83 = sphi 0, %s67
    %s91 = sphi 0, %s93
    %s94 = sphi 0, %s91
    %s95 = sphi 0, %s94
    %s111 = sphi 0, %s95
    %s115 = sphi 0, %s115
    %s117 = sphi 0, %s115
    %s118 = sphi 0, %s117
    %s132 = sphi 0, %s118
    %s136 = sphi 0, %s136
    %s138 = sphi 0, %s136
    %s139 = sphi 0, %s138
    %s153 = sphi 0, %s139
    %s157 = sphi 0, %s157
    %s159 = sphi 0, %s157
    %s160 = sphi 0, %s159
    %s174 = sphi 0, %s160
    %s178 = sphi 0, %s178
    %s180 = sphi 0, %s178
    %s181 = sphi 0, %s180
    %s195 = sphi 0, %s181
    %s203 = sphi 0, %s205
    %s206 = sphi 0, %s203
    %s207 = sphi 0, %s206
    %s223 = sphi 0, %s207
  $region4: #{dgcnn_forward.12} parent=0 // loop_header_branch
    %16 = sbr.rel (%p14) target = $region8
  $region5: #{dgcnn_forward.12} parent=0 // loop_body
    %s18 = ssub.s32 %s13, 1
    %s19 = ssub.s32 %s13, 2
    %s26 = sadd.s32 1, %s21
    %p27 = scmp.ge.s32.totalorder %s26, 1
    %s28 = scalar_select %p27, 0, %s26
    %s29 = sadd.s32 1, %s20
    %s30 = scalar_select %p27, %s29, %s20
    %p31 = scmp.ge.s32.totalorder %s30, 2
    %s32 = scalar_select %p31, 0, %s30
    %s33 = ssub.s32 %s20, %s32
    %p34 = scmp.eq.s32.totalorder %s33, 0
    %s36 = sadd.s32 %s35, 1
    %s37 = scalar_select %p34, %s35, %s36
    %p40 = pneg %p34
    %p41 = scmp.eq.s32.totalorder %s13, 1
    %p42 = por %p40, %p41
    %p43 = scmp.ne.s32.totalorder %s35, %s38
    %p44 = scmp.eq.s32.totalorder %s13, 0
    %p45 = por %p43, %p44
    %p46 = scmp.ne.s32.totalorder %s35, %s38
    %p47 = scmp.eq.s32.totalorder %s18, 1
    %p48 = por %p46, %p47
    %p49 = scmp.ne.s32.totalorder %s38, %s39
    %p50 = scmp.eq.s32.totalorder %s18, 0
    %p51 = por %p49, %p50
    %p52 = scmp.ne.s32.totalorder %s38, %s39
    %p53 = scmp.eq.s32.totalorder %s19, 1
    %p54 = por %p52, %p53
    %p56 = scmp.ne.s32.totalorder %s39, %s55
    %p57 = scmp.eq.s32.totalorder %s19, 0
    %p58 = por %p56, %p57
    %s59 = ssub.s32 %s20, %s32
    %s60 = ssub.s32 %s21, %s28
    %s61 = sor.u32 %s59, %s60
    %p62 = scmp.eq.s32.totalorder %s61, 0
    %s64 = sadd.s32 %s63, 1
    %s65 = scalar_select %p62, %s63, %s64
    %p68 = pneg %p62
    %p69 = scmp.eq.s32.totalorder %s13, 1
    %p70 = por %p68, %p69
    %p71 = scmp.ne.s32.totalorder %s63, %s66
    %p72 = scmp.eq.s32.totalorder %s13, 0
    %p73 = por %p71, %p72
    %p74 = scmp.ne.s32.totalorder %s63, %s66
    %p75 = scmp.eq.s32.totalorder %s18, 1
    %p76 = por %p74, %p75
    %p77 = scmp.ne.s32.totalorder %s66, %s67
    %p78 = scmp.eq.s32.totalorder %s18, 0
    %p79 = por %p77, %p78
    %p80 = scmp.ne.s32.totalorder %s66, %s67
    %p81 = scmp.eq.s32.totalorder %s19, 1
    %p82 = por %p80, %p81
    %p84 = scmp.ne.s32.totalorder %s67, %s83
    %p85 = scmp.eq.s32.totalorder %s19, 0
    %p86 = por %p84, %p85
    %s87 = ssub.s32 %s20, %s32
    %s88 = ssub.s32 %s21, %s28
    %s89 = sor.u32 %s87, %s88
    %p90 = scmp.eq.s32.totalorder %s89, 0
    %s92 = sadd.s32 %s91, 1
    %s93 = scalar_select %p90, %s91, %s92
    %p96 = pneg %p90
    %p97 = scmp.eq.s32.totalorder %s13, 1
    %p98 = por %p96, %p97
    %p99 = scmp.ne.s32.totalorder %s91, %s94
    %p100 = scmp.eq.s32.totalorder %s13, 0
    %p101 = por %p99, %p100
    %p102 = scmp.ne.s32.totalorder %s91, %s94
    %p103 = scmp.eq.s32.totalorder %s18, 1
    %p104 = por %p102, %p103
    %p105 = scmp.ne.s32.totalorder %s94, %s95
    %p106 = scmp.eq.s32.totalorder %s18, 0
    %p107 = por %p105, %p106
    %p108 = scmp.ne.s32.totalorder %s94, %s95
    %p109 = scmp.eq.s32.totalorder %s19, 1
    %p110 = por %p108, %p109
    %p112 = scmp.ne.s32.totalorder %s95, %s111
    %p113 = scmp.eq.s32.totalorder %s19, 0
    %p114 = por %p112, %p113
    %s116 = sadd.s32 %s115, 1
    %p119 = scmp.eq.s32.totalorder %s13, 1
    %p120 = scmp.ne.s32.totalorder %s115, %s117
    %p121 = scmp.eq.s32.totalorder %s13, 0
    %p122 = por %p120, %p121
    %p123 = scmp.ne.s32.totalorder %s115, %s117
    %p124 = scmp.eq.s32.totalorder %s18, 1
    %p125 = por %p123, %p124
    %p126 = scmp.ne.s32.totalorder %s117, %s118
    %p127 = scmp.eq.s32.totalorder %s18, 0
    %p128 = por %p126, %p127
    %p129 = scmp.ne.s32.totalorder %s117, %s118
    %p130 = scmp.eq.s32.totalorder %s19, 1
    %p131 = por %p129, %p130
    %p133 = scmp.ne.s32.totalorder %s118, %s132
    %p134 = scmp.eq.s32.totalorder %s19, 0
    %p135 = por %p133, %p134
    %s137 = sadd.s32 %s136, 1
    %p140 = scmp.eq.s32.totalorder %s13, 1
    %p141 = scmp.ne.s32.totalorder %s136, %s138
    %p142 = scmp.eq.s32.totalorder %s13, 0
    %p143 = por %p141, %p142
    %p144 = scmp.ne.s32.totalorder %s136, %s138
    %p145 = scmp.eq.s32.totalorder %s18, 1
    %p146 = por %p144, %p145
    %p147 = scmp.ne.s32.totalorder %s138, %s139
    %p148 = scmp.eq.s32.totalorder %s18, 0
    %p149 = por %p147, %p148
    %p150 = scmp.ne.s32.totalorder %s138, %s139
    %p151 = scmp.eq.s32.totalorder %s19, 1
    %p152 = por %p150, %p151
    %p154 = scmp.ne.s32.totalorder %s139, %s153
    %p155 = scmp.eq.s32.totalorder %s19, 0
    %p156 = por %p154, %p155
    %s158 = sadd.s32 %s157, 1
    %p161 = scmp.eq.s32.totalorder %s13, 1
    %p162 = scmp.ne.s32.totalorder %s157, %s159
    %p163 = scmp.eq.s32.totalorder %s13, 0
    %p164 = por %p162, %p163
    %p165 = scmp.ne.s32.totalorder %s157, %s159
    %p166 = scmp.eq.s32.totalorder %s18, 1
    %p167 = por %p165, %p166
    %p168 = scmp.ne.s32.totalorder %s159, %s160
    %p169 = scmp.eq.s32.totalorder %s18, 0
    %p170 = por %p168, %p169
    %p171 = scmp.ne.s32.totalorder %s159, %s160
    %p172 = scmp.eq.s32.totalorder %s19, 1
    %p173 = por %p171, %p172
    %p175 = scmp.ne.s32.totalorder %s160, %s174
    %p176 = scmp.eq.s32.totalorder %s19, 0
    %p177 = por %p175, %p176
    %s179 = sadd.s32 %s178, 1
    %p182 = scmp.eq.s32.totalorder %s13, 1
    %p183 = scmp.ne.s32.totalorder %s178, %s180
    %p184 = scmp.eq.s32.totalorder %s13, 0
    %p185 = por %p183, %p184
    %p186 = scmp.ne.s32.totalorder %s178, %s180
    %p187 = scmp.eq.s32.totalorder %s18, 1
    %p188 = por %p186, %p187
    %p189 = scmp.ne.s32.totalorder %s180, %s181
    %p190 = scmp.eq.s32.totalorder %s18, 0
    %p191 = por %p189, %p190
    %p192 = scmp.ne.s32.totalorder %s180, %s181
    %p193 = scmp.eq.s32.totalorder %s19, 1
    %p194 = por %p192, %p193
    %p196 = scmp.ne.s32.totalorder %s181, %s195
    %p197 = scmp.eq.s32.totalorder %s19, 0
    %p198 = por %p196, %p197
    %s199 = ssub.s32 %s20, %s32
    %s200 = ssub.s32 %s21, %s28
    %s201 = sor.u32 %s199, %s200
    %p202 = scmp.eq.s32.totalorder %s201, 0
    %s204 = sadd.s32 %s203, 1
    %s205 = scalar_select %p202, %s203, %s204
    %p208 = pneg %p202
    %p209 = scmp.eq.s32.totalorder %s13, 1
    %p210 = por %p208, %p209
    %p211 = scmp.ne.s32.totalorder %s203, %s206
    %p212 = scmp.eq.s32.totalorder %s13, 0
    %p213 = por %p211, %p212
    %p214 = scmp.ne.s32.totalorder %s203, %s206
    %p215 = scmp.eq.s32.totalorder %s18, 1
    %p216 = por %p214, %p215
    %p217 = scmp.ne.s32.totalorder %s206, %s207
    %p218 = scmp.eq.s32.totalorder %s18, 0
    %p219 = por %p217, %p218
    %p220 = scmp.ne.s32.totalorder %s206, %s207
    %p221 = scmp.eq.s32.totalorder %s19, 1
    %p222 = por %p220, %p221
    %p224 = scmp.ne.s32.totalorder %s207, %s223
    %p225 = scmp.eq.s32.totalorder %s19, 0
    %p226 = por %p224, %p225
    %p227 = scmp.le.s32.totalorder 1, %s13
    %p228 = scmp.lt.s32.totalorder %s13, 3
    %p229 = pnand %p227, %p228
    %p230 = pneg %p229
    // Predicated region
    $region9: #{dgcnn_forward.12} parent=5 // pred_check
      _
    $region10: #{dgcnn_forward.12} parent=5 // pred_check_branch
      %232 = sbr.rel (%p229) target = $region12
    $region11: #{dgcnn_forward.12} parent=5 // pred_region
      %s233 = ssub.s32 %s13, 1
      // Predicated region
      $region13: #{dgcnn_forward.12} parent=11 // pred_check
        %p234 = pneg %p128
      $region14: #{dgcnn_forward.12} parent=11 // pred_check_branch
        %236 = sbr.rel (%p234) target = $region16
      $region15: #{dgcnn_forward.12} parent=11 // pred_region
        _
      $region16: #{dgcnn_forward.12} parent=11 // pred_fallthru
        _
      // Predicated region
      $region17: #{dgcnn_forward.12} parent=11 // pred_check
        %p237 = pneg %p149
      $region18: #{dgcnn_forward.12} parent=11 // pred_check_branch
        %239 = sbr.rel (%p237) target = $region20
      $region19: #{dgcnn_forward.12} parent=11 // pred_region
        _
      $region20: #{dgcnn_forward.12} parent=11 // pred_fallthru
        _
      // Predicated region
      $region21: #{dgcnn_forward.12} parent=11 // pred_check
        %p240 = pneg %p170
      $region22: #{dgcnn_forward.12} parent=11 // pred_check_branch
        %242 = sbr.rel (%p240) target = $region24
      $region23: #{dgcnn_forward.12} parent=11 // pred_region
        _
      $region24: #{dgcnn_forward.12} parent=11 // pred_fallthru
        _
      // Predicated region
      $region25: #{dgcnn_forward.12} parent=11 // pred_check
        %p243 = pneg %p191
      $region26: #{dgcnn_forward.12} parent=11 // pred_check_branch
        %245 = sbr.rel (%p243) target = $region28
      $region27: #{dgcnn_forward.12} parent=11 // pred_region
        _
      $region28: #{dgcnn_forward.12} parent=11 // pred_fallthru
        _
    $region12: #{dgcnn_forward.12} parent=5 // pred_fallthru
      _
    %p246 = scmp.lt.s32.totalorder %s13, 2
    // Predicated region
    $region29: #{dgcnn_forward.12} parent=5 // pred_check
      %p247 = pneg %p246
    $region30: #{dgcnn_forward.12} parent=5 // pred_check_branch
      %249 = sbr.rel (%p247) target = $region32
    $region31: #{dgcnn_forward.12} parent=5 // pred_region
      // Predicated region
      $region33: #{dgcnn_forward.12} parent=31 // pred_check
        %p250 = pneg %p45
      $region34: #{dgcnn_forward.12} parent=31 // pred_check_branch
        %252 = sbr.rel (%p250) target = $region36
      $region35: #{dgcnn_forward.12} parent=31 // pred_region
        %p253 = scmp.lt.s32.totalorder %s20, 1
        %s254 = scalar_select %p253, %s20, 1
        %s255 = smul.addr %s254, 2
        %s256 = smul.addr %s255, 4
        %s257 = scalar_lea.vmem %s0, %s256
      $region36: #{dgcnn_forward.12} parent=31 // pred_fallthru
        _
      // Predicated region
      $region37: #{dgcnn_forward.12} parent=31 // pred_check
        %p258 = pneg %p73
      $region38: #{dgcnn_forward.12} parent=31 // pred_check_branch
        %260 = sbr.rel (%p258) target = $region40
      $region39: #{dgcnn_forward.12} parent=31 // pred_region
        %s261 = smul.u32 2, %s21
        %p262 = scmp.lt.s32.totalorder %s20, 1
        %s263 = scalar_select %p262, %s20, 1
        %p264 = scmp.lt.s32.totalorder %s261, 1
        %s265 = scalar_select %p264, %s261, 1
        %s266 = smul.addr %s263, 2
        %s267 = sadd.s32 %s265, %s266
        %s268 = smul.addr %s267, 4
        %s269 = scalar_lea.vmem %s1, %s268
        %s270 = smul.u32 2, %s21
      $region40: #{dgcnn_forward.12} parent=31 // pred_fallthru
        _
      // Predicated region
      $region41: #{dgcnn_forward.12} parent=31 // pred_check
        %p271 = pneg %p101
      $region42: #{dgcnn_forward.12} parent=31 // pred_check_branch
        %273 = sbr.rel (%p271) target = $region44
      $region43: #{dgcnn_forward.12} parent=31 // pred_region
        %s274 = smul.u32 2, %s21
        %p275 = scmp.lt.s32.totalorder %s20, 1
        %s276 = scalar_select %p275, %s20, 1
        %p277 = scmp.lt.s32.totalorder %s274, 1
        %s278 = scalar_select %p277, %s274, 1
        %s279 = smul.addr %s276, 2
        %s280 = sadd.s32 %s278, %s279
        %s281 = smul.addr %s280, 8
        %s282 = scalar_lea.vmem %s2, %s281
        %s283 = smul.u32 2, %s21
      $region44: #{dgcnn_forward.12} parent=31 // pred_fallthru
        _
    $region32: #{dgcnn_forward.12} parent=5 // pred_fallthru
      _
    %p284 = scmp.le.s32.totalorder 1, %s13
    %p285 = scmp.lt.s32.totalorder %s13, 3
    %p286 = pnand %p284, %p285
    %p287 = pneg %p286
    // Predicated region
    $region45: #{dgcnn_forward.12} parent=5 // pred_check
      _
    $region46: #{dgcnn_forward.12} parent=5 // pred_check_branch
      %289 = sbr.rel (%p286) target = $region48
    $region47: #{dgcnn_forward.12} parent=5 // pred_region
      %s290 = ssub.s32 %s13, 1
      %p291 = scmp.lt.s32.totalorder %s22, 1
      %s292 = scalar_select %p291, %s22, 1
      %s293 = smul.addr %s292, 2
      %s294 = smul.addr %s293, 4
      %s295 = scalar_lea.vmem %s0, %s294
      %p296 = pneg %p51
      %p297 = pneg %p48
      %s298 = smul.u32 2, %s23
      %p299 = scmp.lt.s32.totalorder %s22, 1
      %s300 = scalar_select %p299, %s22, 1
      %p301 = scmp.lt.s32.totalorder %s298, 1
      %s302 = scalar_select %p301, %s298, 1
      %s303 = smul.addr %s300, 2
      %s304 = sadd.s32 %s302, %s303
      %s305 = smul.addr %s304, 4
      %s306 = scalar_lea.vmem %s1, %s305
      %p307 = pneg %p79
      %p308 = pneg %p76
      %s309 = smul.u32 2, %s23
      %p310 = scmp.lt.s32.totalorder %s22, 1
      %s311 = scalar_select %p310, %s22, 1
      %p312 = scmp.lt.s32.totalorder %s309, 1
      %s313 = scalar_select %p312, %s309, 1
      %s314 = smul.addr %s311, 2
      %s315 = sadd.s32 %s313, %s314
      %s316 = smul.addr %s315, 8
      %s317 = scalar_lea.vmem %s2, %s316
      %p318 = pneg %p107
      %p319 = pneg %p104
      %p320 = pneg %p128
      %p321 = pneg %p125
      %p322 = pneg %p149
      %p323 = pneg %p146
      %p324 = pneg %p170
      %p325 = pneg %p167
      %p326 = pneg %p191
      %p327 = pneg %p188
      %p328 = pneg %p219
      %p329 = pneg %p216
      %s330 = smul.u32 2, %s23
      %p331 = scmp.lt.s32.totalorder %s22, 1
      %s332 = scalar_select %p331, %s22, 1
      %p333 = scmp.lt.s32.totalorder %s330, 1
      %s334 = scalar_select %p333, %s330, 1
      %s335 = smul.addr %s332, 2
      %s336 = sadd.s32 %s334, %s335
      %s337 = smul.addr %s336, 4
      %s338 = scalar_lea.vmem %s7, %s337
      %p339 = scmp.lt.s32.totalorder %s22, 1
      %s340 = scalar_select %p339, %s22, 1
      %s341 = smul.addr %s340, 2
      %s342 = smul.addr %s341, 4
      %s343 = scalar_lea.vmem %s0, %s342
      %s344 = smul.u32 2, %s23
      %p345 = scmp.lt.s32.totalorder %s22, 1
      %s346 = scalar_select %p345, %s22, 1
      %p347 = scmp.lt.s32.totalorder %s344, 1
      %s348 = scalar_select %p347, %s344, 1
      %s349 = smul.addr %s346, 2
      %s350 = sadd.s32 %s348, %s349
      %s351 = smul.addr %s350, 4
      %s352 = scalar_lea.vmem %s1, %s351
      %s353 = smul.u32 2, %s23
      %s354 = smul.u32 2, %s23
      %p355 = scmp.lt.s32.totalorder %s22, 1
      %s356 = scalar_select %p355, %s22, 1
      %p357 = scmp.lt.s32.totalorder %s354, 1
      %s358 = scalar_select %p357, %s354, 1
      %s359 = smul.addr %s356, 2
      %s360 = sadd.s32 %s358, %s359
      %s361 = smul.addr %s360, 8
      %s362 = scalar_lea.vmem %s2, %s361
      %s363 = smul.u32 2, %s23
      %s364 = smul.u32 2, %s23
      %p365 = scmp.lt.s32.totalorder %s22, 1
      %s366 = scalar_select %p365, %s22, 1
      %p367 = scmp.lt.s32.totalorder %s364, 1
      %s368 = scalar_select %p367, %s364, 1
      %s369 = smul.addr %s366, 2
      %s370 = sadd.s32 %s368, %s369
      %s371 = smul.addr %s370, 4
      %s372 = scalar_lea.vmem %s7, %s371
      %s373 = smul.u32 2, %s23
      %v375 = vld [vmem:[%s343] sm:$0xf]
      %v376 = vld [vmem:[%s343 + $0x4] sm:$0xf]
      %v377 = vld [vmem:[%s352] sm:$0xf]
      %v378 = vld [vmem:[%s352 + $0x4] sm:$0xf]
      %v379 = vld [vmem:[%s362] sm:$0xff]
      %v380 = vld [vmem:[%s362 + $0x8] sm:$0xff]
      %v381 = vlaneseq
      %v382 = vand.u32 %v381, 127
      %383 = vset.pattern.permute.xlu0 0
      %384 = vperm.xlu0 %383, %v379
      %v385 = vpop.permute.xlu0 %384
      %386 = vset.pattern.permute.xlu0 0
      %387 = vperm.xlu0 %386, %v380
      %v388 = vpop.permute.xlu0 %387
      %vm389 = vcmp.eq.s32.totalorder %v382, %v385
      %vm390 = vcmp.eq.s32.totalorder %v382, %v388
      %v391 = vsel %vm389, 1, 0
      %v392 = vsel %vm390, 1, 0
      %v393 = vcvt.s32.f32 %v391
      %v394 = vcvt.s32.f32 %v392
      %v395 = vpack.c.bf16 %v394, %v393
      %v398 = vunpack.c.l.b16 %v375
      %v399 = vunpack.c.l.b16 %v376
      %v400 = vpack.c.b16 %v399, %v398
      %vm402 = vcmask 130048
      %v404 = vsel %vm402, %v395, 0
      %406 = vmatprep.subr.bf16.mxu0 0
      %407 = vmatpush1.bf16.msra.mxu0 %v400
      %408 = vmatprep.subr.bf16.mxu0 0
      %409 = vmatpush1.bf16.msra.mxu0 0
      %410 = vmatprep.subr.bf16.mxu0 0
      %411 = vmatpush1.bf16.msra.mxu0 0
      %412 = vmatprep.subr.bf16.mxu0 0
      %413 = vmatpush1.bf16.msra.mxu0 0
      %414 = vmatprep.subr.bf16.mxu0 0
      %415 = vmatpush1.bf16.msra.mxu0 0
      %416 = vmatprep.subr.bf16.mxu0 0
      %417 = vmatpush1.bf16.msra.mxu0 0
      %418 = vmatprep.subr.bf16.mxu0 0
      %419 = vmatpush1.bf16.msra.mxu0 0
      %420 = vmatprep.subr.bf16.mxu0 0
      %421 = vmatpush1.bf16.msra.mxu0 0
      %422 = vmatprep.subr.bf16.mxu0 0
      %423 = vmatpush1.bf16.msra.mxu0 0
      %424 = vmatprep.subr.bf16.mxu0 0
      %425 = vmatpush1.bf16.msra.mxu0 0
      %426 = vmatprep.subr.bf16.mxu0 0
      %427 = vmatpush1.bf16.msra.mxu0 0
      %428 = vmatprep.subr.bf16.mxu0 0
      %429 = vmatpush1.bf16.msra.mxu0 0
      %430 = vmatprep.subr.bf16.mxu0 0
      %431 = vmatpush1.bf16.msra.mxu0 0
      %432 = vmatprep.subr.bf16.mxu0 0
      %433 = vmatpush1.bf16.msra.mxu0 0
      %434 = vmatprep.subr.bf16.mxu0 0
      %435 = vmatpush1.bf16.msra.mxu0 0
      %436 = vmatprep.subr.bf16.mxu0 0
      %437 = vmatpush1.bf16.msra.mxu0 0
      %438 = vmatprep.mubr.bf16.mxu0 0
      %439 = vmatmul.mubr.bf16.gmra.mrb[0].mxu0 %v404
      %v440 = vpop.f32.mrb[0].mxu0
      %v441 = vadd.f32 0.0, %v440
      %v442 = vpop.f32.mrb[0].mxu0
      %v443 = vpop.f32.mrb[0].mxu0
      %v444 = vadd.f32 0.0, %v443
      %v445 = vpop.f32.mrb[0].mxu0
      %446 = vdwg.mxu0
      %v447 = vpack.c.bf16 %v444, %v441
      %v448 = vld [vmem:[%s3] sm:$0xf]
      %v449 = vld [vmem:[%s3 + $0x4] sm:$0xf]
      %v450 = vld [vmem:[%s3 + $0x8] sm:$0xf]
      %v451 = vld [vmem:[%s3 + $0xc] sm:$0xf]
      %v452 = vld [vmem:[%s3 + $0x10] sm:$0xf]
      %v453 = vld [vmem:[%s3 + $0x14] sm:$0xf]
      %v454 = vld [vmem:[%s3 + $0x18] sm:$0xf]
      %v455 = vld [vmem:[%s3 + $0x1c] sm:$0xf]
      %v464 = vunpack.c.l.b16 %v448
      %v465 = vunpack.c.l.b16 %v449
      %v466 = vunpack.c.l.b16 %v450
      %v467 = vunpack.c.l.b16 %v451
      %v468 = vunpack.c.l.b16 %v452
      %v469 = vunpack.c.l.b16 %v453
      %v470 = vunpack.c.l.b16 %v454
      %v471 = vunpack.c.l.b16 %v455
      %v472 = vpack.c.b16 %v465, %v464
      %v473 = vpack.c.b16 %v467, %v466
      %v474 = vpack.c.b16 %v469, %v468
      %v475 = vpack.c.b16 %v471, %v470
      %vm480 = vcmask 523264
      %v482 = vsel %vm480, %v447, 0
      %484 = vmatprep.subr.bf16.mxu0 0
      %485 = vmatpush1.bf16.msra.mxu0 %v472
      %486 = vmatprep.subr.bf16.mxu0 0
      %487 = vmatpush1.bf16.msra.mxu0 %v473
      %488 = vmatprep.subr.bf16.mxu0 0
      %489 = vmatpush1.bf16.msra.mxu0 %v474
      %490 = vmatprep.subr.bf16.mxu0 0
      %491 = vmatpush1.bf16.msra.mxu0 %v475
      %492 = vmatprep.subr.bf16.mxu0 0
      %493 = vmatpush1.bf16.msra.mxu0 0
      %494 = vmatprep.subr.bf16.mxu0 0
      %495 = vmatpush1.bf16.msra.mxu0 0
      %496 = vmatprep.subr.bf16.mxu0 0
      %497 = vmatpush1.bf16.msra.mxu0 0
      %498 = vmatprep.subr.bf16.mxu0 0
      %499 = vmatpush1.bf16.msra.mxu0 0
      %500 = vmatprep.subr.bf16.mxu0 0
      %501 = vmatpush1.bf16.msra.mxu0 0
      %502 = vmatprep.subr.bf16.mxu0 0
      %503 = vmatpush1.bf16.msra.mxu0 0
      %504 = vmatprep.subr.bf16.mxu0 0
      %505 = vmatpush1.bf16.msra.mxu0 0
      %506 = vmatprep.subr.bf16.mxu0 0
      %507 = vmatpush1.bf16.msra.mxu0 0
      %508 = vmatprep.subr.bf16.mxu0 0
      %509 = vmatpush1.bf16.msra.mxu0 0
      %510 = vmatprep.subr.bf16.mxu0 0
      %511 = vmatpush1.bf16.msra.mxu0 0
      %512 = vmatprep.subr.bf16.mxu0 0
      %513 = vmatpush1.bf16.msra.mxu0 0
      %514 = vmatprep.subr.bf16.mxu0 0
      %515 = vmatpush1.bf16.msra.mxu0 0
      %516 = vmatprep.mubr.bf16.mxu0 0
      %517 = vmatmul.mubr.bf16.gmra.mrb[0].mxu0 %v482
      %v518 = vpop.f32.mrb[0].mxu0
      %v519 = vadd.f32 0.0, %v518
      %v520 = vpop.f32.mrb[0].mxu0
      %v521 = vpop.f32.mrb[0].mxu0
      %v522 = vadd.f32 0.0, %v521
      %v523 = vpop.f32.mrb[0].mxu0
      %524 = vdwg.mxu0
      %525 = vset.pattern.permute.xlu0 1
      %526 = vperm.xlu0 %525, %v379
      %v527 = vpop.permute.xlu0 %526
      %528 = vset.pattern.permute.xlu0 1
      %529 = vperm.xlu0 %528, %v380
      %v530 = vpop.permute.xlu0 %529
      %vm531 = vcmp.eq.s32.totalorder %v382, %v527
      %vm532 = vcmp.eq.s32.totalorder %v382, %v530
      %v533 = vsel %vm531, 1, 0
      %v534 = vsel %vm532, 1, 0
      %v535 = vcvt.s32.f32 %v533
      %v536 = vcvt.s32.f32 %v534
      %v537 = vpack.c.bf16 %v536, %v535
      %v539 = vsel %vm402, %v537, 0
      %541 = vmatprep.subr.bf16.mxu0 0
      %542 = vmatpush1.bf16.msra.mxu0 %v400
      %543 = vmatprep.subr.bf16.mxu0 0
      %544 = vmatpush1.bf16.msra.mxu0 0
      %545 = vmatprep.subr.bf16.mxu0 0
      %546 = vmatpush1.bf16.msra.mxu0 0
      %547 = vmatprep.subr.bf16.mxu0 0
      %548 = vmatpush1.bf16.msra.mxu0 0
      %549 = vmatprep.subr.bf16.mxu0 0
      %550 = vmatpush1.bf16.msra.mxu0 0
      %551 = vmatprep.subr.bf16.mxu0 0
      %552 = vmatpush1.bf16.msra.mxu0 0
      %553 = vmatprep.subr.bf16.mxu0 0
      %554 = vmatpush1.bf16.msra.mxu0 0
      %555 = vmatprep.subr.bf16.mxu0 0
      %556 = vmatpush1.bf16.msra.mxu0 0
      %557 = vmatprep.subr.bf16.mxu0 0
      %558 = vmatpush1.bf16.msra.mxu0 0
      %559 = vmatprep.subr.bf16.mxu0 0
      %560 = vmatpush1.bf16.msra.mxu0 0
      %561 = vmatprep.subr.bf16.mxu0 0
      %562 = vmatpush1.bf16.msra.mxu0 0
      %563 = vmatprep.subr.bf16.mxu0 0
      %564 = vmatpush1.bf16.msra.mxu0 0
      %565 = vmatprep.subr.bf16.mxu0 0
      %566 = vmatpush1.bf16.msra.mxu0 0
      %567 = vmatprep.subr.bf16.mxu0 0
      %568 = vmatpush1.bf16.msra.mxu0 0
      %569 = vmatprep.subr.bf16.mxu0 0
      %570 = vmatpush1.bf16.msra.mxu0 0
      %571 = vmatprep.subr.bf16.mxu0 0
      %572 = vmatpush1.bf16.msra.mxu0 0
      %573 = vmatprep.mubr.bf16.mxu0 0
      %574 = vmatmul.mubr.bf16.gmra.mrb[0].mxu0 %v539
      %v575 = vpop.f32.mrb[0].mxu0
      %v576 = vadd.f32 0.0, %v575
      %v577 = vpop.f32.mrb[0].mxu0
      %v578 = vpop.f32.mrb[0].mxu0
      %v579 = vadd.f32 0.0, %v578
      %v580 = vpop.f32.mrb[0].mxu0
      %581 = vdwg.mxu0
      %v582 = vpack.c.bf16 %v579, %v576
      %v584 = vsel %vm480, %v582, 0
      %586 = vmatprep.subr.bf16.mxu0 0
      %587 = vmatpush1.bf16.msra.mxu0 %v472
      %588 = vmatprep.subr.bf16.mxu0 0
      %589 = vmatpush1.bf16.msra.mxu0 %v473
      %590 = vmatprep.subr.bf16.mxu0 0
      %591 = vmatpush1.bf16.msra.mxu0 %v474
      %592 = vmatprep.subr.bf16.mxu0 0
      %593 = vmatpush1.bf16.msra.mxu0 %v475
      %594 = vmatprep.subr.bf16.mxu0 0
      %595 = vmatpush1.bf16.msra.mxu0 0
      %596 = vmatprep.subr.bf16.mxu0 0
      %597 = vmatpush1.bf16.msra.mxu0 0
      %598 = vmatprep.subr.bf16.mxu0 0
      %599 = vmatpush1.bf16.msra.mxu0 0
      %600 = vmatprep.subr.bf16.mxu0 0
      %601 = vmatpush1.bf16.msra.mxu0 0
      %602 = vmatprep.subr.bf16.mxu0 0
      %603 = vmatpush1.bf16.msra.mxu0 0
      %604 = vmatprep.subr.bf16.mxu0 0
      %605 = vmatpush1.bf16.msra.mxu0 0
      %606 = vmatprep.subr.bf16.mxu0 0
      %607 = vmatpush1.bf16.msra.mxu0 0
      %608 = vmatprep.subr.bf16.mxu0 0
      %609 = vmatpush1.bf16.msra.mxu0 0
      %610 = vmatprep.subr.bf16.mxu0 0
      %611 = vmatpush1.bf16.msra.mxu0 0
      %612 = vmatprep.subr.bf16.mxu0 0
      %613 = vmatpush1.bf16.msra.mxu0 0
      %614 = vmatprep.subr.bf16.mxu0 0
      %615 = vmatpush1.bf16.msra.mxu0 0
      %616 = vmatprep.subr.bf16.mxu0 0
      %617 = vmatpush1.bf16.msra.mxu0 0
      %618 = vmatprep.mubr.bf16.mxu0 0
      %619 = vmatmul.mubr.bf16.gmra.mrb[0].mxu0 %v584
      %v620 = vpop.f32.mrb[0].mxu0
      %v621 = vadd.f32 0.0, %v620
      %v622 = vpop.f32.mrb[0].mxu0
      %v623 = vpop.f32.mrb[0].mxu0
      %v624 = vadd.f32 0.0, %v623
      %v625 = vpop.f32.mrb[0].mxu0
      %626 = vdwg.mxu0
      %v627 = vmax.f32 %v519, %v621
      %v628 = vmax.f32 %v522, %v624
      %629 = vset.pattern.permute.xlu0 2
      %630 = vperm.xlu0 %629, %v379
      %v631 = vpop.permute.xlu0 %630
      %632 = vset.pattern.permute.xlu0 2
      %633 = vperm.xlu0 %632, %v380
      %v634 = vpop.permute.xlu0 %633
      %vm635 = vcmp.eq.s32.totalorder %v382, %v631
      %vm636 = vcmp.eq.s32.totalorder %v382, %v634
      %v637 = vsel %vm635, 1, 0
      %v638 = vsel %vm636, 1, 0
      %v639 = vcvt.s32.f32 %v637
      %v640 = vcvt.s32.f32 %v638
      %v641 = vpack.c.bf16 %v640, %v639
      %v643 = vsel %vm402, %v641, 0
      %645 = vmatprep.subr.bf16.mxu0 0
      %646 = vmatpush1.bf16.msra.mxu0 %v400
      %647 = vmatprep.subr.bf16.mxu0 0
      %648 = vmatpush1.bf16.msra.mxu0 0
      %649 = vmatprep.subr.bf16.mxu0 0
      %650 = vmatpush1.bf16.msra.mxu0 0
      %651 = vmatprep.subr.bf16.mxu0 0
      %652 = vmatpush1.bf16.msra.mxu0 0
      %653 = vmatprep.subr.bf16.mxu0 0
      %654 = vmatpush1.bf16.msra.mxu0 0
      %655 = vmatprep.subr.bf16.mxu0 0
      %656 = vmatpush1.bf16.msra.mxu0 0
      %657 = vmatprep.subr.bf16.mxu0 0
      %658 = vmatpush1.bf16.msra.mxu0 0
      %659 = vmatprep.subr.bf16.mxu0 0
      %660 = vmatpush1.bf16.msra.mxu0 0
      %661 = vmatprep.subr.bf16.mxu0 0
      %662 = vmatpush1.bf16.msra.mxu0 0
      %663 = vmatprep.subr.bf16.mxu0 0
      %664 = vmatpush1.bf16.msra.mxu0 0
      %665 = vmatprep.subr.bf16.mxu0 0
      %666 = vmatpush1.bf16.msra.mxu0 0
      %667 = vmatprep.subr.bf16.mxu0 0
      %668 = vmatpush1.bf16.msra.mxu0 0
      %669 = vmatprep.subr.bf16.mxu0 0
      %670 = vmatpush1.bf16.msra.mxu0 0
      %671 = vmatprep.subr.bf16.mxu0 0
      %672 = vmatpush1.bf16.msra.mxu0 0
      %673 = vmatprep.subr.bf16.mxu0 0
      %674 = vmatpush1.bf16.msra.mxu0 0
      %675 = vmatprep.subr.bf16.mxu0 0
      %676 = vmatpush1.bf16.msra.mxu0 0
      %677 = vmatprep.mubr.bf16.mxu0 0
      %678 = vmatmul.mubr.bf16.gmra.mrb[0].mxu0 %v643
      %v679 = vpop.f32.mrb[0].mxu0
      %v680 = vadd.f32 0.0, %v679
      %v681 = vpop.f32.mrb[0].mxu0
      %v682 = vpop.f32.mrb[0].mxu0
      %v683 = vadd.f32 0.0, %v682
      %v684 = vpop.f32.mrb[0].mxu0
      %685 = vdwg.mxu0
      %v686 = vpack.c.bf16 %v683, %v680
      %v688 = vsel %vm480, %v686, 0
      %690 = vmatprep.subr.bf16.mxu0 0
      %691 = vmatpush1.bf16.msra.mxu0 %v472
      %692 = vmatprep.subr.bf16.mxu0 0
      %693 = vmatpush1.bf16.msra.mxu0 %v473
      %694 = vmatprep.subr.bf16.mxu0 0
      %695 = vmatpush1.bf16.msra.mxu0 %v474
      %696 = vmatprep.subr.bf16.mxu0 0
      %697 = vmatpush1.bf16.msra.mxu0 %v475
      %698 = vmatprep.subr.bf16.mxu0 0
      %699 = vmatpush1.bf16.msra.mxu0 0
      %700 = vmatprep.subr.bf16.mxu0 0
      %701 = vmatpush1.bf16.msra.mxu0 0
      %702 = vmatprep.subr.bf16.mxu0 0
      %703 = vmatpush1.bf16.msra.mxu0 0
      %704 = vmatprep.subr.bf16.mxu0 0
      %705 = vmatpush1.bf16.msra.mxu0 0
      %706 = vmatprep.subr.bf16.mxu0 0
      %707 = vmatpush1.bf16.msra.mxu0 0
      %708 = vmatprep.subr.bf16.mxu0 0
      %709 = vmatpush1.bf16.msra.mxu0 0
      %710 = vmatprep.subr.bf16.mxu0 0
      %711 = vmatpush1.bf16.msra.mxu0 0
      %712 = vmatprep.subr.bf16.mxu0 0
      %713 = vmatpush1.bf16.msra.mxu0 0
      %714 = vmatprep.subr.bf16.mxu0 0
      %715 = vmatpush1.bf16.msra.mxu0 0
      %716 = vmatprep.subr.bf16.mxu0 0
      %717 = vmatpush1.bf16.msra.mxu0 0
      %718 = vmatprep.subr.bf16.mxu0 0
      %719 = vmatpush1.bf16.msra.mxu0 0
      %720 = vmatprep.subr.bf16.mxu0 0
      %721 = vmatpush1.bf16.msra.mxu0 0
      %722 = vmatprep.mubr.bf16.mxu0 0
      %723 = vmatmul.mubr.bf16.gmra.mrb[0].mxu0 %v688
      %v724 = vpop.f32.mrb[0].mxu0
      %v725 = vadd.f32 0.0, %v724
      %v726 = vpop.f32.mrb[0].mxu0
      %v727 = vpop.f32.mrb[0].mxu0
      %v728 = vadd.f32 0.0, %v727
      %v729 = vpop.f32.mrb[0].mxu0
      %730 = vdwg.mxu0
      %v731 = vmax.f32 %v627, %v725
      %v732 = vmax.f32 %v628, %v728
      %733 = vset.pattern.permute.xlu0 3
      %734 = vperm.xlu0 %733, %v379
      %v735 = vpop.permute.xlu0 %734
      %736 = vset.pattern.permute.xlu0 3
      %737 = vperm.xlu0 %736, %v380
      %v738 = vpop.permute.xlu0 %737
      %vm739 = vcmp.eq.s32.totalorder %v382, %v735
      %vm740 = vcmp.eq.s32.totalorder %v382, %v738
      %v741 = vsel %vm739, 1, 0
      %v742 = vsel %vm740, 1, 0
      %v743 = vcvt.s32.f32 %v741
      %v744 = vcvt.s32.f32 %v742
      %v745 = vpack.c.bf16 %v744, %v743
      %v747 = vsel %vm402, %v745, 0
      %749 = vmatprep.subr.bf16.mxu0 0
      %750 = vmatpush1.bf16.msra.mxu0 %v400
      %751 = vmatprep.subr.bf16.mxu0 0
      %752 = vmatpush1.bf16.msra.mxu0 0
      %753 = vmatprep.subr.bf16.mxu0 0
      %754 = vmatpush1.bf16.msra.mxu0 0
      %755 = vmatprep.subr.bf16.mxu0 0
      %756 = vmatpush1.bf16.msra.mxu0 0
      %757 = vmatprep.subr.bf16.mxu0 0
      %758 = vmatpush1.bf16.msra.mxu0 0
      %759 = vmatprep.subr.bf16.mxu0 0
      %760 = vmatpush1.bf16.msra.mxu0 0
      %761 = vmatprep.subr.bf16.mxu0 0
      %762 = vmatpush1.bf16.msra.mxu0 0
      %763 = vmatprep.subr.bf16.mxu0 0
      %764 = vmatpush1.bf16.msra.mxu0 0
      %765 = vmatprep.subr.bf16.mxu0 0
      %766 = vmatpush1.bf16.msra.mxu0 0
      %767 = vmatprep.subr.bf16.mxu0 0
      %768 = vmatpush1.bf16.msra.mxu0 0
      %769 = vmatprep.subr.bf16.mxu0 0
      %770 = vmatpush1.bf16.msra.mxu0 0
      %771 = vmatprep.subr.bf16.mxu0 0
      %772 = vmatpush1.bf16.msra.mxu0 0
      %773 = vmatprep.subr.bf16.mxu0 0
      %774 = vmatpush1.bf16.msra.mxu0 0
      %775 = vmatprep.subr.bf16.mxu0 0
      %776 = vmatpush1.bf16.msra.mxu0 0
      %777 = vmatprep.subr.bf16.mxu0 0
      %778 = vmatpush1.bf16.msra.mxu0 0
      %779 = vmatprep.subr.bf16.mxu0 0
      %780 = vmatpush1.bf16.msra.mxu0 0
      %781 = vmatprep.mubr.bf16.mxu0 0
      %782 = vmatmul.mubr.bf16.gmra.mrb[0].mxu0 %v747
      %v783 = vpop.f32.mrb[0].mxu0
      %v784 = vadd.f32 0.0, %v783
      %v785 = vpop.f32.mrb[0].mxu0
      %v786 = vpop.f32.mrb[0].mxu0
      %v787 = vadd.f32 0.0, %v786
      %v788 = vpop.f32.mrb[0].mxu0
      %789 = vdwg.mxu0
      %v790 = vpack.c.bf16 %v787, %v784
      %v792 = vsel %vm480, %v790, 0
      %794 = vmatprep.subr.bf16.mxu0 0
      %795 = vmatpush1.bf16.msra.mxu0 %v472
      %796 = vmatprep.subr.bf16.mxu0 0
      %797 = vmatpush1.bf16.msra.mxu0 %v473
      %798 = vmatprep.subr.bf16.mxu0 0
      %799 = vmatpush1.bf16.msra.mxu0 %v474
      %800 = vmatprep.subr.bf16.mxu0 0
      %801 = vmatpush1.bf16.msra.mxu0 %v475
      %802 = vmatprep.subr.bf16.mxu0 0
      %803 = vmatpush1.bf16.msra.mxu0 0
      %804 = vmatprep.subr.bf16.mxu0 0
      %805 = vmatpush1.bf16.msra.mxu0 0
      %806 = vmatprep.subr.bf16.mxu0 0
      %807 = vmatpush1.bf16.msra.mxu0 0
      %808 = vmatprep.subr.bf16.mxu0 0
      %809 = vmatpush1.bf16.msra.mxu0 0
      %810 = vmatprep.subr.bf16.mxu0 0
      %811 = vmatpush1.bf16.msra.mxu0 0
      %812 = vmatprep.subr.bf16.mxu0 0
      %813 = vmatpush1.bf16.msra.mxu0 0
      %814 = vmatprep.subr.bf16.mxu0 0
      %815 = vmatpush1.bf16.msra.mxu0 0
      %816 = vmatprep.subr.bf16.mxu0 0
      %817 = vmatpush1.bf16.msra.mxu0 0
      %818 = vmatprep.subr.bf16.mxu0 0
      %819 = vmatpush1.bf16.msra.mxu0 0
      %820 = vmatprep.subr.bf16.mxu0 0
      %821 = vmatpush1.bf16.msra.mxu0 0
      %822 = vmatprep.subr.bf16.mxu0 0
      %823 = vmatpush1.bf16.msra.mxu0 0
      %824 = vmatprep.subr.bf16.mxu0 0
      %825 = vmatpush1.bf16.msra.mxu0 0
      %826 = vmatprep.mubr.bf16.mxu0 0
      %827 = vmatmul.mubr.bf16.gmra.mrb[0].mxu0 %v792
      %v828 = vpop.f32.mrb[0].mxu0
      %v829 = vadd.f32 0.0, %v828
      %v830 = vpop.f32.mrb[0].mxu0
      %v831 = vpop.f32.mrb[0].mxu0
      %v832 = vadd.f32 0.0, %v831
      %v833 = vpop.f32.mrb[0].mxu0
      %834 = vdwg.mxu0
      %v835 = vmax.f32 %v731, %v829
      %v836 = vmax.f32 %v732, %v832
      %v837 = vld [vmem:[%s4] sm:$0xf]
      %v838 = vld [vmem:[%s4 + $0x4] sm:$0xf]
      %v839 = vld [vmem:[%s4 + $0x8] sm:$0xf]
      %v840 = vld [vmem:[%s4 + $0xc] sm:$0xf]
      %v841 = vld [vmem:[%s4 + $0x10] sm:$0xf]
      %v842 = vld [vmem:[%s4 + $0x14] sm:$0xf]
      %v843 = vld [vmem:[%s4 + $0x18] sm:$0xf]
      %v844 = vld [vmem:[%s4 + $0x1c] sm:$0xf]
      %v847 = vunpack.c.l.b16 %v377
      %v848 = vunpack.c.l.b16 %v378
      %v849 = vpack.c.b16 %v848, %v847
      %v858 = vunpack.c.l.b16 %v837
      %v859 = vunpack.c.l.b16 %v838
      %v860 = vunpack.c.l.b16 %v839
      %v861 = vunpack.c.l.b16 %v840
      %v862 = vunpack.c.l.b16 %v841
      %v863 = vunpack.c.l.b16 %v842
      %v864 = vunpack.c.l.b16 %v843
      %v865 = vunpack.c.l.b16 %v844
      %v866 = vpack.c.b16 %v859, %v858
      %v867 = vpack.c.b16 %v861, %v860
      %v868 = vpack.c.b16 %v863, %v862
      %v869 = vpack.c.b16 %v865, %v864
      %v875 = vsel %vm480, %v849, 0
      %877 = vmatprep.subr.bf16.mxu0 0
      %878 = vmatpush1.bf16.msra.mxu0 %v866
      %879 = vmatprep.subr.bf16.mxu0 0
      %880 = vmatpush1.bf16.msra.mxu0 %v867
      %881 = vmatprep.subr.bf16.mxu0 0
      %882 = vmatpush1.bf16.msra.mxu0 %v868
      %883 = vmatprep.subr.bf16.mxu0 0
      %884 = vmatpush1.bf16.msra.mxu0 %v869
      %885 = vmatprep.subr.bf16.mxu0 0
      %886 = vmatpush1.bf16.msra.mxu0 0
      %887 = vmatprep.subr.bf16.mxu0 0
      %888 = vmatpush1.bf16.msra.mxu0 0
      %889 = vmatprep.subr.bf16.mxu0 0
      %890 = vmatpush1.bf16.msra.mxu0 0
      %891 = vmatprep.subr.bf16.mxu0 0
      %892 = vmatpush1.bf16.msra.mxu0 0
      %893 = vmatprep.subr.bf16.mxu0 0
      %894 = vmatpush1.bf16.msra.mxu0 0
      %895 = vmatprep.subr.bf16.mxu0 0
      %896 = vmatpush1.bf16.msra.mxu0 0
      %897 = vmatprep.subr.bf16.mxu0 0
      %898 = vmatpush1.bf16.msra.mxu0 0
      %899 = vmatprep.subr.bf16.mxu0 0
      %900 = vmatpush1.bf16.msra.mxu0 0
      %901 = vmatprep.subr.bf16.mxu0 0
      %902 = vmatpush1.bf16.msra.mxu0 0
      %903 = vmatprep.subr.bf16.mxu0 0
      %904 = vmatpush1.bf16.msra.mxu0 0
      %905 = vmatprep.subr.bf16.mxu0 0
      %906 = vmatpush1.bf16.msra.mxu0 0
      %907 = vmatprep.subr.bf16.mxu0 0
      %908 = vmatpush1.bf16.msra.mxu0 0
      %909 = vmatprep.mubr.bf16.mxu0 0
      %910 = vmatmul.mubr.bf16.gmra.mrb[0].mxu0 %v875
      %v911 = vpop.f32.mrb[0].mxu0
      %v912 = vadd.f32 0.0, %v911
      %v913 = vpop.f32.mrb[0].mxu0
      %v914 = vpop.f32.mrb[0].mxu0
      %v915 = vadd.f32 0.0, %v914
      %v916 = vpop.f32.mrb[0].mxu0
      %917 = vdwg.mxu0
      %v918 = vadd.f32 %v835, %v912
      %v919 = vadd.f32 %v836, %v915
      %v920 = vld [vmem:[%s5] sm:$0x1]
      %v922 = vlaneseq
      %v923 = vshrl.u32 %v922, 7
      %v924 = vsub.s32 0, %v923
      %v925 = vrot.slane %v920, %v924
      %v927 = vmul.f32 %v918, %v925
      %v928 = vmul.f32 %v919, %v925
      %v929 = vld [vmem:[%s6] sm:$0x1]
      %v931 = vlaneseq
      %v932 = vshrl.u32 %v931, 7
      %v933 = vsub.s32 0, %v932
      %v934 = vrot.slane %v929, %v933
      %v936 = vadd.f32 %v927, %v934
      %v937 = vadd.f32 %v928, %v934
      %v938 = vmul.f32 %v936, 0.2
      %v939 = vmul.f32 %v937, 0.2
      %v940 = vmax.f32 %v936, %v938
      %v941 = vmax.f32 %v937, %v939
      %v942 = vpack.c.bf16 %v941, %v940
      %v944 = vunpack.c.l.b16 %v942
      %v945 = vunpack.c.h.b16 %v942
      %v946 = vpack.c.b16 %v944, %v944
      %v947 = vpack.c.b16 %v945, %v945
      %vm950 = vcmask 519168
      %951 = vst.msk [vmem:[%s372] sm:$0xf] %vm950, %v946
      %952 = vst.msk [vmem:[%s372 + $0x4] sm:$0xf] %vm950, %v947
      %s953 = smul.u32 2, %s23
      %p954 = scmp.lt.s32.totalorder %s22, 1
      %s955 = scalar_select %p954, %s22, 1
      %p956 = scmp.lt.s32.totalorder %s953, 1
      %s957 = scalar_select %p956, %s953, 1
      %s958 = smul.addr %s955, 2
      %s959 = sadd.s32 %s957, %s958
      %s960 = smul.addr %s959, 4
      %s961 = scalar_lea.vmem %s7, %s960
      // Predicated region
      $region49: #{dgcnn_forward.12} parent=47 // pred_check
        %p962 = pneg %p216
      $region50: #{dgcnn_forward.12} parent=47 // pred_check_branch
        %964 = sbr.rel (%p962) target = $region52
      $region51: #{dgcnn_forward.12} parent=47 // pred_region
        %s965 = smul.u32 2, %s23
      $region52: #{dgcnn_forward.12} parent=47 // pred_fallthru
        _
    $region48: #{dgcnn_forward.12} parent=5 // pred_fallthru
      _
    %p966 = scmp.le.s32.totalorder 2, %s13
    // Predicated region
    $region53: #{dgcnn_forward.12} parent=5 // pred_check
      %p967 = pneg %p966
    $region54: #{dgcnn_forward.12} parent=5 // pred_check_branch
      %969 = sbr.rel (%p967) target = $region56
    $region55: #{dgcnn_forward.12} parent=5 // pred_region
      %s970 = ssub.s32 %s13, 2
      // Predicated region
      $region57: #{dgcnn_forward.12} parent=55 // pred_check
        %p971 = pneg %p222
      $region58: #{dgcnn_forward.12} parent=55 // pred_check_branch
        %973 = sbr.rel (%p971) target = $region60
      $region59: #{dgcnn_forward.12} parent=55 // pred_region
        %s974 = smul.u32 2, %s25
        %p975 = scmp.lt.s32.totalorder %s24, 1
        %s976 = scalar_select %p975, %s24, 1
        %p977 = scmp.lt.s32.totalorder %s974, 1
        %s978 = scalar_select %p977, %s974, 1
        %s979 = smul.addr %s976, 2
        %s980 = sadd.s32 %s978, %s979
        %s981 = smul.addr %s980, 4
        %s982 = scalar_lea.vmem %s7, %s981
      $region60: #{dgcnn_forward.12} parent=55 // pred_fallthru
        _
    $region56: #{dgcnn_forward.12} parent=5 // pred_fallthru
      _
  $region6: #{dgcnn_forward.12} parent=0 // loop_footer
    %s17 = sadd.s32 1, %s13
  $region7: #{dgcnn_forward.12} parent=0 // loop_footer_branch
    %12 = sbr.rel target = $region3
  $region8: #{dgcnn_forward.12} parent=0 // loop_exit
    _

// kernel: dgcnn_forward.15
$region0: #{dgcnn_forward.15}
  #allocation0 [shape = 'u32[]', space=smem, size = 0x4, offset = 0x4, fixed_abs, tag = 'smem constant byte address 0x4 - core index']
  #allocation1 [shape = 'u32[144,128]{1,0:T(1,128)}', space=vmem, size = 0x12000, scoped, tag = 'internal scratch']
  %s0 = inlined_call_operand.vmem [shape: bf16[2,16,128], index: 0, kind: input, shape index: {}]
  %s1 = inlined_call_operand.vmem [shape: bf16[2,128,16], index: 1, kind: input, shape index: {}]
  %s2 = inlined_call_operand.vmem [shape: f32[2,1,16], index: 2, kind: input, shape index: {}]
  %s3 = inlined_call_operand.vmem [shape: s32[2,16,4], index: 3, kind: output, shape index: {}]
  %s4 = sld [smem:[#allocation0]]
  $region45: #{dgcnn_forward.15} parent=0
    _
  %s6 = ssub.s32 1, %s4
  %s7 = scalar_select 0, %s6, %s4
  loop: start=0, step=1, limit=4
  $region2: #{dgcnn_forward.15} parent=0 // loop_pre_header
    _
  $region3: #{dgcnn_forward.15} parent=0 // loop_header
    %s9 = sphi 0, %s13
    %p10 = scmp.ge.s32.totalorder %s9, 4
    %s16 = sphi 0, %s28
    %s17 = sphi 0, %s24
    %s18 = sphi 0, %s16
    %s19 = sphi 0, %s17
    %s20 = sphi 0, %s18
    %s21 = sphi 0, %s19
    %s33 = sphi 0, %s35
    %s36 = sphi 0, %s33
    %s37 = sphi 0, %s36
    %s53 = sphi 0, %s37
    %s59 = sphi 0, %s61
    %s62 = sphi 0, %s59
    %s63 = sphi 0, %s62
    %s79 = sphi 0, %s63
    %s85 = sphi 0, %s87
    %s88 = sphi 0, %s85
    %s89 = sphi 0, %s88
    %s105 = sphi 0, %s89
    %s113 = sphi 0, %s115
    %s116 = sphi 0, %s113
    %s117 = sphi 0, %s116
    %s133 = sphi 0, %s117
  $region4: #{dgcnn_forward.15} parent=0 // loop_header_branch
    %12 = sbr.rel (%p10) target = $region8
  $region5: #{dgcnn_forward.15} parent=0 // loop_body
    %s14 = ssub.s32 %s9, 1
    %s15 = ssub.s32 %s9, 2
    %s22 = sadd.s32 1, %s17
    %p23 = scmp.ge.s32.totalorder %s22, 1
    %s24 = scalar_select %p23, 0, %s22
    %s25 = sadd.s32 1, %s16
    %s26 = scalar_select %p23, %s25, %s16
    %p27 = scmp.ge.s32.totalorder %s26, 2
    %s28 = scalar_select %p27, 0, %s26
    %s29 = ssub.s32 %s16, %s28
    %s30 = ssub.s32 %s17, %s24
    %s31 = sor.u32 %s29, %s30
    %p32 = scmp.eq.s32.totalorder %s31, 0
    %s34 = sadd.s32 %s33, 1
    %s35 = scalar_select %p32, %s33, %s34
    %p38 = pneg %p32
    %p39 = scmp.eq.s32.totalorder %s9, 1
    %p40 = por %p38, %p39
    %p41 = scmp.ne.s32.totalorder %s33, %s36
    %p42 = scmp.eq.s32.totalorder %s9, 0
    %p43 = por %p41, %p42
    %p44 = scmp.ne.s32.totalorder %s33, %s36
    %p45 = scmp.eq.s32.totalorder %s14, 1
    %p46 = por %p44, %p45
    %p47 = scmp.ne.s32.totalorder %s36, %s37
    %p48 = scmp.eq.s32.totalorder %s14, 0
    %p49 = por %p47, %p48
    %p50 = scmp.ne.s32.totalorder %s36, %s37
    %p51 = scmp.eq.s32.totalorder %s15, 1
    %p52 = por %p50, %p51
    %p54 = scmp.ne.s32.totalorder %s37, %s53
    %p55 = scmp.eq.s32.totalorder %s15, 0
    %p56 = por %p54, %p55
    %s57 = ssub.s32 %s16, %s28
    %p58 = scmp.eq.s32.totalorder %s57, 0
    %s60 = sadd.s32 %s59, 1
    %s61 = scalar_select %p58, %s59, %s60
    %p64 = pneg %p58
    %p65 = scmp.eq.s32.totalorder %s9, 1
    %p66 = por %p64, %p65
    %p67 = scmp.ne.s32.totalorder %s59, %s62
    %p68 = scmp.eq.s32.totalorder %s9, 0
    %p69 = por %p67, %p68
    %p70 = scmp.ne.s32.totalorder %s59, %s62
    %p71 = scmp.eq.s32.totalorder %s14, 1
    %p72 = por %p70, %p71
    %p73 = scmp.ne.s32.totalorder %s62, %s63
    %p74 = scmp.eq.s32.totalorder %s14, 0
    %p75 = por %p73, %p74
    %p76 = scmp.ne.s32.totalorder %s62, %s63
    %p77 = scmp.eq.s32.totalorder %s15, 1
    %p78 = por %p76, %p77
    %p80 = scmp.ne.s32.totalorder %s63, %s79
    %p81 = scmp.eq.s32.totalorder %s15, 0
    %p82 = por %p80, %p81
    %s83 = ssub.s32 %s16, %s28
    %p84 = scmp.eq.s32.totalorder %s83, 0
    %s86 = sadd.s32 %s85, 1
    %s87 = scalar_select %p84, %s85, %s86
    %p90 = pneg %p84
    %p91 = scmp.eq.s32.totalorder %s9, 1
    %p92 = por %p90, %p91
    %p93 = scmp.ne.s32.totalorder %s85, %s88
    %p94 = scmp.eq.s32.totalorder %s9, 0
    %p95 = por %p93, %p94
    %p96 = scmp.ne.s32.totalorder %s85, %s88
    %p97 = scmp.eq.s32.totalorder %s14, 1
    %p98 = por %p96, %p97
    %p99 = scmp.ne.s32.totalorder %s88, %s89
    %p100 = scmp.eq.s32.totalorder %s14, 0
    %p101 = por %p99, %p100
    %p102 = scmp.ne.s32.totalorder %s88, %s89
    %p103 = scmp.eq.s32.totalorder %s15, 1
    %p104 = por %p102, %p103
    %p106 = scmp.ne.s32.totalorder %s89, %s105
    %p107 = scmp.eq.s32.totalorder %s15, 0
    %p108 = por %p106, %p107
    %s109 = ssub.s32 %s16, %s28
    %s110 = ssub.s32 %s17, %s24
    %s111 = sor.u32 %s109, %s110
    %p112 = scmp.eq.s32.totalorder %s111, 0
    %s114 = sadd.s32 %s113, 1
    %s115 = scalar_select %p112, %s113, %s114
    %p118 = pneg %p112
    %p119 = scmp.eq.s32.totalorder %s9, 1
    %p120 = por %p118, %p119
    %p121 = scmp.ne.s32.totalorder %s113, %s116
    %p122 = scmp.eq.s32.totalorder %s9, 0
    %p123 = por %p121, %p122
    %p124 = scmp.ne.s32.totalorder %s113, %s116
    %p125 = scmp.eq.s32.totalorder %s14, 1
    %p126 = por %p124, %p125
    %p127 = scmp.ne.s32.totalorder %s116, %s117
    %p128 = scmp.eq.s32.totalorder %s14, 0
    %p129 = por %p127, %p128
    %p130 = scmp.ne.s32.totalorder %s116, %s117
    %p131 = scmp.eq.s32.totalorder %s15, 1
    %p132 = por %p130, %p131
    %p134 = scmp.ne.s32.totalorder %s117, %s133
    %p135 = scmp.eq.s32.totalorder %s15, 0
    %p136 = por %p134, %p135
    %p137 = scmp.le.s32.totalorder 1, %s9
    %p138 = scmp.lt.s32.totalorder %s9, 3
    %p139 = pnand %p137, %p138
    %p140 = pneg %p139
    // Predicated region
    $region9: #{dgcnn_forward.15} parent=5 // pred_check
      _
    $region10: #{dgcnn_forward.15} parent=5 // pred_check_branch
      %142 = sbr.rel (%p139) target = $region12
    $region11: #{dgcnn_forward.15} parent=5 // pred_region
      %s143 = ssub.s32 %s9, 1
    $region12: #{dgcnn_forward.15} parent=5 // pred_fallthru
      _
    %p144 = scmp.lt.s32.totalorder %s9, 2
    // Predicated region
    $region13: #{dgcnn_forward.15} parent=5 // pred_check
      %p145 = pneg %p144
    $region14: #{dgcnn_forward.15} parent=5 // pred_check_branch
      %147 = sbr.rel (%p145) target = $region16
    $region15: #{dgcnn_forward.15} parent=5 // pred_region
      // Predicated region
      $region17: #{dgcnn_forward.15} parent=15 // pred_check
        %p148 = pneg %p43
      $region18: #{dgcnn_forward.15} parent=15 // pred_check_branch
        %150 = sbr.rel (%p148) target = $region20
      $region19: #{dgcnn_forward.15} parent=15 // pred_region
        %s151 = smul.u32 2, %s17
        %p152 = scmp.lt.s32.totalorder %s16, 1
        %s153 = scalar_select %p152, %s16, 1
        %p154 = scmp.lt.s32.totalorder %s151, 1
        %s155 = scalar_select %p154, %s151, 1
        %s156 = smul.addr %s153, 2
        %s157 = sadd.s32 %s155, %s156
        %s158 = smul.addr %s157, 4
        %s159 = scalar_lea.vmem %s0, %s158
        %s160 = smul.u32 2, %s17
      $region20: #{dgcnn_forward.15} parent=15 // pred_fallthru
        _
      // Predicated region
      $region21: #{dgcnn_forward.15} parent=15 // pred_check
        %p161 = pneg %p69
      $region22: #{dgcnn_forward.15} parent=15 // pred_check_branch
        %163 = sbr.rel (%p161) target = $region24
      $region23: #{dgcnn_forward.15} parent=15 // pred_region
        %p164 = scmp.lt.s32.totalorder %s16, 1
        %s165 = scalar_select %p164, %s16, 1
        %s166 = smul.addr %s165, 16
        %s167 = smul.addr %s166, 4
        %s168 = scalar_lea.vmem %s1, %s167
      $region24: #{dgcnn_forward.15} parent=15 // pred_fallthru
        _
      // Predicated region
      $region25: #{dgcnn_forward.15} parent=15 // pred_check
        %p169 = pneg %p95
      $region26: #{dgcnn_forward.15} parent=15 // pred_check_branch
        %171 = sbr.rel (%p169) target = $region28
      $region27: #{dgcnn_forward.15} parent=15 // pred_region
        %p172 = scmp.lt.s32.totalorder %s16, 1
        %s173 = scalar_select %p172, %s16, 1
        %s174 = scalar_lea.vmem %s2, %s173
      $region28: #{dgcnn_forward.15} parent=15 // pred_fallthru
        _
    $region16: #{dgcnn_forward.15} parent=5 // pred_fallthru
      _
    %p175 = scmp.le.s32.totalorder 1, %s9
    %p176 = scmp.lt.s32.totalorder %s9, 3
    %p177 = pnand %p175, %p176
    %p178 = pneg %p177
    // Predicated region
    $region29: #{dgcnn_forward.15} parent=5 // pred_check
      _
    $region30: #{dgcnn_forward.15} parent=5 // pred_check_branch
      %180 = sbr.rel (%p177) target = $region32
    $region31: #{dgcnn_forward.15} parent=5 // pred_region
      %s181 = ssub.s32 %s9, 1
      %s182 = smul.u32 2, %s19
      %p183 = scmp.lt.s32.totalorder %s18, 1
      %s184 = scalar_select %p183, %s18, 1
      %p185 = scmp.lt.s32.totalorder %s182, 1
      %s186 = scalar_select %p185, %s182, 1
      %s187 = smul.addr %s184, 2
      %s188 = sadd.s32 %s186, %s187
      %s189 = smul.addr %s188, 4
      %s190 = scalar_lea.vmem %s0, %s189
      %p191 = pneg %p49
      %p192 = pneg %p46
      %p193 = scmp.lt.s32.totalorder %s18, 1
      %s194 = scalar_select %p193, %s18, 1
      %s195 = smul.addr %s194, 16
      %s196 = smul.addr %s195, 4
      %s197 = scalar_lea.vmem %s1, %s196
      %p198 = pneg %p75
      %p199 = pneg %p72
      %p200 = scmp.lt.s32.totalorder %s18, 1
      %s201 = scalar_select %p200, %s18, 1
      %s202 = scalar_lea.vmem %s2, %s201
      %p203 = pneg %p101
      %p204 = pneg %p98
      %p205 = pneg %p129
      %p206 = pneg %p126
      %s207 = smul.u32 2, %s19
      %p208 = scmp.lt.s32.totalorder %s18, 1
      %s209 = scalar_select %p208, %s18, 1
      %p210 = scmp.lt.s32.totalorder %s207, 1
      %s211 = scalar_select %p210, %s207, 1
      %s212 = smul.addr %s209, 2
      %s213 = sadd.s32 %s211, %s212
      %s214 = smul.addr %s213, 8
      %s215 = scalar_lea.vmem %s3, %s214
      %s216 = smul.u32 2, %s19
      %p217 = scmp.lt.s32.totalorder %s18, 1
      %s218 = scalar_select %p217, %s18, 1
      %p219 = scmp.lt.s32.totalorder %s216, 1
      %s220 = scalar_select %p219, %s216, 1
      %s221 = smul.addr %s218, 2
      %s222 = sadd.s32 %s220, %s221
      %s223 = smul.addr %s222, 4
      %s224 = scalar_lea.vmem %s0, %s223
      %s225 = smul.u32 2, %s19
      %p226 = scmp.lt.s32.totalorder %s18, 1
      %s227 = scalar_select %p226, %s18, 1
      %s228 = smul.addr %s227, 16
      %s229 = smul.addr %s228, 4
      %s230 = scalar_lea.vmem %s1, %s229
      %p231 = scmp.lt.s32.totalorder %s18, 1
      %s232 = scalar_select %p231, %s18, 1
      %s233 = scalar_lea.vmem %s2, %s232
      %s234 = smul.u32 2, %s19
      %p235 = scmp.lt.s32.totalorder %s18, 1
      %s236 = scalar_select %p235, %s18, 1
      %p237 = scmp.lt.s32.totalorder %s234, 1
      %s238 = scalar_select %p237, %s234, 1
      %s239 = smul.addr %s236, 2
      %s240 = sadd.s32 %s238, %s239
      %s241 = smul.addr %s240, 8
      %s242 = scalar_lea.vmem %s3, %s241
      %s243 = smul.u32 2, %s19
      %v245 = vld [vmem:[%s224] sm:$0xf]
      %v246 = vld [vmem:[%s224 + $0x4] sm:$0xf]
      %v247 = vld [vmem:[%s230] sm:$0xf]
      %v248 = vld [vmem:[%s230 + $0x4] sm:$0xf]
      %v249 = vld [vmem:[%s230 + $0x8] sm:$0xf]
      %v250 = vld [vmem:[%s230 + $0xc] sm:$0xf]
      %v251 = vld [vmem:[%s230 + $0x10] sm:$0xf]
      %v252 = vld [vmem:[%s230 + $0x14] sm:$0xf]
      %v253 = vld [vmem:[%s230 + $0x18] sm:$0xf]
      %v254 = vld [vmem:[%s230 + $0x1c] sm:$0xf]
      %v255 = vld [vmem:[%s230 + $0x20] sm:$0xf]
      %v256 = vld [vmem:[%s230 + $0x24] sm:$0xf]
      %v257 = vld [vmem:[%s230 + $0x28] sm:$0xf]
      %v258 = vld [vmem:[%s230 + $0x2c] sm:$0xf]
      %v259 = vld [vmem:[%s230 + $0x30] sm:$0xf]
      %v260 = vld [vmem:[%s230 + $0x34] sm:$0xf]
      %v261 = vld [vmem:[%s230 + $0x38] sm:$0xf]
      %v262 = vld [vmem:[%s230 + $0x3c] sm:$0xf]
      %v265 = vunpack.c.l.b16 %v245
      %v266 = vunpack.c.l.b16 %v246
      %v267 = vpack.c.b16 %v266, %v265
      %v285 = vunpack.c.l.b16 %v247
      %v286 = vunpack.c.l.b16 %v248
      %v287 = vunpack.c.l.b16 %v249
      %v288 = vunpack.c.l.b16 %v250
      %v289 = vunpack.c.l.b16 %v251
      %v290 = vunpack.c.l.b16 %v252
      %v291 = vunpack.c.l.b16 %v253
      %v292 = vunpack.c.l.b16 %v254
      %v293 = vunpack.c.l.b16 %v255
      %v294 = vunpack.c.l.b16 %v256
      %v295 = vunpack.c.l.b16 %v257
      %v296 = vunpack.c.l.b16 %v258
      %v297 = vunpack.c.l.b16 %v259
      %v298 = vunpack.c.l.b16 %v260
      %v299 = vunpack.c.l.b16 %v261
      %v300 = vunpack.c.l.b16 %v262
      %v301 = vpack.c.b16 %v286, %v285
      %v302 = vpack.c.b16 %v288, %v287
      %v303 = vpack.c.b16 %v290, %v289
      %v304 = vpack.c.b16 %v292, %v291
      %v305 = vpack.c.b16 %v294, %v293
      %v306 = vpack.c.b16 %v296, %v295
      %v307 = vpack.c.b16 %v298, %v297
      %v308 = vpack.c.b16 %v300, %v299
      %317 = vmatprep.subr.bf16.mxu0 0
      %318 = vmatpush1.bf16.msra.mxu0 %v301
      %319 = vmatprep.subr.bf16.mxu0 0
      %320 = vmatpush1.bf16.msra.mxu0 %v302
      %321 = vmatprep.subr.bf16.mxu0 0
      %322 = vmatpush1.bf16.msra.mxu0 %v303
      %323 = vmatprep.subr.bf16.mxu0 0
      %324 = vmatpush1.bf16.msra.mxu0 %v304
      %325 = vmatprep.subr.bf16.mxu0 0
      %326 = vmatpush1.bf16.msra.mxu0 %v305
      %327 = vmatprep.subr.bf16.mxu0 0
      %328 = vmatpush1.bf16.msra.mxu0 %v306
      %329 = vmatprep.subr.bf16.mxu0 0
      %330 = vmatpush1.bf16.msra.mxu0 %v307
      %331 = vmatprep.subr.bf16.mxu0 0
      %332 = vmatpush1.bf16.msra.mxu0 %v308
      %333 = vmatprep.subr.bf16.mxu0 0
      %334 = vmatpush1.bf16.msra.mxu0 0
      %335 = vmatprep.subr.bf16.mxu0 0
      %336 = vmatpush1.bf16.msra.mxu0 0
      %337 = vmatprep.subr.bf16.mxu0 0
      %338 = vmatpush1.bf16.msra.mxu0 0
      %339 = vmatprep.subr.bf16.mxu0 0
      %340 = vmatpush1.bf16.msra.mxu0 0
      %341 = vmatprep.subr.bf16.mxu0 0
      %342 = vmatpush1.bf16.msra.mxu0 0
      %343 = vmatprep.subr.bf16.mxu0 0
      %344 = vmatpush1.bf16.msra.mxu0 0
      %345 = vmatprep.subr.bf16.mxu0 0
      %346 = vmatpush1.bf16.msra.mxu0 0
      %347 = vmatprep.subr.bf16.mxu0 0
      %348 = vmatpush1.bf16.msra.mxu0 0
      %349 = vmatprep.mubr.bf16.mxu0 0
      %350 = vmatmul.mubr.bf16.gmra.mrb[0].mxu0 %v267
      %v351 = vpop.f32.mrb[0].mxu0
      %v352 = vadd.f32 0.0, %v351
      %v353 = vpop.f32.mrb[0].mxu0
      %v354 = vpop.f32.mrb[0].mxu0
      %v355 = vadd.f32 0.0, %v354
      %v356 = vpop.f32.mrb[0].mxu0
      %357 = vdwg.mxu0
      %v358 = vmul.f32 %v352, 2.0
      %v359 = vmul.f32 %v355, 2.0
      %v360 = vld [vmem:[%s233] sm:$0x1]
      %v362 = vlaneseq
      %v363 = vshrl.u32 %v362, 7
      %v364 = vsub.s32 0, %v363
      %v365 = vrot.slane %v360, %v364
      %v367 = vsub.f32 %v358, %v365
      %v368 = vsub.f32 %v359, %v365
      %v369 = vlaneseq
      %v370 = vand.u32 %v369, 127
      %v371 = vcvt.s32.f32 %v370
      %vm372 = vcmask 130048
      %v373 = vsel %vm372, %v367, -inf
      %374 = vmax.xlane.f32.xlu0 %v373
      %v375 = vpop.xlane.xlu0 %374
      %v376 = vsel %vm372, %v368, -inf
      %377 = vmax.xlane.f32.xlu0 %v376
      %v378 = vpop.xlane.xlu0 %377
      %vm379 = vcmp.eq.f32.partialorder %v367, %v375
      %vm380 = vcmp.eq.f32.partialorder %v368, %v378
      %v381 = vsel %vm379, %v371, 16.0
      %v382 = vsel %vm380, %v371, 16.0
      %v383 = vsel %vm372, %v381, inf
      %384 = vmin.xlane.f32.xlu0 %v383
      %v385 = vpop.xlane.xlu0 %384
      %v386 = vsel %vm372, %v382, inf
      %387 = vmin.xlane.f32.xlu0 %v386
      %v388 = vpop.xlane.xlu0 %387
      %vm389 = vcmp.eq.s32.totalorder %v370, 0
      %v390 = vsel %vm389, %v385, 0.0
      %v391 = vsel %vm389, %v388, 0.0
      %vm392 = vcmp.eq.f32.partialorder %v371, %v385
      %vm393 = vcmp.eq.f32.partialorder %v371, %v388
      %v394 = vsel %vm392, -inf, %v367
      %v395 = vsel %vm393, -inf, %v368
      %v396 = vsel %vm372, %v394, -inf
      %397 = vmax.xlane.f32.xlu0 %v396
      %v398 = vpop.xlane.xlu0 %397
      %v399 = vsel %vm372, %v395, -inf
      %400 = vmax.xlane.f32.xlu0 %v399
      %v401 = vpop.xlane.xlu0 %400
      %vm402 = vcmp.eq.f32.partialorder %v394, %v398
      %vm403 = vcmp.eq.f32.partialorder %v395, %v401
      %v404 = vsel %vm402, %v371, 16.0
      %v405 = vsel %vm403, %v371, 16.0
      %v406 = vsel %vm372, %v404, inf
      %407 = vmin.xlane.f32.xlu0 %v406
      %v408 = vpop.xlane.xlu0 %407
      %v409 = vsel %vm372, %v405, inf
      %410 = vmin.xlane.f32.xlu0 %v409
      %v411 = vpop.xlane.xlu0 %410
      %vm412 = vcmp.eq.s32.totalorder %v370, 1
      %v413 = vsel %vm412, %v408, %v390
      %v414 = vsel %vm412, %v411, %v391
      %vm415 = vcmp.eq.f32.partialorder %v371, %v408
      %vm416 = vcmp.eq.f32.partialorder %v371, %v411
      %v417 = vsel %vm415, -inf, %v394
      %v418 = vsel %vm416, -inf, %v395
      %v419 = vsel %vm372, %v417, -inf
      %420 = vmax.xlane.f32.xlu0 %v419
      %v421 = vpop.xlane.xlu0 %420
      %v422 = vsel %vm372, %v418, -inf
      %423 = vmax.xlane.f32.xlu0 %v422
      %v424 = vpop.xlane.xlu0 %423
      %vm425 = vcmp.eq.f32.partialorder %v417, %v421
      %vm426 = vcmp.eq.f32.partialorder %v418, %v424
      %v427 = vsel %vm425, %v371, 16.0
      %v428 = vsel %vm426, %v371, 16.0
      %v429 = vsel %vm372, %v427, inf
      %430 = vmin.xlane.f32.xlu0 %v429
      %v431 = vpop.xlane.xlu0 %430
      %v432 = vsel %vm372, %v428, inf
      %433 = vmin.xlane.f32.xlu0 %v432
      %v434 = vpop.xlane.xlu0 %433
      %vm435 = vcmp.eq.s32.totalorder %v370, 2
      %v436 = vsel %vm435, %v431, %v413
      %v437 = vsel %vm435, %v434, %v414
      %vm438 = vcmp.eq.f32.partialorder %v371, %v431
      %vm439 = vcmp.eq.f32.partialorder %v371, %v434
      %v440 = vsel %vm438, -inf, %v417
      %v441 = vsel %vm439, -inf, %v418
      %v442 = vsel %vm372, %v440, -inf
      %443 = vmax.xlane.f32.xlu0 %v442
      %v444 = vpop.xlane.xlu0 %443
      %v445 = vsel %vm372, %v441, -inf
      %446 = vmax.xlane.f32.xlu0 %v445
      %v447 = vpop.xlane.xlu0 %446
      %vm448 = vcmp.eq.f32.partialorder %v440, %v444
      %vm449 = vcmp.eq.f32.partialorder %v441, %v447
      %v450 = vsel %vm448, %v371, 16.0
      %v451 = vsel %vm449, %v371, 16.0
      %v452 = vsel %vm372, %v450, inf
      %453 = vmin.xlane.f32.xlu0 %v452
      %v454 = vpop.xlane.xlu0 %453
      %v455 = vsel %vm372, %v451, inf
      %456 = vmin.xlane.f32.xlu0 %v455
      %v457 = vpop.xlane.xlu0 %456
      %vm458 = vcmp.eq.s32.totalorder %v370, 3
      %v459 = vsel %vm458, %v454, %v436
      %v460 = vsel %vm458, %v457, %v437
      %v461 = vcvt.f32.s32.to.zero.pseudo %v459
      %v462 = vcvt.f32.s32.to.zero.pseudo %v460
      %vm463 = vcmask 31744
      %464 = vst.msk [vmem:[%s242] sm:$0xff] %vm463, %v461
      %465 = vst.msk [vmem:[%s242 + $0x8] sm:$0xff] %vm463, %v462
      %s466 = smul.u32 2, %s19
      %p467 = scmp.lt.s32.totalorder %s18, 1
      %s468 = scalar_select %p467, %s18, 1
      %p469 = scmp.lt.s32.totalorder %s466, 1
      %s470 = scalar_select %p469, %s466, 1
      %s471 = smul.addr %s468, 2
      %s472 = sadd.s32 %s470, %s471
      %s473 = smul.addr %s472, 8
      %s474 = scalar_lea.vmem %s3, %s473
      // Predicated region
      $region33: #{dgcnn_forward.15} parent=31 // pred_check
        %p475 = pneg %p126
      $region34: #{dgcnn_forward.15} parent=31 // pred_check_branch
        %477 = sbr.rel (%p475) target = $region36
      $region35: #{dgcnn_forward.15} parent=31 // pred_region
        %s478 = smul.u32 2, %s19
      $region36: #{dgcnn_forward.15} parent=31 // pred_fallthru
        _
    $region32: #{dgcnn_forward.15} parent=5 // pred_fallthru
      _
    %p479 = scmp.le.s32.totalorder 2, %s9
    // Predicated region
    $region37: #{dgcnn_forward.15} parent=5 // pred_check
      %p480 = pneg %p479
    $region38: #{dgcnn_forward.15} parent=5 // pred_check_branch
      %482 = sbr.rel (%p480) target = $region40
    $region39: #{dgcnn_forward.15} parent=5 // pred_region
      %s483 = ssub.s32 %s9, 2
      // Predicated region
      $region41: #{dgcnn_forward.15} parent=39 // pred_check
        %p484 = pneg %p132
      $region42: #{dgcnn_forward.15} parent=39 // pred_check_branch
        %486 = sbr.rel (%p484) target = $region44
      $region43: #{dgcnn_forward.15} parent=39 // pred_region
        %s487 = smul.u32 2, %s21
        %p488 = scmp.lt.s32.totalorder %s20, 1
        %s489 = scalar_select %p488, %s20, 1
        %p490 = scmp.lt.s32.totalorder %s487, 1
        %s491 = scalar_select %p490, %s487, 1
        %s492 = smul.addr %s489, 2
        %s493 = sadd.s32 %s491, %s492
        %s494 = smul.addr %s493, 8
        %s495 = scalar_lea.vmem %s3, %s494
      $region44: #{dgcnn_forward.15} parent=39 // pred_fallthru
        _
    $region40: #{dgcnn_forward.15} parent=5 // pred_fallthru
      _
  $region6: #{dgcnn_forward.15} parent=0 // loop_footer
    %s13 = sadd.s32 1, %s9
  $region7: #{dgcnn_forward.15} parent=0 // loop_footer_branch
    %8 = sbr.rel target = $region3
  $region8: #{dgcnn_forward.15} parent=0 // loop_exit
    _

// kernel: dgcnn_forward.14
$region0: #{dgcnn_forward.14}
  #allocation0 [shape = 'u32[]', space=smem, size = 0x4, offset = 0x4, fixed_abs, tag = 'smem constant byte address 0x4 - core index']
  #allocation1 [shape = 'u32[144,128]{1,0:T(1,128)}', space=vmem, size = 0x12000, scoped, tag = 'internal scratch']
  %s0 = inlined_call_operand.vmem [shape: bf16[2,16,64], index: 0, kind: input, shape index: {}, may-alias: {0,1}]
  %s1 = inlined_call_operand.vmem [shape: bf16[2,16,64], index: 1, kind: input, shape index: {}, may-alias: {0,1}]
  %s2 = inlined_call_operand.vmem [shape: s32[2,16,4], index: 2, kind: input, shape index: {}]
  %s3 = inlined_call_operand.vmem [shape: bf16[64,128], index: 3, kind: input, shape index: {}]
  %s4 = inlined_call_operand.vmem [shape: bf16[64,128], index: 4, kind: input, shape index: {}]
  %s5 = inlined_call_operand.vmem [shape: f32[1,128], index: 5, kind: input, shape index: {}]
  %s6 = inlined_call_operand.vmem [shape: f32[1,128], index: 6, kind: input, shape index: {}]
  %s7 = inlined_call_operand.vmem [shape: bf16[2,16,128], index: 7, kind: output, shape index: {}]
  %s8 = sld [smem:[#allocation0]]
  $region61: #{dgcnn_forward.14} parent=0
    _
  %s10 = ssub.s32 1, %s8
  %s11 = scalar_select 0, %s10, %s8
  loop: start=0, step=1, limit=4
  $region2: #{dgcnn_forward.14} parent=0 // loop_pre_header
    _
  $region3: #{dgcnn_forward.14} parent=0 // loop_header
    %s13 = sphi 0, %s17
    %p14 = scmp.ge.s32.totalorder %s13, 4
    %s20 = sphi 0, %s32
    %s21 = sphi 0, %s28
    %s22 = sphi 0, %s20
    %s23 = sphi 0, %s21
    %s24 = sphi 0, %s22
    %s25 = sphi 0, %s23
    %s35 = sphi 0, %s37
    %s38 = sphi 0, %s35
    %s39 = sphi 0, %s38
    %s55 = sphi 0, %s39
    %s63 = sphi 0, %s65
    %s66 = sphi 0, %s63
    %s67 = sphi 0, %s66
    %s83 = sphi 0, %s67
    %s91 = sphi 0, %s93
    %s94 = sphi 0, %s91
    %s95 = sphi 0, %s94
    %s111 = sphi 0, %s95
    %s115 = sphi 0, %s115
    %s117 = sphi 0, %s115
    %s118 = sphi 0, %s117
    %s132 = sphi 0, %s118
    %s136 = sphi 0, %s136
    %s138 = sphi 0, %s136
    %s139 = sphi 0, %s138
    %s153 = sphi 0, %s139
    %s157 = sphi 0, %s157
    %s159 = sphi 0, %s157
    %s160 = sphi 0, %s159
    %s174 = sphi 0, %s160
    %s178 = sphi 0, %s178
    %s180 = sphi 0, %s178
    %s181 = sphi 0, %s180
    %s195 = sphi 0, %s181
    %s203 = sphi 0, %s205
    %s206 = sphi 0, %s203
    %s207 = sphi 0, %s206
    %s223 = sphi 0, %s207
  $region4: #{dgcnn_forward.14} parent=0 // loop_header_branch
    %16 = sbr.rel (%p14) target = $region8
  $region5: #{dgcnn_forward.14} parent=0 // loop_body
    %s18 = ssub.s32 %s13, 1
    %s19 = ssub.s32 %s13, 2
    %s26 = sadd.s32 1, %s21
    %p27 = scmp.ge.s32.totalorder %s26, 1
    %s28 = scalar_select %p27, 0, %s26
    %s29 = sadd.s32 1, %s20
    %s30 = scalar_select %p27, %s29, %s20
    %p31 = scmp.ge.s32.totalorder %s30, 2
    %s32 = scalar_select %p31, 0, %s30
    %s33 = ssub.s32 %s20, %s32
    %p34 = scmp.eq.s32.totalorder %s33, 0
    %s36 = sadd.s32 %s35, 1
    %s37 = scalar_select %p34, %s35, %s36
    %p40 = pneg %p34
    %p41 = scmp.eq.s32.totalorder %s13, 1
    %p42 = por %p40, %p41
    %p43 = scmp.ne.s32.totalorder %s35, %s38
    %p44 = scmp.eq.s32.totalorder %s13, 0
    %p45 = por %p43, %p44
    %p46 = scmp.ne.s32.totalorder %s35, %s38
    %p47 = scmp.eq.s32.totalorder %s18, 1
    %p48 = por %p46, %p47
    %p49 = scmp.ne.s32.totalorder %s38, %s39
    %p50 = scmp.eq.s32.totalorder %s18, 0
    %p51 = por %p49, %p50
    %p52 = scmp.ne.s32.totalorder %s38, %s39
    %p53 = scmp.eq.s32.totalorder %s19, 1
    %p54 = por %p52, %p53
    %p56 = scmp.ne.s32.totalorder %s39, %s55
    %p57 = scmp.eq.s32.totalorder %s19, 0
    %p58 = por %p56, %p57
    %s59 = ssub.s32 %s20, %s32
    %s60 = ssub.s32 %s21, %s28
    %s61 = sor.u32 %s59, %s60
    %p62 = scmp.eq.s32.totalorder %s61, 0
    %s64 = sadd.s32 %s63, 1
    %s65 = scalar_select %p62, %s63, %s64
    %p68 = pneg %p62
    %p69 = scmp.eq.s32.totalorder %s13, 1
    %p70 = por %p68, %p69
    %p71 = scmp.ne.s32.totalorder %s63, %s66
    %p72 = scmp.eq.s32.totalorder %s13, 0
    %p73 = por %p71, %p72
    %p74 = scmp.ne.s32.totalorder %s63, %s66
    %p75 = scmp.eq.s32.totalorder %s18, 1
    %p76 = por %p74, %p75
    %p77 = scmp.ne.s32.totalorder %s66, %s67
    %p78 = scmp.eq.s32.totalorder %s18, 0
    %p79 = por %p77, %p78
    %p80 = scmp.ne.s32.totalorder %s66, %s67
    %p81 = scmp.eq.s32.totalorder %s19, 1
    %p82 = por %p80, %p81
    %p84 = scmp.ne.s32.totalorder %s67, %s83
    %p85 = scmp.eq.s32.totalorder %s19, 0
    %p86 = por %p84, %p85
    %s87 = ssub.s32 %s20, %s32
    %s88 = ssub.s32 %s21, %s28
    %s89 = sor.u32 %s87, %s88
    %p90 = scmp.eq.s32.totalorder %s89, 0
    %s92 = sadd.s32 %s91, 1
    %s93 = scalar_select %p90, %s91, %s92
    %p96 = pneg %p90
    %p97 = scmp.eq.s32.totalorder %s13, 1
    %p98 = por %p96, %p97
    %p99 = scmp.ne.s32.totalorder %s91, %s94
    %p100 = scmp.eq.s32.totalorder %s13, 0
    %p101 = por %p99, %p100
    %p102 = scmp.ne.s32.totalorder %s91, %s94
    %p103 = scmp.eq.s32.totalorder %s18, 1
    %p104 = por %p102, %p103
    %p105 = scmp.ne.s32.totalorder %s94, %s95
    %p106 = scmp.eq.s32.totalorder %s18, 0
    %p107 = por %p105, %p106
    %p108 = scmp.ne.s32.totalorder %s94, %s95
    %p109 = scmp.eq.s32.totalorder %s19, 1
    %p110 = por %p108, %p109
    %p112 = scmp.ne.s32.totalorder %s95, %s111
    %p113 = scmp.eq.s32.totalorder %s19, 0
    %p114 = por %p112, %p113
    %s116 = sadd.s32 %s115, 1
    %p119 = scmp.eq.s32.totalorder %s13, 1
    %p120 = scmp.ne.s32.totalorder %s115, %s117
    %p121 = scmp.eq.s32.totalorder %s13, 0
    %p122 = por %p120, %p121
    %p123 = scmp.ne.s32.totalorder %s115, %s117
    %p124 = scmp.eq.s32.totalorder %s18, 1
    %p125 = por %p123, %p124
    %p126 = scmp.ne.s32.totalorder %s117, %s118
    %p127 = scmp.eq.s32.totalorder %s18, 0
    %p128 = por %p126, %p127
    %p129 = scmp.ne.s32.totalorder %s117, %s118
    %p130 = scmp.eq.s32.totalorder %s19, 1
    %p131 = por %p129, %p130
    %p133 = scmp.ne.s32.totalorder %s118, %s132
    %p134 = scmp.eq.s32.totalorder %s19, 0
    %p135 = por %p133, %p134
    %s137 = sadd.s32 %s136, 1
    %p140 = scmp.eq.s32.totalorder %s13, 1
    %p141 = scmp.ne.s32.totalorder %s136, %s138
    %p142 = scmp.eq.s32.totalorder %s13, 0
    %p143 = por %p141, %p142
    %p144 = scmp.ne.s32.totalorder %s136, %s138
    %p145 = scmp.eq.s32.totalorder %s18, 1
    %p146 = por %p144, %p145
    %p147 = scmp.ne.s32.totalorder %s138, %s139
    %p148 = scmp.eq.s32.totalorder %s18, 0
    %p149 = por %p147, %p148
    %p150 = scmp.ne.s32.totalorder %s138, %s139
    %p151 = scmp.eq.s32.totalorder %s19, 1
    %p152 = por %p150, %p151
    %p154 = scmp.ne.s32.totalorder %s139, %s153
    %p155 = scmp.eq.s32.totalorder %s19, 0
    %p156 = por %p154, %p155
    %s158 = sadd.s32 %s157, 1
    %p161 = scmp.eq.s32.totalorder %s13, 1
    %p162 = scmp.ne.s32.totalorder %s157, %s159
    %p163 = scmp.eq.s32.totalorder %s13, 0
    %p164 = por %p162, %p163
    %p165 = scmp.ne.s32.totalorder %s157, %s159
    %p166 = scmp.eq.s32.totalorder %s18, 1
    %p167 = por %p165, %p166
    %p168 = scmp.ne.s32.totalorder %s159, %s160
    %p169 = scmp.eq.s32.totalorder %s18, 0
    %p170 = por %p168, %p169
    %p171 = scmp.ne.s32.totalorder %s159, %s160
    %p172 = scmp.eq.s32.totalorder %s19, 1
    %p173 = por %p171, %p172
    %p175 = scmp.ne.s32.totalorder %s160, %s174
    %p176 = scmp.eq.s32.totalorder %s19, 0
    %p177 = por %p175, %p176
    %s179 = sadd.s32 %s178, 1
    %p182 = scmp.eq.s32.totalorder %s13, 1
    %p183 = scmp.ne.s32.totalorder %s178, %s180
    %p184 = scmp.eq.s32.totalorder %s13, 0
    %p185 = por %p183, %p184
    %p186 = scmp.ne.s32.totalorder %s178, %s180
    %p187 = scmp.eq.s32.totalorder %s18, 1
    %p188 = por %p186, %p187
    %p189 = scmp.ne.s32.totalorder %s180, %s181
    %p190 = scmp.eq.s32.totalorder %s18, 0
    %p191 = por %p189, %p190
    %p192 = scmp.ne.s32.totalorder %s180, %s181
    %p193 = scmp.eq.s32.totalorder %s19, 1
    %p194 = por %p192, %p193
    %p196 = scmp.ne.s32.totalorder %s181, %s195
    %p197 = scmp.eq.s32.totalorder %s19, 0
    %p198 = por %p196, %p197
    %s199 = ssub.s32 %s20, %s32
    %s200 = ssub.s32 %s21, %s28
    %s201 = sor.u32 %s199, %s200
    %p202 = scmp.eq.s32.totalorder %s201, 0
    %s204 = sadd.s32 %s203, 1
    %s205 = scalar_select %p202, %s203, %s204
    %p208 = pneg %p202
    %p209 = scmp.eq.s32.totalorder %s13, 1
    %p210 = por %p208, %p209
    %p211 = scmp.ne.s32.totalorder %s203, %s206
    %p212 = scmp.eq.s32.totalorder %s13, 0
    %p213 = por %p211, %p212
    %p214 = scmp.ne.s32.totalorder %s203, %s206
    %p215 = scmp.eq.s32.totalorder %s18, 1
    %p216 = por %p214, %p215
    %p217 = scmp.ne.s32.totalorder %s206, %s207
    %p218 = scmp.eq.s32.totalorder %s18, 0
    %p219 = por %p217, %p218
    %p220 = scmp.ne.s32.totalorder %s206, %s207
    %p221 = scmp.eq.s32.totalorder %s19, 1
    %p222 = por %p220, %p221
    %p224 = scmp.ne.s32.totalorder %s207, %s223
    %p225 = scmp.eq.s32.totalorder %s19, 0
    %p226 = por %p224, %p225
    %p227 = scmp.le.s32.totalorder 1, %s13
    %p228 = scmp.lt.s32.totalorder %s13, 3
    %p229 = pnand %p227, %p228
    %p230 = pneg %p229
    // Predicated region
    $region9: #{dgcnn_forward.14} parent=5 // pred_check
      _
    $region10: #{dgcnn_forward.14} parent=5 // pred_check_branch
      %232 = sbr.rel (%p229) target = $region12
    $region11: #{dgcnn_forward.14} parent=5 // pred_region
      %s233 = ssub.s32 %s13, 1
      // Predicated region
      $region13: #{dgcnn_forward.14} parent=11 // pred_check
        %p234 = pneg %p128
      $region14: #{dgcnn_forward.14} parent=11 // pred_check_branch
        %236 = sbr.rel (%p234) target = $region16
      $region15: #{dgcnn_forward.14} parent=11 // pred_region
        _
      $region16: #{dgcnn_forward.14} parent=11 // pred_fallthru
        _
      // Predicated region
      $region17: #{dgcnn_forward.14} parent=11 // pred_check
        %p237 = pneg %p149
      $region18: #{dgcnn_forward.14} parent=11 // pred_check_branch
        %239 = sbr.rel (%p237) target = $region20
      $region19: #{dgcnn_forward.14} parent=11 // pred_region
        _
      $region20: #{dgcnn_forward.14} parent=11 // pred_fallthru
        _
      // Predicated region
      $region21: #{dgcnn_forward.14} parent=11 // pred_check
        %p240 = pneg %p170
      $region22: #{dgcnn_forward.14} parent=11 // pred_check_branch
        %242 = sbr.rel (%p240) target = $region24
      $region23: #{dgcnn_forward.14} parent=11 // pred_region
        _
      $region24: #{dgcnn_forward.14} parent=11 // pred_fallthru
        _
      // Predicated region
      $region25: #{dgcnn_forward.14} parent=11 // pred_check
        %p243 = pneg %p191
      $region26: #{dgcnn_forward.14} parent=11 // pred_check_branch
        %245 = sbr.rel (%p243) target = $region28
      $region27: #{dgcnn_forward.14} parent=11 // pred_region
        _
      $region28: #{dgcnn_forward.14} parent=11 // pred_fallthru
        _
    $region12: #{dgcnn_forward.14} parent=5 // pred_fallthru
      _
    %p246 = scmp.lt.s32.totalorder %s13, 2
    // Predicated region
    $region29: #{dgcnn_forward.14} parent=5 // pred_check
      %p247 = pneg %p246
    $region30: #{dgcnn_forward.14} parent=5 // pred_check_branch
      %249 = sbr.rel (%p247) target = $region32
    $region31: #{dgcnn_forward.14} parent=5 // pred_region
      // Predicated region
      $region33: #{dgcnn_forward.14} parent=31 // pred_check
        %p250 = pneg %p45
      $region34: #{dgcnn_forward.14} parent=31 // pred_check_branch
        %252 = sbr.rel (%p250) target = $region36
      $region35: #{dgcnn_forward.14} parent=31 // pred_region
        %p253 = scmp.lt.s32.totalorder %s20, 1
        %s254 = scalar_select %p253, %s20, 1
        %s255 = smul.addr %s254, 2
        %s256 = smul.addr %s255, 4
        %s257 = scalar_lea.vmem %s0, %s256
      $region36: #{dgcnn_forward.14} parent=31 // pred_fallthru
        _
      // Predicated region
      $region37: #{dgcnn_forward.14} parent=31 // pred_check
        %p258 = pneg %p73
      $region38: #{dgcnn_forward.14} parent=31 // pred_check_branch
        %260 = sbr.rel (%p258) target = $region40
      $region39: #{dgcnn_forward.14} parent=31 // pred_region
        %s261 = smul.u32 2, %s21
        %p262 = scmp.lt.s32.totalorder %s20, 1
        %s263 = scalar_select %p262, %s20, 1
        %p264 = scmp.lt.s32.totalorder %s261, 1
        %s265 = scalar_select %p264, %s261, 1
        %s266 = smul.addr %s263, 2
        %s267 = sadd.s32 %s265, %s266
        %s268 = smul.addr %s267, 4
        %s269 = scalar_lea.vmem %s1, %s268
        %s270 = smul.u32 2, %s21
      $region40: #{dgcnn_forward.14} parent=31 // pred_fallthru
        _
      // Predicated region
      $region41: #{dgcnn_forward.14} parent=31 // pred_check
        %p271 = pneg %p101
      $region42: #{dgcnn_forward.14} parent=31 // pred_check_branch
        %273 = sbr.rel (%p271) target = $region44
      $region43: #{dgcnn_forward.14} parent=31 // pred_region
        %s274 = smul.u32 2, %s21
        %p275 = scmp.lt.s32.totalorder %s20, 1
        %s276 = scalar_select %p275, %s20, 1
        %p277 = scmp.lt.s32.totalorder %s274, 1
        %s278 = scalar_select %p277, %s274, 1
        %s279 = smul.addr %s276, 2
        %s280 = sadd.s32 %s278, %s279
        %s281 = smul.addr %s280, 8
        %s282 = scalar_lea.vmem %s2, %s281
        %s283 = smul.u32 2, %s21
      $region44: #{dgcnn_forward.14} parent=31 // pred_fallthru
        _
    $region32: #{dgcnn_forward.14} parent=5 // pred_fallthru
      _
    %p284 = scmp.le.s32.totalorder 1, %s13
    %p285 = scmp.lt.s32.totalorder %s13, 3
    %p286 = pnand %p284, %p285
    %p287 = pneg %p286
    // Predicated region
    $region45: #{dgcnn_forward.14} parent=5 // pred_check
      _
    $region46: #{dgcnn_forward.14} parent=5 // pred_check_branch
      %289 = sbr.rel (%p286) target = $region48
    $region47: #{dgcnn_forward.14} parent=5 // pred_region
      %s290 = ssub.s32 %s13, 1
      %p291 = scmp.lt.s32.totalorder %s22, 1
      %s292 = scalar_select %p291, %s22, 1
      %s293 = smul.addr %s292, 2
      %s294 = smul.addr %s293, 4
      %s295 = scalar_lea.vmem %s0, %s294
      %p296 = pneg %p51
      %p297 = pneg %p48
      %s298 = smul.u32 2, %s23
      %p299 = scmp.lt.s32.totalorder %s22, 1
      %s300 = scalar_select %p299, %s22, 1
      %p301 = scmp.lt.s32.totalorder %s298, 1
      %s302 = scalar_select %p301, %s298, 1
      %s303 = smul.addr %s300, 2
      %s304 = sadd.s32 %s302, %s303
      %s305 = smul.addr %s304, 4
      %s306 = scalar_lea.vmem %s1, %s305
      %p307 = pneg %p79
      %p308 = pneg %p76
      %s309 = smul.u32 2, %s23
      %p310 = scmp.lt.s32.totalorder %s22, 1
      %s311 = scalar_select %p310, %s22, 1
      %p312 = scmp.lt.s32.totalorder %s309, 1
      %s313 = scalar_select %p312, %s309, 1
      %s314 = smul.addr %s311, 2
      %s315 = sadd.s32 %s313, %s314
      %s316 = smul.addr %s315, 8
      %s317 = scalar_lea.vmem %s2, %s316
      %p318 = pneg %p107
      %p319 = pneg %p104
      %p320 = pneg %p128
      %p321 = pneg %p125
      %p322 = pneg %p149
      %p323 = pneg %p146
      %p324 = pneg %p170
      %p325 = pneg %p167
      %p326 = pneg %p191
      %p327 = pneg %p188
      %p328 = pneg %p219
      %p329 = pneg %p216
      %s330 = smul.u32 2, %s23
      %p331 = scmp.lt.s32.totalorder %s22, 1
      %s332 = scalar_select %p331, %s22, 1
      %p333 = scmp.lt.s32.totalorder %s330, 1
      %s334 = scalar_select %p333, %s330, 1
      %s335 = smul.addr %s332, 2
      %s336 = sadd.s32 %s334, %s335
      %s337 = smul.addr %s336, 4
      %s338 = scalar_lea.vmem %s7, %s337
      %p339 = scmp.lt.s32.totalorder %s22, 1
      %s340 = scalar_select %p339, %s22, 1
      %s341 = smul.addr %s340, 2
      %s342 = smul.addr %s341, 4
      %s343 = scalar_lea.vmem %s0, %s342
      %s344 = smul.u32 2, %s23
      %p345 = scmp.lt.s32.totalorder %s22, 1
      %s346 = scalar_select %p345, %s22, 1
      %p347 = scmp.lt.s32.totalorder %s344, 1
      %s348 = scalar_select %p347, %s344, 1
      %s349 = smul.addr %s346, 2
      %s350 = sadd.s32 %s348, %s349
      %s351 = smul.addr %s350, 4
      %s352 = scalar_lea.vmem %s1, %s351
      %s353 = smul.u32 2, %s23
      %s354 = smul.u32 2, %s23
      %p355 = scmp.lt.s32.totalorder %s22, 1
      %s356 = scalar_select %p355, %s22, 1
      %p357 = scmp.lt.s32.totalorder %s354, 1
      %s358 = scalar_select %p357, %s354, 1
      %s359 = smul.addr %s356, 2
      %s360 = sadd.s32 %s358, %s359
      %s361 = smul.addr %s360, 8
      %s362 = scalar_lea.vmem %s2, %s361
      %s363 = smul.u32 2, %s23
      %s364 = smul.u32 2, %s23
      %p365 = scmp.lt.s32.totalorder %s22, 1
      %s366 = scalar_select %p365, %s22, 1
      %p367 = scmp.lt.s32.totalorder %s364, 1
      %s368 = scalar_select %p367, %s364, 1
      %s369 = smul.addr %s366, 2
      %s370 = sadd.s32 %s368, %s369
      %s371 = smul.addr %s370, 4
      %s372 = scalar_lea.vmem %s7, %s371
      %s373 = smul.u32 2, %s23
      %v375 = vld [vmem:[%s343] sm:$0xf]
      %v376 = vld [vmem:[%s343 + $0x4] sm:$0xf]
      %v377 = vld [vmem:[%s352] sm:$0xf]
      %v378 = vld [vmem:[%s352 + $0x4] sm:$0xf]
      %v379 = vld [vmem:[%s362] sm:$0xff]
      %v380 = vld [vmem:[%s362 + $0x8] sm:$0xff]
      %v381 = vlaneseq
      %v382 = vand.u32 %v381, 127
      %383 = vset.pattern.permute.xlu0 0
      %384 = vperm.xlu0 %383, %v379
      %v385 = vpop.permute.xlu0 %384
      %386 = vset.pattern.permute.xlu0 0
      %387 = vperm.xlu0 %386, %v380
      %v388 = vpop.permute.xlu0 %387
      %vm389 = vcmp.eq.s32.totalorder %v382, %v385
      %vm390 = vcmp.eq.s32.totalorder %v382, %v388
      %v391 = vsel %vm389, 1, 0
      %v392 = vsel %vm390, 1, 0
      %v393 = vcvt.s32.f32 %v391
      %v394 = vcvt.s32.f32 %v392
      %v395 = vpack.c.bf16 %v394, %v393
      %v398 = vunpack.c.l.b16 %v375
      %v399 = vunpack.c.l.b16 %v376
      %v400 = vpack.c.b16 %v399, %v398
      %vm402 = vcmask 130048
      %v404 = vsel %vm402, %v395, 0
      %406 = vmatprep.subr.bf16.mxu0 0
      %407 = vmatpush1.bf16.msra.mxu0 %v400
      %408 = vmatprep.subr.bf16.mxu0 0
      %409 = vmatpush1.bf16.msra.mxu0 0
      %410 = vmatprep.subr.bf16.mxu0 0
      %411 = vmatpush1.bf16.msra.mxu0 0
      %412 = vmatprep.subr.bf16.mxu0 0
      %413 = vmatpush1.bf16.msra.mxu0 0
      %414 = vmatprep.subr.bf16.mxu0 0
      %415 = vmatpush1.bf16.msra.mxu0 0
      %416 = vmatprep.subr.bf16.mxu0 0
      %417 = vmatpush1.bf16.msra.mxu0 0
      %418 = vmatprep.subr.bf16.mxu0 0
      %419 = vmatpush1.bf16.msra.mxu0 0
      %420 = vmatprep.subr.bf16.mxu0 0
      %421 = vmatpush1.bf16.msra.mxu0 0
      %422 = vmatprep.subr.bf16.mxu0 0
      %423 = vmatpush1.bf16.msra.mxu0 0
      %424 = vmatprep.subr.bf16.mxu0 0
      %425 = vmatpush1.bf16.msra.mxu0 0
      %426 = vmatprep.subr.bf16.mxu0 0
      %427 = vmatpush1.bf16.msra.mxu0 0
      %428 = vmatprep.subr.bf16.mxu0 0
      %429 = vmatpush1.bf16.msra.mxu0 0
      %430 = vmatprep.subr.bf16.mxu0 0
      %431 = vmatpush1.bf16.msra.mxu0 0
      %432 = vmatprep.subr.bf16.mxu0 0
      %433 = vmatpush1.bf16.msra.mxu0 0
      %434 = vmatprep.subr.bf16.mxu0 0
      %435 = vmatpush1.bf16.msra.mxu0 0
      %436 = vmatprep.subr.bf16.mxu0 0
      %437 = vmatpush1.bf16.msra.mxu0 0
      %438 = vmatprep.mubr.bf16.mxu0 0
      %439 = vmatmul.mubr.bf16.gmra.mrb[0].mxu0 %v404
      %v440 = vpop.f32.mrb[0].mxu0
      %v441 = vadd.f32 0.0, %v440
      %v442 = vpop.f32.mrb[0].mxu0
      %v443 = vpop.f32.mrb[0].mxu0
      %v444 = vadd.f32 0.0, %v443
      %v445 = vpop.f32.mrb[0].mxu0
      %446 = vdwg.mxu0
      %v447 = vpack.c.bf16 %v444, %v441
      %v448 = vld [vmem:[%s3] sm:$0xf]
      %v449 = vld [vmem:[%s3 + $0x4] sm:$0xf]
      %v450 = vld [vmem:[%s3 + $0x8] sm:$0xf]
      %v451 = vld [vmem:[%s3 + $0xc] sm:$0xf]
      %v452 = vld [vmem:[%s3 + $0x10] sm:$0xf]
      %v453 = vld [vmem:[%s3 + $0x14] sm:$0xf]
      %v454 = vld [vmem:[%s3 + $0x18] sm:$0xf]
      %v455 = vld [vmem:[%s3 + $0x1c] sm:$0xf]
      %v464 = vunpack.c.l.b16 %v448
      %v465 = vunpack.c.l.b16 %v449
      %v466 = vunpack.c.l.b16 %v450
      %v467 = vunpack.c.l.b16 %v451
      %v468 = vunpack.c.l.b16 %v452
      %v469 = vunpack.c.l.b16 %v453
      %v470 = vunpack.c.l.b16 %v454
      %v471 = vunpack.c.l.b16 %v455
      %v472 = vpack.c.b16 %v465, %v464
      %v473 = vpack.c.b16 %v467, %v466
      %v474 = vpack.c.b16 %v469, %v468
      %v475 = vpack.c.b16 %v471, %v470
      %vm480 = vcmask 523264
      %v482 = vsel %vm480, %v447, 0
      %484 = vmatprep.subr.bf16.mxu0 0
      %485 = vmatpush1.bf16.msra.mxu0 %v472
      %486 = vmatprep.subr.bf16.mxu0 0
      %487 = vmatpush1.bf16.msra.mxu0 %v473
      %488 = vmatprep.subr.bf16.mxu0 0
      %489 = vmatpush1.bf16.msra.mxu0 %v474
      %490 = vmatprep.subr.bf16.mxu0 0
      %491 = vmatpush1.bf16.msra.mxu0 %v475
      %492 = vmatprep.subr.bf16.mxu0 0
      %493 = vmatpush1.bf16.msra.mxu0 0
      %494 = vmatprep.subr.bf16.mxu0 0
      %495 = vmatpush1.bf16.msra.mxu0 0
      %496 = vmatprep.subr.bf16.mxu0 0
      %497 = vmatpush1.bf16.msra.mxu0 0
      %498 = vmatprep.subr.bf16.mxu0 0
      %499 = vmatpush1.bf16.msra.mxu0 0
      %500 = vmatprep.subr.bf16.mxu0 0
      %501 = vmatpush1.bf16.msra.mxu0 0
      %502 = vmatprep.subr.bf16.mxu0 0
      %503 = vmatpush1.bf16.msra.mxu0 0
      %504 = vmatprep.subr.bf16.mxu0 0
      %505 = vmatpush1.bf16.msra.mxu0 0
      %506 = vmatprep.subr.bf16.mxu0 0
      %507 = vmatpush1.bf16.msra.mxu0 0
      %508 = vmatprep.subr.bf16.mxu0 0
      %509 = vmatpush1.bf16.msra.mxu0 0
      %510 = vmatprep.subr.bf16.mxu0 0
      %511 = vmatpush1.bf16.msra.mxu0 0
      %512 = vmatprep.subr.bf16.mxu0 0
      %513 = vmatpush1.bf16.msra.mxu0 0
      %514 = vmatprep.subr.bf16.mxu0 0
      %515 = vmatpush1.bf16.msra.mxu0 0
      %516 = vmatprep.mubr.bf16.mxu0 0
      %517 = vmatmul.mubr.bf16.gmra.mrb[0].mxu0 %v482
      %v518 = vpop.f32.mrb[0].mxu0
      %v519 = vadd.f32 0.0, %v518
      %v520 = vpop.f32.mrb[0].mxu0
      %v521 = vpop.f32.mrb[0].mxu0
      %v522 = vadd.f32 0.0, %v521
      %v523 = vpop.f32.mrb[0].mxu0
      %524 = vdwg.mxu0
      %525 = vset.pattern.permute.xlu0 1
      %526 = vperm.xlu0 %525, %v379
      %v527 = vpop.permute.xlu0 %526
      %528 = vset.pattern.permute.xlu0 1
      %529 = vperm.xlu0 %528, %v380
      %v530 = vpop.permute.xlu0 %529
      %vm531 = vcmp.eq.s32.totalorder %v382, %v527
      %vm532 = vcmp.eq.s32.totalorder %v382, %v530
      %v533 = vsel %vm531, 1, 0
      %v534 = vsel %vm532, 1, 0
      %v535 = vcvt.s32.f32 %v533
      %v536 = vcvt.s32.f32 %v534
      %v537 = vpack.c.bf16 %v536, %v535
      %v539 = vsel %vm402, %v537, 0
      %541 = vmatprep.subr.bf16.mxu0 0
      %542 = vmatpush1.bf16.msra.mxu0 %v400
      %543 = vmatprep.subr.bf16.mxu0 0
      %544 = vmatpush1.bf16.msra.mxu0 0
      %545 = vmatprep.subr.bf16.mxu0 0
      %546 = vmatpush1.bf16.msra.mxu0 0
      %547 = vmatprep.subr.bf16.mxu0 0
      %548 = vmatpush1.bf16.msra.mxu0 0
      %549 = vmatprep.subr.bf16.mxu0 0
      %550 = vmatpush1.bf16.msra.mxu0 0
      %551 = vmatprep.subr.bf16.mxu0 0
      %552 = vmatpush1.bf16.msra.mxu0 0
      %553 = vmatprep.subr.bf16.mxu0 0
      %554 = vmatpush1.bf16.msra.mxu0 0
      %555 = vmatprep.subr.bf16.mxu0 0
      %556 = vmatpush1.bf16.msra.mxu0 0
      %557 = vmatprep.subr.bf16.mxu0 0
      %558 = vmatpush1.bf16.msra.mxu0 0
      %559 = vmatprep.subr.bf16.mxu0 0
      %560 = vmatpush1.bf16.msra.mxu0 0
      %561 = vmatprep.subr.bf16.mxu0 0
      %562 = vmatpush1.bf16.msra.mxu0 0
      %563 = vmatprep.subr.bf16.mxu0 0
      %564 = vmatpush1.bf16.msra.mxu0 0
      %565 = vmatprep.subr.bf16.mxu0 0
      %566 = vmatpush1.bf16.msra.mxu0 0
      %567 = vmatprep.subr.bf16.mxu0 0
      %568 = vmatpush1.bf16.msra.mxu0 0
      %569 = vmatprep.subr.bf16.mxu0 0
      %570 = vmatpush1.bf16.msra.mxu0 0
      %571 = vmatprep.subr.bf16.mxu0 0
      %572 = vmatpush1.bf16.msra.mxu0 0
      %573 = vmatprep.mubr.bf16.mxu0 0
      %574 = vmatmul.mubr.bf16.gmra.mrb[0].mxu0 %v539
      %v575 = vpop.f32.mrb[0].mxu0
      %v576 = vadd.f32 0.0, %v575
      %v577 = vpop.f32.mrb[0].mxu0
      %v578 = vpop.f32.mrb[0].mxu0
      %v579 = vadd.f32 0.0, %v578
      %v580 = vpop.f32.mrb[0].mxu0
      %581 = vdwg.mxu0
      %v582 = vpack.c.bf16 %v579, %v576
      %v584 = vsel %vm480, %v582, 0
      %586 = vmatprep.subr.bf16.mxu0 0
      %587 = vmatpush1.bf16.msra.mxu0 %v472
      %588 = vmatprep.subr.bf16.mxu0 0
      %589 = vmatpush1.bf16.msra.mxu0 %v473
      %590 = vmatprep.subr.bf16.mxu0 0
      %591 = vmatpush1.bf16.msra.mxu0 %v474
      %592 = vmatprep.subr.bf16.mxu0 0
      %593 = vmatpush1.bf16.msra.mxu0 %v475
      %594 = vmatprep.subr.bf16.mxu0 0
      %595 = vmatpush1.bf16.msra.mxu0 0
      %596 = vmatprep.subr.bf16.mxu0 0
      %597 = vmatpush1.bf16.msra.mxu0 0
      %598 = vmatprep.subr.bf16.mxu0 0
      %599 = vmatpush1.bf16.msra.mxu0 0
      %600 = vmatprep.subr.bf16.mxu0 0
      %601 = vmatpush1.bf16.msra.mxu0 0
      %602 = vmatprep.subr.bf16.mxu0 0
      %603 = vmatpush1.bf16.msra.mxu0 0
      %604 = vmatprep.subr.bf16.mxu0 0
      %605 = vmatpush1.bf16.msra.mxu0 0
      %606 = vmatprep.subr.bf16.mxu0 0
      %607 = vmatpush1.bf16.msra.mxu0 0
      %608 = vmatprep.subr.bf16.mxu0 0
      %609 = vmatpush1.bf16.msra.mxu0 0
      %610 = vmatprep.subr.bf16.mxu0 0
      %611 = vmatpush1.bf16.msra.mxu0 0
      %612 = vmatprep.subr.bf16.mxu0 0
      %613 = vmatpush1.bf16.msra.mxu0 0
      %614 = vmatprep.subr.bf16.mxu0 0
      %615 = vmatpush1.bf16.msra.mxu0 0
      %616 = vmatprep.subr.bf16.mxu0 0
      %617 = vmatpush1.bf16.msra.mxu0 0
      %618 = vmatprep.mubr.bf16.mxu0 0
      %619 = vmatmul.mubr.bf16.gmra.mrb[0].mxu0 %v584
      %v620 = vpop.f32.mrb[0].mxu0
      %v621 = vadd.f32 0.0, %v620
      %v622 = vpop.f32.mrb[0].mxu0
      %v623 = vpop.f32.mrb[0].mxu0
      %v624 = vadd.f32 0.0, %v623
      %v625 = vpop.f32.mrb[0].mxu0
      %626 = vdwg.mxu0
      %v627 = vmax.f32 %v519, %v621
      %v628 = vmax.f32 %v522, %v624
      %629 = vset.pattern.permute.xlu0 2
      %630 = vperm.xlu0 %629, %v379
      %v631 = vpop.permute.xlu0 %630
      %632 = vset.pattern.permute.xlu0 2
      %633 = vperm.xlu0 %632, %v380
      %v634 = vpop.permute.xlu0 %633
      %vm635 = vcmp.eq.s32.totalorder %v382, %v631
      %vm636 = vcmp.eq.s32.totalorder %v382, %v634
      %v637 = vsel %vm635, 1, 0
      %v638 = vsel %vm636, 1, 0
      %v639 = vcvt.s32.f32 %v637
      %v640 = vcvt.s32.f32 %v638
      %v641 = vpack.c.bf16 %v640, %v639
      %v643 = vsel %vm402, %v641, 0
      %645 = vmatprep.subr.bf16.mxu0 0
      %646 = vmatpush1.bf16.msra.mxu0 %v400
      %647 = vmatprep.subr.bf16.mxu0 0
      %648 = vmatpush1.bf16.msra.mxu0 0
      %649 = vmatprep.subr.bf16.mxu0 0
      %650 = vmatpush1.bf16.msra.mxu0 0
      %651 = vmatprep.subr.bf16.mxu0 0
      %652 = vmatpush1.bf16.msra.mxu0 0
      %653 = vmatprep.subr.bf16.mxu0 0
      %654 = vmatpush1.bf16.msra.mxu0 0
      %655 = vmatprep.subr.bf16.mxu0 0
      %656 = vmatpush1.bf16.msra.mxu0 0
      %657 = vmatprep.subr.bf16.mxu0 0
      %658 = vmatpush1.bf16.msra.mxu0 0
      %659 = vmatprep.subr.bf16.mxu0 0
      %660 = vmatpush1.bf16.msra.mxu0 0
      %661 = vmatprep.subr.bf16.mxu0 0
      %662 = vmatpush1.bf16.msra.mxu0 0
      %663 = vmatprep.subr.bf16.mxu0 0
      %664 = vmatpush1.bf16.msra.mxu0 0
      %665 = vmatprep.subr.bf16.mxu0 0
      %666 = vmatpush1.bf16.msra.mxu0 0
      %667 = vmatprep.subr.bf16.mxu0 0
      %668 = vmatpush1.bf16.msra.mxu0 0
      %669 = vmatprep.subr.bf16.mxu0 0
      %670 = vmatpush1.bf16.msra.mxu0 0
      %671 = vmatprep.subr.bf16.mxu0 0
      %672 = vmatpush1.bf16.msra.mxu0 0
      %673 = vmatprep.subr.bf16.mxu0 0
      %674 = vmatpush1.bf16.msra.mxu0 0
      %675 = vmatprep.subr.bf16.mxu0 0
      %676 = vmatpush1.bf16.msra.mxu0 0
      %677 = vmatprep.mubr.bf16.mxu0 0
      %678 = vmatmul.mubr.bf16.gmra.mrb[0].mxu0 %v643
      %v679 = vpop.f32.mrb[0].mxu0
      %v680 = vadd.f32 0.0, %v679
      %v681 = vpop.f32.mrb[0].mxu0
      %v682 = vpop.f32.mrb[0].mxu0
      %v683 = vadd.f32 0.0, %v682
      %v684 = vpop.f32.mrb[0].mxu0
      %685 = vdwg.mxu0
      %v686 = vpack.c.bf16 %v683, %v680
      %v688 = vsel %vm480, %v686, 0
      %690 = vmatprep.subr.bf16.mxu0 0
      %691 = vmatpush1.bf16.msra.mxu0 %v472
      %692 = vmatprep.subr.bf16.mxu0 0
      %693 = vmatpush1.bf16.msra.mxu0 %v473
      %694 = vmatprep.subr.bf16.mxu0 0
      %695 = vmatpush1.bf16.msra.mxu0 %v474
      %696 = vmatprep.subr.bf16.mxu0 0
      %697 = vmatpush1.bf16.msra.mxu0 %v475
      %698 = vmatprep.subr.bf16.mxu0 0
      %699 = vmatpush1.bf16.msra.mxu0 0
      %700 = vmatprep.subr.bf16.mxu0 0
      %701 = vmatpush1.bf16.msra.mxu0 0
      %702 = vmatprep.subr.bf16.mxu0 0
      %703 = vmatpush1.bf16.msra.mxu0 0
      %704 = vmatprep.subr.bf16.mxu0 0
      %705 = vmatpush1.bf16.msra.mxu0 0
      %706 = vmatprep.subr.bf16.mxu0 0
      %707 = vmatpush1.bf16.msra.mxu0 0
      %708 = vmatprep.subr.bf16.mxu0 0
      %709 = vmatpush1.bf16.msra.mxu0 0
      %710 = vmatprep.subr.bf16.mxu0 0
      %711 = vmatpush1.bf16.msra.mxu0 0
      %712 = vmatprep.subr.bf16.mxu0 0
      %713 = vmatpush1.bf16.msra.mxu0 0
      %714 = vmatprep.subr.bf16.mxu0 0
      %715 = vmatpush1.bf16.msra.mxu0 0
      %716 = vmatprep.subr.bf16.mxu0 0
      %717 = vmatpush1.bf16.msra.mxu0 0
      %718 = vmatprep.subr.bf16.mxu0 0
      %719 = vmatpush1.bf16.msra.mxu0 0
      %720 = vmatprep.subr.bf16.mxu0 0
      %721 = vmatpush1.bf16.msra.mxu0 0
      %722 = vmatprep.mubr.bf16.mxu0 0
      %723 = vmatmul.mubr.bf16.gmra.mrb[0].mxu0 %v688
      %v724 = vpop.f32.mrb[0].mxu0
      %v725 = vadd.f32 0.0, %v724
      %v726 = vpop.f32.mrb[0].mxu0
      %v727 = vpop.f32.mrb[0].mxu0
      %v728 = vadd.f32 0.0, %v727
      %v729 = vpop.f32.mrb[0].mxu0
      %730 = vdwg.mxu0
      %v731 = vmax.f32 %v627, %v725
      %v732 = vmax.f32 %v628, %v728
      %733 = vset.pattern.permute.xlu0 3
      %734 = vperm.xlu0 %733, %v379
      %v735 = vpop.permute.xlu0 %734
      %736 = vset.pattern.permute.xlu0 3
      %737 = vperm.xlu0 %736, %v380
      %v738 = vpop.permute.xlu0 %737
      %vm739 = vcmp.eq.s32.totalorder %v382, %v735
      %vm740 = vcmp.eq.s32.totalorder %v382, %v738
      %v741 = vsel %vm739, 1, 0
      %v742 = vsel %vm740, 1, 0
      %v743 = vcvt.s32.f32 %v741
      %v744 = vcvt.s32.f32 %v742
      %v745 = vpack.c.bf16 %v744, %v743
      %v747 = vsel %vm402, %v745, 0
      %749 = vmatprep.subr.bf16.mxu0 0
      %750 = vmatpush1.bf16.msra.mxu0 %v400
      %751 = vmatprep.subr.bf16.mxu0 0
      %752 = vmatpush1.bf16.msra.mxu0 0
      %753 = vmatprep.subr.bf16.mxu0 0
      %754 = vmatpush1.bf16.msra.mxu0 0
      %755 = vmatprep.subr.bf16.mxu0 0
      %756 = vmatpush1.bf16.msra.mxu0 0
      %757 = vmatprep.subr.bf16.mxu0 0
      %758 = vmatpush1.bf16.msra.mxu0 0
      %759 = vmatprep.subr.bf16.mxu0 0
      %760 = vmatpush1.bf16.msra.mxu0 0
      %761 = vmatprep.subr.bf16.mxu0 0
      %762 = vmatpush1.bf16.msra.mxu0 0
      %763 = vmatprep.subr.bf16.mxu0 0
      %764 = vmatpush1.bf16.msra.mxu0 0
      %765 = vmatprep.subr.bf16.mxu0 0
      %766 = vmatpush1.bf16.msra.mxu0 0
      %767 = vmatprep.subr.bf16.mxu0 0
      %768 = vmatpush1.bf16.msra.mxu0 0
      %769 = vmatprep.subr.bf16.mxu0 0
      %770 = vmatpush1.bf16.msra.mxu0 0
      %771 = vmatprep.subr.bf16.mxu0 0
      %772 = vmatpush1.bf16.msra.mxu0 0
      %773 = vmatprep.subr.bf16.mxu0 0
      %774 = vmatpush1.bf16.msra.mxu0 0
      %775 = vmatprep.subr.bf16.mxu0 0
      %776 = vmatpush1.bf16.msra.mxu0 0
      %777 = vmatprep.subr.bf16.mxu0 0
      %778 = vmatpush1.bf16.msra.mxu0 0
      %779 = vmatprep.subr.bf16.mxu0 0
      %780 = vmatpush1.bf16.msra.mxu0 0
      %781 = vmatprep.mubr.bf16.mxu0 0
      %782 = vmatmul.mubr.bf16.gmra.mrb[0].mxu0 %v747
      %v783 = vpop.f32.mrb[0].mxu0
      %v784 = vadd.f32 0.0, %v783
      %v785 = vpop.f32.mrb[0].mxu0
      %v786 = vpop.f32.mrb[0].mxu0
      %v787 = vadd.f32 0.0, %v786
      %v788 = vpop.f32.mrb[0].mxu0
      %789 = vdwg.mxu0
      %v790 = vpack.c.bf16 %v787, %v784
      %v792 = vsel %vm480, %v790, 0
      %794 = vmatprep.subr.bf16.mxu0 0
      %795 = vmatpush1.bf16.msra.mxu0 %v472
      %796 = vmatprep.subr.bf16.mxu0 0
      %797 = vmatpush1.bf16.msra.mxu0 %v473
      %798 = vmatprep.subr.bf16.mxu0 0
      %799 = vmatpush1.bf16.msra.mxu0 %v474
      %800 = vmatprep.subr.bf16.mxu0 0
      %801 = vmatpush1.bf16.msra.mxu0 %v475
      %802 = vmatprep.subr.bf16.mxu0 0
      %803 = vmatpush1.bf16.msra.mxu0 0
      %804 = vmatprep.subr.bf16.mxu0 0
      %805 = vmatpush1.bf16.msra.mxu0 0
      %806 = vmatprep.subr.bf16.mxu0 0
      %807 = vmatpush1.bf16.msra.mxu0 0
      %808 = vmatprep.subr.bf16.mxu0 0
      %809 = vmatpush1.bf16.msra.mxu0 0
      %810 = vmatprep.subr.bf16.mxu0 0
      %811 = vmatpush1.bf16.msra.mxu0 0
      %812 = vmatprep.subr.bf16.mxu0 0
      %813 = vmatpush1.bf16.msra.mxu0 0
      %814 = vmatprep.subr.bf16.mxu0 0
      %815 = vmatpush1.bf16.msra.mxu0 0
      %816 = vmatprep.subr.bf16.mxu0 0
      %817 = vmatpush1.bf16.msra.mxu0 0
      %818 = vmatprep.subr.bf16.mxu0 0
      %819 = vmatpush1.bf16.msra.mxu0 0
      %820 = vmatprep.subr.bf16.mxu0 0
      %821 = vmatpush1.bf16.msra.mxu0 0
      %822 = vmatprep.subr.bf16.mxu0 0
      %823 = vmatpush1.bf16.msra.mxu0 0
      %824 = vmatprep.subr.bf16.mxu0 0
      %825 = vmatpush1.bf16.msra.mxu0 0
      %826 = vmatprep.mubr.bf16.mxu0 0
      %827 = vmatmul.mubr.bf16.gmra.mrb[0].mxu0 %v792
      %v828 = vpop.f32.mrb[0].mxu0
      %v829 = vadd.f32 0.0, %v828
      %v830 = vpop.f32.mrb[0].mxu0
      %v831 = vpop.f32.mrb[0].mxu0
      %v832 = vadd.f32 0.0, %v831
      %v833 = vpop.f32.mrb[0].mxu0
      %834 = vdwg.mxu0
      %v835 = vmax.f32 %v731, %v829
      %v836 = vmax.f32 %v732, %v832
      %v837 = vld [vmem:[%s4] sm:$0xf]
      %v838 = vld [vmem:[%s4 + $0x4] sm:$0xf]
      %v839 = vld [vmem:[%s4 + $0x8] sm:$0xf]
      %v840 = vld [vmem:[%s4 + $0xc] sm:$0xf]
      %v841 = vld [vmem:[%s4 + $0x10] sm:$0xf]
      %v842 = vld [vmem:[%s4 + $0x14] sm:$0xf]
      %v843 = vld [vmem:[%s4 + $0x18] sm:$0xf]
      %v844 = vld [vmem:[%s4 + $0x1c] sm:$0xf]
      %v847 = vunpack.c.l.b16 %v377
      %v848 = vunpack.c.l.b16 %v378
      %v849 = vpack.c.b16 %v848, %v847
      %v858 = vunpack.c.l.b16 %v837
      %v859 = vunpack.c.l.b16 %v838
      %v860 = vunpack.c.l.b16 %v839
      %v861 = vunpack.c.l.b16 %v840
      %v862 = vunpack.c.l.b16 %v841
      %v863 = vunpack.c.l.b16 %v842
      %v864 = vunpack.c.l.b16 %v843
      %v865 = vunpack.c.l.b16 %v844
      %v866 = vpack.c.b16 %v859, %v858
      %v867 = vpack.c.b16 %v861, %v860
      %v868 = vpack.c.b16 %v863, %v862
      %v869 = vpack.c.b16 %v865, %v864
      %v875 = vsel %vm480, %v849, 0
      %877 = vmatprep.subr.bf16.mxu0 0
      %878 = vmatpush1.bf16.msra.mxu0 %v866
      %879 = vmatprep.subr.bf16.mxu0 0
      %880 = vmatpush1.bf16.msra.mxu0 %v867
      %881 = vmatprep.subr.bf16.mxu0 0
      %882 = vmatpush1.bf16.msra.mxu0 %v868
      %883 = vmatprep.subr.bf16.mxu0 0
      %884 = vmatpush1.bf16.msra.mxu0 %v869
      %885 = vmatprep.subr.bf16.mxu0 0
      %886 = vmatpush1.bf16.msra.mxu0 0
      %887 = vmatprep.subr.bf16.mxu0 0
      %888 = vmatpush1.bf16.msra.mxu0 0
      %889 = vmatprep.subr.bf16.mxu0 0
      %890 = vmatpush1.bf16.msra.mxu0 0
      %891 = vmatprep.subr.bf16.mxu0 0
      %892 = vmatpush1.bf16.msra.mxu0 0
      %893 = vmatprep.subr.bf16.mxu0 0
      %894 = vmatpush1.bf16.msra.mxu0 0
      %895 = vmatprep.subr.bf16.mxu0 0
      %896 = vmatpush1.bf16.msra.mxu0 0
      %897 = vmatprep.subr.bf16.mxu0 0
      %898 = vmatpush1.bf16.msra.mxu0 0
      %899 = vmatprep.subr.bf16.mxu0 0
      %900 = vmatpush1.bf16.msra.mxu0 0
      %901 = vmatprep.subr.bf16.mxu0 0
      %902 = vmatpush1.bf16.msra.mxu0 0
      %903 = vmatprep.subr.bf16.mxu0 0
      %904 = vmatpush1.bf16.msra.mxu0 0
      %905 = vmatprep.subr.bf16.mxu0 0
      %906 = vmatpush1.bf16.msra.mxu0 0
      %907 = vmatprep.subr.bf16.mxu0 0
      %908 = vmatpush1.bf16.msra.mxu0 0
      %909 = vmatprep.mubr.bf16.mxu0 0
      %910 = vmatmul.mubr.bf16.gmra.mrb[0].mxu0 %v875
      %v911 = vpop.f32.mrb[0].mxu0
      %v912 = vadd.f32 0.0, %v911
      %v913 = vpop.f32.mrb[0].mxu0
      %v914 = vpop.f32.mrb[0].mxu0
      %v915 = vadd.f32 0.0, %v914
      %v916 = vpop.f32.mrb[0].mxu0
      %917 = vdwg.mxu0
      %v918 = vadd.f32 %v835, %v912
      %v919 = vadd.f32 %v836, %v915
      %v920 = vld [vmem:[%s5] sm:$0x1]
      %v922 = vlaneseq
      %v923 = vshrl.u32 %v922, 7
      %v924 = vsub.s32 0, %v923
      %v925 = vrot.slane %v920, %v924
      %v927 = vmul.f32 %v918, %v925
      %v928 = vmul.f32 %v919, %v925
      %v929 = vld [vmem:[%s6] sm:$0x1]
      %v931 = vlaneseq
      %v932 = vshrl.u32 %v931, 7
      %v933 = vsub.s32 0, %v932
      %v934 = vrot.slane %v929, %v933
      %v936 = vadd.f32 %v927, %v934
      %v937 = vadd.f32 %v928, %v934
      %v938 = vmul.f32 %v936, 0.2
      %v939 = vmul.f32 %v937, 0.2
      %v940 = vmax.f32 %v936, %v938
      %v941 = vmax.f32 %v937, %v939
      %v942 = vpack.c.bf16 %v941, %v940
      %v944 = vunpack.c.l.b16 %v942
      %v945 = vunpack.c.h.b16 %v942
      %v946 = vpack.c.b16 %v944, %v944
      %v947 = vpack.c.b16 %v945, %v945
      %950 = vst [vmem:[%s372] sm:$0xf] %v946
      %951 = vst [vmem:[%s372 + $0x4] sm:$0xf] %v947
      %s952 = smul.u32 2, %s23
      %p953 = scmp.lt.s32.totalorder %s22, 1
      %s954 = scalar_select %p953, %s22, 1
      %p955 = scmp.lt.s32.totalorder %s952, 1
      %s956 = scalar_select %p955, %s952, 1
      %s957 = smul.addr %s954, 2
      %s958 = sadd.s32 %s956, %s957
      %s959 = smul.addr %s958, 4
      %s960 = scalar_lea.vmem %s7, %s959
      // Predicated region
      $region49: #{dgcnn_forward.14} parent=47 // pred_check
        %p961 = pneg %p216
      $region50: #{dgcnn_forward.14} parent=47 // pred_check_branch
        %963 = sbr.rel (%p961) target = $region52
      $region51: #{dgcnn_forward.14} parent=47 // pred_region
        %s964 = smul.u32 2, %s23
      $region52: #{dgcnn_forward.14} parent=47 // pred_fallthru
        _
    $region48: #{dgcnn_forward.14} parent=5 // pred_fallthru
      _
    %p965 = scmp.le.s32.totalorder 2, %s13
    // Predicated region
    $region53: #{dgcnn_forward.14} parent=5 // pred_check
      %p966 = pneg %p965
    $region54: #{dgcnn_forward.14} parent=5 // pred_check_branch
      %968 = sbr.rel (%p966) target = $region56
    $region55: #{dgcnn_forward.14} parent=5 // pred_region
      %s969 = ssub.s32 %s13, 2
      // Predicated region
      $region57: #{dgcnn_forward.14} parent=55 // pred_check
        %p970 = pneg %p222
      $region58: #{dgcnn_forward.14} parent=55 // pred_check_branch
        %972 = sbr.rel (%p970) target = $region60
      $region59: #{dgcnn_forward.14} parent=55 // pred_region
        %s973 = smul.u32 2, %s25
        %p974 = scmp.lt.s32.totalorder %s24, 1
        %s975 = scalar_select %p974, %s24, 1
        %p976 = scmp.lt.s32.totalorder %s973, 1
        %s977 = scalar_select %p976, %s973, 1
        %s978 = smul.addr %s975, 2
        %s979 = sadd.s32 %s977, %s978
        %s980 = smul.addr %s979, 4
        %s981 = scalar_lea.vmem %s7, %s980
      $region60: #{dgcnn_forward.14} parent=55 // pred_fallthru
        _
    $region56: #{dgcnn_forward.14} parent=5 // pred_fallthru
      _
  $region6: #{dgcnn_forward.14} parent=0 // loop_footer
    %s17 = sadd.s32 1, %s13
  $region7: #{dgcnn_forward.14} parent=0 // loop_footer_branch
    %12 = sbr.rel target = $region3
  $region8: #{dgcnn_forward.14} parent=0 // loop_exit
    _

// kernel: dgcnn_forward.16
$region0: #{dgcnn_forward.16}
  #allocation0 [shape = 'u32[]', space=smem, size = 0x4, offset = 0x4, fixed_abs, tag = 'smem constant byte address 0x4 - core index']
  #allocation1 [shape = 'u32[144,128]{1,0:T(1,128)}', space=vmem, size = 0x12000, scoped, tag = 'internal scratch']
  %s0 = inlined_call_operand.vmem [shape: bf16[2,16,128], index: 0, kind: input, shape index: {}, may-alias: {0,1}]
  %s1 = inlined_call_operand.vmem [shape: bf16[2,16,128], index: 1, kind: input, shape index: {}, may-alias: {0,1}]
  %s2 = inlined_call_operand.vmem [shape: s32[2,16,4], index: 2, kind: input, shape index: {}]
  %s3 = inlined_call_operand.vmem [shape: bf16[128,256], index: 3, kind: input, shape index: {}]
  %s4 = inlined_call_operand.vmem [shape: bf16[128,256], index: 4, kind: input, shape index: {}]
  %s5 = inlined_call_operand.vmem [shape: f32[1,256], index: 5, kind: input, shape index: {}]
  %s6 = inlined_call_operand.vmem [shape: f32[1,256], index: 6, kind: input, shape index: {}]
  %s7 = inlined_call_operand.vmem [shape: bf16[2,16,256], index: 7, kind: output, shape index: {}]
  %s8 = sld [smem:[#allocation0]]
  $region61: #{dgcnn_forward.16} parent=0
    _
  %s10 = ssub.s32 1, %s8
  %s11 = scalar_select 0, %s10, %s8
  loop: start=0, step=1, limit=4
  $region2: #{dgcnn_forward.16} parent=0 // loop_pre_header
    _
  $region3: #{dgcnn_forward.16} parent=0 // loop_header
    %s13 = sphi 0, %s17
    %p14 = scmp.ge.s32.totalorder %s13, 4
    %s20 = sphi 0, %s32
    %s21 = sphi 0, %s28
    %s22 = sphi 0, %s20
    %s23 = sphi 0, %s21
    %s24 = sphi 0, %s22
    %s25 = sphi 0, %s23
    %s35 = sphi 0, %s37
    %s38 = sphi 0, %s35
    %s39 = sphi 0, %s38
    %s55 = sphi 0, %s39
    %s63 = sphi 0, %s65
    %s66 = sphi 0, %s63
    %s67 = sphi 0, %s66
    %s83 = sphi 0, %s67
    %s91 = sphi 0, %s93
    %s94 = sphi 0, %s91
    %s95 = sphi 0, %s94
    %s111 = sphi 0, %s95
    %s115 = sphi 0, %s115
    %s117 = sphi 0, %s115
    %s118 = sphi 0, %s117
    %s132 = sphi 0, %s118
    %s136 = sphi 0, %s136
    %s138 = sphi 0, %s136
    %s139 = sphi 0, %s138
    %s153 = sphi 0, %s139
    %s157 = sphi 0, %s157
    %s159 = sphi 0, %s157
    %s160 = sphi 0, %s159
    %s174 = sphi 0, %s160
    %s178 = sphi 0, %s178
    %s180 = sphi 0, %s178
    %s181 = sphi 0, %s180
    %s195 = sphi 0, %s181
    %s203 = sphi 0, %s205
    %s206 = sphi 0, %s203
    %s207 = sphi 0, %s206
    %s223 = sphi 0, %s207
  $region4: #{dgcnn_forward.16} parent=0 // loop_header_branch
    %16 = sbr.rel (%p14) target = $region8
  $region5: #{dgcnn_forward.16} parent=0 // loop_body
    %s18 = ssub.s32 %s13, 1
    %s19 = ssub.s32 %s13, 2
    %s26 = sadd.s32 1, %s21
    %p27 = scmp.ge.s32.totalorder %s26, 1
    %s28 = scalar_select %p27, 0, %s26
    %s29 = sadd.s32 1, %s20
    %s30 = scalar_select %p27, %s29, %s20
    %p31 = scmp.ge.s32.totalorder %s30, 2
    %s32 = scalar_select %p31, 0, %s30
    %s33 = ssub.s32 %s20, %s32
    %p34 = scmp.eq.s32.totalorder %s33, 0
    %s36 = sadd.s32 %s35, 1
    %s37 = scalar_select %p34, %s35, %s36
    %p40 = pneg %p34
    %p41 = scmp.eq.s32.totalorder %s13, 1
    %p42 = por %p40, %p41
    %p43 = scmp.ne.s32.totalorder %s35, %s38
    %p44 = scmp.eq.s32.totalorder %s13, 0
    %p45 = por %p43, %p44
    %p46 = scmp.ne.s32.totalorder %s35, %s38
    %p47 = scmp.eq.s32.totalorder %s18, 1
    %p48 = por %p46, %p47
    %p49 = scmp.ne.s32.totalorder %s38, %s39
    %p50 = scmp.eq.s32.totalorder %s18, 0
    %p51 = por %p49, %p50
    %p52 = scmp.ne.s32.totalorder %s38, %s39
    %p53 = scmp.eq.s32.totalorder %s19, 1
    %p54 = por %p52, %p53
    %p56 = scmp.ne.s32.totalorder %s39, %s55
    %p57 = scmp.eq.s32.totalorder %s19, 0
    %p58 = por %p56, %p57
    %s59 = ssub.s32 %s20, %s32
    %s60 = ssub.s32 %s21, %s28
    %s61 = sor.u32 %s59, %s60
    %p62 = scmp.eq.s32.totalorder %s61, 0
    %s64 = sadd.s32 %s63, 1
    %s65 = scalar_select %p62, %s63, %s64
    %p68 = pneg %p62
    %p69 = scmp.eq.s32.totalorder %s13, 1
    %p70 = por %p68, %p69
    %p71 = scmp.ne.s32.totalorder %s63, %s66
    %p72 = scmp.eq.s32.totalorder %s13, 0
    %p73 = por %p71, %p72
    %p74 = scmp.ne.s32.totalorder %s63, %s66
    %p75 = scmp.eq.s32.totalorder %s18, 1
    %p76 = por %p74, %p75
    %p77 = scmp.ne.s32.totalorder %s66, %s67
    %p78 = scmp.eq.s32.totalorder %s18, 0
    %p79 = por %p77, %p78
    %p80 = scmp.ne.s32.totalorder %s66, %s67
    %p81 = scmp.eq.s32.totalorder %s19, 1
    %p82 = por %p80, %p81
    %p84 = scmp.ne.s32.totalorder %s67, %s83
    %p85 = scmp.eq.s32.totalorder %s19, 0
    %p86 = por %p84, %p85
    %s87 = ssub.s32 %s20, %s32
    %s88 = ssub.s32 %s21, %s28
    %s89 = sor.u32 %s87, %s88
    %p90 = scmp.eq.s32.totalorder %s89, 0
    %s92 = sadd.s32 %s91, 1
    %s93 = scalar_select %p90, %s91, %s92
    %p96 = pneg %p90
    %p97 = scmp.eq.s32.totalorder %s13, 1
    %p98 = por %p96, %p97
    %p99 = scmp.ne.s32.totalorder %s91, %s94
    %p100 = scmp.eq.s32.totalorder %s13, 0
    %p101 = por %p99, %p100
    %p102 = scmp.ne.s32.totalorder %s91, %s94
    %p103 = scmp.eq.s32.totalorder %s18, 1
    %p104 = por %p102, %p103
    %p105 = scmp.ne.s32.totalorder %s94, %s95
    %p106 = scmp.eq.s32.totalorder %s18, 0
    %p107 = por %p105, %p106
    %p108 = scmp.ne.s32.totalorder %s94, %s95
    %p109 = scmp.eq.s32.totalorder %s19, 1
    %p110 = por %p108, %p109
    %p112 = scmp.ne.s32.totalorder %s95, %s111
    %p113 = scmp.eq.s32.totalorder %s19, 0
    %p114 = por %p112, %p113
    %s116 = sadd.s32 %s115, 1
    %p119 = scmp.eq.s32.totalorder %s13, 1
    %p120 = scmp.ne.s32.totalorder %s115, %s117
    %p121 = scmp.eq.s32.totalorder %s13, 0
    %p122 = por %p120, %p121
    %p123 = scmp.ne.s32.totalorder %s115, %s117
    %p124 = scmp.eq.s32.totalorder %s18, 1
    %p125 = por %p123, %p124
    %p126 = scmp.ne.s32.totalorder %s117, %s118
    %p127 = scmp.eq.s32.totalorder %s18, 0
    %p128 = por %p126, %p127
    %p129 = scmp.ne.s32.totalorder %s117, %s118
    %p130 = scmp.eq.s32.totalorder %s19, 1
    %p131 = por %p129, %p130
    %p133 = scmp.ne.s32.totalorder %s118, %s132
    %p134 = scmp.eq.s32.totalorder %s19, 0
    %p135 = por %p133, %p134
    %s137 = sadd.s32 %s136, 1
    %p140 = scmp.eq.s32.totalorder %s13, 1
    %p141 = scmp.ne.s32.totalorder %s136, %s138
    %p142 = scmp.eq.s32.totalorder %s13, 0
    %p143 = por %p141, %p142
    %p144 = scmp.ne.s32.totalorder %s136, %s138
    %p145 = scmp.eq.s32.totalorder %s18, 1
    %p146 = por %p144, %p145
    %p147 = scmp.ne.s32.totalorder %s138, %s139
    %p148 = scmp.eq.s32.totalorder %s18, 0
    %p149 = por %p147, %p148
    %p150 = scmp.ne.s32.totalorder %s138, %s139
    %p151 = scmp.eq.s32.totalorder %s19, 1
    %p152 = por %p150, %p151
    %p154 = scmp.ne.s32.totalorder %s139, %s153
    %p155 = scmp.eq.s32.totalorder %s19, 0
    %p156 = por %p154, %p155
    %s158 = sadd.s32 %s157, 1
    %p161 = scmp.eq.s32.totalorder %s13, 1
    %p162 = scmp.ne.s32.totalorder %s157, %s159
    %p163 = scmp.eq.s32.totalorder %s13, 0
    %p164 = por %p162, %p163
    %p165 = scmp.ne.s32.totalorder %s157, %s159
    %p166 = scmp.eq.s32.totalorder %s18, 1
    %p167 = por %p165, %p166
    %p168 = scmp.ne.s32.totalorder %s159, %s160
    %p169 = scmp.eq.s32.totalorder %s18, 0
    %p170 = por %p168, %p169
    %p171 = scmp.ne.s32.totalorder %s159, %s160
    %p172 = scmp.eq.s32.totalorder %s19, 1
    %p173 = por %p171, %p172
    %p175 = scmp.ne.s32.totalorder %s160, %s174
    %p176 = scmp.eq.s32.totalorder %s19, 0
    %p177 = por %p175, %p176
    %s179 = sadd.s32 %s178, 1
    %p182 = scmp.eq.s32.totalorder %s13, 1
    %p183 = scmp.ne.s32.totalorder %s178, %s180
    %p184 = scmp.eq.s32.totalorder %s13, 0
    %p185 = por %p183, %p184
    %p186 = scmp.ne.s32.totalorder %s178, %s180
    %p187 = scmp.eq.s32.totalorder %s18, 1
    %p188 = por %p186, %p187
    %p189 = scmp.ne.s32.totalorder %s180, %s181
    %p190 = scmp.eq.s32.totalorder %s18, 0
    %p191 = por %p189, %p190
    %p192 = scmp.ne.s32.totalorder %s180, %s181
    %p193 = scmp.eq.s32.totalorder %s19, 1
    %p194 = por %p192, %p193
    %p196 = scmp.ne.s32.totalorder %s181, %s195
    %p197 = scmp.eq.s32.totalorder %s19, 0
    %p198 = por %p196, %p197
    %s199 = ssub.s32 %s20, %s32
    %s200 = ssub.s32 %s21, %s28
    %s201 = sor.u32 %s199, %s200
    %p202 = scmp.eq.s32.totalorder %s201, 0
    %s204 = sadd.s32 %s203, 1
    %s205 = scalar_select %p202, %s203, %s204
    %p208 = pneg %p202
    %p209 = scmp.eq.s32.totalorder %s13, 1
    %p210 = por %p208, %p209
    %p211 = scmp.ne.s32.totalorder %s203, %s206
    %p212 = scmp.eq.s32.totalorder %s13, 0
    %p213 = por %p211, %p212
    %p214 = scmp.ne.s32.totalorder %s203, %s206
    %p215 = scmp.eq.s32.totalorder %s18, 1
    %p216 = por %p214, %p215
    %p217 = scmp.ne.s32.totalorder %s206, %s207
    %p218 = scmp.eq.s32.totalorder %s18, 0
    %p219 = por %p217, %p218
    %p220 = scmp.ne.s32.totalorder %s206, %s207
    %p221 = scmp.eq.s32.totalorder %s19, 1
    %p222 = por %p220, %p221
    %p224 = scmp.ne.s32.totalorder %s207, %s223
    %p225 = scmp.eq.s32.totalorder %s19, 0
    %p226 = por %p224, %p225
    %p227 = scmp.le.s32.totalorder 1, %s13
    %p228 = scmp.lt.s32.totalorder %s13, 3
    %p229 = pnand %p227, %p228
    %p230 = pneg %p229
    // Predicated region
    $region9: #{dgcnn_forward.16} parent=5 // pred_check
      _
    $region10: #{dgcnn_forward.16} parent=5 // pred_check_branch
      %232 = sbr.rel (%p229) target = $region12
    $region11: #{dgcnn_forward.16} parent=5 // pred_region
      %s233 = ssub.s32 %s13, 1
      // Predicated region
      $region13: #{dgcnn_forward.16} parent=11 // pred_check
        %p234 = pneg %p128
      $region14: #{dgcnn_forward.16} parent=11 // pred_check_branch
        %236 = sbr.rel (%p234) target = $region16
      $region15: #{dgcnn_forward.16} parent=11 // pred_region
        _
      $region16: #{dgcnn_forward.16} parent=11 // pred_fallthru
        _
      // Predicated region
      $region17: #{dgcnn_forward.16} parent=11 // pred_check
        %p237 = pneg %p149
      $region18: #{dgcnn_forward.16} parent=11 // pred_check_branch
        %239 = sbr.rel (%p237) target = $region20
      $region19: #{dgcnn_forward.16} parent=11 // pred_region
        _
      $region20: #{dgcnn_forward.16} parent=11 // pred_fallthru
        _
      // Predicated region
      $region21: #{dgcnn_forward.16} parent=11 // pred_check
        %p240 = pneg %p170
      $region22: #{dgcnn_forward.16} parent=11 // pred_check_branch
        %242 = sbr.rel (%p240) target = $region24
      $region23: #{dgcnn_forward.16} parent=11 // pred_region
        _
      $region24: #{dgcnn_forward.16} parent=11 // pred_fallthru
        _
      // Predicated region
      $region25: #{dgcnn_forward.16} parent=11 // pred_check
        %p243 = pneg %p191
      $region26: #{dgcnn_forward.16} parent=11 // pred_check_branch
        %245 = sbr.rel (%p243) target = $region28
      $region27: #{dgcnn_forward.16} parent=11 // pred_region
        _
      $region28: #{dgcnn_forward.16} parent=11 // pred_fallthru
        _
    $region12: #{dgcnn_forward.16} parent=5 // pred_fallthru
      _
    %p246 = scmp.lt.s32.totalorder %s13, 2
    // Predicated region
    $region29: #{dgcnn_forward.16} parent=5 // pred_check
      %p247 = pneg %p246
    $region30: #{dgcnn_forward.16} parent=5 // pred_check_branch
      %249 = sbr.rel (%p247) target = $region32
    $region31: #{dgcnn_forward.16} parent=5 // pred_region
      // Predicated region
      $region33: #{dgcnn_forward.16} parent=31 // pred_check
        %p250 = pneg %p45
      $region34: #{dgcnn_forward.16} parent=31 // pred_check_branch
        %252 = sbr.rel (%p250) target = $region36
      $region35: #{dgcnn_forward.16} parent=31 // pred_region
        %p253 = scmp.lt.s32.totalorder %s20, 1
        %s254 = scalar_select %p253, %s20, 1
        %s255 = smul.addr %s254, 2
        %s256 = smul.addr %s255, 4
        %s257 = scalar_lea.vmem %s0, %s256
      $region36: #{dgcnn_forward.16} parent=31 // pred_fallthru
        _
      // Predicated region
      $region37: #{dgcnn_forward.16} parent=31 // pred_check
        %p258 = pneg %p73
      $region38: #{dgcnn_forward.16} parent=31 // pred_check_branch
        %260 = sbr.rel (%p258) target = $region40
      $region39: #{dgcnn_forward.16} parent=31 // pred_region
        %s261 = smul.u32 2, %s21
        %p262 = scmp.lt.s32.totalorder %s20, 1
        %s263 = scalar_select %p262, %s20, 1
        %p264 = scmp.lt.s32.totalorder %s261, 1
        %s265 = scalar_select %p264, %s261, 1
        %s266 = smul.addr %s263, 2
        %s267 = sadd.s32 %s265, %s266
        %s268 = smul.addr %s267, 4
        %s269 = scalar_lea.vmem %s1, %s268
        %s270 = smul.u32 2, %s21
      $region40: #{dgcnn_forward.16} parent=31 // pred_fallthru
        _
      // Predicated region
      $region41: #{dgcnn_forward.16} parent=31 // pred_check
        %p271 = pneg %p101
      $region42: #{dgcnn_forward.16} parent=31 // pred_check_branch
        %273 = sbr.rel (%p271) target = $region44
      $region43: #{dgcnn_forward.16} parent=31 // pred_region
        %s274 = smul.u32 2, %s21
        %p275 = scmp.lt.s32.totalorder %s20, 1
        %s276 = scalar_select %p275, %s20, 1
        %p277 = scmp.lt.s32.totalorder %s274, 1
        %s278 = scalar_select %p277, %s274, 1
        %s279 = smul.addr %s276, 2
        %s280 = sadd.s32 %s278, %s279
        %s281 = smul.addr %s280, 8
        %s282 = scalar_lea.vmem %s2, %s281
        %s283 = smul.u32 2, %s21
      $region44: #{dgcnn_forward.16} parent=31 // pred_fallthru
        _
    $region32: #{dgcnn_forward.16} parent=5 // pred_fallthru
      _
    %p284 = scmp.le.s32.totalorder 1, %s13
    %p285 = scmp.lt.s32.totalorder %s13, 3
    %p286 = pnand %p284, %p285
    %p287 = pneg %p286
    // Predicated region
    $region45: #{dgcnn_forward.16} parent=5 // pred_check
      _
    $region46: #{dgcnn_forward.16} parent=5 // pred_check_branch
      %289 = sbr.rel (%p286) target = $region48
    $region47: #{dgcnn_forward.16} parent=5 // pred_region
      %s290 = ssub.s32 %s13, 1
      %p291 = scmp.lt.s32.totalorder %s22, 1
      %s292 = scalar_select %p291, %s22, 1
      %s293 = smul.addr %s292, 2
      %s294 = smul.addr %s293, 4
      %s295 = scalar_lea.vmem %s0, %s294
      %p296 = pneg %p51
      %p297 = pneg %p48
      %s298 = smul.u32 2, %s23
      %p299 = scmp.lt.s32.totalorder %s22, 1
      %s300 = scalar_select %p299, %s22, 1
      %p301 = scmp.lt.s32.totalorder %s298, 1
      %s302 = scalar_select %p301, %s298, 1
      %s303 = smul.addr %s300, 2
      %s304 = sadd.s32 %s302, %s303
      %s305 = smul.addr %s304, 4
      %s306 = scalar_lea.vmem %s1, %s305
      %p307 = pneg %p79
      %p308 = pneg %p76
      %s309 = smul.u32 2, %s23
      %p310 = scmp.lt.s32.totalorder %s22, 1
      %s311 = scalar_select %p310, %s22, 1
      %p312 = scmp.lt.s32.totalorder %s309, 1
      %s313 = scalar_select %p312, %s309, 1
      %s314 = smul.addr %s311, 2
      %s315 = sadd.s32 %s313, %s314
      %s316 = smul.addr %s315, 8
      %s317 = scalar_lea.vmem %s2, %s316
      %p318 = pneg %p107
      %p319 = pneg %p104
      %p320 = pneg %p128
      %p321 = pneg %p125
      %p322 = pneg %p149
      %p323 = pneg %p146
      %p324 = pneg %p170
      %p325 = pneg %p167
      %p326 = pneg %p191
      %p327 = pneg %p188
      %p328 = pneg %p219
      %p329 = pneg %p216
      %s330 = smul.u32 2, %s23
      %p331 = scmp.lt.s32.totalorder %s22, 1
      %s332 = scalar_select %p331, %s22, 1
      %p333 = scmp.lt.s32.totalorder %s330, 1
      %s334 = scalar_select %p333, %s330, 1
      %s335 = smul.addr %s334, 2
      %s336 = smul.addr %s332, 4
      %s337 = sadd.s32 %s335, %s336
      %s338 = smul.addr %s337, 4
      %s339 = scalar_lea.vmem %s7, %s338
      %p340 = scmp.lt.s32.totalorder %s22, 1
      %s341 = scalar_select %p340, %s22, 1
      %s342 = smul.addr %s341, 2
      %s343 = smul.addr %s342, 4
      %s344 = scalar_lea.vmem %s0, %s343
      %s345 = smul.u32 2, %s23
      %p346 = scmp.lt.s32.totalorder %s22, 1
      %s347 = scalar_select %p346, %s22, 1
      %p348 = scmp.lt.s32.totalorder %s345, 1
      %s349 = scalar_select %p348, %s345, 1
      %s350 = smul.addr %s347, 2
      %s351 = sadd.s32 %s349, %s350
      %s352 = smul.addr %s351, 4
      %s353 = scalar_lea.vmem %s1, %s352
      %s354 = smul.u32 2, %s23
      %s355 = smul.u32 2, %s23
      %p356 = scmp.lt.s32.totalorder %s22, 1
      %s357 = scalar_select %p356, %s22, 1
      %p358 = scmp.lt.s32.totalorder %s355, 1
      %s359 = scalar_select %p358, %s355, 1
      %s360 = smul.addr %s357, 2
      %s361 = sadd.s32 %s359, %s360
      %s362 = smul.addr %s361, 8
      %s363 = scalar_lea.vmem %s2, %s362
      %s364 = smul.u32 2, %s23
      %s365 = smul.u32 2, %s23
      %p366 = scmp.lt.s32.totalorder %s22, 1
      %s367 = scalar_select %p366, %s22, 1
      %p368 = scmp.lt.s32.totalorder %s365, 1
      %s369 = scalar_select %p368, %s365, 1
      %s370 = smul.addr %s369, 2
      %s371 = smul.addr %s367, 4
      %s372 = sadd.s32 %s370, %s371
      %s373 = smul.addr %s372, 4
      %s374 = scalar_lea.vmem %s7, %s373
      %s375 = smul.u32 2, %s23
      %v377 = vld [vmem:[%s344] sm:$0xf]
      %v378 = vld [vmem:[%s344 + $0x4] sm:$0xf]
      %v379 = vld [vmem:[%s353] sm:$0xf]
      %v380 = vld [vmem:[%s353 + $0x4] sm:$0xf]
      %v381 = vld [vmem:[%s363] sm:$0xff]
      %v382 = vld [vmem:[%s363 + $0x8] sm:$0xff]
      %v383 = vlaneseq
      %v384 = vand.u32 %v383, 127
      %385 = vset.pattern.permute.xlu0 0
      %386 = vperm.xlu0 %385, %v381
      %v387 = vpop.permute.xlu0 %386
      %388 = vset.pattern.permute.xlu0 0
      %389 = vperm.xlu0 %388, %v382
      %v390 = vpop.permute.xlu0 %389
      %vm391 = vcmp.eq.s32.totalorder %v384, %v387
      %vm392 = vcmp.eq.s32.totalorder %v384, %v390
      %v393 = vsel %vm391, 1, 0
      %v394 = vsel %vm392, 1, 0
      %v395 = vcvt.s32.f32 %v393
      %v396 = vcvt.s32.f32 %v394
      %v397 = vpack.c.bf16 %v396, %v395
      %v400 = vunpack.c.l.b16 %v377
      %v401 = vunpack.c.l.b16 %v378
      %v402 = vpack.c.b16 %v401, %v400
      %vm404 = vcmask 130048
      %v406 = vsel %vm404, %v397, 0
      %408 = vmatprep.subr.bf16.mxu0 0
      %409 = vmatpush1.bf16.msra.mxu0 %v402
      %410 = vmatprep.subr.bf16.mxu0 0
      %411 = vmatpush1.bf16.msra.mxu0 0
      %412 = vmatprep.subr.bf16.mxu0 0
      %413 = vmatpush1.bf16.msra.mxu0 0
      %414 = vmatprep.subr.bf16.mxu0 0
      %415 = vmatpush1.bf16.msra.mxu0 0
      %416 = vmatprep.subr.bf16.mxu0 0
      %417 = vmatpush1.bf16.msra.mxu0 0
      %418 = vmatprep.subr.bf16.mxu0 0
      %419 = vmatpush1.bf16.msra.mxu0 0
      %420 = vmatprep.subr.bf16.mxu0 0
      %421 = vmatpush1.bf16.msra.mxu0 0
      %422 = vmatprep.subr.bf16.mxu0 0
      %423 = vmatpush1.bf16.msra.mxu0 0
      %424 = vmatprep.subr.bf16.mxu0 0
      %425 = vmatpush1.bf16.msra.mxu0 0
      %426 = vmatprep.subr.bf16.mxu0 0
      %427 = vmatpush1.bf16.msra.mxu0 0
      %428 = vmatprep.subr.bf16.mxu0 0
      %429 = vmatpush1.bf16.msra.mxu0 0
      %430 = vmatprep.subr.bf16.mxu0 0
      %431 = vmatpush1.bf16.msra.mxu0 0
      %432 = vmatprep.subr.bf16.mxu0 0
      %433 = vmatpush1.bf16.msra.mxu0 0
      %434 = vmatprep.subr.bf16.mxu0 0
      %435 = vmatpush1.bf16.msra.mxu0 0
      %436 = vmatprep.subr.bf16.mxu0 0
      %437 = vmatpush1.bf16.msra.mxu0 0
      %438 = vmatprep.subr.bf16.mxu0 0
      %439 = vmatpush1.bf16.msra.mxu0 0
      %440 = vmatprep.mubr.bf16.mxu0 0
      %441 = vmatmul.mubr.bf16.gmra.mrb[0].mxu0 %v406
      %v442 = vpop.f32.mrb[0].mxu0
      %v443 = vadd.f32 0.0, %v442
      %v444 = vpop.f32.mrb[0].mxu0
      %v445 = vpop.f32.mrb[0].mxu0
      %v446 = vadd.f32 0.0, %v445
      %v447 = vpop.f32.mrb[0].mxu0
      %448 = vdwg.mxu0
      %v449 = vpack.c.bf16 %v446, %v443
      %v450 = vld [vmem:[%s3] sm:$0xff]
      %v451 = vld [vmem:[%s3 + $0x8] sm:$0xff]
      %v452 = vld [vmem:[%s3 + $0x10] sm:$0xff]
      %v453 = vld [vmem:[%s3 + $0x18] sm:$0xff]
      %v454 = vld [vmem:[%s3 + $0x20] sm:$0xff]
      %v455 = vld [vmem:[%s3 + $0x28] sm:$0xff]
      %v456 = vld [vmem:[%s3 + $0x30] sm:$0xff]
      %v457 = vld [vmem:[%s3 + $0x38] sm:$0xff]
      %v458 = vld [vmem:[%s3 + $0x40] sm:$0xff]
      %v459 = vld [vmem:[%s3 + $0x48] sm:$0xff]
      %v460 = vld [vmem:[%s3 + $0x50] sm:$0xff]
      %v461 = vld [vmem:[%s3 + $0x58] sm:$0xff]
      %v462 = vld [vmem:[%s3 + $0x60] sm:$0xff]
      %v463 = vld [vmem:[%s3 + $0x68] sm:$0xff]
      %v464 = vld [vmem:[%s3 + $0x70] sm:$0xff]
      %v465 = vld [vmem:[%s3 + $0x78] sm:$0xff]
      %v482 = vunpack.c.l.b16 %v450
      %v483 = vunpack.c.h.b16 %v450
      %v484 = vunpack.c.l.b16 %v451
      %v485 = vunpack.c.h.b16 %v451
      %v486 = vunpack.c.l.b16 %v452
      %v487 = vunpack.c.h.b16 %v452
      %v488 = vunpack.c.l.b16 %v453
      %v489 = vunpack.c.h.b16 %v453
      %v490 = vunpack.c.l.b16 %v454
      %v491 = vunpack.c.h.b16 %v454
      %v492 = vunpack.c.l.b16 %v455
      %v493 = vunpack.c.h.b16 %v455
      %v494 = vunpack.c.l.b16 %v456
      %v495 = vunpack.c.h.b16 %v456
      %v496 = vunpack.c.l.b16 %v457
      %v497 = vunpack.c.h.b16 %v457
      %v498 = vunpack.c.l.b16 %v458
      %v499 = vunpack.c.h.b16 %v458
      %v500 = vunpack.c.l.b16 %v459
      %v501 = vunpack.c.h.b16 %v459
      %v502 = vunpack.c.l.b16 %v460
      %v503 = vunpack.c.h.b16 %v460
      %v504 = vunpack.c.l.b16 %v461
      %v505 = vunpack.c.h.b16 %v461
      %v506 = vunpack.c.l.b16 %v462
      %v507 = vunpack.c.h.b16 %v462
      %v508 = vunpack.c.l.b16 %v463
      %v509 = vunpack.c.h.b16 %v463
      %v510 = vunpack.c.l.b16 %v464
      %v511 = vunpack.c.h.b16 %v464
      %v512 = vunpack.c.l.b16 %v465
      %v513 = vunpack.c.h.b16 %v465
      %v514 = vpack.c.b16 %v484, %v482
      %v515 = vpack.c.b16 %v485, %v483
      %v516 = vpack.c.b16 %v488, %v486
      %v517 = vpack.c.b16 %v489, %v487
      %v518 = vpack.c.b16 %v492, %v490
      %v519 = vpack.c.b16 %v493, %v491
      %v520 = vpack.c.b16 %v496, %v494
      %v521 = vpack.c.b16 %v497, %v495
      %v522 = vpack.c.b16 %v500, %v498
      %v523 = vpack.c.b16 %v501, %v499
      %v524 = vpack.c.b16 %v504, %v502
      %v525 = vpack.c.b16 %v505, %v503
      %v526 = vpack.c.b16 %v508, %v506
      %v527 = vpack.c.b16 %v509, %v507
      %v528 = vpack.c.b16 %v512, %v510
      %v529 = vpack.c.b16 %v513, %v511
      %546 = vmatprep.subr.bf16.mxu0 %v515
      %547 = vmatpush1.bf16.msra.mxu0 %v514
      %548 = vmatprep.subr.bf16.mxu0 %v517
      %549 = vmatpush1.bf16.msra.mxu0 %v516
      %550 = vmatprep.subr.bf16.mxu0 %v519
      %551 = vmatpush1.bf16.msra.mxu0 %v518
      %552 = vmatprep.subr.bf16.mxu0 %v521
      %553 = vmatpush1.bf16.msra.mxu0 %v520
      %554 = vmatprep.subr.bf16.mxu0 %v523
      %555 = vmatpush1.bf16.msra.mxu0 %v522
      %556 = vmatprep.subr.bf16.mxu0 %v525
      %557 = vmatpush1.bf16.msra.mxu0 %v524
      %558 = vmatprep.subr.bf16.mxu0 %v527
      %559 = vmatpush1.bf16.msra.mxu0 %v526
      %560 = vmatprep.subr.bf16.mxu0 %v529
      %561 = vmatpush1.bf16.msra.mxu0 %v528
      %562 = vmatprep.subr.bf16.mxu0 0
      %563 = vmatpush1.bf16.msra.mxu0 0
      %564 = vmatprep.subr.bf16.mxu0 0
      %565 = vmatpush1.bf16.msra.mxu0 0
      %566 = vmatprep.subr.bf16.mxu0 0
      %567 = vmatpush1.bf16.msra.mxu0 0
      %568 = vmatprep.subr.bf16.mxu0 0
      %569 = vmatpush1.bf16.msra.mxu0 0
      %570 = vmatprep.subr.bf16.mxu0 0
      %571 = vmatpush1.bf16.msra.mxu0 0
      %572 = vmatprep.subr.bf16.mxu0 0
      %573 = vmatpush1.bf16.msra.mxu0 0
      %574 = vmatprep.subr.bf16.mxu0 0
      %575 = vmatpush1.bf16.msra.mxu0 0
      %576 = vmatprep.subr.bf16.mxu0 0
      %577 = vmatpush1.bf16.msra.mxu0 0
      %578 = vmatprep.mubr.bf16.mxu0 0
      %579 = vmatmul.mubr.bf16.gmra.mrb[0].mxu0 %v449
      %v580 = vpop.f32.mrb[0].mxu0
      %v581 = vadd.f32 0.0, %v580
      %v582 = vpop.f32.mrb[0].mxu0
      %v583 = vadd.f32 0.0, %v582
      %v584 = vpop.f32.mrb[0].mxu0
      %v585 = vadd.f32 0.0, %v584
      %v586 = vpop.f32.mrb[0].mxu0
      %v587 = vadd.f32 0.0, %v586
      %588 = vdwg.mxu0
      %589 = vset.pattern.permute.xlu0 1
      %590 = vperm.xlu0 %589, %v381
      %v591 = vpop.permute.xlu0 %590
      %592 = vset.pattern.permute.xlu0 1
      %593 = vperm.xlu0 %592, %v382
      %v594 = vpop.permute.xlu0 %593
      %vm595 = vcmp.eq.s32.totalorder %v384, %v591
      %vm596 = vcmp.eq.s32.totalorder %v384, %v594
      %v597 = vsel %vm595, 1, 0
      %v598 = vsel %vm596, 1, 0
      %v599 = vcvt.s32.f32 %v597
      %v600 = vcvt.s32.f32 %v598
      %v601 = vpack.c.bf16 %v600, %v599
      %v603 = vsel %vm404, %v601, 0
      %605 = vmatprep.subr.bf16.mxu0 0
      %606 = vmatpush1.bf16.msra.mxu0 %v402
      %607 = vmatprep.subr.bf16.mxu0 0
      %608 = vmatpush1.bf16.msra.mxu0 0
      %609 = vmatprep.subr.bf16.mxu0 0
      %610 = vmatpush1.bf16.msra.mxu0 0
      %611 = vmatprep.subr.bf16.mxu0 0
      %612 = vmatpush1.bf16.msra.mxu0 0
      %613 = vmatprep.subr.bf16.mxu0 0
      %614 = vmatpush1.bf16.msra.mxu0 0
      %615 = vmatprep.subr.bf16.mxu0 0
      %616 = vmatpush1.bf16.msra.mxu0 0
      %617 = vmatprep.subr.bf16.mxu0 0
      %618 = vmatpush1.bf16.msra.mxu0 0
      %619 = vmatprep.subr.bf16.mxu0 0
      %620 = vmatpush1.bf16.msra.mxu0 0
      %621 = vmatprep.subr.bf16.mxu0 0
      %622 = vmatpush1.bf16.msra.mxu0 0
      %623 = vmatprep.subr.bf16.mxu0 0
      %624 = vmatpush1.bf16.msra.mxu0 0
      %625 = vmatprep.subr.bf16.mxu0 0
      %626 = vmatpush1.bf16.msra.mxu0 0
      %627 = vmatprep.subr.bf16.mxu0 0
      %628 = vmatpush1.bf16.msra.mxu0 0
      %629 = vmatprep.subr.bf16.mxu0 0
      %630 = vmatpush1.bf16.msra.mxu0 0
      %631 = vmatprep.subr.bf16.mxu0 0
      %632 = vmatpush1.bf16.msra.mxu0 0
      %633 = vmatprep.subr.bf16.mxu0 0
      %634 = vmatpush1.bf16.msra.mxu0 0
      %635 = vmatprep.subr.bf16.mxu0 0
      %636 = vmatpush1.bf16.msra.mxu0 0
      %637 = vmatprep.mubr.bf16.mxu0 0
      %638 = vmatmul.mubr.bf16.gmra.mrb[0].mxu0 %v603
      %v639 = vpop.f32.mrb[0].mxu0
      %v640 = vadd.f32 0.0, %v639
      %v641 = vpop.f32.mrb[0].mxu0
      %v642 = vpop.f32.mrb[0].mxu0
      %v643 = vadd.f32 0.0, %v642
      %v644 = vpop.f32.mrb[0].mxu0
      %645 = vdwg.mxu0
      %v646 = vpack.c.bf16 %v643, %v640
      %647 = vmatprep.subr.bf16.mxu0 %v515
      %648 = vmatpush1.bf16.msra.mxu0 %v514
      %649 = vmatprep.subr.bf16.mxu0 %v517
      %650 = vmatpush1.bf16.msra.mxu0 %v516
      %651 = vmatprep.subr.bf16.mxu0 %v519
      %652 = vmatpush1.bf16.msra.mxu0 %v518
      %653 = vmatprep.subr.bf16.mxu0 %v521
      %654 = vmatpush1.bf16.msra.mxu0 %v520
      %655 = vmatprep.subr.bf16.mxu0 %v523
      %656 = vmatpush1.bf16.msra.mxu0 %v522
      %657 = vmatprep.subr.bf16.mxu0 %v525
      %658 = vmatpush1.bf16.msra.mxu0 %v524
      %659 = vmatprep.subr.bf16.mxu0 %v527
      %660 = vmatpush1.bf16.msra.mxu0 %v526
      %661 = vmatprep.subr.bf16.mxu0 %v529
      %662 = vmatpush1.bf16.msra.mxu0 %v528
      %663 = vmatprep.subr.bf16.mxu0 0
      %664 = vmatpush1.bf16.msra.mxu0 0
      %665 = vmatprep.subr.bf16.mxu0 0
      %666 = vmatpush1.bf16.msra.mxu0 0
      %667 = vmatprep.subr.bf16.mxu0 0
      %668 = vmatpush1.bf16.msra.mxu0 0
      %669 = vmatprep.subr.bf16.mxu0 0
      %670 = vmatpush1.bf16.msra.mxu0 0
      %671 = vmatprep.subr.bf16.mxu0 0
      %672 = vmatpush1.bf16.msra.mxu0 0
      %673 = vmatprep.subr.bf16.mxu0 0
      %674 = vmatpush1.bf16.msra.mxu0 0
      %675 = vmatprep.subr.bf16.mxu0 0
      %676 = vmatpush1.bf16.msra.mxu0 0
      %677 = vmatprep.subr.bf16.mxu0 0
      %678 = vmatpush1.bf16.msra.mxu0 0
      %679 = vmatprep.mubr.bf16.mxu0 0
      %680 = vmatmul.mubr.bf16.gmra.mrb[0].mxu0 %v646
      %v681 = vpop.f32.mrb[0].mxu0
      %v682 = vadd.f32 0.0, %v681
      %v683 = vpop.f32.mrb[0].mxu0
      %v684 = vadd.f32 0.0, %v683
      %v685 = vpop.f32.mrb[0].mxu0
      %v686 = vadd.f32 0.0, %v685
      %v687 = vpop.f32.mrb[0].mxu0
      %v688 = vadd.f32 0.0, %v687
      %689 = vdwg.mxu0
      %v690 = vmax.f32 %v581, %v682
      %v691 = vmax.f32 %v583, %v684
      %v692 = vmax.f32 %v585, %v686
      %v693 = vmax.f32 %v587, %v688
      %694 = vset.pattern.permute.xlu0 2
      %695 = vperm.xlu0 %694, %v381
      %v696 = vpop.permute.xlu0 %695
      %697 = vset.pattern.permute.xlu0 2
      %698 = vperm.xlu0 %697, %v382
      %v699 = vpop.permute.xlu0 %698
      %vm700 = vcmp.eq.s32.totalorder %v384, %v696
      %vm701 = vcmp.eq.s32.totalorder %v384, %v699
      %v702 = vsel %vm700, 1, 0
      %v703 = vsel %vm701, 1, 0
      %v704 = vcvt.s32.f32 %v702
      %v705 = vcvt.s32.f32 %v703
      %v706 = vpack.c.bf16 %v705, %v704
      %v708 = vsel %vm404, %v706, 0
      %710 = vmatprep.subr.bf16.mxu0 0
      %711 = vmatpush1.bf16.msra.mxu0 %v402
      %712 = vmatprep.subr.bf16.mxu0 0
      %713 = vmatpush1.bf16.msra.mxu0 0
      %714 = vmatprep.subr.bf16.mxu0 0
      %715 = vmatpush1.bf16.msra.mxu0 0
      %716 = vmatprep.subr.bf16.mxu0 0
      %717 = vmatpush1.bf16.msra.mxu0 0
      %718 = vmatprep.subr.bf16.mxu0 0
      %719 = vmatpush1.bf16.msra.mxu0 0
      %720 = vmatprep.subr.bf16.mxu0 0
      %721 = vmatpush1.bf16.msra.mxu0 0
      %722 = vmatprep.subr.bf16.mxu0 0
      %723 = vmatpush1.bf16.msra.mxu0 0
      %724 = vmatprep.subr.bf16.mxu0 0
      %725 = vmatpush1.bf16.msra.mxu0 0
      %726 = vmatprep.subr.bf16.mxu0 0
      %727 = vmatpush1.bf16.msra.mxu0 0
      %728 = vmatprep.subr.bf16.mxu0 0
      %729 = vmatpush1.bf16.msra.mxu0 0
      %730 = vmatprep.subr.bf16.mxu0 0
      %731 = vmatpush1.bf16.msra.mxu0 0
      %732 = vmatprep.subr.bf16.mxu0 0
      %733 = vmatpush1.bf16.msra.mxu0 0
      %734 = vmatprep.subr.bf16.mxu0 0
      %735 = vmatpush1.bf16.msra.mxu0 0
      %736 = vmatprep.subr.bf16.mxu0 0
      %737 = vmatpush1.bf16.msra.mxu0 0
      %738 = vmatprep.subr.bf16.mxu0 0
      %739 = vmatpush1.bf16.msra.mxu0 0
      %740 = vmatprep.subr.bf16.mxu0 0
      %741 = vmatpush1.bf16.msra.mxu0 0
      %742 = vmatprep.mubr.bf16.mxu0 0
      %743 = vmatmul.mubr.bf16.gmra.mrb[0].mxu0 %v708
      %v744 = vpop.f32.mrb[0].mxu0
      %v745 = vadd.f32 0.0, %v744
      %v746 = vpop.f32.mrb[0].mxu0
      %v747 = vpop.f32.mrb[0].mxu0
      %v748 = vadd.f32 0.0, %v747
      %v749 = vpop.f32.mrb[0].mxu0
      %750 = vdwg.mxu0
      %v751 = vpack.c.bf16 %v748, %v745
      %752 = vmatprep.subr.bf16.mxu0 %v515
      %753 = vmatpush1.bf16.msra.mxu0 %v514
      %754 = vmatprep.subr.bf16.mxu0 %v517
      %755 = vmatpush1.bf16.msra.mxu0 %v516
      %756 = vmatprep.subr.bf16.mxu0 %v519
      %757 = vmatpush1.bf16.msra.mxu0 %v518
      %758 = vmatprep.subr.bf16.mxu0 %v521
      %759 = vmatpush1.bf16.msra.mxu0 %v520
      %760 = vmatprep.subr.bf16.mxu0 %v523
      %761 = vmatpush1.bf16.msra.mxu0 %v522
      %762 = vmatprep.subr.bf16.mxu0 %v525
      %763 = vmatpush1.bf16.msra.mxu0 %v524
      %764 = vmatprep.subr.bf16.mxu0 %v527
      %765 = vmatpush1.bf16.msra.mxu0 %v526
      %766 = vmatprep.subr.bf16.mxu0 %v529
      %767 = vmatpush1.bf16.msra.mxu0 %v528
      %768 = vmatprep.subr.bf16.mxu0 0
      %769 = vmatpush1.bf16.msra.mxu0 0
      %770 = vmatprep.subr.bf16.mxu0 0
      %771 = vmatpush1.bf16.msra.mxu0 0
      %772 = vmatprep.subr.bf16.mxu0 0
      %773 = vmatpush1.bf16.msra.mxu0 0
      %774 = vmatprep.subr.bf16.mxu0 0
      %775 = vmatpush1.bf16.msra.mxu0 0
      %776 = vmatprep.subr.bf16.mxu0 0
      %777 = vmatpush1.bf16.msra.mxu0 0
      %778 = vmatprep.subr.bf16.mxu0 0
      %779 = vmatpush1.bf16.msra.mxu0 0
      %780 = vmatprep.subr.bf16.mxu0 0
      %781 = vmatpush1.bf16.msra.mxu0 0
      %782 = vmatprep.subr.bf16.mxu0 0
      %783 = vmatpush1.bf16.msra.mxu0 0
      %784 = vmatprep.mubr.bf16.mxu0 0
      %785 = vmatmul.mubr.bf16.gmra.mrb[0].mxu0 %v751
      %v786 = vpop.f32.mrb[0].mxu0
      %v787 = vadd.f32 0.0, %v786
      %v788 = vpop.f32.mrb[0].mxu0
      %v789 = vadd.f32 0.0, %v788
      %v790 = vpop.f32.mrb[0].mxu0
      %v791 = vadd.f32 0.0, %v790
      %v792 = vpop.f32.mrb[0].mxu0
      %v793 = vadd.f32 0.0, %v792
      %794 = vdwg.mxu0
      %v795 = vmax.f32 %v690, %v787
      %v796 = vmax.f32 %v691, %v789
      %v797 = vmax.f32 %v692, %v791
      %v798 = vmax.f32 %v693, %v793
      %799 = vset.pattern.permute.xlu0 3
      %800 = vperm.xlu0 %799, %v381
      %v801 = vpop.permute.xlu0 %800
      %802 = vset.pattern.permute.xlu0 3
      %803 = vperm.xlu0 %802, %v382
      %v804 = vpop.permute.xlu0 %803
      %vm805 = vcmp.eq.s32.totalorder %v384, %v801
      %vm806 = vcmp.eq.s32.totalorder %v384, %v804
      %v807 = vsel %vm805, 1, 0
      %v808 = vsel %vm806, 1, 0
      %v809 = vcvt.s32.f32 %v807
      %v810 = vcvt.s32.f32 %v808
      %v811 = vpack.c.bf16 %v810, %v809
      %v813 = vsel %vm404, %v811, 0
      %815 = vmatprep.subr.bf16.mxu0 0
      %816 = vmatpush1.bf16.msra.mxu0 %v402
      %817 = vmatprep.subr.bf16.mxu0 0
      %818 = vmatpush1.bf16.msra.mxu0 0
      %819 = vmatprep.subr.bf16.mxu0 0
      %820 = vmatpush1.bf16.msra.mxu0 0
      %821 = vmatprep.subr.bf16.mxu0 0
      %822 = vmatpush1.bf16.msra.mxu0 0
      %823 = vmatprep.subr.bf16.mxu0 0
      %824 = vmatpush1.bf16.msra.mxu0 0
      %825 = vmatprep.subr.bf16.mxu0 0
      %826 = vmatpush1.bf16.msra.mxu0 0
      %827 = vmatprep.subr.bf16.mxu0 0
      %828 = vmatpush1.bf16.msra.mxu0 0
      %829 = vmatprep.subr.bf16.mxu0 0
      %830 = vmatpush1.bf16.msra.mxu0 0
      %831 = vmatprep.subr.bf16.mxu0 0
      %832 = vmatpush1.bf16.msra.mxu0 0
      %833 = vmatprep.subr.bf16.mxu0 0
      %834 = vmatpush1.bf16.msra.mxu0 0
      %835 = vmatprep.subr.bf16.mxu0 0
      %836 = vmatpush1.bf16.msra.mxu0 0
      %837 = vmatprep.subr.bf16.mxu0 0
      %838 = vmatpush1.bf16.msra.mxu0 0
      %839 = vmatprep.subr.bf16.mxu0 0
      %840 = vmatpush1.bf16.msra.mxu0 0
      %841 = vmatprep.subr.bf16.mxu0 0
      %842 = vmatpush1.bf16.msra.mxu0 0
      %843 = vmatprep.subr.bf16.mxu0 0
      %844 = vmatpush1.bf16.msra.mxu0 0
      %845 = vmatprep.subr.bf16.mxu0 0
      %846 = vmatpush1.bf16.msra.mxu0 0
      %847 = vmatprep.mubr.bf16.mxu0 0
      %848 = vmatmul.mubr.bf16.gmra.mrb[0].mxu0 %v813
      %v849 = vpop.f32.mrb[0].mxu0
      %v850 = vadd.f32 0.0, %v849
      %v851 = vpop.f32.mrb[0].mxu0
      %v852 = vpop.f32.mrb[0].mxu0
      %v853 = vadd.f32 0.0, %v852
      %v854 = vpop.f32.mrb[0].mxu0
      %855 = vdwg.mxu0
      %v856 = vpack.c.bf16 %v853, %v850
      %857 = vmatprep.subr.bf16.mxu0 %v515
      %858 = vmatpush1.bf16.msra.mxu0 %v514
      %859 = vmatprep.subr.bf16.mxu0 %v517
      %860 = vmatpush1.bf16.msra.mxu0 %v516
      %861 = vmatprep.subr.bf16.mxu0 %v519
      %862 = vmatpush1.bf16.msra.mxu0 %v518
      %863 = vmatprep.subr.bf16.mxu0 %v521
      %864 = vmatpush1.bf16.msra.mxu0 %v520
      %865 = vmatprep.subr.bf16.mxu0 %v523
      %866 = vmatpush1.bf16.msra.mxu0 %v522
      %867 = vmatprep.subr.bf16.mxu0 %v525
      %868 = vmatpush1.bf16.msra.mxu0 %v524
      %869 = vmatprep.subr.bf16.mxu0 %v527
      %870 = vmatpush1.bf16.msra.mxu0 %v526
      %871 = vmatprep.subr.bf16.mxu0 %v529
      %872 = vmatpush1.bf16.msra.mxu0 %v528
      %873 = vmatprep.subr.bf16.mxu0 0
      %874 = vmatpush1.bf16.msra.mxu0 0
      %875 = vmatprep.subr.bf16.mxu0 0
      %876 = vmatpush1.bf16.msra.mxu0 0
      %877 = vmatprep.subr.bf16.mxu0 0
      %878 = vmatpush1.bf16.msra.mxu0 0
      %879 = vmatprep.subr.bf16.mxu0 0
      %880 = vmatpush1.bf16.msra.mxu0 0
      %881 = vmatprep.subr.bf16.mxu0 0
      %882 = vmatpush1.bf16.msra.mxu0 0
      %883 = vmatprep.subr.bf16.mxu0 0
      %884 = vmatpush1.bf16.msra.mxu0 0
      %885 = vmatprep.subr.bf16.mxu0 0
      %886 = vmatpush1.bf16.msra.mxu0 0
      %887 = vmatprep.subr.bf16.mxu0 0
      %888 = vmatpush1.bf16.msra.mxu0 0
      %889 = vmatprep.mubr.bf16.mxu0 0
      %890 = vmatmul.mubr.bf16.gmra.mrb[0].mxu0 %v856
      %v891 = vpop.f32.mrb[0].mxu0
      %v892 = vadd.f32 0.0, %v891
      %v893 = vpop.f32.mrb[0].mxu0
      %v894 = vadd.f32 0.0, %v893
      %v895 = vpop.f32.mrb[0].mxu0
      %v896 = vadd.f32 0.0, %v895
      %v897 = vpop.f32.mrb[0].mxu0
      %v898 = vadd.f32 0.0, %v897
      %899 = vdwg.mxu0
      %v900 = vmax.f32 %v795, %v892
      %v901 = vmax.f32 %v796, %v894
      %v902 = vmax.f32 %v797, %v896
      %v903 = vmax.f32 %v798, %v898
      %v904 = vld [vmem:[%s4] sm:$0xff]
      %v905 = vld [vmem:[%s4 + $0x8] sm:$0xff]
      %v906 = vld [vmem:[%s4 + $0x10] sm:$0xff]
      %v907 = vld [vmem:[%s4 + $0x18] sm:$0xff]
      %v908 = vld [vmem:[%s4 + $0x20] sm:$0xff]
      %v909 = vld [vmem:[%s4 + $0x28] sm:$0xff]
      %v910 = vld [vmem:[%s4 + $0x30] sm:$0xff]
      %v911 = vld [vmem:[%s4 + $0x38] sm:$0xff]
      %v912 = vld [vmem:[%s4 + $0x40] sm:$0xff]
      %v913 = vld [vmem:[%s4 + $0x48] sm:$0xff]
      %v914 = vld [vmem:[%s4 + $0x50] sm:$0xff]
      %v915 = vld [vmem:[%s4 + $0x58] sm:$0xff]
      %v916 = vld [vmem:[%s4 + $0x60] sm:$0xff]
      %v917 = vld [vmem:[%s4 + $0x68] sm:$0xff]
      %v918 = vld [vmem:[%s4 + $0x70] sm:$0xff]
      %v919 = vld [vmem:[%s4 + $0x78] sm:$0xff]
      %v922 = vunpack.c.l.b16 %v379
      %v923 = vunpack.c.l.b16 %v380
      %v924 = vpack.c.b16 %v923, %v922
      %v942 = vunpack.c.l.b16 %v904
      %v943 = vunpack.c.h.b16 %v904
      %v944 = vunpack.c.l.b16 %v905
      %v945 = vunpack.c.h.b16 %v905
      %v946 = vunpack.c.l.b16 %v906
      %v947 = vunpack.c.h.b16 %v906
      %v948 = vunpack.c.l.b16 %v907
      %v949 = vunpack.c.h.b16 %v907
      %v950 = vunpack.c.l.b16 %v908
      %v951 = vunpack.c.h.b16 %v908
      %v952 = vunpack.c.l.b16 %v909
      %v953 = vunpack.c.h.b16 %v909
      %v954 = vunpack.c.l.b16 %v910
      %v955 = vunpack.c.h.b16 %v910
      %v956 = vunpack.c.l.b16 %v911
      %v957 = vunpack.c.h.b16 %v911
      %v958 = vunpack.c.l.b16 %v912
      %v959 = vunpack.c.h.b16 %v912
      %v960 = vunpack.c.l.b16 %v913
      %v961 = vunpack.c.h.b16 %v913
      %v962 = vunpack.c.l.b16 %v914
      %v963 = vunpack.c.h.b16 %v914
      %v964 = vunpack.c.l.b16 %v915
      %v965 = vunpack.c.h.b16 %v915
      %v966 = vunpack.c.l.b16 %v916
      %v967 = vunpack.c.h.b16 %v916
      %v968 = vunpack.c.l.b16 %v917
      %v969 = vunpack.c.h.b16 %v917
      %v970 = vunpack.c.l.b16 %v918
      %v971 = vunpack.c.h.b16 %v918
      %v972 = vunpack.c.l.b16 %v919
      %v973 = vunpack.c.h.b16 %v919
      %v974 = vpack.c.b16 %v944, %v942
      %v975 = vpack.c.b16 %v945, %v943
      %v976 = vpack.c.b16 %v948, %v946
      %v977 = vpack.c.b16 %v949, %v947
      %v978 = vpack.c.b16 %v952, %v950
      %v979 = vpack.c.b16 %v953, %v951
      %v980 = vpack.c.b16 %v956, %v954
      %v981 = vpack.c.b16 %v957, %v955
      %v982 = vpack.c.b16 %v960, %v958
      %v983 = vpack.c.b16 %v961, %v959
      %v984 = vpack.c.b16 %v964, %v962
      %v985 = vpack.c.b16 %v965, %v963
      %v986 = vpack.c.b16 %v968, %v966
      %v987 = vpack.c.b16 %v969, %v967
      %v988 = vpack.c.b16 %v972, %v970
      %v989 = vpack.c.b16 %v973, %v971
      %1006 = vmatprep.subr.bf16.mxu0 %v975
      %1007 = vmatpush1.bf16.msra.mxu0 %v974
      %1008 = vmatprep.subr.bf16.mxu0 %v977
      %1009 = vmatpush1.bf16.msra.mxu0 %v976
      %1010 = vmatprep.subr.bf16.mxu0 %v979
      %1011 = vmatpush1.bf16.msra.mxu0 %v978
      %1012 = vmatprep.subr.bf16.mxu0 %v981
      %1013 = vmatpush1.bf16.msra.mxu0 %v980
      %1014 = vmatprep.subr.bf16.mxu0 %v983
      %1015 = vmatpush1.bf16.msra.mxu0 %v982
      %1016 = vmatprep.subr.bf16.mxu0 %v985
      %1017 = vmatpush1.bf16.msra.mxu0 %v984
      %1018 = vmatprep.subr.bf16.mxu0 %v987
      %1019 = vmatpush1.bf16.msra.mxu0 %v986
      %1020 = vmatprep.subr.bf16.mxu0 %v989
      %1021 = vmatpush1.bf16.msra.mxu0 %v988
      %1022 = vmatprep.subr.bf16.mxu0 0
      %1023 = vmatpush1.bf16.msra.mxu0 0
      %1024 = vmatprep.subr.bf16.mxu0 0
      %1025 = vmatpush1.bf16.msra.mxu0 0
      %1026 = vmatprep.subr.bf16.mxu0 0
      %1027 = vmatpush1.bf16.msra.mxu0 0
      %1028 = vmatprep.subr.bf16.mxu0 0
      %1029 = vmatpush1.bf16.msra.mxu0 0
      %1030 = vmatprep.subr.bf16.mxu0 0
      %1031 = vmatpush1.bf16.msra.mxu0 0
      %1032 = vmatprep.subr.bf16.mxu0 0
      %1033 = vmatpush1.bf16.msra.mxu0 0
      %1034 = vmatprep.subr.bf16.mxu0 0
      %1035 = vmatpush1.bf16.msra.mxu0 0
      %1036 = vmatprep.subr.bf16.mxu0 0
      %1037 = vmatpush1.bf16.msra.mxu0 0
      %1038 = vmatprep.mubr.bf16.mxu0 0
      %1039 = vmatmul.mubr.bf16.gmra.mrb[0].mxu0 %v924
      %v1040 = vpop.f32.mrb[0].mxu0
      %v1041 = vadd.f32 0.0, %v1040
      %v1042 = vpop.f32.mrb[0].mxu0
      %v1043 = vadd.f32 0.0, %v1042
      %v1044 = vpop.f32.mrb[0].mxu0
      %v1045 = vadd.f32 0.0, %v1044
      %v1046 = vpop.f32.mrb[0].mxu0
      %v1047 = vadd.f32 0.0, %v1046
      %1048 = vdwg.mxu0
      %v1049 = vadd.f32 %v900, %v1041
      %v1050 = vadd.f32 %v901, %v1043
      %v1051 = vadd.f32 %v902, %v1045
      %v1052 = vadd.f32 %v903, %v1047
      %v1053 = vld [vmem:[%s5] sm:$0x3]
      %v1055 = vlaneseq
      %v1056 = vshrl.u32 %v1055, 7
      %v1057 = vsub.s32 0, %v1056
      %v1058 = vrot.slane %v1053, %v1057
      %v1059 = vlaneseq
      %v1060 = vshrl.u32 %v1059, 7
      %v1061 = vsub.s32 1, %v1060
      %v1062 = vrot.slane %v1053, %v1061
      %v1065 = vmul.f32 %v1049, %v1058
      %v1066 = vmul.f32 %v1050, %v1062
      %v1067 = vmul.f32 %v1051, %v1058
      %v1068 = vmul.f32 %v1052, %v1062
      %v1069 = vld [vmem:[%s6] sm:$0x3]
      %v1071 = vlaneseq
      %v1072 = vshrl.u32 %v1071, 7
      %v1073 = vsub.s32 0, %v1072
      %v1074 = vrot.slane %v1069, %v1073
      %v1075 = vlaneseq
      %v1076 = vshrl.u32 %v1075, 7
      %v1077 = vsub.s32 1, %v1076
      %v1078 = vrot.slane %v1069, %v1077
      %v1081 = vadd.f32 %v1065, %v1074
      %v1082 = vadd.f32 %v1066, %v1078
      %v1083 = vadd.f32 %v1067, %v1074
      %v1084 = vadd.f32 %v1068, %v1078
      %v1085 = vmul.f32 %v1081, 0.2
      %v1086 = vmul.f32 %v1082, 0.2
      %v1087 = vmul.f32 %v1083, 0.2
      %v1088 = vmul.f32 %v1084, 0.2
      %v1089 = vmax.f32 %v1081, %v1085
      %v1090 = vmax.f32 %v1082, %v1086
      %v1091 = vmax.f32 %v1083, %v1087
      %v1092 = vmax.f32 %v1084, %v1088
      %v1093 = vpack.c.bf16 %v1091, %v1089
      %v1094 = vpack.c.bf16 %v1092, %v1090
      %v1097 = vunpack.c.l.b16 %v1093
      %v1098 = vunpack.c.l.b16 %v1094
      %v1099 = vunpack.c.h.b16 %v1093
      %v1100 = vunpack.c.h.b16 %v1094
      %v1101 = vpack.c.b16 %v1098, %v1097
      %v1102 = vpack.c.b16 %v1100, %v1099
      %1105 = vst [vmem:[%s374] sm:$0xff] %v1101
      %1106 = vst [vmem:[%s374 + $0x8] sm:$0xff] %v1102
      %s1107 = smul.u32 2, %s23
      %p1108 = scmp.lt.s32.totalorder %s22, 1
      %s1109 = scalar_select %p1108, %s22, 1
      %p1110 = scmp.lt.s32.totalorder %s1107, 1
      %s1111 = scalar_select %p1110, %s1107, 1
      %s1112 = smul.addr %s1111, 2
      %s1113 = smul.addr %s1109, 4
      %s1114 = sadd.s32 %s1112, %s1113
      %s1115 = smul.addr %s1114, 4
      %s1116 = scalar_lea.vmem %s7, %s1115
      // Predicated region
      $region49: #{dgcnn_forward.16} parent=47 // pred_check
        %p1117 = pneg %p216
      $region50: #{dgcnn_forward.16} parent=47 // pred_check_branch
        %1119 = sbr.rel (%p1117) target = $region52
      $region51: #{dgcnn_forward.16} parent=47 // pred_region
        %s1120 = smul.u32 2, %s23
      $region52: #{dgcnn_forward.16} parent=47 // pred_fallthru
        _
    $region48: #{dgcnn_forward.16} parent=5 // pred_fallthru
      _
    %p1121 = scmp.le.s32.totalorder 2, %s13
    // Predicated region
    $region53: #{dgcnn_forward.16} parent=5 // pred_check
      %p1122 = pneg %p1121
    $region54: #{dgcnn_forward.16} parent=5 // pred_check_branch
      %1124 = sbr.rel (%p1122) target = $region56
    $region55: #{dgcnn_forward.16} parent=5 // pred_region
      %s1125 = ssub.s32 %s13, 2
      // Predicated region
      $region57: #{dgcnn_forward.16} parent=55 // pred_check
        %p1126 = pneg %p222
      $region58: #{dgcnn_forward.16} parent=55 // pred_check_branch
        %1128 = sbr.rel (%p1126) target = $region60
      $region59: #{dgcnn_forward.16} parent=55 // pred_region
        %s1129 = smul.u32 2, %s25
        %p1130 = scmp.lt.s32.totalorder %s24, 1
        %s1131 = scalar_select %p1130, %s24, 1
        %p1132 = scmp.lt.s32.totalorder %s1129, 1
        %s1133 = scalar_select %p1132, %s1129, 1
        %s1134 = smul.addr %s1133, 2
        %s1135 = smul.addr %s1131, 4
        %s1136 = sadd.s32 %s1134, %s1135
        %s1137 = smul.addr %s1136, 4
        %s1138 = scalar_lea.vmem %s7, %s1137
      $region60: #{dgcnn_forward.16} parent=55 // pred_fallthru
        _
    $region56: #{dgcnn_forward.16} parent=5 // pred_fallthru
      _
  $region6: #{dgcnn_forward.16} parent=0 // loop_footer
    %s17 = sadd.s32 1, %s13
  $region7: #{dgcnn_forward.16} parent=0 // loop_footer_branch
    %12 = sbr.rel target = $region3
  $region8: #{dgcnn_forward.16} parent=0 // loop_exit
    _

// kernel: dgcnn_forward.17
$region0: #{dgcnn_forward.17}
  #allocation0 [shape = 'u32[]', space=smem, size = 0x4, offset = 0x4, fixed_abs, tag = 'smem constant byte address 0x4 - core index']
  #allocation1 [shape = 'u32[144,128]{1,0:T(1,128)}', space=vmem, size = 0x12000, scoped, tag = 'internal scratch']
  #allocation2 [shape = 'f32[1,64]{1,0:T(1,128)}', space=vmem, size = 0x200, scoped, tag = 'scratch operand']
  #allocation3 [shape = 'f32[1,64]{1,0:T(1,128)}', space=vmem, size = 0x200, scoped, tag = 'scratch operand']
  %s0 = inlined_call_operand.vmem [shape: bf16[2,16,64], index: 0, kind: input, shape index: {}]
  %s1 = inlined_call_operand.vmem [shape: bf16[2,16,64], index: 1, kind: input, shape index: {}]
  %s2 = inlined_call_operand.vmem [shape: bf16[2,16,128], index: 2, kind: input, shape index: {}]
  %s3 = inlined_call_operand.vmem [shape: bf16[2,16,256], index: 3, kind: input, shape index: {}]
  %s4 = inlined_call_operand.vmem [shape: bf16[64,64], index: 4, kind: input, shape index: {}]
  %s5 = inlined_call_operand.vmem [shape: bf16[64,64], index: 5, kind: input, shape index: {}]
  %s6 = inlined_call_operand.vmem [shape: bf16[128,64], index: 6, kind: input, shape index: {}]
  %s7 = inlined_call_operand.vmem [shape: bf16[256,64], index: 7, kind: input, shape index: {}]
  %s8 = inlined_call_operand.vmem [shape: f32[1,64], index: 8, kind: input, shape index: {}]
  %s9 = inlined_call_operand.vmem [shape: f32[1,64], index: 9, kind: input, shape index: {}]
  %s10 = inlined_call_operand.vmem [shape: bf16[64,512], index: 10, kind: input, shape index: {}]
  %s11 = inlined_call_operand.vmem [shape: bf16[64,512], index: 11, kind: input, shape index: {}]
  %s12 = inlined_call_operand.vmem [shape: f32[1,512], index: 12, kind: input, shape index: {}]
  %s13 = inlined_call_operand.vmem [shape: f32[1,512], index: 13, kind: input, shape index: {}]
  %s14 = inlined_call_operand.vmem [shape: bf16[512,256], index: 14, kind: input, shape index: {}]
  %s15 = inlined_call_operand.vmem [shape: f32[1,256], index: 15, kind: input, shape index: {}]
  %s16 = inlined_call_operand.vmem [shape: f32[1,256], index: 16, kind: input, shape index: {}]
  %s17 = inlined_call_operand.vmem [shape: f32[1,256], index: 17, kind: input, shape index: {}]
  %s18 = inlined_call_operand.vmem [shape: bf16[256,8], index: 18, kind: input, shape index: {}]
  %s19 = inlined_call_operand.vmem [shape: f32[1,8], index: 19, kind: input, shape index: {}]
  %s20 = inlined_call_operand.hbm [shape: f32[2,1,8], index: 20, kind: output, shape index: {}]
  %s21 = sld [smem:[#allocation0]]
  $region121: #{dgcnn_forward.17} parent=0
    _
  %s23 = ssub.s32 1, %s21
  %s24 = scalar_select 0, %s23, %s21
  $region1: #{dgcnn_forward.17} parent=0
    #allocation4 [shape = 'u8[1024]{0}', space=vmem, size = 0x400, scoped, tag = 'output window, operand 0']
    #allocation5 [shape = 's32[2]{0}', space=sflag, size = 0x8, scoped, tag = 'scoped memory for dgcnn_forward.17']
    %25 = vsyncpa [#allocation5], 0
    %s26 = scalar_lea.sflag [#allocation5], 1
    %27 = vsyncpa %s26, 0
    loop: start=0, step=1, limit=4
    $region2: #{dgcnn_forward.17} parent=1 // loop_pre_header
      _
    $region3: #{dgcnn_forward.17} parent=1 // loop_header
      %s29 = sphi 0, %s33
      %p30 = scmp.ge.s32.totalorder %s29, 4
      %s36 = sphi 0, %s48
      %s37 = sphi 0, %s44
      %s38 = sphi 0, %s36
      %s39 = sphi 0, %s37
      %s40 = sphi 0, %s38
      %s41 = sphi 0, %s39
      %s53 = sphi 0, %s55
      %s56 = sphi 0, %s53
      %s57 = sphi 0, %s56
      %s73 = sphi 0, %s57
      %s81 = sphi 0, %s83
      %s84 = sphi 0, %s81
      %s85 = sphi 0, %s84
      %s101 = sphi 0, %s85
      %s109 = sphi 0, %s111
      %s112 = sphi 0, %s109
      %s113 = sphi 0, %s112
      %s129 = sphi 0, %s113
      %s137 = sphi 0, %s139
      %s140 = sphi 0, %s137
      %s141 = sphi 0, %s140
      %s157 = sphi 0, %s141
      %s161 = sphi 0, %s161
      %s163 = sphi 0, %s161
      %s164 = sphi 0, %s163
      %s178 = sphi 0, %s164
      %s182 = sphi 0, %s182
      %s184 = sphi 0, %s182
      %s185 = sphi 0, %s184
      %s199 = sphi 0, %s185
      %s203 = sphi 0, %s203
      %s205 = sphi 0, %s203
      %s206 = sphi 0, %s205
      %s220 = sphi 0, %s206
      %s224 = sphi 0, %s224
      %s226 = sphi 0, %s224
      %s227 = sphi 0, %s226
      %s241 = sphi 0, %s227
      %s245 = sphi 0, %s245
      %s247 = sphi 0, %s245
      %s248 = sphi 0, %s247
      %s262 = sphi 0, %s248
      %s266 = sphi 0, %s266
      %s268 = sphi 0, %s266
      %s269 = sphi 0, %s268
      %s283 = sphi 0, %s269
      %s287 = sphi 0, %s287
      %s289 = sphi 0, %s287
      %s290 = sphi 0, %s289
      %s304 = sphi 0, %s290
      %s308 = sphi 0, %s308
      %s310 = sphi 0, %s308
      %s311 = sphi 0, %s310
      %s325 = sphi 0, %s311
      %s329 = sphi 0, %s329
      %s331 = sphi 0, %s329
      %s332 = sphi 0, %s331
      %s346 = sphi 0, %s332
      %s350 = sphi 0, %s350
      %s352 = sphi 0, %s350
      %s353 = sphi 0, %s352
      %s367 = sphi 0, %s353
      %s371 = sphi 0, %s371
      %s373 = sphi 0, %s371
      %s374 = sphi 0, %s373
      %s388 = sphi 0, %s374
      %s392 = sphi 0, %s392
      %s394 = sphi 0, %s392
      %s395 = sphi 0, %s394
      %s409 = sphi 0, %s395
      %s413 = sphi 0, %s413
      %s415 = sphi 0, %s413
      %s416 = sphi 0, %s415
      %s430 = sphi 0, %s416
      %s434 = sphi 0, %s434
      %s436 = sphi 0, %s434
      %s437 = sphi 0, %s436
      %s451 = sphi 0, %s437
      %s455 = sphi 0, %s455
      %s457 = sphi 0, %s455
      %s458 = sphi 0, %s457
      %s472 = sphi 0, %s458
      %s476 = sphi 0, %s476
      %s478 = sphi 0, %s476
      %s479 = sphi 0, %s478
      %s493 = sphi 0, %s479
      %s499 = sphi 0, %s501
      %s502 = sphi 0, %s499
      %s503 = sphi 0, %s502
      %s519 = sphi 0, %s503
    $region4: #{dgcnn_forward.17} parent=1 // loop_header_branch
      %32 = sbr.rel (%p30) target = $region8
    $region5: #{dgcnn_forward.17} parent=1 // loop_body
      %s34 = ssub.s32 %s29, 1
      %s35 = ssub.s32 %s29, 2
      %s42 = sadd.s32 1, %s37
      %p43 = scmp.ge.s32.totalorder %s42, 1
      %s44 = scalar_select %p43, 0, %s42
      %s45 = sadd.s32 1, %s36
      %s46 = scalar_select %p43, %s45, %s36
      %p47 = scmp.ge.s32.totalorder %s46, 2
      %s48 = scalar_select %p47, 0, %s46
      %s49 = ssub.s32 %s36, %s48
      %s50 = ssub.s32 %s37, %s44
      %s51 = sor.u32 %s49, %s50
      %p52 = scmp.eq.s32.totalorder %s51, 0
      %s54 = sadd.s32 %s53, 1
      %s55 = scalar_select %p52, %s53, %s54
      %p58 = pneg %p52
      %p59 = scmp.eq.s32.totalorder %s29, 1
      %p60 = por %p58, %p59
      %p61 = scmp.ne.s32.totalorder %s53, %s56
      %p62 = scmp.eq.s32.totalorder %s29, 0
      %p63 = por %p61, %p62
      %p64 = scmp.ne.s32.totalorder %s53, %s56
      %p65 = scmp.eq.s32.totalorder %s34, 1
      %p66 = por %p64, %p65
      %p67 = scmp.ne.s32.totalorder %s56, %s57
      %p68 = scmp.eq.s32.totalorder %s34, 0
      %p69 = por %p67, %p68
      %p70 = scmp.ne.s32.totalorder %s56, %s57
      %p71 = scmp.eq.s32.totalorder %s35, 1
      %p72 = por %p70, %p71
      %p74 = scmp.ne.s32.totalorder %s57, %s73
      %p75 = scmp.eq.s32.totalorder %s35, 0
      %p76 = por %p74, %p75
      %s77 = ssub.s32 %s36, %s48
      %s78 = ssub.s32 %s37, %s44
      %s79 = sor.u32 %s77, %s78
      %p80 = scmp.eq.s32.totalorder %s79, 0
      %s82 = sadd.s32 %s81, 1
      %s83 = scalar_select %p80, %s81, %s82
      %p86 = pneg %p80
      %p87 = scmp.eq.s32.totalorder %s29, 1
      %p88 = por %p86, %p87
      %p89 = scmp.ne.s32.totalorder %s81, %s84
      %p90 = scmp.eq.s32.totalorder %s29, 0
      %p91 = por %p89, %p90
      %p92 = scmp.ne.s32.totalorder %s81, %s84
      %p93 = scmp.eq.s32.totalorder %s34, 1
      %p94 = por %p92, %p93
      %p95 = scmp.ne.s32.totalorder %s84, %s85
      %p96 = scmp.eq.s32.totalorder %s34, 0
      %p97 = por %p95, %p96
      %p98 = scmp.ne.s32.totalorder %s84, %s85
      %p99 = scmp.eq.s32.totalorder %s35, 1
      %p100 = por %p98, %p99
      %p102 = scmp.ne.s32.totalorder %s85, %s101
      %p103 = scmp.eq.s32.totalorder %s35, 0
      %p104 = por %p102, %p103
      %s105 = ssub.s32 %s36, %s48
      %s106 = ssub.s32 %s37, %s44
      %s107 = sor.u32 %s105, %s106
      %p108 = scmp.eq.s32.totalorder %s107, 0
      %s110 = sadd.s32 %s109, 1
      %s111 = scalar_select %p108, %s109, %s110
      %p114 = pneg %p108
      %p115 = scmp.eq.s32.totalorder %s29, 1
      %p116 = por %p114, %p115
      %p117 = scmp.ne.s32.totalorder %s109, %s112
      %p118 = scmp.eq.s32.totalorder %s29, 0
      %p119 = por %p117, %p118
      %p120 = scmp.ne.s32.totalorder %s109, %s112
      %p121 = scmp.eq.s32.totalorder %s34, 1
      %p122 = por %p120, %p121
      %p123 = scmp.ne.s32.totalorder %s112, %s113
      %p124 = scmp.eq.s32.totalorder %s34, 0
      %p125 = por %p123, %p124
      %p126 = scmp.ne.s32.totalorder %s112, %s113
      %p127 = scmp.eq.s32.totalorder %s35, 1
      %p128 = por %p126, %p127
      %p130 = scmp.ne.s32.totalorder %s113, %s129
      %p131 = scmp.eq.s32.totalorder %s35, 0
      %p132 = por %p130, %p131
      %s133 = ssub.s32 %s36, %s48
      %s134 = ssub.s32 %s37, %s44
      %s135 = sor.u32 %s133, %s134
      %p136 = scmp.eq.s32.totalorder %s135, 0
      %s138 = sadd.s32 %s137, 1
      %s139 = scalar_select %p136, %s137, %s138
      %p142 = pneg %p136
      %p143 = scmp.eq.s32.totalorder %s29, 1
      %p144 = por %p142, %p143
      %p145 = scmp.ne.s32.totalorder %s137, %s140
      %p146 = scmp.eq.s32.totalorder %s29, 0
      %p147 = por %p145, %p146
      %p148 = scmp.ne.s32.totalorder %s137, %s140
      %p149 = scmp.eq.s32.totalorder %s34, 1
      %p150 = por %p148, %p149
      %p151 = scmp.ne.s32.totalorder %s140, %s141
      %p152 = scmp.eq.s32.totalorder %s34, 0
      %p153 = por %p151, %p152
      %p154 = scmp.ne.s32.totalorder %s140, %s141
      %p155 = scmp.eq.s32.totalorder %s35, 1
      %p156 = por %p154, %p155
      %p158 = scmp.ne.s32.totalorder %s141, %s157
      %p159 = scmp.eq.s32.totalorder %s35, 0
      %p160 = por %p158, %p159
      %s162 = sadd.s32 %s161, 1
      %p165 = scmp.eq.s32.totalorder %s29, 1
      %p166 = scmp.ne.s32.totalorder %s161, %s163
      %p167 = scmp.eq.s32.totalorder %s29, 0
      %p168 = por %p166, %p167
      %p169 = scmp.ne.s32.totalorder %s161, %s163
      %p170 = scmp.eq.s32.totalorder %s34, 1
      %p171 = por %p169, %p170
      %p172 = scmp.ne.s32.totalorder %s163, %s164
      %p173 = scmp.eq.s32.totalorder %s34, 0
      %p174 = por %p172, %p173
      %p175 = scmp.ne.s32.totalorder %s163, %s164
      %p176 = scmp.eq.s32.totalorder %s35, 1
      %p177 = por %p175, %p176
      %p179 = scmp.ne.s32.totalorder %s164, %s178
      %p180 = scmp.eq.s32.totalorder %s35, 0
      %p181 = por %p179, %p180
      %s183 = sadd.s32 %s182, 1
      %p186 = scmp.eq.s32.totalorder %s29, 1
      %p187 = scmp.ne.s32.totalorder %s182, %s184
      %p188 = scmp.eq.s32.totalorder %s29, 0
      %p189 = por %p187, %p188
      %p190 = scmp.ne.s32.totalorder %s182, %s184
      %p191 = scmp.eq.s32.totalorder %s34, 1
      %p192 = por %p190, %p191
      %p193 = scmp.ne.s32.totalorder %s184, %s185
      %p194 = scmp.eq.s32.totalorder %s34, 0
      %p195 = por %p193, %p194
      %p196 = scmp.ne.s32.totalorder %s184, %s185
      %p197 = scmp.eq.s32.totalorder %s35, 1
      %p198 = por %p196, %p197
      %p200 = scmp.ne.s32.totalorder %s185, %s199
      %p201 = scmp.eq.s32.totalorder %s35, 0
      %p202 = por %p200, %p201
      %s204 = sadd.s32 %s203, 1
      %p207 = scmp.eq.s32.totalorder %s29, 1
      %p208 = scmp.ne.s32.totalorder %s203, %s205
      %p209 = scmp.eq.s32.totalorder %s29, 0
      %p210 = por %p208, %p209
      %p211 = scmp.ne.s32.totalorder %s203, %s205
      %p212 = scmp.eq.s32.totalorder %s34, 1
      %p213 = por %p211, %p212
      %p214 = scmp.ne.s32.totalorder %s205, %s206
      %p215 = scmp.eq.s32.totalorder %s34, 0
      %p216 = por %p214, %p215
      %p217 = scmp.ne.s32.totalorder %s205, %s206
      %p218 = scmp.eq.s32.totalorder %s35, 1
      %p219 = por %p217, %p218
      %p221 = scmp.ne.s32.totalorder %s206, %s220
      %p222 = scmp.eq.s32.totalorder %s35, 0
      %p223 = por %p221, %p222
      %s225 = sadd.s32 %s224, 1
      %p228 = scmp.eq.s32.totalorder %s29, 1
      %p229 = scmp.ne.s32.totalorder %s224, %s226
      %p230 = scmp.eq.s32.totalorder %s29, 0
      %p231 = por %p229, %p230
      %p232 = scmp.ne.s32.totalorder %s224, %s226
      %p233 = scmp.eq.s32.totalorder %s34, 1
      %p234 = por %p232, %p233
      %p235 = scmp.ne.s32.totalorder %s226, %s227
      %p236 = scmp.eq.s32.totalorder %s34, 0
      %p237 = por %p235, %p236
      %p238 = scmp.ne.s32.totalorder %s226, %s227
      %p239 = scmp.eq.s32.totalorder %s35, 1
      %p240 = por %p238, %p239
      %p242 = scmp.ne.s32.totalorder %s227, %s241
      %p243 = scmp.eq.s32.totalorder %s35, 0
      %p244 = por %p242, %p243
      %s246 = sadd.s32 %s245, 1
      %p249 = scmp.eq.s32.totalorder %s29, 1
      %p250 = scmp.ne.s32.totalorder %s245, %s247
      %p251 = scmp.eq.s32.totalorder %s29, 0
      %p252 = por %p250, %p251
      %p253 = scmp.ne.s32.totalorder %s245, %s247
      %p254 = scmp.eq.s32.totalorder %s34, 1
      %p255 = por %p253, %p254
      %p256 = scmp.ne.s32.totalorder %s247, %s248
      %p257 = scmp.eq.s32.totalorder %s34, 0
      %p258 = por %p256, %p257
      %p259 = scmp.ne.s32.totalorder %s247, %s248
      %p260 = scmp.eq.s32.totalorder %s35, 1
      %p261 = por %p259, %p260
      %p263 = scmp.ne.s32.totalorder %s248, %s262
      %p264 = scmp.eq.s32.totalorder %s35, 0
      %p265 = por %p263, %p264
      %s267 = sadd.s32 %s266, 1
      %p270 = scmp.eq.s32.totalorder %s29, 1
      %p271 = scmp.ne.s32.totalorder %s266, %s268
      %p272 = scmp.eq.s32.totalorder %s29, 0
      %p273 = por %p271, %p272
      %p274 = scmp.ne.s32.totalorder %s266, %s268
      %p275 = scmp.eq.s32.totalorder %s34, 1
      %p276 = por %p274, %p275
      %p277 = scmp.ne.s32.totalorder %s268, %s269
      %p278 = scmp.eq.s32.totalorder %s34, 0
      %p279 = por %p277, %p278
      %p280 = scmp.ne.s32.totalorder %s268, %s269
      %p281 = scmp.eq.s32.totalorder %s35, 1
      %p282 = por %p280, %p281
      %p284 = scmp.ne.s32.totalorder %s269, %s283
      %p285 = scmp.eq.s32.totalorder %s35, 0
      %p286 = por %p284, %p285
      %s288 = sadd.s32 %s287, 1
      %p291 = scmp.eq.s32.totalorder %s29, 1
      %p292 = scmp.ne.s32.totalorder %s287, %s289
      %p293 = scmp.eq.s32.totalorder %s29, 0
      %p294 = por %p292, %p293
      %p295 = scmp.ne.s32.totalorder %s287, %s289
      %p296 = scmp.eq.s32.totalorder %s34, 1
      %p297 = por %p295, %p296
      %p298 = scmp.ne.s32.totalorder %s289, %s290
      %p299 = scmp.eq.s32.totalorder %s34, 0
      %p300 = por %p298, %p299
      %p301 = scmp.ne.s32.totalorder %s289, %s290
      %p302 = scmp.eq.s32.totalorder %s35, 1
      %p303 = por %p301, %p302
      %p305 = scmp.ne.s32.totalorder %s290, %s304
      %p306 = scmp.eq.s32.totalorder %s35, 0
      %p307 = por %p305, %p306
      %s309 = sadd.s32 %s308, 1
      %p312 = scmp.eq.s32.totalorder %s29, 1
      %p313 = scmp.ne.s32.totalorder %s308, %s310
      %p314 = scmp.eq.s32.totalorder %s29, 0
      %p315 = por %p313, %p314
      %p316 = scmp.ne.s32.totalorder %s308, %s310
      %p317 = scmp.eq.s32.totalorder %s34, 1
      %p318 = por %p316, %p317
      %p319 = scmp.ne.s32.totalorder %s310, %s311
      %p320 = scmp.eq.s32.totalorder %s34, 0
      %p321 = por %p319, %p320
      %p322 = scmp.ne.s32.totalorder %s310, %s311
      %p323 = scmp.eq.s32.totalorder %s35, 1
      %p324 = por %p322, %p323
      %p326 = scmp.ne.s32.totalorder %s311, %s325
      %p327 = scmp.eq.s32.totalorder %s35, 0
      %p328 = por %p326, %p327
      %s330 = sadd.s32 %s329, 1
      %p333 = scmp.eq.s32.totalorder %s29, 1
      %p334 = scmp.ne.s32.totalorder %s329, %s331
      %p335 = scmp.eq.s32.totalorder %s29, 0
      %p336 = por %p334, %p335
      %p337 = scmp.ne.s32.totalorder %s329, %s331
      %p338 = scmp.eq.s32.totalorder %s34, 1
      %p339 = por %p337, %p338
      %p340 = scmp.ne.s32.totalorder %s331, %s332
      %p341 = scmp.eq.s32.totalorder %s34, 0
      %p342 = por %p340, %p341
      %p343 = scmp.ne.s32.totalorder %s331, %s332
      %p344 = scmp.eq.s32.totalorder %s35, 1
      %p345 = por %p343, %p344
      %p347 = scmp.ne.s32.totalorder %s332, %s346
      %p348 = scmp.eq.s32.totalorder %s35, 0
      %p349 = por %p347, %p348
      %s351 = sadd.s32 %s350, 1
      %p354 = scmp.eq.s32.totalorder %s29, 1
      %p355 = scmp.ne.s32.totalorder %s350, %s352
      %p356 = scmp.eq.s32.totalorder %s29, 0
      %p357 = por %p355, %p356
      %p358 = scmp.ne.s32.totalorder %s350, %s352
      %p359 = scmp.eq.s32.totalorder %s34, 1
      %p360 = por %p358, %p359
      %p361 = scmp.ne.s32.totalorder %s352, %s353
      %p362 = scmp.eq.s32.totalorder %s34, 0
      %p363 = por %p361, %p362
      %p364 = scmp.ne.s32.totalorder %s352, %s353
      %p365 = scmp.eq.s32.totalorder %s35, 1
      %p366 = por %p364, %p365
      %p368 = scmp.ne.s32.totalorder %s353, %s367
      %p369 = scmp.eq.s32.totalorder %s35, 0
      %p370 = por %p368, %p369
      %s372 = sadd.s32 %s371, 1
      %p375 = scmp.eq.s32.totalorder %s29, 1
      %p376 = scmp.ne.s32.totalorder %s371, %s373
      %p377 = scmp.eq.s32.totalorder %s29, 0
      %p378 = por %p376, %p377
      %p379 = scmp.ne.s32.totalorder %s371, %s373
      %p380 = scmp.eq.s32.totalorder %s34, 1
      %p381 = por %p379, %p380
      %p382 = scmp.ne.s32.totalorder %s373, %s374
      %p383 = scmp.eq.s32.totalorder %s34, 0
      %p384 = por %p382, %p383
      %p385 = scmp.ne.s32.totalorder %s373, %s374
      %p386 = scmp.eq.s32.totalorder %s35, 1
      %p387 = por %p385, %p386
      %p389 = scmp.ne.s32.totalorder %s374, %s388
      %p390 = scmp.eq.s32.totalorder %s35, 0
      %p391 = por %p389, %p390
      %s393 = sadd.s32 %s392, 1
      %p396 = scmp.eq.s32.totalorder %s29, 1
      %p397 = scmp.ne.s32.totalorder %s392, %s394
      %p398 = scmp.eq.s32.totalorder %s29, 0
      %p399 = por %p397, %p398
      %p400 = scmp.ne.s32.totalorder %s392, %s394
      %p401 = scmp.eq.s32.totalorder %s34, 1
      %p402 = por %p400, %p401
      %p403 = scmp.ne.s32.totalorder %s394, %s395
      %p404 = scmp.eq.s32.totalorder %s34, 0
      %p405 = por %p403, %p404
      %p406 = scmp.ne.s32.totalorder %s394, %s395
      %p407 = scmp.eq.s32.totalorder %s35, 1
      %p408 = por %p406, %p407
      %p410 = scmp.ne.s32.totalorder %s395, %s409
      %p411 = scmp.eq.s32.totalorder %s35, 0
      %p412 = por %p410, %p411
      %s414 = sadd.s32 %s413, 1
      %p417 = scmp.eq.s32.totalorder %s29, 1
      %p418 = scmp.ne.s32.totalorder %s413, %s415
      %p419 = scmp.eq.s32.totalorder %s29, 0
      %p420 = por %p418, %p419
      %p421 = scmp.ne.s32.totalorder %s413, %s415
      %p422 = scmp.eq.s32.totalorder %s34, 1
      %p423 = por %p421, %p422
      %p424 = scmp.ne.s32.totalorder %s415, %s416
      %p425 = scmp.eq.s32.totalorder %s34, 0
      %p426 = por %p424, %p425
      %p427 = scmp.ne.s32.totalorder %s415, %s416
      %p428 = scmp.eq.s32.totalorder %s35, 1
      %p429 = por %p427, %p428
      %p431 = scmp.ne.s32.totalorder %s416, %s430
      %p432 = scmp.eq.s32.totalorder %s35, 0
      %p433 = por %p431, %p432
      %s435 = sadd.s32 %s434, 1
      %p438 = scmp.eq.s32.totalorder %s29, 1
      %p439 = scmp.ne.s32.totalorder %s434, %s436
      %p440 = scmp.eq.s32.totalorder %s29, 0
      %p441 = por %p439, %p440
      %p442 = scmp.ne.s32.totalorder %s434, %s436
      %p443 = scmp.eq.s32.totalorder %s34, 1
      %p444 = por %p442, %p443
      %p445 = scmp.ne.s32.totalorder %s436, %s437
      %p446 = scmp.eq.s32.totalorder %s34, 0
      %p447 = por %p445, %p446
      %p448 = scmp.ne.s32.totalorder %s436, %s437
      %p449 = scmp.eq.s32.totalorder %s35, 1
      %p450 = por %p448, %p449
      %p452 = scmp.ne.s32.totalorder %s437, %s451
      %p453 = scmp.eq.s32.totalorder %s35, 0
      %p454 = por %p452, %p453
      %s456 = sadd.s32 %s455, 1
      %p459 = scmp.eq.s32.totalorder %s29, 1
      %p460 = scmp.ne.s32.totalorder %s455, %s457
      %p461 = scmp.eq.s32.totalorder %s29, 0
      %p462 = por %p460, %p461
      %p463 = scmp.ne.s32.totalorder %s455, %s457
      %p464 = scmp.eq.s32.totalorder %s34, 1
      %p465 = por %p463, %p464
      %p466 = scmp.ne.s32.totalorder %s457, %s458
      %p467 = scmp.eq.s32.totalorder %s34, 0
      %p468 = por %p466, %p467
      %p469 = scmp.ne.s32.totalorder %s457, %s458
      %p470 = scmp.eq.s32.totalorder %s35, 1
      %p471 = por %p469, %p470
      %p473 = scmp.ne.s32.totalorder %s458, %s472
      %p474 = scmp.eq.s32.totalorder %s35, 0
      %p475 = por %p473, %p474
      %s477 = sadd.s32 %s476, 1
      %p480 = scmp.eq.s32.totalorder %s29, 1
      %p481 = scmp.ne.s32.totalorder %s476, %s478
      %p482 = scmp.eq.s32.totalorder %s29, 0
      %p483 = por %p481, %p482
      %p484 = scmp.ne.s32.totalorder %s476, %s478
      %p485 = scmp.eq.s32.totalorder %s34, 1
      %p486 = por %p484, %p485
      %p487 = scmp.ne.s32.totalorder %s478, %s479
      %p488 = scmp.eq.s32.totalorder %s34, 0
      %p489 = por %p487, %p488
      %p490 = scmp.ne.s32.totalorder %s478, %s479
      %p491 = scmp.eq.s32.totalorder %s35, 1
      %p492 = por %p490, %p491
      %p494 = scmp.ne.s32.totalorder %s479, %s493
      %p495 = scmp.eq.s32.totalorder %s35, 0
      %p496 = por %p494, %p495
      %s497 = ssub.s32 %s36, %s48
      %p498 = scmp.eq.s32.totalorder %s497, 0
      %s500 = sadd.s32 %s499, 1
      %s501 = scalar_select %p498, %s499, %s500
      %p504 = pneg %p498
      %p505 = scmp.eq.s32.totalorder %s29, 1
      %p506 = por %p504, %p505
      %p507 = scmp.ne.s32.totalorder %s499, %s502
      %p508 = scmp.eq.s32.totalorder %s29, 0
      %p509 = por %p507, %p508
      %p510 = scmp.ne.s32.totalorder %s499, %s502
      %p511 = scmp.eq.s32.totalorder %s34, 1
      %p512 = por %p510, %p511
      %p513 = scmp.ne.s32.totalorder %s502, %s503
      %p514 = scmp.eq.s32.totalorder %s34, 0
      %p515 = por %p513, %p514
      %p516 = scmp.ne.s32.totalorder %s502, %s503
      %p517 = scmp.eq.s32.totalorder %s35, 1
      %p518 = por %p516, %p517
      %p520 = scmp.ne.s32.totalorder %s503, %s519
      %p521 = scmp.eq.s32.totalorder %s35, 0
      %p522 = por %p520, %p521
      %p523 = scmp.le.s32.totalorder 1, %s29
      %p524 = scmp.lt.s32.totalorder %s29, 3
      %p525 = pnand %p523, %p524
      %p526 = pneg %p525
      // Predicated region
      $region9: #{dgcnn_forward.17} parent=5 // pred_check
        _
      $region10: #{dgcnn_forward.17} parent=5 // pred_check_branch
        %528 = sbr.rel (%p525) target = $region12
      $region11: #{dgcnn_forward.17} parent=5 // pred_region
        %s529 = ssub.s32 %s29, 1
        // Predicated region
        $region13: #{dgcnn_forward.17} parent=11 // pred_check
          %p530 = pneg %p174
        $region14: #{dgcnn_forward.17} parent=11 // pred_check_branch
          %532 = sbr.rel (%p530) target = $region16
        $region15: #{dgcnn_forward.17} parent=11 // pred_region
          _
        $region16: #{dgcnn_forward.17} parent=11 // pred_fallthru
          _
        // Predicated region
        $region17: #{dgcnn_forward.17} parent=11 // pred_check
          %p533 = pneg %p195
        $region18: #{dgcnn_forward.17} parent=11 // pred_check_branch
          %535 = sbr.rel (%p533) target = $region20
        $region19: #{dgcnn_forward.17} parent=11 // pred_region
          _
        $region20: #{dgcnn_forward.17} parent=11 // pred_fallthru
          _
        // Predicated region
        $region21: #{dgcnn_forward.17} parent=11 // pred_check
          %p536 = pneg %p216
        $region22: #{dgcnn_forward.17} parent=11 // pred_check_branch
          %538 = sbr.rel (%p536) target = $region24
        $region23: #{dgcnn_forward.17} parent=11 // pred_region
          _
        $region24: #{dgcnn_forward.17} parent=11 // pred_fallthru
          _
        // Predicated region
        $region25: #{dgcnn_forward.17} parent=11 // pred_check
          %p539 = pneg %p237
        $region26: #{dgcnn_forward.17} parent=11 // pred_check_branch
          %541 = sbr.rel (%p539) target = $region28
        $region27: #{dgcnn_forward.17} parent=11 // pred_region
          _
        $region28: #{dgcnn_forward.17} parent=11 // pred_fallthru
          _
        // Predicated region
        $region29: #{dgcnn_forward.17} parent=11 // pred_check
          %p542 = pneg %p258
        $region30: #{dgcnn_forward.17} parent=11 // pred_check_branch
          %544 = sbr.rel (%p542) target = $region32
        $region31: #{dgcnn_forward.17} parent=11 // pred_region
          _
        $region32: #{dgcnn_forward.17} parent=11 // pred_fallthru
          _
        // Predicated region
        $region33: #{dgcnn_forward.17} parent=11 // pred_check
          %p545 = pneg %p279
        $region34: #{dgcnn_forward.17} parent=11 // pred_check_branch
          %547 = sbr.rel (%p545) target = $region36
        $region35: #{dgcnn_forward.17} parent=11 // pred_region
          _
        $region36: #{dgcnn_forward.17} parent=11 // pred_fallthru
          _
        // Predicated region
        $region37: #{dgcnn_forward.17} parent=11 // pred_check
          %p548 = pneg %p300
        $region38: #{dgcnn_forward.17} parent=11 // pred_check_branch
          %550 = sbr.rel (%p548) target = $region40
        $region39: #{dgcnn_forward.17} parent=11 // pred_region
          _
        $region40: #{dgcnn_forward.17} parent=11 // pred_fallthru
          _
        // Predicated region
        $region41: #{dgcnn_forward.17} parent=11 // pred_check
          %p551 = pneg %p321
        $region42: #{dgcnn_forward.17} parent=11 // pred_check_branch
          %553 = sbr.rel (%p551) target = $region44
        $region43: #{dgcnn_forward.17} parent=11 // pred_region
          _
        $region44: #{dgcnn_forward.17} parent=11 // pred_fallthru
          _
        // Predicated region
        $region45: #{dgcnn_forward.17} parent=11 // pred_check
          %p554 = pneg %p342
        $region46: #{dgcnn_forward.17} parent=11 // pred_check_branch
          %556 = sbr.rel (%p554) target = $region48
        $region47: #{dgcnn_forward.17} parent=11 // pred_region
          _
        $region48: #{dgcnn_forward.17} parent=11 // pred_fallthru
          _
        // Predicated region
        $region49: #{dgcnn_forward.17} parent=11 // pred_check
          %p557 = pneg %p363
        $region50: #{dgcnn_forward.17} parent=11 // pred_check_branch
          %559 = sbr.rel (%p557) target = $region52
        $region51: #{dgcnn_forward.17} parent=11 // pred_region
          _
        $region52: #{dgcnn_forward.17} parent=11 // pred_fallthru
          _
        // Predicated region
        $region53: #{dgcnn_forward.17} parent=11 // pred_check
          %p560 = pneg %p384
        $region54: #{dgcnn_forward.17} parent=11 // pred_check_branch
          %562 = sbr.rel (%p560) target = $region56
        $region55: #{dgcnn_forward.17} parent=11 // pred_region
          _
        $region56: #{dgcnn_forward.17} parent=11 // pred_fallthru
          _
        // Predicated region
        $region57: #{dgcnn_forward.17} parent=11 // pred_check
          %p563 = pneg %p405
        $region58: #{dgcnn_forward.17} parent=11 // pred_check_branch
          %565 = sbr.rel (%p563) target = $region60
        $region59: #{dgcnn_forward.17} parent=11 // pred_region
          _
        $region60: #{dgcnn_forward.17} parent=11 // pred_fallthru
          _
        // Predicated region
        $region61: #{dgcnn_forward.17} parent=11 // pred_check
          %p566 = pneg %p426
        $region62: #{dgcnn_forward.17} parent=11 // pred_check_branch
          %568 = sbr.rel (%p566) target = $region64
        $region63: #{dgcnn_forward.17} parent=11 // pred_region
          _
        $region64: #{dgcnn_forward.17} parent=11 // pred_fallthru
          _
        // Predicated region
        $region65: #{dgcnn_forward.17} parent=11 // pred_check
          %p569 = pneg %p447
        $region66: #{dgcnn_forward.17} parent=11 // pred_check_branch
          %571 = sbr.rel (%p569) target = $region68
        $region67: #{dgcnn_forward.17} parent=11 // pred_region
          _
        $region68: #{dgcnn_forward.17} parent=11 // pred_fallthru
          _
        // Predicated region
        $region69: #{dgcnn_forward.17} parent=11 // pred_check
          %p572 = pneg %p468
        $region70: #{dgcnn_forward.17} parent=11 // pred_check_branch
          %574 = sbr.rel (%p572) target = $region72
        $region71: #{dgcnn_forward.17} parent=11 // pred_region
          _
        $region72: #{dgcnn_forward.17} parent=11 // pred_fallthru
          _
        // Predicated region
        $region73: #{dgcnn_forward.17} parent=11 // pred_check
          %p575 = pneg %p489
        $region74: #{dgcnn_forward.17} parent=11 // pred_check_branch
          %577 = sbr.rel (%p575) target = $region76
        $region75: #{dgcnn_forward.17} parent=11 // pred_region
          _
        $region76: #{dgcnn_forward.17} parent=11 // pred_fallthru
          _
      $region12: #{dgcnn_forward.17} parent=5 // pred_fallthru
        _
      %p578 = scmp.lt.s32.totalorder %s29, 2
      // Predicated region
      $region77: #{dgcnn_forward.17} parent=5 // pred_check
        %p579 = pneg %p578
      $region78: #{dgcnn_forward.17} parent=5 // pred_check_branch
        %581 = sbr.rel (%p579) target = $region80
      $region79: #{dgcnn_forward.17} parent=5 // pred_region
        // Predicated region
        $region81: #{dgcnn_forward.17} parent=79 // pred_check
          %p582 = pneg %p63
        $region82: #{dgcnn_forward.17} parent=79 // pred_check_branch
          %584 = sbr.rel (%p582) target = $region84
        $region83: #{dgcnn_forward.17} parent=79 // pred_region
          %s585 = smul.u32 2, %s37
          %p586 = scmp.lt.s32.totalorder %s36, 1
          %s587 = scalar_select %p586, %s36, 1
          %p588 = scmp.lt.s32.totalorder %s585, 1
          %s589 = scalar_select %p588, %s585, 1
          %s590 = smul.addr %s587, 2
          %s591 = sadd.s32 %s589, %s590
          %s592 = smul.addr %s591, 4
          %s593 = scalar_lea.vmem %s0, %s592
          %s594 = smul.u32 2, %s37
        $region84: #{dgcnn_forward.17} parent=79 // pred_fallthru
          _
        // Predicated region
        $region85: #{dgcnn_forward.17} parent=79 // pred_check
          %p595 = pneg %p91
        $region86: #{dgcnn_forward.17} parent=79 // pred_check_branch
          %597 = sbr.rel (%p595) target = $region88
        $region87: #{dgcnn_forward.17} parent=79 // pred_region
          %s598 = smul.u32 2, %s37
          %p599 = scmp.lt.s32.totalorder %s36, 1
          %s600 = scalar_select %p599, %s36, 1
          %p601 = scmp.lt.s32.totalorder %s598, 1
          %s602 = scalar_select %p601, %s598, 1
          %s603 = smul.addr %s600, 2
          %s604 = sadd.s32 %s602, %s603
          %s605 = smul.addr %s604, 4
          %s606 = scalar_lea.vmem %s1, %s605
          %s607 = smul.u32 2, %s37
        $region88: #{dgcnn_forward.17} parent=79 // pred_fallthru
          _
        // Predicated region
        $region89: #{dgcnn_forward.17} parent=79 // pred_check
          %p608 = pneg %p119
        $region90: #{dgcnn_forward.17} parent=79 // pred_check_branch
          %610 = sbr.rel (%p608) target = $region92
        $region91: #{dgcnn_forward.17} parent=79 // pred_region
          %s611 = smul.u32 2, %s37
          %p612 = scmp.lt.s32.totalorder %s36, 1
          %s613 = scalar_select %p612, %s36, 1
          %p614 = scmp.lt.s32.totalorder %s611, 1
          %s615 = scalar_select %p614, %s611, 1
          %s616 = smul.addr %s613, 2
          %s617 = sadd.s32 %s615, %s616
          %s618 = smul.addr %s617, 4
          %s619 = scalar_lea.vmem %s2, %s618
          %s620 = smul.u32 2, %s37
        $region92: #{dgcnn_forward.17} parent=79 // pred_fallthru
          _
        // Predicated region
        $region93: #{dgcnn_forward.17} parent=79 // pred_check
          %p621 = pneg %p147
        $region94: #{dgcnn_forward.17} parent=79 // pred_check_branch
          %623 = sbr.rel (%p621) target = $region96
        $region95: #{dgcnn_forward.17} parent=79 // pred_region
          %s624 = smul.u32 2, %s37
          %p625 = scmp.lt.s32.totalorder %s36, 1
          %s626 = scalar_select %p625, %s36, 1
          %p627 = scmp.lt.s32.totalorder %s624, 1
          %s628 = scalar_select %p627, %s624, 1
          %s629 = smul.addr %s628, 2
          %s630 = smul.addr %s626, 4
          %s631 = sadd.s32 %s629, %s630
          %s632 = smul.addr %s631, 4
          %s633 = scalar_lea.vmem %s3, %s632
          %s634 = smul.u32 2, %s37
        $region96: #{dgcnn_forward.17} parent=79 // pred_fallthru
          _
      $region80: #{dgcnn_forward.17} parent=5 // pred_fallthru
        _
      %p635 = scmp.le.s32.totalorder 1, %s29
      %p636 = scmp.lt.s32.totalorder %s29, 3
      %p637 = pnand %p635, %p636
      %p638 = pneg %p637
      // Predicated region
      $region97: #{dgcnn_forward.17} parent=5 // pred_check
        _
      $region98: #{dgcnn_forward.17} parent=5 // pred_check_branch
        %640 = sbr.rel (%p637) target = $region100
      $region99: #{dgcnn_forward.17} parent=5 // pred_region
        %s641 = ssub.s32 %s29, 1
        %s642 = smul.u32 2, %s39
        %p643 = scmp.lt.s32.totalorder %s38, 1
        %s644 = scalar_select %p643, %s38, 1
        %p645 = scmp.lt.s32.totalorder %s642, 1
        %s646 = scalar_select %p645, %s642, 1
        %s647 = smul.addr %s644, 2
        %s648 = sadd.s32 %s646, %s647
        %s649 = smul.addr %s648, 4
        %s650 = scalar_lea.vmem %s0, %s649
        %p651 = pneg %p69
        %p652 = pneg %p66
        %s653 = smul.u32 2, %s39
        %p654 = scmp.lt.s32.totalorder %s38, 1
        %s655 = scalar_select %p654, %s38, 1
        %p656 = scmp.lt.s32.totalorder %s653, 1
        %s657 = scalar_select %p656, %s653, 1
        %s658 = smul.addr %s655, 2
        %s659 = sadd.s32 %s657, %s658
        %s660 = smul.addr %s659, 4
        %s661 = scalar_lea.vmem %s1, %s660
        %p662 = pneg %p97
        %p663 = pneg %p94
        %s664 = smul.u32 2, %s39
        %p665 = scmp.lt.s32.totalorder %s38, 1
        %s666 = scalar_select %p665, %s38, 1
        %p667 = scmp.lt.s32.totalorder %s664, 1
        %s668 = scalar_select %p667, %s664, 1
        %s669 = smul.addr %s666, 2
        %s670 = sadd.s32 %s668, %s669
        %s671 = smul.addr %s670, 4
        %s672 = scalar_lea.vmem %s2, %s671
        %p673 = pneg %p125
        %p674 = pneg %p122
        %s675 = smul.u32 2, %s39
        %p676 = scmp.lt.s32.totalorder %s38, 1
        %s677 = scalar_select %p676, %s38, 1
        %p678 = scmp.lt.s32.totalorder %s675, 1
        %s679 = scalar_select %p678, %s675, 1
        %s680 = smul.addr %s679, 2
        %s681 = smul.addr %s677, 4
        %s682 = sadd.s32 %s680, %s681
        %s683 = smul.addr %s682, 4
        %s684 = scalar_lea.vmem %s3, %s683
        %p685 = pneg %p153
        %p686 = pneg %p150
        %p687 = pneg %p174
        %p688 = pneg %p171
        %p689 = pneg %p195
        %p690 = pneg %p192
        %p691 = pneg %p216
        %p692 = pneg %p213
        %p693 = pneg %p237
        %p694 = pneg %p234
        %p695 = pneg %p258
        %p696 = pneg %p255
        %p697 = pneg %p279
        %p698 = pneg %p276
        %p699 = pneg %p300
        %p700 = pneg %p297
        %p701 = pneg %p321
        %p702 = pneg %p318
        %p703 = pneg %p342
        %p704 = pneg %p339
        %p705 = pneg %p363
        %p706 = pneg %p360
        %p707 = pneg %p384
        %p708 = pneg %p381
        %p709 = pneg %p405
        %p710 = pneg %p402
        %p711 = pneg %p426
        %p712 = pneg %p423
        %p713 = pneg %p447
        %p714 = pneg %p444
        %p715 = pneg %p468
        %p716 = pneg %p465
        %p717 = pneg %p489
        %p718 = pneg %p486
        %p719 = pneg %p515
        %p720 = pneg %p512
        %s721 = sand.u32 %s502, 1
        %s722 = scalar_lea.sflag [#allocation5], %s721
        %s723 = sand.u32 %s502, 1
        %s724 = scalar_lea.vmem [#allocation4], %s723
        %s725 = smul.u32 2, %s39
        %p726 = scmp.lt.s32.totalorder %s38, 1
        %s727 = scalar_select %p726, %s38, 1
        %p728 = scmp.lt.s32.totalorder %s725, 1
        %s729 = scalar_select %p728, %s725, 1
        %s730 = smul.addr %s727, 2
        %s731 = sadd.s32 %s729, %s730
        %s732 = smul.addr %s731, 4
        %s733 = scalar_lea.vmem %s0, %s732
        %s734 = smul.u32 2, %s39
        %s735 = smul.u32 2, %s39
        %p736 = scmp.lt.s32.totalorder %s38, 1
        %s737 = scalar_select %p736, %s38, 1
        %p738 = scmp.lt.s32.totalorder %s735, 1
        %s739 = scalar_select %p738, %s735, 1
        %s740 = smul.addr %s737, 2
        %s741 = sadd.s32 %s739, %s740
        %s742 = smul.addr %s741, 4
        %s743 = scalar_lea.vmem %s1, %s742
        %s744 = smul.u32 2, %s39
        %s745 = smul.u32 2, %s39
        %p746 = scmp.lt.s32.totalorder %s38, 1
        %s747 = scalar_select %p746, %s38, 1
        %p748 = scmp.lt.s32.totalorder %s745, 1
        %s749 = scalar_select %p748, %s745, 1
        %s750 = smul.addr %s747, 2
        %s751 = sadd.s32 %s749, %s750
        %s752 = smul.addr %s751, 4
        %s753 = scalar_lea.vmem %s2, %s752
        %s754 = smul.u32 2, %s39
        %s755 = smul.u32 2, %s39
        %p756 = scmp.lt.s32.totalorder %s38, 1
        %s757 = scalar_select %p756, %s38, 1
        %p758 = scmp.lt.s32.totalorder %s755, 1
        %s759 = scalar_select %p758, %s755, 1
        %s760 = smul.addr %s759, 2
        %s761 = smul.addr %s757, 4
        %s762 = sadd.s32 %s760, %s761
        %s763 = smul.addr %s762, 4
        %s764 = scalar_lea.vmem %s3, %s763
        %s765 = smul.u32 2, %s39
        %p767 = scmp.eq.s32.totalorder %s39, 0
        // Predicated region
        $region101: #{dgcnn_forward.17} parent=99 // pred_check
          %p768 = pneg %p767
        $region102: #{dgcnn_forward.17} parent=99 // pred_check_branch
          %770 = sbr.rel (%p768) target = $region104
        $region103: #{dgcnn_forward.17} parent=99 // pred_region
          %vm771 = vcmask 516096
          %772 = vst.msk [vmem:[#allocation2] sm:$0x1] %vm771, -inf
          %773 = vst.msk [vmem:[#allocation3] sm:$0x1] %vm771, 0.0
        $region104: #{dgcnn_forward.17} parent=99 // pred_fallthru
          _
        %v774 = vld [vmem:[%s733] sm:$0xf]
        %v775 = vld [vmem:[%s733 + $0x4] sm:$0xf]
        %v776 = vld [vmem:[%s4] sm:$0xf]
        %v777 = vld [vmem:[%s4 + $0x4] sm:$0xf]
        %v778 = vld [vmem:[%s4 + $0x8] sm:$0xf]
        %v779 = vld [vmem:[%s4 + $0xc] sm:$0xf]
        %v780 = vld [vmem:[%s4 + $0x10] sm:$0xf]
        %v781 = vld [vmem:[%s4 + $0x14] sm:$0xf]
        %v782 = vld [vmem:[%s4 + $0x18] sm:$0xf]
        %v783 = vld [vmem:[%s4 + $0x1c] sm:$0xf]
        %v784 = vld [vmem:[%s743] sm:$0xf]
        %v785 = vld [vmem:[%s743 + $0x4] sm:$0xf]
        %v786 = vld [vmem:[%s5] sm:$0xf]
        %v787 = vld [vmem:[%s5 + $0x4] sm:$0xf]
        %v788 = vld [vmem:[%s5 + $0x8] sm:$0xf]
        %v789 = vld [vmem:[%s5 + $0xc] sm:$0xf]
        %v790 = vld [vmem:[%s5 + $0x10] sm:$0xf]
        %v791 = vld [vmem:[%s5 + $0x14] sm:$0xf]
        %v792 = vld [vmem:[%s5 + $0x18] sm:$0xf]
        %v793 = vld [vmem:[%s5 + $0x1c] sm:$0xf]
        %v796 = vunpack.c.l.b16 %v784
        %v797 = vunpack.c.l.b16 %v785
        %v798 = vpack.c.b16 %v797, %v796
        %v807 = vunpack.c.l.b16 %v786
        %v808 = vunpack.c.l.b16 %v787
        %v809 = vunpack.c.l.b16 %v788
        %v810 = vunpack.c.l.b16 %v789
        %v811 = vunpack.c.l.b16 %v790
        %v812 = vunpack.c.l.b16 %v791
        %v813 = vunpack.c.l.b16 %v792
        %v814 = vunpack.c.l.b16 %v793
        %v815 = vpack.c.b16 %v808, %v807
        %v816 = vpack.c.b16 %v810, %v809
        %v817 = vpack.c.b16 %v812, %v811
        %v818 = vpack.c.b16 %v814, %v813
        %vm823 = vcmask 523264
        %v825 = vsel %vm823, %v798, 0
        %827 = vmatprep.subr.bf16.mxu0 0
        %828 = vmatpush1.bf16.msra.mxu0 %v815
        %829 = vmatprep.subr.bf16.mxu0 0
        %830 = vmatpush1.bf16.msra.mxu0 %v816
        %831 = vmatprep.subr.bf16.mxu0 0
        %832 = vmatpush1.bf16.msra.mxu0 %v817
        %833 = vmatprep.subr.bf16.mxu0 0
        %834 = vmatpush1.bf16.msra.mxu0 %v818
        %835 = vmatprep.subr.bf16.mxu0 0
        %836 = vmatpush1.bf16.msra.mxu0 0
        %837 = vmatprep.subr.bf16.mxu0 0
        %838 = vmatpush1.bf16.msra.mxu0 0
        %839 = vmatprep.subr.bf16.mxu0 0
        %840 = vmatpush1.bf16.msra.mxu0 0
        %841 = vmatprep.subr.bf16.mxu0 0
        %842 = vmatpush1.bf16.msra.mxu0 0
        %843 = vmatprep.subr.bf16.mxu0 0
        %844 = vmatpush1.bf16.msra.mxu0 0
        %845 = vmatprep.subr.bf16.mxu0 0
        %846 = vmatpush1.bf16.msra.mxu0 0
        %847 = vmatprep.subr.bf16.mxu0 0
        %848 = vmatpush1.bf16.msra.mxu0 0
        %849 = vmatprep.subr.bf16.mxu0 0
        %850 = vmatpush1.bf16.msra.mxu0 0
        %851 = vmatprep.subr.bf16.mxu0 0
        %852 = vmatpush1.bf16.msra.mxu0 0
        %853 = vmatprep.subr.bf16.mxu0 0
        %854 = vmatpush1.bf16.msra.mxu0 0
        %855 = vmatprep.subr.bf16.mxu0 0
        %856 = vmatpush1.bf16.msra.mxu0 0
        %857 = vmatprep.subr.bf16.mxu0 0
        %858 = vmatpush1.bf16.msra.mxu0 0
        %859 = vmatprep.mubr.bf16.mxu0 0
        %860 = vmatmul.mubr.bf16.gmra.mrb[0].mxu0 %v825
        %v861 = vpop.f32.mrb[0].mxu0
        %v862 = vadd.f32 0.0, %v861
        %v863 = vpop.f32.mrb[0].mxu0
        %v864 = vpop.f32.mrb[0].mxu0
        %v865 = vadd.f32 0.0, %v864
        %v866 = vpop.f32.mrb[0].mxu0
        %867 = vdwg.mxu0
        %v870 = vunpack.c.l.b16 %v774
        %v871 = vunpack.c.l.b16 %v775
        %v872 = vpack.c.b16 %v871, %v870
        %v881 = vunpack.c.l.b16 %v776
        %v882 = vunpack.c.l.b16 %v777
        %v883 = vunpack.c.l.b16 %v778
        %v884 = vunpack.c.l.b16 %v779
        %v885 = vunpack.c.l.b16 %v780
        %v886 = vunpack.c.l.b16 %v781
        %v887 = vunpack.c.l.b16 %v782
        %v888 = vunpack.c.l.b16 %v783
        %v889 = vpack.c.b16 %v882, %v881
        %v890 = vpack.c.b16 %v884, %v883
        %v891 = vpack.c.b16 %v886, %v885
        %v892 = vpack.c.b16 %v888, %v887
        %v898 = vsel %vm823, %v872, 0
        %900 = vmatprep.subr.bf16.mxu0 0
        %901 = vmatpush1.bf16.msra.mxu0 %v889
        %902 = vmatprep.subr.bf16.mxu0 0
        %903 = vmatpush1.bf16.msra.mxu0 %v890
        %904 = vmatprep.subr.bf16.mxu0 0
        %905 = vmatpush1.bf16.msra.mxu0 %v891
        %906 = vmatprep.subr.bf16.mxu0 0
        %907 = vmatpush1.bf16.msra.mxu0 %v892
        %908 = vmatprep.subr.bf16.mxu0 0
        %909 = vmatpush1.bf16.msra.mxu0 0
        %910 = vmatprep.subr.bf16.mxu0 0
        %911 = vmatpush1.bf16.msra.mxu0 0
        %912 = vmatprep.subr.bf16.mxu0 0
        %913 = vmatpush1.bf16.msra.mxu0 0
        %914 = vmatprep.subr.bf16.mxu0 0
        %915 = vmatpush1.bf16.msra.mxu0 0
        %916 = vmatprep.subr.bf16.mxu0 0
        %917 = vmatpush1.bf16.msra.mxu0 0
        %918 = vmatprep.subr.bf16.mxu0 0
        %919 = vmatpush1.bf16.msra.mxu0 0
        %920 = vmatprep.subr.bf16.mxu0 0
        %921 = vmatpush1.bf16.msra.mxu0 0
        %922 = vmatprep.subr.bf16.mxu0 0
        %923 = vmatpush1.bf16.msra.mxu0 0
        %924 = vmatprep.subr.bf16.mxu0 0
        %925 = vmatpush1.bf16.msra.mxu0 0
        %926 = vmatprep.subr.bf16.mxu0 0
        %927 = vmatpush1.bf16.msra.mxu0 0
        %928 = vmatprep.subr.bf16.mxu0 0
        %929 = vmatpush1.bf16.msra.mxu0 0
        %930 = vmatprep.subr.bf16.mxu0 0
        %931 = vmatpush1.bf16.msra.mxu0 0
        %932 = vmatprep.mubr.bf16.mxu0 0
        %933 = vmatmul.mubr.bf16.gmra.mrb[0].mxu0 %v898
        %v934 = vpop.f32.mrb[0].mxu0
        %v935 = vadd.f32 %v862, %v934
        %v936 = vpop.f32.mrb[0].mxu0
        %v937 = vpop.f32.mrb[0].mxu0
        %v938 = vadd.f32 %v865, %v937
        %v939 = vpop.f32.mrb[0].mxu0
        %940 = vdwg.mxu0
        %v941 = vld [vmem:[%s753] sm:$0xf]
        %v942 = vld [vmem:[%s753 + $0x4] sm:$0xf]
        %v943 = vld [vmem:[%s6] sm:$0xf]
        %v944 = vld [vmem:[%s6 + $0x4] sm:$0xf]
        %v945 = vld [vmem:[%s6 + $0x8] sm:$0xf]
        %v946 = vld [vmem:[%s6 + $0xc] sm:$0xf]
        %v947 = vld [vmem:[%s6 + $0x10] sm:$0xf]
        %v948 = vld [vmem:[%s6 + $0x14] sm:$0xf]
        %v949 = vld [vmem:[%s6 + $0x18] sm:$0xf]
        %v950 = vld [vmem:[%s6 + $0x1c] sm:$0xf]
        %v951 = vld [vmem:[%s6 + $0x20] sm:$0xf]
        %v952 = vld [vmem:[%s6 + $0x24] sm:$0xf]
        %v953 = vld [vmem:[%s6 + $0x28] sm:$0xf]
        %v954 = vld [vmem:[%s6 + $0x2c] sm:$0xf]
        %v955 = vld [vmem:[%s6 + $0x30] sm:$0xf]
        %v956 = vld [vmem:[%s6 + $0x34] sm:$0xf]
        %v957 = vld [vmem:[%s6 + $0x38] sm:$0xf]
        %v958 = vld [vmem:[%s6 + $0x3c] sm:$0xf]
        %v961 = vunpack.c.l.b16 %v941
        %v962 = vunpack.c.l.b16 %v942
        %v963 = vpack.c.b16 %v962, %v961
        %v981 = vunpack.c.l.b16 %v943
        %v982 = vunpack.c.l.b16 %v944
        %v983 = vunpack.c.l.b16 %v945
        %v984 = vunpack.c.l.b16 %v946
        %v985 = vunpack.c.l.b16 %v947
        %v986 = vunpack.c.l.b16 %v948
        %v987 = vunpack.c.l.b16 %v949
        %v988 = vunpack.c.l.b16 %v950
        %v989 = vunpack.c.l.b16 %v951
        %v990 = vunpack.c.l.b16 %v952
        %v991 = vunpack.c.l.b16 %v953
        %v992 = vunpack.c.l.b16 %v954
        %v993 = vunpack.c.l.b16 %v955
        %v994 = vunpack.c.l.b16 %v956
        %v995 = vunpack.c.l.b16 %v957
        %v996 = vunpack.c.l.b16 %v958
        %v997 = vpack.c.b16 %v982, %v981
        %v998 = vpack.c.b16 %v984, %v983
        %v999 = vpack.c.b16 %v986, %v985
        %v1000 = vpack.c.b16 %v988, %v987
        %v1001 = vpack.c.b16 %v990, %v989
        %v1002 = vpack.c.b16 %v992, %v991
        %v1003 = vpack.c.b16 %v994, %v993
        %v1004 = vpack.c.b16 %v996, %v995
        %1013 = vmatprep.subr.bf16.mxu0 0
        %1014 = vmatpush1.bf16.msra.mxu0 %v997
        %1015 = vmatprep.subr.bf16.mxu0 0
        %1016 = vmatpush1.bf16.msra.mxu0 %v998
        %1017 = vmatprep.subr.bf16.mxu0 0
        %1018 = vmatpush1.bf16.msra.mxu0 %v999
        %1019 = vmatprep.subr.bf16.mxu0 0
        %1020 = vmatpush1.bf16.msra.mxu0 %v1000
        %1021 = vmatprep.subr.bf16.mxu0 0
        %1022 = vmatpush1.bf16.msra.mxu0 %v1001
        %1023 = vmatprep.subr.bf16.mxu0 0
        %1024 = vmatpush1.bf16.msra.mxu0 %v1002
        %1025 = vmatprep.subr.bf16.mxu0 0
        %1026 = vmatpush1.bf16.msra.mxu0 %v1003
        %1027 = vmatprep.subr.bf16.mxu0 0
        %1028 = vmatpush1.bf16.msra.mxu0 %v1004
        %1029 = vmatprep.subr.bf16.mxu0 0
        %1030 = vmatpush1.bf16.msra.mxu0 0
        %1031 = vmatprep.subr.bf16.mxu0 0
        %1032 = vmatpush1.bf16.msra.mxu0 0
        %1033 = vmatprep.subr.bf16.mxu0 0
        %1034 = vmatpush1.bf16.msra.mxu0 0
        %1035 = vmatprep.subr.bf16.mxu0 0
        %1036 = vmatpush1.bf16.msra.mxu0 0
        %1037 = vmatprep.subr.bf16.mxu0 0
        %1038 = vmatpush1.bf16.msra.mxu0 0
        %1039 = vmatprep.subr.bf16.mxu0 0
        %1040 = vmatpush1.bf16.msra.mxu0 0
        %1041 = vmatprep.subr.bf16.mxu0 0
        %1042 = vmatpush1.bf16.msra.mxu0 0
        %1043 = vmatprep.subr.bf16.mxu0 0
        %1044 = vmatpush1.bf16.msra.mxu0 0
        %1045 = vmatprep.mubr.bf16.mxu0 0
        %1046 = vmatmul.mubr.bf16.gmra.mrb[0].mxu0 %v963
        %v1047 = vpop.f32.mrb[0].mxu0
        %v1048 = vadd.f32 0.0, %v1047
        %v1049 = vpop.f32.mrb[0].mxu0
        %v1050 = vpop.f32.mrb[0].mxu0
        %v1051 = vadd.f32 0.0, %v1050
        %v1052 = vpop.f32.mrb[0].mxu0
        %1053 = vdwg.mxu0
        %v1054 = vadd.f32 %v935, %v1048
        %v1055 = vadd.f32 %v938, %v1051
        %v1056 = vld [vmem:[%s764] sm:$0xff]
        %v1057 = vld [vmem:[%s764 + $0x8] sm:$0xff]
        %v1058 = vld [vmem:[%s7] sm:$0xf]
        %v1059 = vld [vmem:[%s7 + $0x4] sm:$0xf]
        %v1060 = vld [vmem:[%s7 + $0x8] sm:$0xf]
        %v1061 = vld [vmem:[%s7 + $0xc] sm:$0xf]
        %v1062 = vld [vmem:[%s7 + $0x10] sm:$0xf]
        %v1063 = vld [vmem:[%s7 + $0x14] sm:$0xf]
        %v1064 = vld [vmem:[%s7 + $0x18] sm:$0xf]
        %v1065 = vld [vmem:[%s7 + $0x1c] sm:$0xf]
        %v1066 = vld [vmem:[%s7 + $0x20] sm:$0xf]
        %v1067 = vld [vmem:[%s7 + $0x24] sm:$0xf]
        %v1068 = vld [vmem:[%s7 + $0x28] sm:$0xf]
        %v1069 = vld [vmem:[%s7 + $0x2c] sm:$0xf]
        %v1070 = vld [vmem:[%s7 + $0x30] sm:$0xf]
        %v1071 = vld [vmem:[%s7 + $0x34] sm:$0xf]
        %v1072 = vld [vmem:[%s7 + $0x38] sm:$0xf]
        %v1073 = vld [vmem:[%s7 + $0x3c] sm:$0xf]
        %v1074 = vld [vmem:[%s7 + $0x40] sm:$0xf]
        %v1075 = vld [vmem:[%s7 + $0x44] sm:$0xf]
        %v1076 = vld [vmem:[%s7 + $0x48] sm:$0xf]
        %v1077 = vld [vmem:[%s7 + $0x4c] sm:$0xf]
        %v1078 = vld [vmem:[%s7 + $0x50] sm:$0xf]
        %v1079 = vld [vmem:[%s7 + $0x54] sm:$0xf]
        %v1080 = vld [vmem:[%s7 + $0x58] sm:$0xf]
        %v1081 = vld [vmem:[%s7 + $0x5c] sm:$0xf]
        %v1082 = vld [vmem:[%s7 + $0x60] sm:$0xf]
        %v1083 = vld [vmem:[%s7 + $0x64] sm:$0xf]
        %v1084 = vld [vmem:[%s7 + $0x68] sm:$0xf]
        %v1085 = vld [vmem:[%s7 + $0x6c] sm:$0xf]
        %v1086 = vld [vmem:[%s7 + $0x70] sm:$0xf]
        %v1087 = vld [vmem:[%s7 + $0x74] sm:$0xf]
        %v1088 = vld [vmem:[%s7 + $0x78] sm:$0xf]
        %v1089 = vld [vmem:[%s7 + $0x7c] sm:$0xf]
        %v1092 = vunpack.c.l.b16 %v1056
        %v1093 = vunpack.c.h.b16 %v1056
        %v1094 = vunpack.c.l.b16 %v1057
        %v1095 = vunpack.c.h.b16 %v1057
        %v1096 = vpack.c.b16 %v1094, %v1092
        %v1097 = vpack.c.b16 %v1095, %v1093
        %v1132 = vunpack.c.l.b16 %v1058
        %v1133 = vunpack.c.l.b16 %v1059
        %v1134 = vunpack.c.l.b16 %v1060
        %v1135 = vunpack.c.l.b16 %v1061
        %v1136 = vunpack.c.l.b16 %v1062
        %v1137 = vunpack.c.l.b16 %v1063
        %v1138 = vunpack.c.l.b16 %v1064
        %v1139 = vunpack.c.l.b16 %v1065
        %v1140 = vunpack.c.l.b16 %v1066
        %v1141 = vunpack.c.l.b16 %v1067
        %v1142 = vunpack.c.l.b16 %v1068
        %v1143 = vunpack.c.l.b16 %v1069
        %v1144 = vunpack.c.l.b16 %v1070
        %v1145 = vunpack.c.l.b16 %v1071
        %v1146 = vunpack.c.l.b16 %v1072
        %v1147 = vunpack.c.l.b16 %v1073
        %v1148 = vunpack.c.l.b16 %v1074
        %v1149 = vunpack.c.l.b16 %v1075
        %v1150 = vunpack.c.l.b16 %v1076
        %v1151 = vunpack.c.l.b16 %v1077
        %v1152 = vunpack.c.l.b16 %v1078
        %v1153 = vunpack.c.l.b16 %v1079
        %v1154 = vunpack.c.l.b16 %v1080
        %v1155 = vunpack.c.l.b16 %v1081
        %v1156 = vunpack.c.l.b16 %v1082
        %v1157 = vunpack.c.l.b16 %v1083
        %v1158 = vunpack.c.l.b16 %v1084
        %v1159 = vunpack.c.l.b16 %v1085
        %v1160 = vunpack.c.l.b16 %v1086
        %v1161 = vunpack.c.l.b16 %v1087
        %v1162 = vunpack.c.l.b16 %v1088
        %v1163 = vunpack.c.l.b16 %v1089
        %v1164 = vpack.c.b16 %v1133, %v1132
        %v1165 = vpack.c.b16 %v1135, %v1134
        %v1166 = vpack.c.b16 %v1137, %v1136
        %v1167 = vpack.c.b16 %v1139, %v1138
        %v1168 = vpack.c.b16 %v1141, %v1140
        %v1169 = vpack.c.b16 %v1143, %v1142
        %v1170 = vpack.c.b16 %v1145, %v1144
        %v1171 = vpack.c.b16 %v1147, %v1146
        %v1172 = vpack.c.b16 %v1149, %v1148
        %v1173 = vpack.c.b16 %v1151, %v1150
        %v1174 = vpack.c.b16 %v1153, %v1152
        %v1175 = vpack.c.b16 %v1155, %v1154
        %v1176 = vpack.c.b16 %v1157, %v1156
        %v1177 = vpack.c.b16 %v1159, %v1158
        %v1178 = vpack.c.b16 %v1161, %v1160
        %v1179 = vpack.c.b16 %v1163, %v1162
        %1196 = vmatprep.subr.bf16.mxu0 0
        %1197 = vmatpush1.bf16.msra.mxu0 %v1164
        %1198 = vmatprep.subr.bf16.mxu0 0
        %1199 = vmatpush1.bf16.msra.mxu0 %v1165
        %1200 = vmatprep.subr.bf16.mxu0 0
        %1201 = vmatpush1.bf16.msra.mxu0 %v1166
        %1202 = vmatprep.subr.bf16.mxu0 0
        %1203 = vmatpush1.bf16.msra.mxu0 %v1167
        %1204 = vmatprep.subr.bf16.mxu0 0
        %1205 = vmatpush1.bf16.msra.mxu0 %v1168
        %1206 = vmatprep.subr.bf16.mxu0 0
        %1207 = vmatpush1.bf16.msra.mxu0 %v1169
        %1208 = vmatprep.subr.bf16.mxu0 0
        %1209 = vmatpush1.bf16.msra.mxu0 %v1170
        %1210 = vmatprep.subr.bf16.mxu0 0
        %1211 = vmatpush1.bf16.msra.mxu0 %v1171
        %1212 = vmatprep.subr.bf16.mxu0 0
        %1213 = vmatpush1.bf16.msra.mxu0 %v1172
        %1214 = vmatprep.subr.bf16.mxu0 0
        %1215 = vmatpush1.bf16.msra.mxu0 %v1173
        %1216 = vmatprep.subr.bf16.mxu0 0
        %1217 = vmatpush1.bf16.msra.mxu0 %v1174
        %1218 = vmatprep.subr.bf16.mxu0 0
        %1219 = vmatpush1.bf16.msra.mxu0 %v1175
        %1220 = vmatprep.subr.bf16.mxu0 0
        %1221 = vmatpush1.bf16.msra.mxu0 %v1176
        %1222 = vmatprep.subr.bf16.mxu0 0
        %1223 = vmatpush1.bf16.msra.mxu0 %v1177
        %1224 = vmatprep.subr.bf16.mxu0 0
        %1225 = vmatpush1.bf16.msra.mxu0 %v1178
        %1226 = vmatprep.subr.bf16.mxu0 0
        %1227 = vmatpush1.bf16.msra.mxu0 %v1179
        %1228 = vmatprep.mubr.bf16.mxu0 %v1097
        %1229 = vmatmul.mubr.bf16.gmra.mrb[0].mxu0 %v1096
        %v1230 = vpop.f32.mrb[0].mxu0
        %v1231 = vadd.f32 0.0, %v1230
        %v1232 = vpop.f32.mrb[0].mxu0
        %v1233 = vpop.f32.mrb[0].mxu0
        %v1234 = vadd.f32 0.0, %v1233
        %v1235 = vpop.f32.mrb[0].mxu0
        %1236 = vdwg.mxu0
        %v1237 = vadd.f32 %v1054, %v1231
        %v1238 = vadd.f32 %v1055, %v1234
        %v1239 = vld [vmem:[%s8] sm:$0x1]
        %v1241 = vlaneseq
        %v1242 = vshrl.u32 %v1241, 7
        %v1243 = vsub.s32 0, %v1242
        %v1244 = vrot.slane %v1239, %v1243
        %v1246 = vmul.f32 %v1237, %v1244
        %v1247 = vmul.f32 %v1238, %v1244
        %v1248 = vld [vmem:[%s9] sm:$0x1]
        %v1250 = vlaneseq
        %v1251 = vshrl.u32 %v1250, 7
        %v1252 = vsub.s32 0, %v1251
        %v1253 = vrot.slane %v1248, %v1252
        %v1255 = vadd.f32 %v1246, %v1253
        %v1256 = vadd.f32 %v1247, %v1253
        %v1257 = vmul.f32 %v1255, 0.2
        %v1258 = vmul.f32 %v1256, 0.2
        %v1259 = vmax.f32 %v1255, %v1257
        %v1260 = vmax.f32 %v1256, %v1258
        %v1261 = vld [vmem:[#allocation2] sm:$0x1]
        %v1262 = vsel %vm823, %v1259, -inf
        %v1263 = vsel %vm823, %v1260, -inf
        %v1264 = vmax.f32 %v1262, %v1263
        %v1265 = vrot.slane %v1264, 4
        %v1266 = vmax.f32 %v1264, %v1265
        %v1267 = vrot.slane %v1266, 2
        %v1268 = vmax.f32 %v1266, %v1267
        %v1269 = vrot.slane %v1268, 1
        %v1270 = vmax.f32 %v1268, %v1269
        %v1271 = vmax.f32 %v1261, %v1270
        %vm1272 = vcmask 516096
        %1273 = vst.msk [vmem:[#allocation2] sm:$0x1] %vm1272, %v1271
        %v1274 = vld [vmem:[#allocation3] sm:$0x1]
        %v1275 = vsel %vm823, %v1259, 0.0
        %v1276 = vsel %vm823, %v1260, 0.0
        %v1277 = vadd.f32 %v1275, %v1276
        %v1278 = vrot.slane %v1277, 4
        %v1279 = vadd.f32 %v1277, %v1278
        %v1280 = vrot.slane %v1279, 2
        %v1281 = vadd.f32 %v1279, %v1280
        %v1282 = vrot.slane %v1281, 1
        %v1283 = vadd.f32 %v1281, %v1282
        %v1284 = vadd.f32 %v1274, %v1283
        %1285 = vst.msk [vmem:[#allocation3] sm:$0x1] %vm1272, %v1284
        // Predicated region
        $region105: #{dgcnn_forward.17} parent=99 // pred_check
          %p1286 = pneg %p767
        $region106: #{dgcnn_forward.17} parent=99 // pred_check_branch
          %1288 = sbr.rel (%p1286) target = $region108
        $region107: #{dgcnn_forward.17} parent=99 // pred_region
          %v1289 = vld [vmem:[#allocation2] sm:$0x1]
          %v1290 = vld [vmem:[#allocation3] sm:$0x1]
          %v1291 = vmul.f32 %v1290, 0.0625
          %v1292 = vpack.c.bf16 %v1289, %v1289
          %v1293 = vld [vmem:[%s10] sm:$0xff]
          %v1294 = vld [vmem:[%s10 + $0x8] sm:$0xff]
          %v1295 = vld [vmem:[%s10 + $0x10] sm:$0xff]
          %v1296 = vld [vmem:[%s10 + $0x18] sm:$0xff]
          %v1297 = vld [vmem:[%s10 + $0x20] sm:$0xff]
          %v1298 = vld [vmem:[%s10 + $0x28] sm:$0xff]
          %v1299 = vld [vmem:[%s10 + $0x30] sm:$0xff]
          %v1300 = vld [vmem:[%s10 + $0x38] sm:$0xff]
          %v1301 = vld [vmem:[%s10 + $0x40] sm:$0xff]
          %v1302 = vld [vmem:[%s10 + $0x48] sm:$0xff]
          %v1303 = vld [vmem:[%s10 + $0x50] sm:$0xff]
          %v1304 = vld [vmem:[%s10 + $0x58] sm:$0xff]
          %v1305 = vld [vmem:[%s10 + $0x60] sm:$0xff]
          %v1306 = vld [vmem:[%s10 + $0x68] sm:$0xff]
          %v1307 = vld [vmem:[%s10 + $0x70] sm:$0xff]
          %v1308 = vld [vmem:[%s10 + $0x78] sm:$0xff]
          %v1309 = vpack.c.bf16 %v1291, %v1291
          %v1310 = vld [vmem:[%s11] sm:$0xff]
          %v1311 = vld [vmem:[%s11 + $0x8] sm:$0xff]
          %v1312 = vld [vmem:[%s11 + $0x10] sm:$0xff]
          %v1313 = vld [vmem:[%s11 + $0x18] sm:$0xff]
          %v1314 = vld [vmem:[%s11 + $0x20] sm:$0xff]
          %v1315 = vld [vmem:[%s11 + $0x28] sm:$0xff]
          %v1316 = vld [vmem:[%s11 + $0x30] sm:$0xff]
          %v1317 = vld [vmem:[%s11 + $0x38] sm:$0xff]
          %v1318 = vld [vmem:[%s11 + $0x40] sm:$0xff]
          %v1319 = vld [vmem:[%s11 + $0x48] sm:$0xff]
          %v1320 = vld [vmem:[%s11 + $0x50] sm:$0xff]
          %v1321 = vld [vmem:[%s11 + $0x58] sm:$0xff]
          %v1322 = vld [vmem:[%s11 + $0x60] sm:$0xff]
          %v1323 = vld [vmem:[%s11 + $0x68] sm:$0xff]
          %v1324 = vld [vmem:[%s11 + $0x70] sm:$0xff]
          %v1325 = vld [vmem:[%s11 + $0x78] sm:$0xff]
          %v1342 = vunpack.c.l.b16 %v1310
          %v1343 = vunpack.c.h.b16 %v1310
          %v1344 = vunpack.c.l.b16 %v1311
          %v1345 = vunpack.c.h.b16 %v1311
          %v1346 = vunpack.c.l.b16 %v1312
          %v1347 = vunpack.c.h.b16 %v1312
          %v1348 = vunpack.c.l.b16 %v1313
          %v1349 = vunpack.c.h.b16 %v1313
          %v1350 = vunpack.c.l.b16 %v1314
          %v1351 = vunpack.c.h.b16 %v1314
          %v1352 = vunpack.c.l.b16 %v1315
          %v1353 = vunpack.c.h.b16 %v1315
          %v1354 = vunpack.c.l.b16 %v1316
          %v1355 = vunpack.c.h.b16 %v1316
          %v1356 = vunpack.c.l.b16 %v1317
          %v1357 = vunpack.c.h.b16 %v1317
          %v1358 = vunpack.c.l.b16 %v1318
          %v1359 = vunpack.c.h.b16 %v1318
          %v1360 = vunpack.c.l.b16 %v1319
          %v1361 = vunpack.c.h.b16 %v1319
          %v1362 = vunpack.c.l.b16 %v1320
          %v1363 = vunpack.c.h.b16 %v1320
          %v1364 = vunpack.c.l.b16 %v1321
          %v1365 = vunpack.c.h.b16 %v1321
          %v1366 = vunpack.c.l.b16 %v1322
          %v1367 = vunpack.c.h.b16 %v1322
          %v1368 = vunpack.c.l.b16 %v1323
          %v1369 = vunpack.c.h.b16 %v1323
          %v1370 = vunpack.c.l.b16 %v1324
          %v1371 = vunpack.c.h.b16 %v1324
          %v1372 = vunpack.c.l.b16 %v1325
          %v1373 = vunpack.c.h.b16 %v1325
          %v1374 = vpack.c.b16 %v1346, %v1342
          %v1375 = vpack.c.b16 %v1347, %v1343
          %v1376 = vpack.c.b16 %v1348, %v1344
          %v1377 = vpack.c.b16 %v1349, %v1345
          %v1378 = vpack.c.b16 %v1354, %v1350
          %v1379 = vpack.c.b16 %v1355, %v1351
          %v1380 = vpack.c.b16 %v1356, %v1352
          %v1381 = vpack.c.b16 %v1357, %v1353
          %v1382 = vpack.c.b16 %v1362, %v1358
          %v1383 = vpack.c.b16 %v1363, %v1359
          %v1384 = vpack.c.b16 %v1364, %v1360
          %v1385 = vpack.c.b16 %v1365, %v1361
          %v1386 = vpack.c.b16 %v1370, %v1366
          %v1387 = vpack.c.b16 %v1371, %v1367
          %v1388 = vpack.c.b16 %v1372, %v1368
          %v1389 = vpack.c.b16 %v1373, %v1369
          %v1407 = vsel %vm823, %v1309, 0
          %1409 = vmatprep.subr.bf16.mxu0 %v1375
          %1410 = vmatpush1.bf16.msra.mxu0 %v1374
          %1411 = vmatprep.subr.bf16.mxu0 %v1379
          %1412 = vmatpush1.bf16.msra.mxu0 %v1378
          %1413 = vmatprep.subr.bf16.mxu0 %v1383
          %1414 = vmatpush1.bf16.msra.mxu0 %v1382
          %1415 = vmatprep.subr.bf16.mxu0 %v1387
          %1416 = vmatpush1.bf16.msra.mxu0 %v1386
          %1417 = vmatprep.subr.bf16.mxu0 0
          %1418 = vmatpush1.bf16.msra.mxu0 0
          %1419 = vmatprep.subr.bf16.mxu0 0
          %1420 = vmatpush1.bf16.msra.mxu0 0
          %1421 = vmatprep.subr.bf16.mxu0 0
          %1422 = vmatpush1.bf16.msra.mxu0 0
          %1423 = vmatprep.subr.bf16.mxu0 0
          %1424 = vmatpush1.bf16.msra.mxu0 0
          %1425 = vmatprep.subr.bf16.mxu0 0
          %1426 = vmatpush1.bf16.msra.mxu0 0
          %1427 = vmatprep.subr.bf16.mxu0 0
          %1428 = vmatpush1.bf16.msra.mxu0 0
          %1429 = vmatprep.subr.bf16.mxu0 0
          %1430 = vmatpush1.bf16.msra.mxu0 0
          %1431 = vmatprep.subr.bf16.mxu0 0
          %1432 = vmatpush1.bf16.msra.mxu0 0
          %1433 = vmatprep.subr.bf16.mxu0 0
          %1434 = vmatpush1.bf16.msra.mxu0 0
          %1435 = vmatprep.subr.bf16.mxu0 0
          %1436 = vmatpush1.bf16.msra.mxu0 0
          %1437 = vmatprep.subr.bf16.mxu0 0
          %1438 = vmatpush1.bf16.msra.mxu0 0
          %1439 = vmatprep.subr.bf16.mxu0 0
          %1440 = vmatpush1.bf16.msra.mxu0 0
          %1441 = vmatprep.mubr.bf16.mxu0 0
          %1442 = vmatmul.mubr.bf16.gmra.mrb[0].mxu0 %v1407
          %v1443 = vpop.f32.mrb[0].mxu0
          %v1444 = vadd.f32 0.0, %v1443
          %v1445 = vpop.f32.mrb[0].mxu0
          %v1446 = vadd.f32 0.0, %v1445
          %v1447 = vpop.f32.mrb[0].mxu0
          %v1448 = vpop.f32.mrb[0].mxu0
          %1449 = vdwg.mxu0
          %1450 = vmatprep.subr.bf16.mxu0 %v1377
          %1451 = vmatpush1.bf16.msra.mxu0 %v1376
          %1452 = vmatprep.subr.bf16.mxu0 %v1381
          %1453 = vmatpush1.bf16.msra.mxu0 %v1380
          %1454 = vmatprep.subr.bf16.mxu0 %v1385
          %1455 = vmatpush1.bf16.msra.mxu0 %v1384
          %1456 = vmatprep.subr.bf16.mxu0 %v1389
          %1457 = vmatpush1.bf16.msra.mxu0 %v1388
          %1458 = vmatprep.subr.bf16.mxu0 0
          %1459 = vmatpush1.bf16.msra.mxu0 0
          %1460 = vmatprep.subr.bf16.mxu0 0
          %1461 = vmatpush1.bf16.msra.mxu0 0
          %1462 = vmatprep.subr.bf16.mxu0 0
          %1463 = vmatpush1.bf16.msra.mxu0 0
          %1464 = vmatprep.subr.bf16.mxu0 0
          %1465 = vmatpush1.bf16.msra.mxu0 0
          %1466 = vmatprep.subr.bf16.mxu0 0
          %1467 = vmatpush1.bf16.msra.mxu0 0
          %1468 = vmatprep.subr.bf16.mxu0 0
          %1469 = vmatpush1.bf16.msra.mxu0 0
          %1470 = vmatprep.subr.bf16.mxu0 0
          %1471 = vmatpush1.bf16.msra.mxu0 0
          %1472 = vmatprep.subr.bf16.mxu0 0
          %1473 = vmatpush1.bf16.msra.mxu0 0
          %1474 = vmatprep.subr.bf16.mxu0 0
          %1475 = vmatpush1.bf16.msra.mxu0 0
          %1476 = vmatprep.subr.bf16.mxu0 0
          %1477 = vmatpush1.bf16.msra.mxu0 0
          %1478 = vmatprep.subr.bf16.mxu0 0
          %1479 = vmatpush1.bf16.msra.mxu0 0
          %1480 = vmatprep.subr.bf16.mxu0 0
          %1481 = vmatpush1.bf16.msra.mxu0 0
          %1482 = vmatprep.mubr.bf16.mxu0 0
          %1483 = vmatmul.mubr.bf16.gmra.mrb[0].mxu0 %v1407
          %v1484 = vpop.f32.mrb[0].mxu0
          %v1485 = vadd.f32 0.0, %v1484
          %v1486 = vpop.f32.mrb[0].mxu0
          %v1487 = vadd.f32 0.0, %v1486
          %v1488 = vpop.f32.mrb[0].mxu0
          %v1489 = vpop.f32.mrb[0].mxu0
          %1490 = vdwg.mxu0
          %v1507 = vunpack.c.l.b16 %v1293
          %v1508 = vunpack.c.h.b16 %v1293
          %v1509 = vunpack.c.l.b16 %v1294
          %v1510 = vunpack.c.h.b16 %v1294
          %v1511 = vunpack.c.l.b16 %v1295
          %v1512 = vunpack.c.h.b16 %v1295
          %v1513 = vunpack.c.l.b16 %v1296
          %v1514 = vunpack.c.h.b16 %v1296
          %v1515 = vunpack.c.l.b16 %v1297
          %v1516 = vunpack.c.h.b16 %v1297
          %v1517 = vunpack.c.l.b16 %v1298
          %v1518 = vunpack.c.h.b16 %v1298
          %v1519 = vunpack.c.l.b16 %v1299
          %v1520 = vunpack.c.h.b16 %v1299
          %v1521 = vunpack.c.l.b16 %v1300
          %v1522 = vunpack.c.h.b16 %v1300
          %v1523 = vunpack.c.l.b16 %v1301
          %v1524 = vunpack.c.h.b16 %v1301
          %v1525 = vunpack.c.l.b16 %v1302
          %v1526 = vunpack.c.h.b16 %v1302
          %v1527 = vunpack.c.l.b16 %v1303
          %v1528 = vunpack.c.h.b16 %v1303
          %v1529 = vunpack.c.l.b16 %v1304
          %v1530 = vunpack.c.h.b16 %v1304
          %v1531 = vunpack.c.l.b16 %v1305
          %v1532 = vunpack.c.h.b16 %v1305
          %v1533 = vunpack.c.l.b16 %v1306
          %v1534 = vunpack.c.h.b16 %v1306
          %v1535 = vunpack.c.l.b16 %v1307
          %v1536 = vunpack.c.h.b16 %v1307
          %v1537 = vunpack.c.l.b16 %v1308
          %v1538 = vunpack.c.h.b16 %v1308
          %v1539 = vpack.c.b16 %v1511, %v1507
          %v1540 = vpack.c.b16 %v1512, %v1508
          %v1541 = vpack.c.b16 %v1513, %v1509
          %v1542 = vpack.c.b16 %v1514, %v1510
          %v1543 = vpack.c.b16 %v1519, %v1515
          %v1544 = vpack.c.b16 %v1520, %v1516
          %v1545 = vpack.c.b16 %v1521, %v1517
          %v1546 = vpack.c.b16 %v1522, %v1518
          %v1547 = vpack.c.b16 %v1527, %v1523
          %v1548 = vpack.c.b16 %v1528, %v1524
          %v1549 = vpack.c.b16 %v1529, %v1525
          %v1550 = vpack.c.b16 %v1530, %v1526
          %v1551 = vpack.c.b16 %v1535, %v1531
          %v1552 = vpack.c.b16 %v1536, %v1532
          %v1553 = vpack.c.b16 %v1537, %v1533
          %v1554 = vpack.c.b16 %v1538, %v1534
          %v1572 = vsel %vm823, %v1292, 0
          %1574 = vmatprep.subr.bf16.mxu0 %v1540
          %1575 = vmatpush1.bf16.msra.mxu0 %v1539
          %1576 = vmatprep.subr.bf16.mxu0 %v1544
          %1577 = vmatpush1.bf16.msra.mxu0 %v1543
          %1578 = vmatprep.subr.bf16.mxu0 %v1548
          %1579 = vmatpush1.bf16.msra.mxu0 %v1547
          %1580 = vmatprep.subr.bf16.mxu0 %v1552
          %1581 = vmatpush1.bf16.msra.mxu0 %v1551
          %1582 = vmatprep.subr.bf16.mxu0 0
          %1583 = vmatpush1.bf16.msra.mxu0 0
          %1584 = vmatprep.subr.bf16.mxu0 0
          %1585 = vmatpush1.bf16.msra.mxu0 0
          %1586 = vmatprep.subr.bf16.mxu0 0
          %1587 = vmatpush1.bf16.msra.mxu0 0
          %1588 = vmatprep.subr.bf16.mxu0 0
          %1589 = vmatpush1.bf16.msra.mxu0 0
          %1590 = vmatprep.subr.bf16.mxu0 0
          %1591 = vmatpush1.bf16.msra.mxu0 0
          %1592 = vmatprep.subr.bf16.mxu0 0
          %1593 = vmatpush1.bf16.msra.mxu0 0
          %1594 = vmatprep.subr.bf16.mxu0 0
          %1595 = vmatpush1.bf16.msra.mxu0 0
          %1596 = vmatprep.subr.bf16.mxu0 0
          %1597 = vmatpush1.bf16.msra.mxu0 0
          %1598 = vmatprep.subr.bf16.mxu0 0
          %1599 = vmatpush1.bf16.msra.mxu0 0
          %1600 = vmatprep.subr.bf16.mxu0 0
          %1601 = vmatpush1.bf16.msra.mxu0 0
          %1602 = vmatprep.subr.bf16.mxu0 0
          %1603 = vmatpush1.bf16.msra.mxu0 0
          %1604 = vmatprep.subr.bf16.mxu0 0
          %1605 = vmatpush1.bf16.msra.mxu0 0
          %1606 = vmatprep.mubr.bf16.mxu0 0
          %1607 = vmatmul.mubr.bf16.gmra.mrb[0].mxu0 %v1572
          %v1608 = vpop.f32.mrb[0].mxu0
          %v1609 = vadd.f32 %v1444, %v1608
          %v1610 = vpop.f32.mrb[0].mxu0
          %v1611 = vadd.f32 %v1446, %v1610
          %v1612 = vpop.f32.mrb[0].mxu0
          %v1613 = vpop.f32.mrb[0].mxu0
          %1614 = vdwg.mxu0
          %1615 = vmatprep.subr.bf16.mxu0 %v1542
          %1616 = vmatpush1.bf16.msra.mxu0 %v1541
          %1617 = vmatprep.subr.bf16.mxu0 %v1546
          %1618 = vmatpush1.bf16.msra.mxu0 %v1545
          %1619 = vmatprep.subr.bf16.mxu0 %v1550
          %1620 = vmatpush1.bf16.msra.mxu0 %v1549
          %1621 = vmatprep.subr.bf16.mxu0 %v1554
          %1622 = vmatpush1.bf16.msra.mxu0 %v1553
          %1623 = vmatprep.subr.bf16.mxu0 0
          %1624 = vmatpush1.bf16.msra.mxu0 0
          %1625 = vmatprep.subr.bf16.mxu0 0
          %1626 = vmatpush1.bf16.msra.mxu0 0
          %1627 = vmatprep.subr.bf16.mxu0 0
          %1628 = vmatpush1.bf16.msra.mxu0 0
          %1629 = vmatprep.subr.bf16.mxu0 0
          %1630 = vmatpush1.bf16.msra.mxu0 0
          %1631 = vmatprep.subr.bf16.mxu0 0
          %1632 = vmatpush1.bf16.msra.mxu0 0
          %1633 = vmatprep.subr.bf16.mxu0 0
          %1634 = vmatpush1.bf16.msra.mxu0 0
          %1635 = vmatprep.subr.bf16.mxu0 0
          %1636 = vmatpush1.bf16.msra.mxu0 0
          %1637 = vmatprep.subr.bf16.mxu0 0
          %1638 = vmatpush1.bf16.msra.mxu0 0
          %1639 = vmatprep.subr.bf16.mxu0 0
          %1640 = vmatpush1.bf16.msra.mxu0 0
          %1641 = vmatprep.subr.bf16.mxu0 0
          %1642 = vmatpush1.bf16.msra.mxu0 0
          %1643 = vmatprep.subr.bf16.mxu0 0
          %1644 = vmatpush1.bf16.msra.mxu0 0
          %1645 = vmatprep.subr.bf16.mxu0 0
          %1646 = vmatpush1.bf16.msra.mxu0 0
          %1647 = vmatprep.mubr.bf16.mxu0 0
          %1648 = vmatmul.mubr.bf16.gmra.mrb[0].mxu0 %v1572
          %v1649 = vpop.f32.mrb[0].mxu0
          %v1650 = vadd.f32 %v1485, %v1649
          %v1651 = vpop.f32.mrb[0].mxu0
          %v1652 = vadd.f32 %v1487, %v1651
          %v1653 = vpop.f32.mrb[0].mxu0
          %v1654 = vpop.f32.mrb[0].mxu0
          %1655 = vdwg.mxu0
          %v1656 = vld [vmem:[%s12] sm:$0xf]
          %v1658 = vlaneseq
          %v1659 = vshrl.u32 %v1658, 7
          %v1660 = vsub.s32 0, %v1659
          %v1661 = vrot.slane %v1656, %v1660
          %v1662 = vlaneseq
          %v1663 = vshrl.u32 %v1662, 7
          %v1664 = vsub.s32 1, %v1663
          %v1665 = vrot.slane %v1656, %v1664
          %v1666 = vlaneseq
          %v1667 = vshrl.u32 %v1666, 7
          %v1668 = vsub.s32 2, %v1667
          %v1669 = vrot.slane %v1656, %v1668
          %v1670 = vlaneseq
          %v1671 = vshrl.u32 %v1670, 7
          %v1672 = vsub.s32 3, %v1671
          %v1673 = vrot.slane %v1656, %v1672
          %v1678 = vmul.f32 %v1609, %v1661
          %v1679 = vmul.f32 %v1611, %v1665
          %v1680 = vmul.f32 %v1650, %v1669
          %v1681 = vmul.f32 %v1652, %v1673
          %v1682 = vld [vmem:[%s13] sm:$0xf]
          %v1684 = vlaneseq
          %v1685 = vshrl.u32 %v1684, 7
          %v1686 = vsub.s32 0, %v1685
          %v1687 = vrot.slane %v1682, %v1686
          %v1688 = vlaneseq
          %v1689 = vshrl.u32 %v1688, 7
          %v1690 = vsub.s32 1, %v1689
          %v1691 = vrot.slane %v1682, %v1690
          %v1692 = vlaneseq
          %v1693 = vshrl.u32 %v1692, 7
          %v1694 = vsub.s32 2, %v1693
          %v1695 = vrot.slane %v1682, %v1694
          %v1696 = vlaneseq
          %v1697 = vshrl.u32 %v1696, 7
          %v1698 = vsub.s32 3, %v1697
          %v1699 = vrot.slane %v1682, %v1698
          %v1704 = vadd.f32 %v1678, %v1687
          %v1705 = vadd.f32 %v1679, %v1691
          %v1706 = vadd.f32 %v1680, %v1695
          %v1707 = vadd.f32 %v1681, %v1699
          %v1708 = vmul.f32 %v1704, 0.2
          %v1709 = vmul.f32 %v1705, 0.2
          %v1710 = vmul.f32 %v1706, 0.2
          %v1711 = vmul.f32 %v1707, 0.2
          %v1712 = vmax.f32 %v1704, %v1708
          %v1713 = vmax.f32 %v1705, %v1709
          %v1714 = vmax.f32 %v1706, %v1710
          %v1715 = vmax.f32 %v1707, %v1711
          %v1716 = vpack.c.bf16 %v1712, %v1712
          %v1717 = vpack.c.bf16 %v1713, %v1713
          %v1718 = vpack.c.bf16 %v1714, %v1714
          %v1719 = vpack.c.bf16 %v1715, %v1715
          %v1720 = vld [vmem:[%s14] sm:$0xff]
          %v1721 = vld [vmem:[%s14 + $0x8] sm:$0xff]
          %v1722 = vld [vmem:[%s14 + $0x10] sm:$0xff]
          %v1723 = vld [vmem:[%s14 + $0x18] sm:$0xff]
          %v1724 = vld [vmem:[%s14 + $0x20] sm:$0xff]
          %v1725 = vld [vmem:[%s14 + $0x28] sm:$0xff]
          %v1726 = vld [vmem:[%s14 + $0x30] sm:$0xff]
          %v1727 = vld [vmem:[%s14 + $0x38] sm:$0xff]
          %v1728 = vld [vmem:[%s14 + $0x40] sm:$0xff]
          %v1729 = vld [vmem:[%s14 + $0x48] sm:$0xff]
          %v1730 = vld [vmem:[%s14 + $0x50] sm:$0xff]
          %v1731 = vld [vmem:[%s14 + $0x58] sm:$0xff]
          %v1732 = vld [vmem:[%s14 + $0x60] sm:$0xff]
          %v1733 = vld [vmem:[%s14 + $0x68] sm:$0xff]
          %v1734 = vld [vmem:[%s14 + $0x70] sm:$0xff]
          %v1735 = vld [vmem:[%s14 + $0x78] sm:$0xff]
          %v1736 = vld [vmem:[%s14 + $0x80] sm:$0xff]
          %v1737 = vld [vmem:[%s14 + $0x88] sm:$0xff]
          %v1738 = vld [vmem:[%s14 + $0x90] sm:$0xff]
          %v1739 = vld [vmem:[%s14 + $0x98] sm:$0xff]
          %v1740 = vld [vmem:[%s14 + $0xa0] sm:$0xff]
          %v1741 = vld [vmem:[%s14 + $0xa8] sm:$0xff]
          %v1742 = vld [vmem:[%s14 + $0xb0] sm:$0xff]
          %v1743 = vld [vmem:[%s14 + $0xb8] sm:$0xff]
          %v1744 = vld [vmem:[%s14 + $0xc0] sm:$0xff]
          %v1745 = vld [vmem:[%s14 + $0xc8] sm:$0xff]
          %v1746 = vld [vmem:[%s14 + $0xd0] sm:$0xff]
          %v1747 = vld [vmem:[%s14 + $0xd8] sm:$0xff]
          %v1748 = vld [vmem:[%s14 + $0xe0] sm:$0xff]
          %v1749 = vld [vmem:[%s14 + $0xe8] sm:$0xff]
          %v1750 = vld [vmem:[%s14 + $0xf0] sm:$0xff]
          %v1751 = vld [vmem:[%s14 + $0xf8] sm:$0xff]
          %v1752 = vld [vmem:[%s14 + $0x100] sm:$0xff]
          %v1753 = vld [vmem:[%s14 + $0x108] sm:$0xff]
          %v1754 = vld [vmem:[%s14 + $0x110] sm:$0xff]
          %v1755 = vld [vmem:[%s14 + $0x118] sm:$0xff]
          %v1756 = vld [vmem:[%s14 + $0x120] sm:$0xff]
          %v1757 = vld [vmem:[%s14 + $0x128] sm:$0xff]
          %v1758 = vld [vmem:[%s14 + $0x130] sm:$0xff]
          %v1759 = vld [vmem:[%s14 + $0x138] sm:$0xff]
          %v1760 = vld [vmem:[%s14 + $0x140] sm:$0xff]
          %v1761 = vld [vmem:[%s14 + $0x148] sm:$0xff]
          %v1762 = vld [vmem:[%s14 + $0x150] sm:$0xff]
          %v1763 = vld [vmem:[%s14 + $0x158] sm:$0xff]
          %v1764 = vld [vmem:[%s14 + $0x160] sm:$0xff]
          %v1765 = vld [vmem:[%s14 + $0x168] sm:$0xff]
          %v1766 = vld [vmem:[%s14 + $0x170] sm:$0xff]
          %v1767 = vld [vmem:[%s14 + $0x178] sm:$0xff]
          %v1768 = vld [vmem:[%s14 + $0x180] sm:$0xff]
          %v1769 = vld [vmem:[%s14 + $0x188] sm:$0xff]
          %v1770 = vld [vmem:[%s14 + $0x190] sm:$0xff]
          %v1771 = vld [vmem:[%s14 + $0x198] sm:$0xff]
          %v1772 = vld [vmem:[%s14 + $0x1a0] sm:$0xff]
          %v1773 = vld [vmem:[%s14 + $0x1a8] sm:$0xff]
          %v1774 = vld [vmem:[%s14 + $0x1b0] sm:$0xff]
          %v1775 = vld [vmem:[%s14 + $0x1b8] sm:$0xff]
          %v1776 = vld [vmem:[%s14 + $0x1c0] sm:$0xff]
          %v1777 = vld [vmem:[%s14 + $0x1c8] sm:$0xff]
          %v1778 = vld [vmem:[%s14 + $0x1d0] sm:$0xff]
          %v1779 = vld [vmem:[%s14 + $0x1d8] sm:$0xff]
          %v1780 = vld [vmem:[%s14 + $0x1e0] sm:$0xff]
          %v1781 = vld [vmem:[%s14 + $0x1e8] sm:$0xff]
          %v1782 = vld [vmem:[%s14 + $0x1f0] sm:$0xff]
          %v1783 = vld [vmem:[%s14 + $0x1f8] sm:$0xff]
          %v1784 = vld [vmem:[%s15] sm:$0x3]
          %v1849 = vunpack.c.l.b16 %v1720
          %v1850 = vunpack.c.h.b16 %v1720
          %v1851 = vunpack.c.l.b16 %v1721
          %v1852 = vunpack.c.h.b16 %v1721
          %v1853 = vunpack.c.l.b16 %v1722
          %v1854 = vunpack.c.h.b16 %v1722
          %v1855 = vunpack.c.l.b16 %v1723
          %v1856 = vunpack.c.h.b16 %v1723
          %v1857 = vunpack.c.l.b16 %v1724
          %v1858 = vunpack.c.h.b16 %v1724
          %v1859 = vunpack.c.l.b16 %v1725
          %v1860 = vunpack.c.h.b16 %v1725
          %v1861 = vunpack.c.l.b16 %v1726
          %v1862 = vunpack.c.h.b16 %v1726
          %v1863 = vunpack.c.l.b16 %v1727
          %v1864 = vunpack.c.h.b16 %v1727
          %v1865 = vunpack.c.l.b16 %v1728
          %v1866 = vunpack.c.h.b16 %v1728
          %v1867 = vunpack.c.l.b16 %v1729
          %v1868 = vunpack.c.h.b16 %v1729
          %v1869 = vunpack.c.l.b16 %v1730
          %v1870 = vunpack.c.h.b16 %v1730
          %v1871 = vunpack.c.l.b16 %v1731
          %v1872 = vunpack.c.h.b16 %v1731
          %v1873 = vunpack.c.l.b16 %v1732
          %v1874 = vunpack.c.h.b16 %v1732
          %v1875 = vunpack.c.l.b16 %v1733
          %v1876 = vunpack.c.h.b16 %v1733
          %v1877 = vunpack.c.l.b16 %v1734
          %v1878 = vunpack.c.h.b16 %v1734
          %v1879 = vunpack.c.l.b16 %v1735
          %v1880 = vunpack.c.h.b16 %v1735
          %v1881 = vunpack.c.l.b16 %v1736
          %v1882 = vunpack.c.h.b16 %v1736
          %v1883 = vunpack.c.l.b16 %v1737
          %v1884 = vunpack.c.h.b16 %v1737
          %v1885 = vunpack.c.l.b16 %v1738
          %v1886 = vunpack.c.h.b16 %v1738
          %v1887 = vunpack.c.l.b16 %v1739
          %v1888 = vunpack.c.h.b16 %v1739
          %v1889 = vunpack.c.l.b16 %v1740
          %v1890 = vunpack.c.h.b16 %v1740
          %v1891 = vunpack.c.l.b16 %v1741
          %v1892 = vunpack.c.h.b16 %v1741
          %v1893 = vunpack.c.l.b16 %v1742
          %v1894 = vunpack.c.h.b16 %v1742
          %v1895 = vunpack.c.l.b16 %v1743
          %v1896 = vunpack.c.h.b16 %v1743
          %v1897 = vunpack.c.l.b16 %v1744
          %v1898 = vunpack.c.h.b16 %v1744
          %v1899 = vunpack.c.l.b16 %v1745
          %v1900 = vunpack.c.h.b16 %v1745
          %v1901 = vunpack.c.l.b16 %v1746
          %v1902 = vunpack.c.h.b16 %v1746
          %v1903 = vunpack.c.l.b16 %v1747
          %v1904 = vunpack.c.h.b16 %v1747
          %v1905 = vunpack.c.l.b16 %v1748
          %v1906 = vunpack.c.h.b16 %v1748
          %v1907 = vunpack.c.l.b16 %v1749
          %v1908 = vunpack.c.h.b16 %v1749
          %v1909 = vunpack.c.l.b16 %v1750
          %v1910 = vunpack.c.h.b16 %v1750
          %v1911 = vunpack.c.l.b16 %v1751
          %v1912 = vunpack.c.h.b16 %v1751
          %v1913 = vunpack.c.l.b16 %v1752
          %v1914 = vunpack.c.h.b16 %v1752
          %v1915 = vunpack.c.l.b16 %v1753
          %v1916 = vunpack.c.h.b16 %v1753
          %v1917 = vunpack.c.l.b16 %v1754
          %v1918 = vunpack.c.h.b16 %v1754
          %v1919 = vunpack.c.l.b16 %v1755
          %v1920 = vunpack.c.h.b16 %v1755
          %v1921 = vunpack.c.l.b16 %v1756
          %v1922 = vunpack.c.h.b16 %v1756
          %v1923 = vunpack.c.l.b16 %v1757
          %v1924 = vunpack.c.h.b16 %v1757
          %v1925 = vunpack.c.l.b16 %v1758
          %v1926 = vunpack.c.h.b16 %v1758
          %v1927 = vunpack.c.l.b16 %v1759
          %v1928 = vunpack.c.h.b16 %v1759
          %v1929 = vunpack.c.l.b16 %v1760
          %v1930 = vunpack.c.h.b16 %v1760
          %v1931 = vunpack.c.l.b16 %v1761
          %v1932 = vunpack.c.h.b16 %v1761
          %v1933 = vunpack.c.l.b16 %v1762
          %v1934 = vunpack.c.h.b16 %v1762
          %v1935 = vunpack.c.l.b16 %v1763
          %v1936 = vunpack.c.h.b16 %v1763
          %v1937 = vunpack.c.l.b16 %v1764
          %v1938 = vunpack.c.h.b16 %v1764
          %v1939 = vunpack.c.l.b16 %v1765
          %v1940 = vunpack.c.h.b16 %v1765
          %v1941 = vunpack.c.l.b16 %v1766
          %v1942 = vunpack.c.h.b16 %v1766
          %v1943 = vunpack.c.l.b16 %v1767
          %v1944 = vunpack.c.h.b16 %v1767
          %v1945 = vunpack.c.l.b16 %v1768
          %v1946 = vunpack.c.h.b16 %v1768
          %v1947 = vunpack.c.l.b16 %v1769
          %v1948 = vunpack.c.h.b16 %v1769
          %v1949 = vunpack.c.l.b16 %v1770
          %v1950 = vunpack.c.h.b16 %v1770
          %v1951 = vunpack.c.l.b16 %v1771
          %v1952 = vunpack.c.h.b16 %v1771
          %v1953 = vunpack.c.l.b16 %v1772
          %v1954 = vunpack.c.h.b16 %v1772
          %v1955 = vunpack.c.l.b16 %v1773
          %v1956 = vunpack.c.h.b16 %v1773
          %v1957 = vunpack.c.l.b16 %v1774
          %v1958 = vunpack.c.h.b16 %v1774
          %v1959 = vunpack.c.l.b16 %v1775
          %v1960 = vunpack.c.h.b16 %v1775
          %v1961 = vunpack.c.l.b16 %v1776
          %v1962 = vunpack.c.h.b16 %v1776
          %v1963 = vunpack.c.l.b16 %v1777
          %v1964 = vunpack.c.h.b16 %v1777
          %v1965 = vunpack.c.l.b16 %v1778
          %v1966 = vunpack.c.h.b16 %v1778
          %v1967 = vunpack.c.l.b16 %v1779
          %v1968 = vunpack.c.h.b16 %v1779
          %v1969 = vunpack.c.l.b16 %v1780
          %v1970 = vunpack.c.h.b16 %v1780
          %v1971 = vunpack.c.l.b16 %v1781
          %v1972 = vunpack.c.h.b16 %v1781
          %v1973 = vunpack.c.l.b16 %v1782
          %v1974 = vunpack.c.h.b16 %v1782
          %v1975 = vunpack.c.l.b16 %v1783
          %v1976 = vunpack.c.h.b16 %v1783
          %v1977 = vpack.c.b16 %v1851, %v1849
          %v1978 = vpack.c.b16 %v1852, %v1850
          %v1979 = vpack.c.b16 %v1855, %v1853
          %v1980 = vpack.c.b16 %v1856, %v1854
          %v1981 = vpack.c.b16 %v1859, %v1857
          %v1982 = vpack.c.b16 %v1860, %v1858
          %v1983 = vpack.c.b16 %v1863, %v1861
          %v1984 = vpack.c.b16 %v1864, %v1862
          %v1985 = vpack.c.b16 %v1867, %v1865
          %v1986 = vpack.c.b16 %v1868, %v1866
          %v1987 = vpack.c.b16 %v1871, %v1869
          %v1988 = vpack.c.b16 %v1872, %v1870
          %v1989 = vpack.c.b16 %v1875, %v1873
          %v1990 = vpack.c.b16 %v1876, %v1874
          %v1991 = vpack.c.b16 %v1879, %v1877
          %v1992 = vpack.c.b16 %v1880, %v1878
          %v1993 = vpack.c.b16 %v1883, %v1881
          %v1994 = vpack.c.b16 %v1884, %v1882
          %v1995 = vpack.c.b16 %v1887, %v1885
          %v1996 = vpack.c.b16 %v1888, %v1886
          %v1997 = vpack.c.b16 %v1891, %v1889
          %v1998 = vpack.c.b16 %v1892, %v1890
          %v1999 = vpack.c.b16 %v1895, %v1893
          %v2000 = vpack.c.b16 %v1896, %v1894
          %v2001 = vpack.c.b16 %v1899, %v1897
          %v2002 = vpack.c.b16 %v1900, %v1898
          %v2003 = vpack.c.b16 %v1903, %v1901
          %v2004 = vpack.c.b16 %v1904, %v1902
          %v2005 = vpack.c.b16 %v1907, %v1905
          %v2006 = vpack.c.b16 %v1908, %v1906
          %v2007 = vpack.c.b16 %v1911, %v1909
          %v2008 = vpack.c.b16 %v1912, %v1910
          %v2009 = vpack.c.b16 %v1915, %v1913
          %v2010 = vpack.c.b16 %v1916, %v1914
          %v2011 = vpack.c.b16 %v1919, %v1917
          %v2012 = vpack.c.b16 %v1920, %v1918
          %v2013 = vpack.c.b16 %v1923, %v1921
          %v2014 = vpack.c.b16 %v1924, %v1922
          %v2015 = vpack.c.b16 %v1927, %v1925
          %v2016 = vpack.c.b16 %v1928, %v1926
          %v2017 = vpack.c.b16 %v1931, %v1929
          %v2018 = vpack.c.b16 %v1932, %v1930
          %v2019 = vpack.c.b16 %v1935, %v1933
          %v2020 = vpack.c.b16 %v1936, %v1934
          %v2021 = vpack.c.b16 %v1939, %v1937
          %v2022 = vpack.c.b16 %v1940, %v1938
          %v2023 = vpack.c.b16 %v1943, %v1941
          %v2024 = vpack.c.b16 %v1944, %v1942
          %v2025 = vpack.c.b16 %v1947, %v1945
          %v2026 = vpack.c.b16 %v1948, %v1946
          %v2027 = vpack.c.b16 %v1951, %v1949
          %v2028 = vpack.c.b16 %v1952, %v1950
          %v2029 = vpack.c.b16 %v1955, %v1953
          %v2030 = vpack.c.b16 %v1956, %v1954
          %v2031 = vpack.c.b16 %v1959, %v1957
          %v2032 = vpack.c.b16 %v1960, %v1958
          %v2033 = vpack.c.b16 %v1963, %v1961
          %v2034 = vpack.c.b16 %v1964, %v1962
          %v2035 = vpack.c.b16 %v1967, %v1965
          %v2036 = vpack.c.b16 %v1968, %v1966
          %v2037 = vpack.c.b16 %v1971, %v1969
          %v2038 = vpack.c.b16 %v1972, %v1970
          %v2039 = vpack.c.b16 %v1975, %v1973
          %v2040 = vpack.c.b16 %v1976, %v1974
          %v2106 = vlaneseq
          %v2107 = vshrl.u32 %v2106, 7
          %v2108 = vsub.s32 0, %v2107
          %v2109 = vrot.slane %v1784, %v2108
          %v2110 = vlaneseq
          %v2111 = vshrl.u32 %v2110, 7
          %v2112 = vsub.s32 1, %v2111
          %v2113 = vrot.slane %v1784, %v2112
          %2116 = vmatprep.subr.bf16.mxu0 %v1978
          %2117 = vmatpush1.bf16.msra.mxu0 %v1977
          %2118 = vmatprep.subr.bf16.mxu0 %v1980
          %2119 = vmatpush1.bf16.msra.mxu0 %v1979
          %2120 = vmatprep.subr.bf16.mxu0 %v1982
          %2121 = vmatpush1.bf16.msra.mxu0 %v1981
          %2122 = vmatprep.subr.bf16.mxu0 %v1984
          %2123 = vmatpush1.bf16.msra.mxu0 %v1983
          %2124 = vmatprep.subr.bf16.mxu0 %v1986
          %2125 = vmatpush1.bf16.msra.mxu0 %v1985
          %2126 = vmatprep.subr.bf16.mxu0 %v1988
          %2127 = vmatpush1.bf16.msra.mxu0 %v1987
          %2128 = vmatprep.subr.bf16.mxu0 %v1990
          %2129 = vmatpush1.bf16.msra.mxu0 %v1989
          %2130 = vmatprep.subr.bf16.mxu0 %v1992
          %2131 = vmatpush1.bf16.msra.mxu0 %v1991
          %2132 = vmatprep.subr.bf16.mxu0 %v1994
          %2133 = vmatpush1.bf16.msra.mxu0 %v1993
          %2134 = vmatprep.subr.bf16.mxu0 %v1996
          %2135 = vmatpush1.bf16.msra.mxu0 %v1995
          %2136 = vmatprep.subr.bf16.mxu0 %v1998
          %2137 = vmatpush1.bf16.msra.mxu0 %v1997
          %2138 = vmatprep.subr.bf16.mxu0 %v2000
          %2139 = vmatpush1.bf16.msra.mxu0 %v1999
          %2140 = vmatprep.subr.bf16.mxu0 %v2002
          %2141 = vmatpush1.bf16.msra.mxu0 %v2001
          %2142 = vmatprep.subr.bf16.mxu0 %v2004
          %2143 = vmatpush1.bf16.msra.mxu0 %v2003
          %2144 = vmatprep.subr.bf16.mxu0 %v2006
          %2145 = vmatpush1.bf16.msra.mxu0 %v2005
          %2146 = vmatprep.subr.bf16.mxu0 %v2008
          %2147 = vmatpush1.bf16.msra.mxu0 %v2007
          %2148 = vmatprep.mubr.bf16.mxu0 %v1717
          %2149 = vmatmul.mubr.bf16.gmra.mrb[0].mxu0 %v1716
          %v2150 = vpop.f32.mrb[0].mxu0
          %v2151 = vadd.f32 %v2109, %v2150
          %v2152 = vpop.f32.mrb[0].mxu0
          %v2153 = vadd.f32 %v2113, %v2152
          %v2154 = vpop.f32.mrb[0].mxu0
          %v2155 = vpop.f32.mrb[0].mxu0
          %2156 = vdwg.mxu0
          %2157 = vmatprep.subr.bf16.mxu0 %v2010
          %2158 = vmatpush1.bf16.msra.mxu0 %v2009
          %2159 = vmatprep.subr.bf16.mxu0 %v2012
          %2160 = vmatpush1.bf16.msra.mxu0 %v2011
          %2161 = vmatprep.subr.bf16.mxu0 %v2014
          %2162 = vmatpush1.bf16.msra.mxu0 %v2013
          %2163 = vmatprep.subr.bf16.mxu0 %v2016
          %2164 = vmatpush1.bf16.msra.mxu0 %v2015
          %2165 = vmatprep.subr.bf16.mxu0 %v2018
          %2166 = vmatpush1.bf16.msra.mxu0 %v2017
          %2167 = vmatprep.subr.bf16.mxu0 %v2020
          %2168 = vmatpush1.bf16.msra.mxu0 %v2019
          %2169 = vmatprep.subr.bf16.mxu0 %v2022
          %2170 = vmatpush1.bf16.msra.mxu0 %v2021
          %2171 = vmatprep.subr.bf16.mxu0 %v2024
          %2172 = vmatpush1.bf16.msra.mxu0 %v2023
          %2173 = vmatprep.subr.bf16.mxu0 %v2026
          %2174 = vmatpush1.bf16.msra.mxu0 %v2025
          %2175 = vmatprep.subr.bf16.mxu0 %v2028
          %2176 = vmatpush1.bf16.msra.mxu0 %v2027
          %2177 = vmatprep.subr.bf16.mxu0 %v2030
          %2178 = vmatpush1.bf16.msra.mxu0 %v2029
          %2179 = vmatprep.subr.bf16.mxu0 %v2032
          %2180 = vmatpush1.bf16.msra.mxu0 %v2031
          %2181 = vmatprep.subr.bf16.mxu0 %v2034
          %2182 = vmatpush1.bf16.msra.mxu0 %v2033
          %2183 = vmatprep.subr.bf16.mxu0 %v2036
          %2184 = vmatpush1.bf16.msra.mxu0 %v2035
          %2185 = vmatprep.subr.bf16.mxu0 %v2038
          %2186 = vmatpush1.bf16.msra.mxu0 %v2037
          %2187 = vmatprep.subr.bf16.mxu0 %v2040
          %2188 = vmatpush1.bf16.msra.mxu0 %v2039
          %2189 = vmatprep.mubr.bf16.mxu0 %v1719
          %2190 = vmatmul.mubr.bf16.gmra.mrb[0].mxu0 %v1718
          %v2191 = vpop.f32.mrb[0].mxu0
          %v2192 = vadd.f32 %v2151, %v2191
          %v2193 = vpop.f32.mrb[0].mxu0
          %v2194 = vadd.f32 %v2153, %v2193
          %v2195 = vpop.f32.mrb[0].mxu0
          %v2196 = vpop.f32.mrb[0].mxu0
          %2197 = vdwg.mxu0
          %v2198 = vld [vmem:[%s16] sm:$0x3]
          %v2200 = vlaneseq
          %v2201 = vshrl.u32 %v2200, 7
          %v2202 = vsub.s32 0, %v2201
          %v2203 = vrot.slane %v2198, %v2202
          %v2204 = vlaneseq
          %v2205 = vshrl.u32 %v2204, 7
          %v2206 = vsub.s32 1, %v2205
          %v2207 = vrot.slane %v2198, %v2206
          %v2210 = vmul.f32 %v2192, %v2203
          %v2211 = vmul.f32 %v2194, %v2207
          %v2212 = vld [vmem:[%s17] sm:$0x3]
          %v2214 = vlaneseq
          %v2215 = vshrl.u32 %v2214, 7
          %v2216 = vsub.s32 0, %v2215
          %v2217 = vrot.slane %v2212, %v2216
          %v2218 = vlaneseq
          %v2219 = vshrl.u32 %v2218, 7
          %v2220 = vsub.s32 1, %v2219
          %v2221 = vrot.slane %v2212, %v2220
          %v2224 = vadd.f32 %v2210, %v2217
          %v2225 = vadd.f32 %v2211, %v2221
          %v2226 = vmul.f32 %v2224, 0.2
          %v2227 = vmul.f32 %v2225, 0.2
          %v2228 = vmax.f32 %v2224, %v2226
          %v2229 = vmax.f32 %v2225, %v2227
          %v2230 = vpack.c.bf16 %v2228, %v2228
          %v2231 = vpack.c.bf16 %v2229, %v2229
          %v2232 = vld [vmem:[%s18] sm:$0xf]
          %v2233 = vld [vmem:[%s18 + $0x4] sm:$0xf]
          %v2234 = vld [vmem:[%s18 + $0x8] sm:$0xf]
          %v2235 = vld [vmem:[%s18 + $0xc] sm:$0xf]
          %v2236 = vld [vmem:[%s18 + $0x10] sm:$0xf]
          %v2237 = vld [vmem:[%s18 + $0x14] sm:$0xf]
          %v2238 = vld [vmem:[%s18 + $0x18] sm:$0xf]
          %v2239 = vld [vmem:[%s18 + $0x1c] sm:$0xf]
          %v2240 = vld [vmem:[%s18 + $0x20] sm:$0xf]
          %v2241 = vld [vmem:[%s18 + $0x24] sm:$0xf]
          %v2242 = vld [vmem:[%s18 + $0x28] sm:$0xf]
          %v2243 = vld [vmem:[%s18 + $0x2c] sm:$0xf]
          %v2244 = vld [vmem:[%s18 + $0x30] sm:$0xf]
          %v2245 = vld [vmem:[%s18 + $0x34] sm:$0xf]
          %v2246 = vld [vmem:[%s18 + $0x38] sm:$0xf]
          %v2247 = vld [vmem:[%s18 + $0x3c] sm:$0xf]
          %v2248 = vld [vmem:[%s18 + $0x40] sm:$0xf]
          %v2249 = vld [vmem:[%s18 + $0x44] sm:$0xf]
          %v2250 = vld [vmem:[%s18 + $0x48] sm:$0xf]
          %v2251 = vld [vmem:[%s18 + $0x4c] sm:$0xf]
          %v2252 = vld [vmem:[%s18 + $0x50] sm:$0xf]
          %v2253 = vld [vmem:[%s18 + $0x54] sm:$0xf]
          %v2254 = vld [vmem:[%s18 + $0x58] sm:$0xf]
          %v2255 = vld [vmem:[%s18 + $0x5c] sm:$0xf]
          %v2256 = vld [vmem:[%s18 + $0x60] sm:$0xf]
          %v2257 = vld [vmem:[%s18 + $0x64] sm:$0xf]
          %v2258 = vld [vmem:[%s18 + $0x68] sm:$0xf]
          %v2259 = vld [vmem:[%s18 + $0x6c] sm:$0xf]
          %v2260 = vld [vmem:[%s18 + $0x70] sm:$0xf]
          %v2261 = vld [vmem:[%s18 + $0x74] sm:$0xf]
          %v2262 = vld [vmem:[%s18 + $0x78] sm:$0xf]
          %v2263 = vld [vmem:[%s18 + $0x7c] sm:$0xf]
          %v2264 = vld [vmem:[%s19] sm:$0x1]
          %v2297 = vunpack.c.l.b16 %v2232
          %v2298 = vunpack.c.l.b16 %v2233
          %v2299 = vunpack.c.l.b16 %v2234
          %v2300 = vunpack.c.l.b16 %v2235
          %v2301 = vunpack.c.l.b16 %v2236
          %v2302 = vunpack.c.l.b16 %v2237
          %v2303 = vunpack.c.l.b16 %v2238
          %v2304 = vunpack.c.l.b16 %v2239
          %v2305 = vunpack.c.l.b16 %v2240
          %v2306 = vunpack.c.l.b16 %v2241
          %v2307 = vunpack.c.l.b16 %v2242
          %v2308 = vunpack.c.l.b16 %v2243
          %v2309 = vunpack.c.l.b16 %v2244
          %v2310 = vunpack.c.l.b16 %v2245
          %v2311 = vunpack.c.l.b16 %v2246
          %v2312 = vunpack.c.l.b16 %v2247
          %v2313 = vunpack.c.l.b16 %v2248
          %v2314 = vunpack.c.l.b16 %v2249
          %v2315 = vunpack.c.l.b16 %v2250
          %v2316 = vunpack.c.l.b16 %v2251
          %v2317 = vunpack.c.l.b16 %v2252
          %v2318 = vunpack.c.l.b16 %v2253
          %v2319 = vunpack.c.l.b16 %v2254
          %v2320 = vunpack.c.l.b16 %v2255
          %v2321 = vunpack.c.l.b16 %v2256
          %v2322 = vunpack.c.l.b16 %v2257
          %v2323 = vunpack.c.l.b16 %v2258
          %v2324 = vunpack.c.l.b16 %v2259
          %v2325 = vunpack.c.l.b16 %v2260
          %v2326 = vunpack.c.l.b16 %v2261
          %v2327 = vunpack.c.l.b16 %v2262
          %v2328 = vunpack.c.l.b16 %v2263
          %v2329 = vpack.c.b16 %v2298, %v2297
          %v2330 = vpack.c.b16 %v2300, %v2299
          %v2331 = vpack.c.b16 %v2302, %v2301
          %v2332 = vpack.c.b16 %v2304, %v2303
          %v2333 = vpack.c.b16 %v2306, %v2305
          %v2334 = vpack.c.b16 %v2308, %v2307
          %v2335 = vpack.c.b16 %v2310, %v2309
          %v2336 = vpack.c.b16 %v2312, %v2311
          %v2337 = vpack.c.b16 %v2314, %v2313
          %v2338 = vpack.c.b16 %v2316, %v2315
          %v2339 = vpack.c.b16 %v2318, %v2317
          %v2340 = vpack.c.b16 %v2320, %v2319
          %v2341 = vpack.c.b16 %v2322, %v2321
          %v2342 = vpack.c.b16 %v2324, %v2323
          %v2343 = vpack.c.b16 %v2326, %v2325
          %v2344 = vpack.c.b16 %v2328, %v2327
          %2361 = vmatprep.subr.bf16.mxu0 0
          %2362 = vmatpush1.bf16.msra.mxu0 %v2329
          %2363 = vmatprep.subr.bf16.mxu0 0
          %2364 = vmatpush1.bf16.msra.mxu0 %v2330
          %2365 = vmatprep.subr.bf16.mxu0 0
          %2366 = vmatpush1.bf16.msra.mxu0 %v2331
          %2367 = vmatprep.subr.bf16.mxu0 0
          %2368 = vmatpush1.bf16.msra.mxu0 %v2332
          %2369 = vmatprep.subr.bf16.mxu0 0
          %2370 = vmatpush1.bf16.msra.mxu0 %v2333
          %2371 = vmatprep.subr.bf16.mxu0 0
          %2372 = vmatpush1.bf16.msra.mxu0 %v2334
          %2373 = vmatprep.subr.bf16.mxu0 0
          %2374 = vmatpush1.bf16.msra.mxu0 %v2335
          %2375 = vmatprep.subr.bf16.mxu0 0
          %2376 = vmatpush1.bf16.msra.mxu0 %v2336
          %2377 = vmatprep.subr.bf16.mxu0 0
          %2378 = vmatpush1.bf16.msra.mxu0 %v2337
          %2379 = vmatprep.subr.bf16.mxu0 0
          %2380 = vmatpush1.bf16.msra.mxu0 %v2338
          %2381 = vmatprep.subr.bf16.mxu0 0
          %2382 = vmatpush1.bf16.msra.mxu0 %v2339
          %2383 = vmatprep.subr.bf16.mxu0 0
          %2384 = vmatpush1.bf16.msra.mxu0 %v2340
          %2385 = vmatprep.subr.bf16.mxu0 0
          %2386 = vmatpush1.bf16.msra.mxu0 %v2341
          %2387 = vmatprep.subr.bf16.mxu0 0
          %2388 = vmatpush1.bf16.msra.mxu0 %v2342
          %2389 = vmatprep.subr.bf16.mxu0 0
          %2390 = vmatpush1.bf16.msra.mxu0 %v2343
          %2391 = vmatprep.subr.bf16.mxu0 0
          %2392 = vmatpush1.bf16.msra.mxu0 %v2344
          %2393 = vmatprep.mubr.bf16.mxu0 %v2231
          %2394 = vmatmul.mubr.bf16.gmra.mrb[0].mxu0 %v2230
          %v2395 = vpop.f32.mrb[0].mxu0
          %v2396 = vadd.f32 %v2264, %v2395
          %v2397 = vpop.f32.mrb[0].mxu0
          %v2398 = vpop.f32.mrb[0].mxu0
          %v2399 = vpop.f32.mrb[0].mxu0
          %2400 = vdwg.mxu0
          %vm2401 = vcmask 57344
          %2402 = vst.msk [vmem:[%s724] sm:$0x1] %vm2401, %v2396
        $region108: #{dgcnn_forward.17} parent=99 // pred_fallthru
          _
        %s2403 = sand.u32 %s502, 1
        %s2404 = scalar_lea.sflag [#allocation5], %s2403
        %s2405 = sand.u32 %s502, 1
        %s2406 = scalar_lea.vmem [#allocation4], %s2405
        // Predicated region
        $region109: #{dgcnn_forward.17} parent=99 // pred_check
          %p2407 = pneg %p512
        $region110: #{dgcnn_forward.17} parent=99 // pred_check_branch
          %2409 = sbr.rel (%p2407) target = $region112
        $region111: #{dgcnn_forward.17} parent=99 // pred_region
          %s2411 = ssub.s32 16, 16
          %2412 = vsyncadd %s2404, %s2411
          %s2413 = smul.addr %s38, 16
          %s2414 = scalar_lea.hbm %s20, %s2413
          %s2416 = sshll.u32 %s2406, 4
          %s2417 = int_to_ptr.vmem [resolvable:$true] %s2416
          %2419 = dma.vmem_to_hbm [thread:$0]  %s2417, 16, %s2414, %s2404
        $region112: #{dgcnn_forward.17} parent=99 // pred_fallthru
          _
      $region100: #{dgcnn_forward.17} parent=5 // pred_fallthru
        _
      %p2420 = scmp.le.s32.totalorder 2, %s29
      // Predicated region
      $region113: #{dgcnn_forward.17} parent=5 // pred_check
        %p2421 = pneg %p2420
      $region114: #{dgcnn_forward.17} parent=5 // pred_check_branch
        %2423 = sbr.rel (%p2421) target = $region116
      $region115: #{dgcnn_forward.17} parent=5 // pred_region
        %s2424 = ssub.s32 %s29, 2
        // Predicated region
        $region117: #{dgcnn_forward.17} parent=115 // pred_check
          %p2425 = pneg %p518
        $region118: #{dgcnn_forward.17} parent=115 // pred_check_branch
          %2427 = sbr.rel (%p2425) target = $region120
        $region119: #{dgcnn_forward.17} parent=115 // pred_region
          %s2428 = sand.u32 %s503, 1
          %s2429 = scalar_lea.sflag [#allocation5], %s2428
          %s2430 = sand.u32 %s503, 1
          %s2431 = scalar_lea.vmem [#allocation4], %s2430
          %2432 = dma.done %s2429, 16
        $region120: #{dgcnn_forward.17} parent=115 // pred_fallthru
          _
      $region116: #{dgcnn_forward.17} parent=5 // pred_fallthru
        _
    $region6: #{dgcnn_forward.17} parent=1 // loop_footer
      %s33 = sadd.s32 1, %s29
    $region7: #{dgcnn_forward.17} parent=1 // loop_footer_branch
      %28 = sbr.rel target = $region3
    $region8: #{dgcnn_forward.17} parent=1 // loop_exit
      _
    %2433 = vsyncpa [#allocation5], 1
    %s2434 = scalar_lea.sflag [#allocation5], 1
    %2435 = vsyncpa %s2434, 1

</llo_original>
